<compile_context>
chip_gen: v5e
topology: v5e:2x2
jax: 0.10.0
libtpu: 0.0.40
codegen_flags: <defaults>
</compile_context>

<pallas_src>
import functools
import math

import jax
import jax.numpy as jnp
from jax.experimental import pallas as pl
from jax.experimental.pallas import tpu as pltpu


# TODO(synk): `build_activation(activation)` is not provided in the source
# module; ReLU is used as the activation here.
def _act(v):
    return jnp.maximum(v, 0.0)


def _elementwise_dtype():
    """bf16 elementwise math on VPUs that support it (v6e / v7x), f32 otherwise."""
    try:
        kind = jax.devices()[0].device_kind.lower()
    except Exception:
        return jnp.float32
    if any(tag in kind for tag in ("v2", "v3", "v4", "v5")):
        return jnp.float32   # v5e & older: no bf16 VALU -> keep f32 elementwise
    return jnp.bfloat16       # v6e / v7x: packed bf16 VPU, 2x smaller temporaries


def _choose_b_tile(T, B, C):
    """Batch tile: sublane aligned (16 or 8) so the depthwise time-shift is a
    whole-sublane-group row shift, >=2 grid steps when possible (pipelining +
    megacore), and an f32 input tile <= ~2 MiB so the resident set stays well
    inside v7x's 64 MiB VMEM with double buffering and in-kernel temporaries."""
    budget = 2 * 1024 * 1024
    if B % 16 == 0 and B // 16 >= 2 and T * 16 * C * 4 <= budget:
        bt = 16
        while B % (bt * 2) == 0 and B // (bt * 2) >= 2 and T * bt * 2 * C * 4 <= budget:
            bt *= 2
        return bt
    if B % 8 == 0 and B // 8 >= 2 and T * 8 * C * 4 <= budget:
        return 8
    # TODO(synk): for small B with very long T, tile along T with a 2*(k//2)
    # halo of raw input (manual DMA) instead; whole-batch single tile here.
    return B


def enc_sep_conv_kernel(x_ref, ln_w_ref, ln_b_ref,
                        dw1_ref, pw1_ref, pw1b_ref,
                        dw2_ref, pw2_ref, pw2b_ref,
                        o_ref, acc_ref, *, k, ew_dtype):
    T, BT, C = x_ref.shape
    TB = T * BT
    pad = k // 2

    # Flatten (T, BT, C) -> (T*BT, C).  BT is a multiple of 8 in the tiled
    # path, so sublane groups line up and this is a pure re-view.
    x = x_ref[...].reshape(TB, C).astype(jnp.float32)

    # LayerNorm over channels (eps=1e-6, elementwise affine), stats in f32.
    mean = jnp.mean(x, axis=-1, keepdims=True)
    xc = x - mean
    var = jnp.mean(xc * xc, axis=-1, keepdims=True)
    y = xc * jax.lax.rsqrt(var + 1e-6)
    y = (y * ln_w_ref[0, :] + ln_b_ref[0, :]).astype(ew_dtype)
    del x, xc  # do not keep the residual live across both convs

    # TODO(synk): encoder_padding_mask is assumed None (no masked_fill).
    # TODO(synk): dropout is identity (eval mode).

    def sep_conv(y, dw_ref, pw_ref, pwb_ref):
        # Depthwise conv along T.  A time shift of (j - pad) steps is a row
        # shift of (j - pad) * BT in the flattened layout; rows shifted past
        # the tile edge are exactly Conv1d's zero padding, so each tap only
        # touches its valid row range: slice-accumulate into a VMEM scratch,
        # no zero-padded concat copies.
        dw = dw_ref[...]                                  # (k, C), ew_dtype
        acc_ref[...] = y * dw[pad, :]                     # centre tap
        for j in range(k):
            if j == pad:
                continue
            d = (j - pad) * BT                            # static, multiple of BT
            n = TB - abs(d)
            dst = max(-d, 0)
            src = max(d, 0)
            acc_ref[pl.ds(dst, n), :] = (acc_ref[pl.ds(dst, n), :]
                                         + y[src:src + n, :] * dw[j, :])
        # Pointwise 1x1 conv: one big MXU matmul, bf16 inputs, f32 accumulate.
        out = jnp.dot(acc_ref[...].astype(jnp.bfloat16), pw_ref[...],
                      preferred_element_type=jnp.float32)
        return out + pwb_ref[0, :]

    y = _act(sep_conv(y, dw1_ref, pw1_ref, pw1b_ref)).astype(ew_dtype)
    y = _act(sep_conv(y, dw2_ref, pw2_ref, pw2b_ref))     # stays f32

    # Residual: re-read the input tile instead of holding it live; add in f32.
    o_ref[...] = (x_ref[...].astype(jnp.float32)
                  + y.reshape(T, BT, C)).astype(o_ref.dtype)


@functools.partial(jax.jit, static_argnames=("kernel_size",))
def enc_sep_conv_layer(x_tbc, ops, kernel_size):
    """x_tbc: (T, B, C) float32; ops from prepare_operands(); returns (T, B, C)."""
    T, B, C = x_tbc.shape
    k = kernel_size
    # TODO(synk): even kernel_size changes the output length in the PyTorch
    # reference (padding=k//2 gives T+1); only odd k is supported here.
    assert k % 2 == 1 and T > k // 2

    b_tile = _choose_b_tile(T, B, C)
    grid = (B // b_tile,)
    ew_dtype = ops["dw1"].dtype

    xo_spec = pl.BlockSpec((T, b_tile, C), lambda i: (0, i, 0))
    const = lambda i: (0, 0)   # grid-invariant weight / bias operands

    flops = (4 * T * B * C * C          # two pointwise matmuls
             + 4 * k * T * B * C        # two depthwise convs
             + 12 * T * B * C)          # LayerNorm / ReLU / residual
    cost = pl.CostEstimate(
        flops=flops,
        transcendentals=T * B,          # one rsqrt per row
        bytes_accessed=2 * T * B * C * 4 + 2 * C * C * 2 + (2 * k + 6) * C * 4)

    return pl.pallas_call(
        functools.partial(enc_sep_conv_kernel, k=k, ew_dtype=ew_dtype),
        out_shape=jax.ShapeDtypeStruct((T, B, C), x_tbc.dtype),
        grid=grid,
        in_specs=[
            xo_spec,                              # x tile (T, b_tile, C)
            pl.BlockSpec((1, C), const),          # ln_w
            pl.BlockSpec((1, C), const),          # ln_b
            pl.BlockSpec((k, C), const),          # dw1 (ew_dtype)
            pl.BlockSpec((C, C), const),          # pw1 (bf16)
            pl.BlockSpec((1, C), const),          # pw1_b
            pl.BlockSpec((k, C), const),          # dw2 (ew_dtype)
            pl.BlockSpec((C, C), const),          # pw2 (bf16)
            pl.BlockSpec((1, C), const),          # pw2_b
        ],
        out_specs=xo_spec,
        scratch_shapes=[pltpu.VMEM((T * b_tile, C), ew_dtype)],
        compiler_params=pltpu.CompilerParams(
            dimension_semantics=("parallel",),    # batch tiles are independent
            vmem_limit_bytes=32 * 1024 * 1024),
        cost_estimate=cost,
    )(x_tbc, ops["ln_w"], ops["ln_b"],
      ops["dw1"], ops["pw1"], ops["pw1_b"],
      ops["dw2"], ops["pw2"], ops["pw2_b"])


def init_params(key, C, k, dropout=0.0):
    """Deterministic init matching ConvSeparable.__init__ (shapes + init scheme)."""
    std = math.sqrt(4.0 * (1.0 - dropout) / (k * C))
    k0, k1, k2, k3 = jax.random.split(key, 4)
    # PyTorch shapes: depthwise (C, 1, k), pointwise (C_out, C_in, 1)
    dw1_pt = jax.random.normal(k0, (C, 1, k), jnp.float32) * std
    pw1_pt = jax.random.normal(k1, (C, C, 1), jnp.float32) * std
    dw2_pt = jax.random.normal(k2, (C, 1, k), jnp.float32) * std
    pw2_pt = jax.random.normal(k3, (C, C, 1), jnp.float32) * std
    return dict(
        ln_w=jnp.ones((C,), jnp.float32),
        ln_b=jnp.zeros((C,), jnp.float32),
        dw1=jnp.transpose(dw1_pt[:, 0, :], (1, 0)),   # (k, C)
        pw1=jnp.transpose(pw1_pt[:, :, 0], (1, 0)),   # (C_in, C_out)
        pw1_b=jnp.zeros((C,), jnp.float32),
        dw2=jnp.transpose(dw2_pt[:, 0, :], (1, 0)),
        pw2=jnp.transpose(pw2_pt[:, :, 0], (1, 0)),
        pw2_b=jnp.zeros((C,), jnp.float32),
    )


def prepare_operands(params, ew_dtype):
    """One-time cast/reshape of parameters into kernel-ready operands."""
    C = params["ln_w"].shape[0]
    return dict(
        ln_w=params["ln_w"].reshape(1, C).astype(jnp.float32),
        ln_b=params["ln_b"].reshape(1, C).astype(jnp.float32),
        dw1=params["dw1"].astype(ew_dtype),
        dw2=params["dw2"].astype(ew_dtype),
        pw1=params["pw1"].astype(jnp.bfloat16),        # MXU inputs
        pw2=params["pw2"].astype(jnp.bfloat16),
        pw1_b=params["pw1_b"].reshape(1, C).astype(jnp.float32),
        pw2_b=params["pw2_b"].reshape(1, C).astype(jnp.float32),
    )


def reference(x_tbc, p, k):
    """Pure-JAX f32 reference of the same forward pass (eval mode)."""
    T, B, C = x_tbc.shape
    residual = x_tbc
    mean = x_tbc.mean(-1, keepdims=True)
    var = ((x_tbc - mean) ** 2).mean(-1, keepdims=True)
    y = (x_tbc - mean) / jnp.sqrt(var + 1e-6) * p["ln_w"] + p["ln_b"]
    y = jnp.transpose(y, (1, 2, 0))           # (B, C, T)

    def sepconv(y, dw_kc, pw_io, pwb):
        pad = k // 2
        yp = jnp.pad(y, ((0, 0), (0, 0), (pad, pad)))
        out = jnp.zeros_like(y)
        for j in range(k):
            out = out + yp[:, :, j:j + T] * dw_kc[j][None, :, None]
        return jnp.einsum("bit,io->bot", out, pw_io) + pwb[None, :, None]

    y = jnp.maximum(sepconv(y, p["dw1"], p["pw1"], p["pw1_b"]), 0.0)
    y = jnp.maximum(sepconv(y, p["dw2"], p["pw2"], p["pw2_b"]), 0.0)
    y = jnp.transpose(y, (2, 0, 1))
    return residual + y


if __name__ == "__main__":
    # (seq, batch, channels); B=32 -> b_tile=16 -> grid=(2,) parallel steps,
    # sublane-aligned shifts, M=512 rows per pointwise matmul per step.
    T, B, C, K = 32, 32, 128, 5
    key = jax.random.PRNGKey(0)
    kx, kp = jax.random.split(key)
    x = jax.random.normal(kx, (T, B, C), jnp.float32)
    params = init_params(kp, C, K, dropout=0.0)
    ops = prepare_operands(params, _elementwise_dtype())

    out = jax.block_until_ready(enc_sep_conv_layer(x, ops, kernel_size=K))
    ref = reference(x, params, K)

    assert out.shape == (T, B, C)
    err = float(jnp.max(jnp.abs(out - ref)))
    # bf16 MXU inputs (+ bf16 elementwise on v6e/v7x) vs. the all-f32 reference
    assert jnp.allclose(out, ref, atol=5e-2, rtol=5e-2), err
    print("KERNEL_OK")
</pallas_src>

<mosaic_0001>
module attributes {stable_mosaic.version = 11 : i64} {
  func.func @enc_sep_conv_kernel(%arg0: i32, %arg1: memref<32x16x128xf32, #tpu.memory_space<vmem>>, %arg2: memref<1x128xf32, #tpu.memory_space<vmem>>, %arg3: memref<1x128xf32, #tpu.memory_space<vmem>>, %arg4: memref<5x128xbf16, #tpu.memory_space<vmem>>, %arg5: memref<128x128xbf16, #tpu.memory_space<vmem>>, %arg6: memref<1x128xf32, #tpu.memory_space<vmem>>, %arg7: memref<5x128xbf16, #tpu.memory_space<vmem>>, %arg8: memref<128x128xbf16, #tpu.memory_space<vmem>>, %arg9: memref<1x128xf32, #tpu.memory_space<vmem>>, %arg10: memref<32x16x128xf32, #tpu.memory_space<vmem>>, %arg11: memref<512x128xbf16, #tpu.memory_space<vmem>>) attributes {dimension_semantics = [#tpu.dimension_semantics<parallel>], iteration_bounds = array<i64: 2>, scalar_prefetch = 0 : i64, scratch_operands = 1 : i64, tpu.core_type = #tpu.core_type<tc>, window_params = [{transform_indices = @transform_0, window_bounds = array<i64: 32, 16, 128>}, {pipeline_mode = #tpu.pipeline_mode<synchronous>, transform_indices = @transform_1, window_bounds = array<i64: 1, 128>}, {pipeline_mode = #tpu.pipeline_mode<synchronous>, transform_indices = @transform_2, window_bounds = array<i64: 1, 128>}, {pipeline_mode = #tpu.pipeline_mode<synchronous>, transform_indices = @transform_3, window_bounds = array<i64: 5, 128>}, {pipeline_mode = #tpu.pipeline_mode<synchronous>, transform_indices = @transform_4, window_bounds = array<i64: 128, 128>}, {pipeline_mode = #tpu.pipeline_mode<synchronous>, transform_indices = @transform_5, window_bounds = array<i64: 1, 128>}, {pipeline_mode = #tpu.pipeline_mode<synchronous>, transform_indices = @transform_6, window_bounds = array<i64: 5, 128>}, {pipeline_mode = #tpu.pipeline_mode<synchronous>, transform_indices = @transform_7, window_bounds = array<i64: 128, 128>}, {pipeline_mode = #tpu.pipeline_mode<synchronous>, transform_indices = @transform_8, window_bounds = array<i64: 1, 128>}, {transform_indices = @transform_9, window_bounds = array<i64: 32, 16, 128>}]} {
    %c0 = arith.constant 0 : index
    %c0_0 = arith.constant 0 : index
    %c0_1 = arith.constant 0 : index
    %0 = vector.load %arg1[%c0, %c0_0, %c0_1] : memref<32x16x128xf32, #tpu.memory_space<vmem>>, vector<32x16x128xf32>
    %1 = vector.shape_cast %0 : vector<32x16x128xf32> to vector<512x128xf32>
    %cst = arith.constant dense<0.000000e+00> : vector<512xf32>
    %2 = vector.multi_reduction <add>, %1, %cst [1] : vector<512x128xf32> to vector<512xf32>
    %3 = vector.shape_cast %2 : vector<512xf32> to vector<512x1xf32>
    %cst_2 = arith.constant 1.280000e+02 : f32
    %4 = vector.broadcast %cst_2 : f32 to vector<512x1xf32>
    %5 = arith.divf %3, %4 : vector<512x1xf32>
    %6 = vector.broadcast %5 : vector<512x1xf32> to vector<512x128xf32>
    %7 = arith.subf %1, %6 : vector<512x128xf32>
    %8 = arith.mulf %7, %7 : vector<512x128xf32>
    %cst_3 = arith.constant dense<0.000000e+00> : vector<512xf32>
    %9 = vector.multi_reduction <add>, %8, %cst_3 [1] : vector<512x128xf32> to vector<512xf32>
    %10 = vector.shape_cast %9 : vector<512xf32> to vector<512x1xf32>
    %cst_4 = arith.constant 1.280000e+02 : f32
    %11 = vector.broadcast %cst_4 : f32 to vector<512x1xf32>
    %12 = arith.divf %10, %11 : vector<512x1xf32>
    %cst_5 = arith.constant 9.99999997E-7 : f32
    %13 = vector.broadcast %cst_5 : f32 to vector<512x1xf32>
    %14 = arith.addf %12, %13 : vector<512x1xf32>
    %15 = math.rsqrt %14 : vector<512x1xf32>
    %16 = vector.broadcast %15 : vector<512x1xf32> to vector<512x128xf32>
    %17 = arith.mulf %7, %16 : vector<512x128xf32>
    %c0_6 = arith.constant 0 : index
    %c0_7 = arith.constant 0 : index
    %18 = vector.load %arg2[%c0_6, %c0_7] : memref<1x128xf32, #tpu.memory_space<vmem>>, vector<1x128xf32>
    %19 = vector.shape_cast %18 : vector<1x128xf32> to vector<128xf32>
    %20 = vector.shape_cast %19 : vector<128xf32> to vector<1x128xf32>
    %21 = vector.broadcast %20 : vector<1x128xf32> to vector<512x128xf32>
    %22 = arith.mulf %17, %21 : vector<512x128xf32>
    %c0_8 = arith.constant 0 : index
    %c0_9 = arith.constant 0 : index
    %23 = vector.load %arg3[%c0_8, %c0_9] : memref<1x128xf32, #tpu.memory_space<vmem>>, vector<1x128xf32>
    %24 = vector.shape_cast %23 : vector<1x128xf32> to vector<128xf32>
    %25 = vector.shape_cast %24 : vector<128xf32> to vector<1x128xf32>
    %26 = vector.broadcast %25 : vector<1x128xf32> to vector<512x128xf32>
    %27 = arith.addf %22, %26 : vector<512x128xf32>
    %28 = arith.truncf %27 : vector<512x128xf32> to vector<512x128xbf16>
    %c0_10 = arith.constant 0 : index
    %c0_11 = arith.constant 0 : index
    %29 = vector.load %arg4[%c0_10, %c0_11] : memref<5x128xbf16, #tpu.memory_space<vmem>>, vector<5x128xbf16>
    %30 = vector.extract_strided_slice %29 {offsets = [2, 0], sizes = [1, 128], strides = [1, 1]} : vector<5x128xbf16> to vector<1x128xbf16>
    %31 = vector.shape_cast %30 : vector<1x128xbf16> to vector<128xbf16>
    %32 = vector.shape_cast %31 : vector<128xbf16> to vector<1x128xbf16>
    %33 = vector.broadcast %32 : vector<1x128xbf16> to vector<512x128xbf16>
    %34 = arith.mulf %28, %33 : vector<512x128xbf16>
    %c0_12 = arith.constant 0 : index
    %c0_13 = arith.constant 0 : index
    %35 = vector.load %arg11[%c0_12, %c0_13] : memref<512x128xbf16, #tpu.memory_space<vmem>>, vector<512x128xbf16>
    tpu.vector_store %arg11[%c0_12, %c0_13], %34 {strides = array<i32>} : memref<512x128xbf16, #tpu.memory_space<vmem>>, vector<512x128xbf16>,
    %c32 = arith.constant 32 : index
    %c0_14 = arith.constant 0 : index
    %36 = vector.load %arg11[%c32, %c0_14] : memref<512x128xbf16, #tpu.memory_space<vmem>>, vector<480x128xbf16>
    %37 = vector.extract_strided_slice %28 {offsets = [0, 0], sizes = [480, 128], strides = [1, 1]} : vector<512x128xbf16> to vector<480x128xbf16>
    %38 = vector.extract_strided_slice %29 {offsets = [0, 0], sizes = [1, 128], strides = [1, 1]} : vector<5x128xbf16> to vector<1x128xbf16>
    %39 = vector.shape_cast %38 : vector<1x128xbf16> to vector<128xbf16>
    %40 = vector.shape_cast %39 : vector<128xbf16> to vector<1x128xbf16>
    %41 = vector.broadcast %40 : vector<1x128xbf16> to vector<480x128xbf16>
    %42 = arith.mulf %37, %41 : vector<480x128xbf16>
    %43 = arith.addf %36, %42 : vector<480x128xbf16>
    %c32_15 = arith.constant 32 : index
    %c0_16 = arith.constant 0 : index
    %44 = vector.load %arg11[%c32_15, %c0_16] : memref<512x128xbf16, #tpu.memory_space<vmem>>, vector<480x128xbf16>
    tpu.vector_store %arg11[%c32_15, %c0_16], %43 {strides = array<i32>} : memref<512x128xbf16, #tpu.memory_space<vmem>>, vector<480x128xbf16>,
    %c16 = arith.constant 16 : index
    %c0_17 = arith.constant 0 : index
    %45 = vector.load %arg11[%c16, %c0_17] : memref<512x128xbf16, #tpu.memory_space<vmem>>, vector<496x128xbf16>
    %46 = vector.extract_strided_slice %28 {offsets = [0, 0], sizes = [496, 128], strides = [1, 1]} : vector<512x128xbf16> to vector<496x128xbf16>
    %47 = vector.extract_strided_slice %29 {offsets = [1, 0], sizes = [1, 128], strides = [1, 1]} : vector<5x128xbf16> to vector<1x128xbf16>
    %48 = vector.shape_cast %47 : vector<1x128xbf16> to vector<128xbf16>
    %49 = vector.shape_cast %48 : vector<128xbf16> to vector<1x128xbf16>
    %50 = vector.broadcast %49 : vector<1x128xbf16> to vector<496x128xbf16>
    %51 = arith.mulf %46, %50 : vector<496x128xbf16>
    %52 = arith.addf %45, %51 : vector<496x128xbf16>
    %c16_18 = arith.constant 16 : index
    %c0_19 = arith.constant 0 : index
    %53 = vector.load %arg11[%c16_18, %c0_19] : memref<512x128xbf16, #tpu.memory_space<vmem>>, vector<496x128xbf16>
    tpu.vector_store %arg11[%c16_18, %c0_19], %52 {strides = array<i32>} : memref<512x128xbf16, #tpu.memory_space<vmem>>, vector<496x128xbf16>,
    %c0_20 = arith.constant 0 : index
    %c0_21 = arith.constant 0 : index
    %54 = vector.load %arg11[%c0_20, %c0_21] : memref<512x128xbf16, #tpu.memory_space<vmem>>, vector<496x128xbf16>
    %55 = vector.extract_strided_slice %28 {offsets = [16, 0], sizes = [496, 128], strides = [1, 1]} : vector<512x128xbf16> to vector<496x128xbf16>
    %56 = vector.extract_strided_slice %29 {offsets = [3, 0], sizes = [1, 128], strides = [1, 1]} : vector<5x128xbf16> to vector<1x128xbf16>
    %57 = vector.shape_cast %56 : vector<1x128xbf16> to vector<128xbf16>
    %58 = vector.shape_cast %57 : vector<128xbf16> to vector<1x128xbf16>
    %59 = vector.broadcast %58 : vector<1x128xbf16> to vector<496x128xbf16>
    %60 = arith.mulf %55, %59 : vector<496x128xbf16>
    %61 = arith.addf %54, %60 : vector<496x128xbf16>
    %c0_22 = arith.constant 0 : index
    %c0_23 = arith.constant 0 : index
    %62 = vector.load %arg11[%c0_22, %c0_23] : memref<512x128xbf16, #tpu.memory_space<vmem>>, vector<496x128xbf16>
    tpu.vector_store %arg11[%c0_22, %c0_23], %61 {strides = array<i32>} : memref<512x128xbf16, #tpu.memory_space<vmem>>, vector<496x128xbf16>,
    %c0_24 = arith.constant 0 : index
    %c0_25 = arith.constant 0 : index
    %63 = vector.load %arg11[%c0_24, %c0_25] : memref<512x128xbf16, #tpu.memory_space<vmem>>, vector<480x128xbf16>
    %64 = vector.extract_strided_slice %28 {offsets = [32, 0], sizes = [480, 128], strides = [1, 1]} : vector<512x128xbf16> to vector<480x128xbf16>
    %65 = vector.extract_strided_slice %29 {offsets = [4, 0], sizes = [1, 128], strides = [1, 1]} : vector<5x128xbf16> to vector<1x128xbf16>
    %66 = vector.shape_cast %65 : vector<1x128xbf16> to vector<128xbf16>
    %67 = vector.shape_cast %66 : vector<128xbf16> to vector<1x128xbf16>
    %68 = vector.broadcast %67 : vector<1x128xbf16> to vector<480x128xbf16>
    %69 = arith.mulf %64, %68 : vector<480x128xbf16>
    %70 = arith.addf %63, %69 : vector<480x128xbf16>
    %c0_26 = arith.constant 0 : index
    %c0_27 = arith.constant 0 : index
    %71 = vector.load %arg11[%c0_26, %c0_27] : memref<512x128xbf16, #tpu.memory_space<vmem>>, vector<480x128xbf16>
    tpu.vector_store %arg11[%c0_26, %c0_27], %70 {strides = array<i32>} : memref<512x128xbf16, #tpu.memory_space<vmem>>, vector<480x128xbf16>,
    %c0_28 = arith.constant 0 : index
    %c0_29 = arith.constant 0 : index
    %72 = vector.load %arg11[%c0_28, %c0_29] : memref<512x128xbf16, #tpu.memory_space<vmem>>, vector<512x128xbf16>
    %c0_30 = arith.constant 0 : index
    %c0_31 = arith.constant 0 : index
    %73 = vector.load %arg5[%c0_30, %c0_31] : memref<128x128xbf16, #tpu.memory_space<vmem>>, vector<128x128xbf16>
    %cst_32 = arith.constant dense<0.000000e+00> : vector<512x128xf32>
    %74 = tpu.matmul %72, %73, %cst_32 {dimension_numbers = #tpu.dot_dimension_numbers<[1], [0], [0], [1], [0, 0, 1, 1], [], []>} : vector<512x128xbf16>, vector<128x128xbf16>, vector<512x128xf32> -> vector<512x128xf32>
    %c0_33 = arith.constant 0 : index
    %c0_34 = arith.constant 0 : index
    %75 = vector.load %arg6[%c0_33, %c0_34] : memref<1x128xf32, #tpu.memory_space<vmem>>, vector<1x128xf32>
    %76 = vector.shape_cast %75 : vector<1x128xf32> to vector<128xf32>
    %77 = vector.shape_cast %76 : vector<128xf32> to vector<1x128xf32>
    %78 = vector.broadcast %77 : vector<1x128xf32> to vector<512x128xf32>
    %79 = arith.addf %74, %78 : vector<512x128xf32>
    %cst_35 = arith.constant 0.000000e+00 : f32
    %80 = vector.broadcast %cst_35 : f32 to vector<512x128xf32>
    %81 = arith.maximumf %79, %80 : vector<512x128xf32>
    %82 = arith.truncf %81 : vector<512x128xf32> to vector<512x128xbf16>
    %c0_36 = arith.constant 0 : index
    %c0_37 = arith.constant 0 : index
    %83 = vector.load %arg7[%c0_36, %c0_37] : memref<5x128xbf16, #tpu.memory_space<vmem>>, vector<5x128xbf16>
    %84 = vector.extract_strided_slice %83 {offsets = [2, 0], sizes = [1, 128], strides = [1, 1]} : vector<5x128xbf16> to vector<1x128xbf16>
    %85 = vector.shape_cast %84 : vector<1x128xbf16> to vector<128xbf16>
    %86 = vector.shape_cast %85 : vector<128xbf16> to vector<1x128xbf16>
    %87 = vector.broadcast %86 : vector<1x128xbf16> to vector<512x128xbf16>
    %88 = arith.mulf %82, %87 : vector<512x128xbf16>
    %c0_38 = arith.constant 0 : index
    %c0_39 = arith.constant 0 : index
    %89 = vector.load %arg11[%c0_38, %c0_39] : memref<512x128xbf16, #tpu.memory_space<vmem>>, vector<512x128xbf16>
    tpu.vector_store %arg11[%c0_38, %c0_39], %88 {strides = array<i32>} : memref<512x128xbf16, #tpu.memory_space<vmem>>, vector<512x128xbf16>,
    %c32_40 = arith.constant 32 : index
    %c0_41 = arith.constant 0 : index
    %90 = vector.load %arg11[%c32_40, %c0_41] : memref<512x128xbf16, #tpu.memory_space<vmem>>, vector<480x128xbf16>
    %91 = vector.extract_strided_slice %82 {offsets = [0, 0], sizes = [480, 128], strides = [1, 1]} : vector<512x128xbf16> to vector<480x128xbf16>
    %92 = vector.extract_strided_slice %83 {offsets = [0, 0], sizes = [1, 128], strides = [1, 1]} : vector<5x128xbf16> to vector<1x128xbf16>
    %93 = vector.shape_cast %92 : vector<1x128xbf16> to vector<128xbf16>
    %94 = vector.shape_cast %93 : vector<128xbf16> to vector<1x128xbf16>
    %95 = vector.broadcast %94 : vector<1x128xbf16> to vector<480x128xbf16>
    %96 = arith.mulf %91, %95 : vector<480x128xbf16>
    %97 = arith.addf %90, %96 : vector<480x128xbf16>
    %c32_42 = arith.constant 32 : index
    %c0_43 = arith.constant 0 : index
    %98 = vector.load %arg11[%c32_42, %c0_43] : memref<512x128xbf16, #tpu.memory_space<vmem>>, vector<480x128xbf16>
    tpu.vector_store %arg11[%c32_42, %c0_43], %97 {strides = array<i32>} : memref<512x128xbf16, #tpu.memory_space<vmem>>, vector<480x128xbf16>,
    %c16_44 = arith.constant 16 : index
    %c0_45 = arith.constant 0 : index
    %99 = vector.load %arg11[%c16_44, %c0_45] : memref<512x128xbf16, #tpu.memory_space<vmem>>, vector<496x128xbf16>
    %100 = vector.extract_strided_slice %82 {offsets = [0, 0], sizes = [496, 128], strides = [1, 1]} : vector<512x128xbf16> to vector<496x128xbf16>
    %101 = vector.extract_strided_slice %83 {offsets = [1, 0], sizes = [1, 128], strides = [1, 1]} : vector<5x128xbf16> to vector<1x128xbf16>
    %102 = vector.shape_cast %101 : vector<1x128xbf16> to vector<128xbf16>
    %103 = vector.shape_cast %102 : vector<128xbf16> to vector<1x128xbf16>
    %104 = vector.broadcast %103 : vector<1x128xbf16> to vector<496x128xbf16>
    %105 = arith.mulf %100, %104 : vector<496x128xbf16>
    %106 = arith.addf %99, %105 : vector<496x128xbf16>
    %c16_46 = arith.constant 16 : index
    %c0_47 = arith.constant 0 : index
    %107 = vector.load %arg11[%c16_46, %c0_47] : memref<512x128xbf16, #tpu.memory_space<vmem>>, vector<496x128xbf16>
    tpu.vector_store %arg11[%c16_46, %c0_47], %106 {strides = array<i32>} : memref<512x128xbf16, #tpu.memory_space<vmem>>, vector<496x128xbf16>,
    %c0_48 = arith.constant 0 : index
    %c0_49 = arith.constant 0 : index
    %108 = vector.load %arg11[%c0_48, %c0_49] : memref<512x128xbf16, #tpu.memory_space<vmem>>, vector<496x128xbf16>
    %109 = vector.extract_strided_slice %82 {offsets = [16, 0], sizes = [496, 128], strides = [1, 1]} : vector<512x128xbf16> to vector<496x128xbf16>
    %110 = vector.extract_strided_slice %83 {offsets = [3, 0], sizes = [1, 128], strides = [1, 1]} : vector<5x128xbf16> to vector<1x128xbf16>
    %111 = vector.shape_cast %110 : vector<1x128xbf16> to vector<128xbf16>
    %112 = vector.shape_cast %111 : vector<128xbf16> to vector<1x128xbf16>
    %113 = vector.broadcast %112 : vector<1x128xbf16> to vector<496x128xbf16>
    %114 = arith.mulf %109, %113 : vector<496x128xbf16>
    %115 = arith.addf %108, %114 : vector<496x128xbf16>
    %c0_50 = arith.constant 0 : index
    %c0_51 = arith.constant 0 : index
    %116 = vector.load %arg11[%c0_50, %c0_51] : memref<512x128xbf16, #tpu.memory_space<vmem>>, vector<496x128xbf16>
    tpu.vector_store %arg11[%c0_50, %c0_51], %115 {strides = array<i32>} : memref<512x128xbf16, #tpu.memory_space<vmem>>, vector<496x128xbf16>,
    %c0_52 = arith.constant 0 : index
    %c0_53 = arith.constant 0 : index
    %117 = vector.load %arg11[%c0_52, %c0_53] : memref<512x128xbf16, #tpu.memory_space<vmem>>, vector<480x128xbf16>
    %118 = vector.extract_strided_slice %82 {offsets = [32, 0], sizes = [480, 128], strides = [1, 1]} : vector<512x128xbf16> to vector<480x128xbf16>
    %119 = vector.extract_strided_slice %83 {offsets = [4, 0], sizes = [1, 128], strides = [1, 1]} : vector<5x128xbf16> to vector<1x128xbf16>
    %120 = vector.shape_cast %119 : vector<1x128xbf16> to vector<128xbf16>
    %121 = vector.shape_cast %120 : vector<128xbf16> to vector<1x128xbf16>
    %122 = vector.broadcast %121 : vector<1x128xbf16> to vector<480x128xbf16>
    %123 = arith.mulf %118, %122 : vector<480x128xbf16>
    %124 = arith.addf %117, %123 : vector<480x128xbf16>
    %c0_54 = arith.constant 0 : index
    %c0_55 = arith.constant 0 : index
    %125 = vector.load %arg11[%c0_54, %c0_55] : memref<512x128xbf16, #tpu.memory_space<vmem>>, vector<480x128xbf16>
    tpu.vector_store %arg11[%c0_54, %c0_55], %124 {strides = array<i32>} : memref<512x128xbf16, #tpu.memory_space<vmem>>, vector<480x128xbf16>,
    %c0_56 = arith.constant 0 : index
    %c0_57 = arith.constant 0 : index
    %126 = vector.load %arg11[%c0_56, %c0_57] : memref<512x128xbf16, #tpu.memory_space<vmem>>, vector<512x128xbf16>
    %c0_58 = arith.constant 0 : index
    %c0_59 = arith.constant 0 : index
    %127 = vector.load %arg8[%c0_58, %c0_59] : memref<128x128xbf16, #tpu.memory_space<vmem>>, vector<128x128xbf16>
    %cst_60 = arith.constant dense<0.000000e+00> : vector<512x128xf32>
    %128 = tpu.matmul %126, %127, %cst_60 {dimension_numbers = #tpu.dot_dimension_numbers<[1], [0], [0], [1], [0, 0, 1, 1], [], []>} : vector<512x128xbf16>, vector<128x128xbf16>, vector<512x128xf32> -> vector<512x128xf32>
    %c0_61 = arith.constant 0 : index
    %c0_62 = arith.constant 0 : index
    %129 = vector.load %arg9[%c0_61, %c0_62] : memref<1x128xf32, #tpu.memory_space<vmem>>, vector<1x128xf32>
    %130 = vector.shape_cast %129 : vector<1x128xf32> to vector<128xf32>
    %131 = vector.shape_cast %130 : vector<128xf32> to vector<1x128xf32>
    %132 = vector.broadcast %131 : vector<1x128xf32> to vector<512x128xf32>
    %133 = arith.addf %128, %132 : vector<512x128xf32>
    %cst_63 = arith.constant 0.000000e+00 : f32
    %134 = vector.broadcast %cst_63 : f32 to vector<512x128xf32>
    %135 = arith.maximumf %133, %134 : vector<512x128xf32>
    %c0_64 = arith.constant 0 : index
    %c0_65 = arith.constant 0 : index
    %c0_66 = arith.constant 0 : index
    %136 = vector.load %arg1[%c0_64, %c0_65, %c0_66] : memref<32x16x128xf32, #tpu.memory_space<vmem>>, vector<32x16x128xf32>
    %137 = vector.shape_cast %135 : vector<512x128xf32> to vector<32x16x128xf32>
    %138 = arith.addf %136, %137 : vector<32x16x128xf32>
    %c0_67 = arith.constant 0 : index
    %c0_68 = arith.constant 0 : index
    %c0_69 = arith.constant 0 : index
    %139 = vector.load %arg10[%c0_67, %c0_68, %c0_69] : memref<32x16x128xf32, #tpu.memory_space<vmem>>, vector<32x16x128xf32>
    tpu.vector_store %arg10[%c0_67, %c0_68, %c0_69], %138 {strides = array<i32>} : memref<32x16x128xf32, #tpu.memory_space<vmem>>, vector<32x16x128xf32>,
    return
  }
  func.func @transform_0(%arg0: i32) -> (i32, i32, i32) {
    %c0_i32 = arith.constant 0 : i32
    %c0_i32_0 = arith.constant 0 : i32
    %c0_i32_1 = arith.constant 0 : i32
    return %c0_i32, %arg0, %c0_i32_0 : i32, i32, i32
  }
  func.func @transform_1(%arg0: i32) -> (i32, i32) {
    %c0_i32 = arith.constant 0 : i32
    %c0_i32_0 = arith.constant 0 : i32
    %c0_i32_1 = arith.constant 0 : i32
    return %c0_i32, %c0_i32_0 : i32, i32
  }
  func.func @transform_2(%arg0: i32) -> (i32, i32) {
    %c0_i32 = arith.constant 0 : i32
    %c0_i32_0 = arith.constant 0 : i32
    %c0_i32_1 = arith.constant 0 : i32
    return %c0_i32, %c0_i32_0 : i32, i32
  }
  func.func @transform_3(%arg0: i32) -> (i32, i32) {
    %c0_i32 = arith.constant 0 : i32
    %c0_i32_0 = arith.constant 0 : i32
    %c0_i32_1 = arith.constant 0 : i32
    return %c0_i32, %c0_i32_0 : i32, i32
  }
  func.func @transform_4(%arg0: i32) -> (i32, i32) {
    %c0_i32 = arith.constant 0 : i32
    %c0_i32_0 = arith.constant 0 : i32
    %c0_i32_1 = arith.constant 0 : i32
    return %c0_i32, %c0_i32_0 : i32, i32
  }
  func.func @transform_5(%arg0: i32) -> (i32, i32) {
    %c0_i32 = arith.constant 0 : i32
    %c0_i32_0 = arith.constant 0 : i32
    %c0_i32_1 = arith.constant 0 : i32
    return %c0_i32, %c0_i32_0 : i32, i32
  }
  func.func @transform_6(%arg0: i32) -> (i32, i32) {
    %c0_i32 = arith.constant 0 : i32
    %c0_i32_0 = arith.constant 0 : i32
    %c0_i32_1 = arith.constant 0 : i32
    return %c0_i32, %c0_i32_0 : i32, i32
  }
  func.func @transform_7(%arg0: i32) -> (i32, i32) {
    %c0_i32 = arith.constant 0 : i32
    %c0_i32_0 = arith.constant 0 : i32
    %c0_i32_1 = arith.constant 0 : i32
    return %c0_i32, %c0_i32_0 : i32, i32
  }
  func.func @transform_8(%arg0: i32) -> (i32, i32) {
    %c0_i32 = arith.constant 0 : i32
    %c0_i32_0 = arith.constant 0 : i32
    %c0_i32_1 = arith.constant 0 : i32
    return %c0_i32, %c0_i32_0 : i32, i32
  }
  func.func @transform_9(%arg0: i32) -> (i32, i32, i32) {
    %c0_i32 = arith.constant 0 : i32
    %c0_i32_0 = arith.constant 0 : i32
    %c0_i32_1 = arith.constant 0 : i32
    return %c0_i32, %arg0, %c0_i32_0 : i32, i32, i32
  }
}

</mosaic_0001>

<llo_original>
// kernel: enc_sep_conv_layer.1
$region0: #{enc_sep_conv_layer.1}
  #allocation0 [shape = 'u32[]', space=smem, size = 0x4, offset = 0x4, fixed_abs, tag = 'smem constant byte address 0x4 - core index']
  #allocation1 [shape = 'u32[72,128]{1,0:T(1,128)}', space=vmem, size = 0x9000, scoped, tag = 'internal scratch']
  #allocation2 [shape = 'bf16[512,128]{1,0:T(8,128)(2,1)}', space=vmem, size = 0x20000, scoped, tag = 'scratch operand']
  #allocation13 [shape = 's32[]', space=sflag, size = 0x4, offset = 0, fixed_abs, tag = 'sflag constant byte address 0x0 - dummy sync flag']
  #allocation15 [shape = 's32[]', space=sflag, size = 0x4, offset = 0, fixed_abs, tag = 'sflag constant byte address 0x0 - dummy sync flag']
  %s0 = inlined_call_operand.hbm [shape: f32[32,32,128], index: 0, kind: input, shape index: {}]
  %s1 = inlined_call_operand.vmem [shape: f32[1,128], index: 1, kind: input, shape index: {}]
  %s2 = inlined_call_operand.vmem [shape: f32[1,128], index: 2, kind: input, shape index: {}]
  %s3 = inlined_call_operand.hbm [shape: bf16[5,128], index: 3, kind: input, shape index: {}]
  %s4 = inlined_call_operand.hbm [shape: bf16[128,128], index: 4, kind: input, shape index: {}]
  %s5 = inlined_call_operand.vmem [shape: f32[1,128], index: 5, kind: input, shape index: {}]
  %s6 = inlined_call_operand.hbm [shape: bf16[5,128], index: 6, kind: input, shape index: {}]
  %s7 = inlined_call_operand.hbm [shape: bf16[128,128], index: 7, kind: input, shape index: {}]
  %s8 = inlined_call_operand.vmem [shape: f32[1,128], index: 8, kind: input, shape index: {}]
  %s9 = inlined_call_operand.hbm [shape: f32[32,32,128], index: 9, kind: output, shape index: {}]
  %s10 = sld [smem:[#allocation0]]
  $region89: #{enc_sep_conv_layer.1} parent=0
    _
  %s12 = ssub.s32 1, %s10
  %s13 = scalar_select 0, %s12, %s10
  $region1: #{enc_sep_conv_layer.1} parent=0
    #allocation3 [shape = 'u8[524288]{0}', space=vmem, size = 0x80000, scoped, tag = 'input window, operand 0']
    #allocation4 [shape = 's32[2]{0}', space=sflag, size = 0x8, scoped, tag = 'scoped memory for enc_sep_conv_layer.1']
    #allocation5 [shape = 's32[2]{0}', space=sflag, size = 0x8, scoped, tag = 'scoped memory for enc_sep_conv_layer.1']
    #allocation6 [shape = 'u8[2048]{0}', space=vmem, size = 0x800, scoped, tag = 'input window, operand 3, single buffered']
    #allocation7 [shape = 's32[1]{0}', space=sflag, size = 0x4, scoped, tag = 'scoped memory for enc_sep_conv_layer.1']
    #allocation8 [shape = 'u8[32768]{0}', space=vmem, size = 0x8000, scoped, tag = 'input window, operand 4, single buffered']
    #allocation9 [shape = 'u8[2048]{0}', space=vmem, size = 0x800, scoped, tag = 'input window, operand 6, single buffered']
    #allocation10 [shape = 's32[1]{0}', space=sflag, size = 0x4, scoped, tag = 'scoped memory for enc_sep_conv_layer.1']
    #allocation11 [shape = 'u8[32768]{0}', space=vmem, size = 0x8000, scoped, tag = 'input window, operand 7, single buffered']
    #allocation12 [shape = 'u8[524288]{0}', space=vmem, size = 0x80000, scoped, tag = 'output window, operand 0']
    %14 = vsyncpa [#allocation4], 0
    %s15 = scalar_lea.sflag [#allocation4], 1
    %16 = vsyncpa %s15, 0
    %17 = vsyncpa [#allocation7], 0
    %18 = vsyncpa [#allocation10], 0
    %19 = vsyncpa [#allocation5], 0
    %s20 = scalar_lea.sflag [#allocation5], 1
    %21 = vsyncpa %s20, 0
    loop: start=0, step=1, limit=4
    $region2: #{enc_sep_conv_layer.1} parent=1 // loop_pre_header
      _
    $region3: #{enc_sep_conv_layer.1} parent=1 // loop_header
      %s23 = sphi 0, %s27
      %p24 = scmp.ge.s32.totalorder %s23, 4
      %s33 = sphi 0, %s35
      %s36 = sphi 0, %s33
      %s37 = sphi 0, %s36
      %s53 = sphi 0, %s37
      %s57 = sphi 0, %s57
      %s59 = sphi 0, %s57
      %s60 = sphi 0, %s59
      %s74 = sphi 0, %s60
      %s78 = sphi 0, %s78
      %s80 = sphi 0, %s78
      %s81 = sphi 0, %s80
      %s95 = sphi 0, %s81
      %s99 = sphi 0, %s99
      %s101 = sphi 0, %s99
      %s102 = sphi 0, %s101
      %s116 = sphi 0, %s102
      %s120 = sphi 0, %s120
      %s122 = sphi 0, %s120
      %s123 = sphi 0, %s122
      %s137 = sphi 0, %s123
      %s141 = sphi 0, %s141
      %s143 = sphi 0, %s141
      %s144 = sphi 0, %s143
      %s158 = sphi 0, %s144
      %s162 = sphi 0, %s162
      %s164 = sphi 0, %s162
      %s165 = sphi 0, %s164
      %s179 = sphi 0, %s165
      %s183 = sphi 0, %s183
      %s185 = sphi 0, %s183
      %s186 = sphi 0, %s185
      %s200 = sphi 0, %s186
      %s204 = sphi 0, %s204
      %s206 = sphi 0, %s204
      %s207 = sphi 0, %s206
      %s221 = sphi 0, %s207
      %s227 = sphi 0, %s229
      %s230 = sphi 0, %s227
      %s231 = sphi 0, %s230
      %s247 = sphi 0, %s231
    $region4: #{enc_sep_conv_layer.1} parent=1 // loop_header_branch
      %26 = sbr.rel (%p24) target = $region8
    $region5: #{enc_sep_conv_layer.1} parent=1 // loop_body
      %s28 = ssub.s32 %s23, 1
      %s29 = ssub.s32 %s23, 2
      %s30 = sadd.s32 %s23, 1
      %s31 = ssub.s32 %s23, %s30
      %p32 = scmp.eq.s32.totalorder %s31, 0
      %s34 = sadd.s32 %s33, 1
      %s35 = scalar_select %p32, %s33, %s34
      %p38 = pneg %p32
      %p39 = scmp.eq.s32.totalorder %s23, 1
      %p40 = por %p38, %p39
      %p41 = scmp.ne.s32.totalorder %s33, %s36
      %p42 = scmp.eq.s32.totalorder %s23, 0
      %p43 = por %p41, %p42
      %p44 = scmp.ne.s32.totalorder %s33, %s36
      %p45 = scmp.eq.s32.totalorder %s28, 1
      %p46 = por %p44, %p45
      %p47 = scmp.ne.s32.totalorder %s36, %s37
      %p48 = scmp.eq.s32.totalorder %s28, 0
      %p49 = por %p47, %p48
      %p50 = scmp.ne.s32.totalorder %s36, %s37
      %p51 = scmp.eq.s32.totalorder %s29, 1
      %p52 = por %p50, %p51
      %p54 = scmp.ne.s32.totalorder %s37, %s53
      %p55 = scmp.eq.s32.totalorder %s29, 0
      %p56 = por %p54, %p55
      %s58 = sadd.s32 %s57, 1
      %p61 = scmp.eq.s32.totalorder %s23, 1
      %p62 = scmp.ne.s32.totalorder %s57, %s59
      %p63 = scmp.eq.s32.totalorder %s23, 0
      %p64 = por %p62, %p63
      %p65 = scmp.ne.s32.totalorder %s57, %s59
      %p66 = scmp.eq.s32.totalorder %s28, 1
      %p67 = por %p65, %p66
      %p68 = scmp.ne.s32.totalorder %s59, %s60
      %p69 = scmp.eq.s32.totalorder %s28, 0
      %p70 = por %p68, %p69
      %p71 = scmp.ne.s32.totalorder %s59, %s60
      %p72 = scmp.eq.s32.totalorder %s29, 1
      %p73 = por %p71, %p72
      %p75 = scmp.ne.s32.totalorder %s60, %s74
      %p76 = scmp.eq.s32.totalorder %s29, 0
      %p77 = por %p75, %p76
      %s79 = sadd.s32 %s78, 1
      %p82 = scmp.eq.s32.totalorder %s23, 1
      %p83 = scmp.ne.s32.totalorder %s78, %s80
      %p84 = scmp.eq.s32.totalorder %s23, 0
      %p85 = por %p83, %p84
      %p86 = scmp.ne.s32.totalorder %s78, %s80
      %p87 = scmp.eq.s32.totalorder %s28, 1
      %p88 = por %p86, %p87
      %p89 = scmp.ne.s32.totalorder %s80, %s81
      %p90 = scmp.eq.s32.totalorder %s28, 0
      %p91 = por %p89, %p90
      %p92 = scmp.ne.s32.totalorder %s80, %s81
      %p93 = scmp.eq.s32.totalorder %s29, 1
      %p94 = por %p92, %p93
      %p96 = scmp.ne.s32.totalorder %s81, %s95
      %p97 = scmp.eq.s32.totalorder %s29, 0
      %p98 = por %p96, %p97
      %s100 = sadd.s32 %s99, 1
      %p103 = scmp.eq.s32.totalorder %s23, 1
      %p104 = scmp.ne.s32.totalorder %s99, %s101
      %p105 = scmp.eq.s32.totalorder %s23, 0
      %p106 = por %p104, %p105
      %p107 = scmp.ne.s32.totalorder %s99, %s101
      %p108 = scmp.eq.s32.totalorder %s28, 1
      %p109 = por %p107, %p108
      %p110 = scmp.ne.s32.totalorder %s101, %s102
      %p111 = scmp.eq.s32.totalorder %s28, 0
      %p112 = por %p110, %p111
      %p113 = scmp.ne.s32.totalorder %s101, %s102
      %p114 = scmp.eq.s32.totalorder %s29, 1
      %p115 = por %p113, %p114
      %p117 = scmp.ne.s32.totalorder %s102, %s116
      %p118 = scmp.eq.s32.totalorder %s29, 0
      %p119 = por %p117, %p118
      %s121 = sadd.s32 %s120, 1
      %p124 = scmp.eq.s32.totalorder %s23, 1
      %p125 = scmp.ne.s32.totalorder %s120, %s122
      %p126 = scmp.eq.s32.totalorder %s23, 0
      %p127 = por %p125, %p126
      %p128 = scmp.ne.s32.totalorder %s120, %s122
      %p129 = scmp.eq.s32.totalorder %s28, 1
      %p130 = por %p128, %p129
      %p131 = scmp.ne.s32.totalorder %s122, %s123
      %p132 = scmp.eq.s32.totalorder %s28, 0
      %p133 = por %p131, %p132
      %p134 = scmp.ne.s32.totalorder %s122, %s123
      %p135 = scmp.eq.s32.totalorder %s29, 1
      %p136 = por %p134, %p135
      %p138 = scmp.ne.s32.totalorder %s123, %s137
      %p139 = scmp.eq.s32.totalorder %s29, 0
      %p140 = por %p138, %p139
      %s142 = sadd.s32 %s141, 1
      %p145 = scmp.eq.s32.totalorder %s23, 1
      %p146 = scmp.ne.s32.totalorder %s141, %s143
      %p147 = scmp.eq.s32.totalorder %s23, 0
      %p148 = por %p146, %p147
      %p149 = scmp.ne.s32.totalorder %s141, %s143
      %p150 = scmp.eq.s32.totalorder %s28, 1
      %p151 = por %p149, %p150
      %p152 = scmp.ne.s32.totalorder %s143, %s144
      %p153 = scmp.eq.s32.totalorder %s28, 0
      %p154 = por %p152, %p153
      %p155 = scmp.ne.s32.totalorder %s143, %s144
      %p156 = scmp.eq.s32.totalorder %s29, 1
      %p157 = por %p155, %p156
      %p159 = scmp.ne.s32.totalorder %s144, %s158
      %p160 = scmp.eq.s32.totalorder %s29, 0
      %p161 = por %p159, %p160
      %s163 = sadd.s32 %s162, 1
      %p166 = scmp.eq.s32.totalorder %s23, 1
      %p167 = scmp.ne.s32.totalorder %s162, %s164
      %p168 = scmp.eq.s32.totalorder %s23, 0
      %p169 = por %p167, %p168
      %p170 = scmp.ne.s32.totalorder %s162, %s164
      %p171 = scmp.eq.s32.totalorder %s28, 1
      %p172 = por %p170, %p171
      %p173 = scmp.ne.s32.totalorder %s164, %s165
      %p174 = scmp.eq.s32.totalorder %s28, 0
      %p175 = por %p173, %p174
      %p176 = scmp.ne.s32.totalorder %s164, %s165
      %p177 = scmp.eq.s32.totalorder %s29, 1
      %p178 = por %p176, %p177
      %p180 = scmp.ne.s32.totalorder %s165, %s179
      %p181 = scmp.eq.s32.totalorder %s29, 0
      %p182 = por %p180, %p181
      %s184 = sadd.s32 %s183, 1
      %p187 = scmp.eq.s32.totalorder %s23, 1
      %p188 = scmp.ne.s32.totalorder %s183, %s185
      %p189 = scmp.eq.s32.totalorder %s23, 0
      %p190 = por %p188, %p189
      %p191 = scmp.ne.s32.totalorder %s183, %s185
      %p192 = scmp.eq.s32.totalorder %s28, 1
      %p193 = por %p191, %p192
      %p194 = scmp.ne.s32.totalorder %s185, %s186
      %p195 = scmp.eq.s32.totalorder %s28, 0
      %p196 = por %p194, %p195
      %p197 = scmp.ne.s32.totalorder %s185, %s186
      %p198 = scmp.eq.s32.totalorder %s29, 1
      %p199 = por %p197, %p198
      %p201 = scmp.ne.s32.totalorder %s186, %s200
      %p202 = scmp.eq.s32.totalorder %s29, 0
      %p203 = por %p201, %p202
      %s205 = sadd.s32 %s204, 1
      %p208 = scmp.eq.s32.totalorder %s23, 1
      %p209 = scmp.ne.s32.totalorder %s204, %s206
      %p210 = scmp.eq.s32.totalorder %s23, 0
      %p211 = por %p209, %p210
      %p212 = scmp.ne.s32.totalorder %s204, %s206
      %p213 = scmp.eq.s32.totalorder %s28, 1
      %p214 = por %p212, %p213
      %p215 = scmp.ne.s32.totalorder %s206, %s207
      %p216 = scmp.eq.s32.totalorder %s28, 0
      %p217 = por %p215, %p216
      %p218 = scmp.ne.s32.totalorder %s206, %s207
      %p219 = scmp.eq.s32.totalorder %s29, 1
      %p220 = por %p218, %p219
      %p222 = scmp.ne.s32.totalorder %s207, %s221
      %p223 = scmp.eq.s32.totalorder %s29, 0
      %p224 = por %p222, %p223
      %s225 = ssub.s32 %s23, %s30
      %p226 = scmp.eq.s32.totalorder %s225, 0
      %s228 = sadd.s32 %s227, 1
      %s229 = scalar_select %p226, %s227, %s228
      %p232 = pneg %p226
      %p233 = scmp.eq.s32.totalorder %s23, 1
      %p234 = por %p232, %p233
      %p235 = scmp.ne.s32.totalorder %s227, %s230
      %p236 = scmp.eq.s32.totalorder %s23, 0
      %p237 = por %p235, %p236
      %p238 = scmp.ne.s32.totalorder %s227, %s230
      %p239 = scmp.eq.s32.totalorder %s28, 1
      %p240 = por %p238, %p239
      %p241 = scmp.ne.s32.totalorder %s230, %s231
      %p242 = scmp.eq.s32.totalorder %s28, 0
      %p243 = por %p241, %p242
      %p244 = scmp.ne.s32.totalorder %s230, %s231
      %p245 = scmp.eq.s32.totalorder %s29, 1
      %p246 = por %p244, %p245
      %p248 = scmp.ne.s32.totalorder %s231, %s247
      %p249 = scmp.eq.s32.totalorder %s29, 0
      %p250 = por %p248, %p249
      %p251 = scmp.le.s32.totalorder 1, %s23
      %p252 = scmp.lt.s32.totalorder %s23, 3
      %p253 = pnand %p251, %p252
      %p254 = pneg %p253
      // Predicated region
      $region9: #{enc_sep_conv_layer.1} parent=5 // pred_check
        _
      $region10: #{enc_sep_conv_layer.1} parent=5 // pred_check_branch
        %256 = sbr.rel (%p253) target = $region12
      $region11: #{enc_sep_conv_layer.1} parent=5 // pred_region
        %s257 = ssub.s32 %s23, 1
        // Predicated region
        $region13: #{enc_sep_conv_layer.1} parent=11 // pred_check
          %p258 = pneg %p70
        $region14: #{enc_sep_conv_layer.1} parent=11 // pred_check_branch
          %260 = sbr.rel (%p258) target = $region16
        $region15: #{enc_sep_conv_layer.1} parent=11 // pred_region
          _
        $region16: #{enc_sep_conv_layer.1} parent=11 // pred_fallthru
          _
        // Predicated region
        $region17: #{enc_sep_conv_layer.1} parent=11 // pred_check
          %p261 = pneg %p91
        $region18: #{enc_sep_conv_layer.1} parent=11 // pred_check_branch
          %263 = sbr.rel (%p261) target = $region20
        $region19: #{enc_sep_conv_layer.1} parent=11 // pred_region
          _
        $region20: #{enc_sep_conv_layer.1} parent=11 // pred_fallthru
          _
        // Predicated region
        $region21: #{enc_sep_conv_layer.1} parent=11 // pred_check
          %p264 = pneg %p112
        $region22: #{enc_sep_conv_layer.1} parent=11 // pred_check_branch
          %266 = sbr.rel (%p264) target = $region24
        $region23: #{enc_sep_conv_layer.1} parent=11 // pred_region
          %268 = vsyncadd [#allocation7], 0
          %s270 = sshll.u32 %s3, 4
          %s271 = int_to_ptr.hbm [resolvable:$true] %s270
          %s272 = sshll.u32 [#allocation6], 4
          %s273 = int_to_ptr.vmem [resolvable:$true] %s272
          %275 = dma.hbm_to_vmem [thread:$0]  %s271, 64, %s273, [#allocation7]
        $region24: #{enc_sep_conv_layer.1} parent=11 // pred_fallthru
          _
        // Predicated region
        $region25: #{enc_sep_conv_layer.1} parent=11 // pred_check
          %p276 = pneg %p133
        $region26: #{enc_sep_conv_layer.1} parent=11 // pred_check_branch
          %278 = sbr.rel (%p276) target = $region28
        $region27: #{enc_sep_conv_layer.1} parent=11 // pred_region
          %280 = vsyncadd [#allocation7], 0
          %s281 = sshll.u32 %s4, 4
          %s282 = int_to_ptr.hbm [resolvable:$true] %s281
          %s283 = sshll.u32 [#allocation8], 4
          %s284 = int_to_ptr.vmem [resolvable:$true] %s283
          %289 = dma.hbm_to_vmem [thread:$0]  %s282, 1024, %s284, [#allocation7], 64, 64, 4
        $region28: #{enc_sep_conv_layer.1} parent=11 // pred_fallthru
          _
        // Predicated region
        $region29: #{enc_sep_conv_layer.1} parent=11 // pred_check
          %p290 = pneg %p154
        $region30: #{enc_sep_conv_layer.1} parent=11 // pred_check_branch
          %292 = sbr.rel (%p290) target = $region32
        $region31: #{enc_sep_conv_layer.1} parent=11 // pred_region
          _
        $region32: #{enc_sep_conv_layer.1} parent=11 // pred_fallthru
          _
        // Predicated region
        $region33: #{enc_sep_conv_layer.1} parent=11 // pred_check
          %p293 = pneg %p175
        $region34: #{enc_sep_conv_layer.1} parent=11 // pred_check_branch
          %295 = sbr.rel (%p293) target = $region36
        $region35: #{enc_sep_conv_layer.1} parent=11 // pred_region
          %297 = vsyncadd [#allocation10], 0
          %s299 = sshll.u32 %s6, 4
          %s300 = int_to_ptr.hbm [resolvable:$true] %s299
          %s301 = sshll.u32 [#allocation9], 4
          %s302 = int_to_ptr.vmem [resolvable:$true] %s301
          %304 = dma.hbm_to_vmem [thread:$0]  %s300, 64, %s302, [#allocation10]
        $region36: #{enc_sep_conv_layer.1} parent=11 // pred_fallthru
          _
        // Predicated region
        $region37: #{enc_sep_conv_layer.1} parent=11 // pred_check
          %p305 = pneg %p196
        $region38: #{enc_sep_conv_layer.1} parent=11 // pred_check_branch
          %307 = sbr.rel (%p305) target = $region40
        $region39: #{enc_sep_conv_layer.1} parent=11 // pred_region
          %309 = vsyncadd [#allocation10], 0
          %s310 = sshll.u32 %s7, 4
          %s311 = int_to_ptr.hbm [resolvable:$true] %s310
          %s312 = sshll.u32 [#allocation11], 4
          %s313 = int_to_ptr.vmem [resolvable:$true] %s312
          %318 = dma.hbm_to_vmem [thread:$0]  %s311, 1024, %s313, [#allocation10], 64, 64, 4
        $region40: #{enc_sep_conv_layer.1} parent=11 // pred_fallthru
          _
        // Predicated region
        $region41: #{enc_sep_conv_layer.1} parent=11 // pred_check
          %p319 = pneg %p217
        $region42: #{enc_sep_conv_layer.1} parent=11 // pred_check_branch
          %321 = sbr.rel (%p319) target = $region44
        $region43: #{enc_sep_conv_layer.1} parent=11 // pred_region
          _
        $region44: #{enc_sep_conv_layer.1} parent=11 // pred_fallthru
          _
      $region12: #{enc_sep_conv_layer.1} parent=5 // pred_fallthru
        _
      %p322 = scmp.lt.s32.totalorder %s23, 2
      // Predicated region
      $region45: #{enc_sep_conv_layer.1} parent=5 // pred_check
        %p323 = pneg %p322
      $region46: #{enc_sep_conv_layer.1} parent=5 // pred_check_branch
        %325 = sbr.rel (%p323) target = $region48
      $region47: #{enc_sep_conv_layer.1} parent=5 // pred_region
        // Predicated region
        $region49: #{enc_sep_conv_layer.1} parent=47 // pred_check
          %p326 = pneg %p43
        $region50: #{enc_sep_conv_layer.1} parent=47 // pred_check_branch
          %328 = sbr.rel (%p326) target = $region52
        $region51: #{enc_sep_conv_layer.1} parent=47 // pred_region
          #allocation14 [shape = 'u32[6]{0}', space=smem, size = 0x18, scoped, tag = 'DMA stride descriptor']
          %s329 = sand.u32 %s33, 1
          %s330 = scalar_lea.sflag [#allocation4], %s329
          %s331 = sand.u32 %s33, 1
          %s332 = smul.addr %s331, 512
          %s333 = scalar_lea.vmem [#allocation3], %s332
          %s334 = smul.u32 2, %s23
          %336 = vsyncadd %s330, 0
          %s337 = smul.addr %s334, 8
          %s338 = scalar_lea.hbm %s0, %s337
          %s340 = sshll.u32 1, 14
          %s341 = sxor.u32 4294967295, %s340
          %s343 = sld [smem:[#allocation0]]
          %s344 = sadd.s32 2, %s343
          %s346 = sshll.u32 7, 26
          %s347 = sxor.u32 4294967295, %s346
          %s348 = sand.u32 0, %s347
          %s349 = sshll.u32 %s344, 26
          %s350 = sor.u32 %s348, %s349
          %s351 = sshll.u32 %s338, 4
          %s352 = int_to_ptr.hbm [resolvable:$true] %s351
          %s353 = sshll.u32 %s333, 4
          %s354 = int_to_ptr.vmem [resolvable:$true] %s353
          %360 = sst [smem:[#allocation14]] 512
          %s361 = scalar_lea.smem [#allocation14], 1
          %362 = sst [smem:[%s361]] 256
          %s363 = scalar_lea.smem [#allocation14], 2
          %364 = sst [smem:[%s363]] 2
          %s365 = scalar_lea.smem [#allocation14], 3
          %366 = sst [smem:[%s365]] 128
          %s367 = scalar_lea.smem [#allocation14], 4
          %368 = sst [smem:[%s367]] 128
          %s369 = scalar_lea.smem [#allocation14], 5
          %370 = sst [smem:[%s369]] 8
          %372 = dma.general %s352, 8192, %s354, %s330, [#allocation13], [#allocation14], %s350, 0
        $region52: #{enc_sep_conv_layer.1} parent=47 // pred_fallthru
          _
      $region48: #{enc_sep_conv_layer.1} parent=5 // pred_fallthru
        _
      %p373 = scmp.le.s32.totalorder 1, %s23
      %p374 = scmp.lt.s32.totalorder %s23, 3
      %p375 = pnand %p373, %p374
      %p376 = pneg %p375
      // Predicated region
      $region53: #{enc_sep_conv_layer.1} parent=5 // pred_check
        _
      $region54: #{enc_sep_conv_layer.1} parent=5 // pred_check_branch
        %378 = sbr.rel (%p375) target = $region56
      $region55: #{enc_sep_conv_layer.1} parent=5 // pred_region
        %s379 = ssub.s32 %s23, 1
        %s380 = sand.u32 %s36, 1
        %s381 = scalar_lea.sflag [#allocation4], %s380
        %s382 = sand.u32 %s36, 1
        %s383 = smul.addr %s382, 512
        %s384 = scalar_lea.vmem [#allocation3], %s383
        // Predicated region
        $region57: #{enc_sep_conv_layer.1} parent=55 // pred_check
          %p385 = pneg %p49
        $region58: #{enc_sep_conv_layer.1} parent=55 // pred_check_branch
          %387 = sbr.rel (%p385) target = $region60
        $region59: #{enc_sep_conv_layer.1} parent=55 // pred_region
          %389 = dma.done %s381, 8192
        $region60: #{enc_sep_conv_layer.1} parent=55 // pred_fallthru
          _
        // Predicated region
        $region61: #{enc_sep_conv_layer.1} parent=55 // pred_check
          %p390 = pneg %p112
        $region62: #{enc_sep_conv_layer.1} parent=55 // pred_check_branch
          %392 = sbr.rel (%p390) target = $region64
        $region63: #{enc_sep_conv_layer.1} parent=55 // pred_region
          %394 = dma.done [#allocation7], 64
        $region64: #{enc_sep_conv_layer.1} parent=55 // pred_fallthru
          _
        // Predicated region
        $region65: #{enc_sep_conv_layer.1} parent=55 // pred_check
          %p395 = pneg %p133
        $region66: #{enc_sep_conv_layer.1} parent=55 // pred_check_branch
          %397 = sbr.rel (%p395) target = $region68
        $region67: #{enc_sep_conv_layer.1} parent=55 // pred_region
          %399 = dma.done [#allocation7], 1024
        $region68: #{enc_sep_conv_layer.1} parent=55 // pred_fallthru
          _
        // Predicated region
        $region69: #{enc_sep_conv_layer.1} parent=55 // pred_check
          %p400 = pneg %p175
        $region70: #{enc_sep_conv_layer.1} parent=55 // pred_check_branch
          %402 = sbr.rel (%p400) target = $region72
        $region71: #{enc_sep_conv_layer.1} parent=55 // pred_region
          %404 = dma.done [#allocation10], 64
        $region72: #{enc_sep_conv_layer.1} parent=55 // pred_fallthru
          _
        // Predicated region
        $region73: #{enc_sep_conv_layer.1} parent=55 // pred_check
          %p405 = pneg %p196
        $region74: #{enc_sep_conv_layer.1} parent=55 // pred_check_branch
          %407 = sbr.rel (%p405) target = $region76
        $region75: #{enc_sep_conv_layer.1} parent=55 // pred_region
          %409 = dma.done [#allocation10], 1024
        $region76: #{enc_sep_conv_layer.1} parent=55 // pred_fallthru
          _
        %s410 = sand.u32 %s36, 1
        %s411 = scalar_lea.sflag [#allocation4], %s410
        %s412 = sand.u32 %s36, 1
        %s413 = smul.addr %s412, 512
        %s414 = scalar_lea.vmem [#allocation3], %s413
        %p415 = pneg %p49
        %p416 = pneg %p46
        %p417 = pneg %p70
        %p418 = pneg %p67
        %p419 = pneg %p91
        %p420 = pneg %p88
        %p421 = pneg %p112
        %p422 = pneg %p109
        %p423 = pneg %p133
        %p424 = pneg %p130
        %p425 = pneg %p154
        %p426 = pneg %p151
        %p427 = pneg %p175
        %p428 = pneg %p172
        %p429 = pneg %p196
        %p430 = pneg %p193
        %p431 = pneg %p217
        %p432 = pneg %p214
        %p433 = pneg %p243
        %p434 = pneg %p240
        %s435 = sand.u32 %s230, 1
        %s436 = scalar_lea.sflag [#allocation5], %s435
        %s437 = sand.u32 %s230, 1
        %s438 = smul.addr %s437, 512
        %s439 = scalar_lea.vmem [#allocation12], %s438
        %s440 = smul.u32 2, %s28
        %s441 = smul.u32 2, %s28
        %v442 = vld [vmem:[%s384] sm:$0xff]
        %v443 = vld [vmem:[%s384 + $0x8] sm:$0xff]
        %v444 = vld [vmem:[%s384 + $0x10] sm:$0xff]
        %v445 = vld [vmem:[%s384 + $0x18] sm:$0xff]
        %v446 = vld [vmem:[%s384 + $0x20] sm:$0xff]
        %v447 = vld [vmem:[%s384 + $0x28] sm:$0xff]
        %v448 = vld [vmem:[%s384 + $0x30] sm:$0xff]
        %v449 = vld [vmem:[%s384 + $0x38] sm:$0xff]
        %v450 = vld [vmem:[%s384 + $0x40] sm:$0xff]
        %v451 = vld [vmem:[%s384 + $0x48] sm:$0xff]
        %v452 = vld [vmem:[%s384 + $0x50] sm:$0xff]
        %v453 = vld [vmem:[%s384 + $0x58] sm:$0xff]
        %v454 = vld [vmem:[%s384 + $0x60] sm:$0xff]
        %v455 = vld [vmem:[%s384 + $0x68] sm:$0xff]
        %v456 = vld [vmem:[%s384 + $0x70] sm:$0xff]
        %v457 = vld [vmem:[%s384 + $0x78] sm:$0xff]
        %v458 = vld [vmem:[%s384 + $0x80] sm:$0xff]
        %v459 = vld [vmem:[%s384 + $0x88] sm:$0xff]
        %v460 = vld [vmem:[%s384 + $0x90] sm:$0xff]
        %v461 = vld [vmem:[%s384 + $0x98] sm:$0xff]
        %v462 = vld [vmem:[%s384 + $0xa0] sm:$0xff]
        %v463 = vld [vmem:[%s384 + $0xa8] sm:$0xff]
        %v464 = vld [vmem:[%s384 + $0xb0] sm:$0xff]
        %v465 = vld [vmem:[%s384 + $0xb8] sm:$0xff]
        %v466 = vld [vmem:[%s384 + $0xc0] sm:$0xff]
        %v467 = vld [vmem:[%s384 + $0xc8] sm:$0xff]
        %v468 = vld [vmem:[%s384 + $0xd0] sm:$0xff]
        %v469 = vld [vmem:[%s384 + $0xd8] sm:$0xff]
        %v470 = vld [vmem:[%s384 + $0xe0] sm:$0xff]
        %v471 = vld [vmem:[%s384 + $0xe8] sm:$0xff]
        %v472 = vld [vmem:[%s384 + $0xf0] sm:$0xff]
        %v473 = vld [vmem:[%s384 + $0xf8] sm:$0xff]
        %v474 = vld [vmem:[%s384 + $0x100] sm:$0xff]
        %v475 = vld [vmem:[%s384 + $0x108] sm:$0xff]
        %v476 = vld [vmem:[%s384 + $0x110] sm:$0xff]
        %v477 = vld [vmem:[%s384 + $0x118] sm:$0xff]
        %v478 = vld [vmem:[%s384 + $0x120] sm:$0xff]
        %v479 = vld [vmem:[%s384 + $0x128] sm:$0xff]
        %v480 = vld [vmem:[%s384 + $0x130] sm:$0xff]
        %v481 = vld [vmem:[%s384 + $0x138] sm:$0xff]
        %v482 = vld [vmem:[%s384 + $0x140] sm:$0xff]
        %v483 = vld [vmem:[%s384 + $0x148] sm:$0xff]
        %v484 = vld [vmem:[%s384 + $0x150] sm:$0xff]
        %v485 = vld [vmem:[%s384 + $0x158] sm:$0xff]
        %v486 = vld [vmem:[%s384 + $0x160] sm:$0xff]
        %v487 = vld [vmem:[%s384 + $0x168] sm:$0xff]
        %v488 = vld [vmem:[%s384 + $0x170] sm:$0xff]
        %v489 = vld [vmem:[%s384 + $0x178] sm:$0xff]
        %v490 = vld [vmem:[%s384 + $0x180] sm:$0xff]
        %v491 = vld [vmem:[%s384 + $0x188] sm:$0xff]
        %v492 = vld [vmem:[%s384 + $0x190] sm:$0xff]
        %v493 = vld [vmem:[%s384 + $0x198] sm:$0xff]
        %v494 = vld [vmem:[%s384 + $0x1a0] sm:$0xff]
        %v495 = vld [vmem:[%s384 + $0x1a8] sm:$0xff]
        %v496 = vld [vmem:[%s384 + $0x1b0] sm:$0xff]
        %v497 = vld [vmem:[%s384 + $0x1b8] sm:$0xff]
        %v498 = vld [vmem:[%s384 + $0x1c0] sm:$0xff]
        %v499 = vld [vmem:[%s384 + $0x1c8] sm:$0xff]
        %v500 = vld [vmem:[%s384 + $0x1d0] sm:$0xff]
        %v501 = vld [vmem:[%s384 + $0x1d8] sm:$0xff]
        %v502 = vld [vmem:[%s384 + $0x1e0] sm:$0xff]
        %v503 = vld [vmem:[%s384 + $0x1e8] sm:$0xff]
        %v504 = vld [vmem:[%s384 + $0x1f0] sm:$0xff]
        %v505 = vld [vmem:[%s384 + $0x1f8] sm:$0xff]
        %506 = vadd.xlane.f32.xlu0 %v442
        %v507 = vpop.xlane.xlu0 %506
        %508 = vadd.xlane.f32.xlu0 %v443
        %v509 = vpop.xlane.xlu0 %508
        %510 = vadd.xlane.f32.xlu0 %v444
        %v511 = vpop.xlane.xlu0 %510
        %512 = vadd.xlane.f32.xlu0 %v445
        %v513 = vpop.xlane.xlu0 %512
        %514 = vadd.xlane.f32.xlu0 %v446
        %v515 = vpop.xlane.xlu0 %514
        %516 = vadd.xlane.f32.xlu0 %v447
        %v517 = vpop.xlane.xlu0 %516
        %518 = vadd.xlane.f32.xlu0 %v448
        %v519 = vpop.xlane.xlu0 %518
        %520 = vadd.xlane.f32.xlu0 %v449
        %v521 = vpop.xlane.xlu0 %520
        %522 = vadd.xlane.f32.xlu0 %v450
        %v523 = vpop.xlane.xlu0 %522
        %524 = vadd.xlane.f32.xlu0 %v451
        %v525 = vpop.xlane.xlu0 %524
        %526 = vadd.xlane.f32.xlu0 %v452
        %v527 = vpop.xlane.xlu0 %526
        %528 = vadd.xlane.f32.xlu0 %v453
        %v529 = vpop.xlane.xlu0 %528
        %530 = vadd.xlane.f32.xlu0 %v454
        %v531 = vpop.xlane.xlu0 %530
        %532 = vadd.xlane.f32.xlu0 %v455
        %v533 = vpop.xlane.xlu0 %532
        %534 = vadd.xlane.f32.xlu0 %v456
        %v535 = vpop.xlane.xlu0 %534
        %536 = vadd.xlane.f32.xlu0 %v457
        %v537 = vpop.xlane.xlu0 %536
        %538 = vadd.xlane.f32.xlu0 %v458
        %v539 = vpop.xlane.xlu0 %538
        %540 = vadd.xlane.f32.xlu0 %v459
        %v541 = vpop.xlane.xlu0 %540
        %542 = vadd.xlane.f32.xlu0 %v460
        %v543 = vpop.xlane.xlu0 %542
        %544 = vadd.xlane.f32.xlu0 %v461
        %v545 = vpop.xlane.xlu0 %544
        %546 = vadd.xlane.f32.xlu0 %v462
        %v547 = vpop.xlane.xlu0 %546
        %548 = vadd.xlane.f32.xlu0 %v463
        %v549 = vpop.xlane.xlu0 %548
        %550 = vadd.xlane.f32.xlu0 %v464
        %v551 = vpop.xlane.xlu0 %550
        %552 = vadd.xlane.f32.xlu0 %v465
        %v553 = vpop.xlane.xlu0 %552
        %554 = vadd.xlane.f32.xlu0 %v466
        %v555 = vpop.xlane.xlu0 %554
        %556 = vadd.xlane.f32.xlu0 %v467
        %v557 = vpop.xlane.xlu0 %556
        %558 = vadd.xlane.f32.xlu0 %v468
        %v559 = vpop.xlane.xlu0 %558
        %560 = vadd.xlane.f32.xlu0 %v469
        %v561 = vpop.xlane.xlu0 %560
        %562 = vadd.xlane.f32.xlu0 %v470
        %v563 = vpop.xlane.xlu0 %562
        %564 = vadd.xlane.f32.xlu0 %v471
        %v565 = vpop.xlane.xlu0 %564
        %566 = vadd.xlane.f32.xlu0 %v472
        %v567 = vpop.xlane.xlu0 %566
        %568 = vadd.xlane.f32.xlu0 %v473
        %v569 = vpop.xlane.xlu0 %568
        %570 = vadd.xlane.f32.xlu0 %v474
        %v571 = vpop.xlane.xlu0 %570
        %572 = vadd.xlane.f32.xlu0 %v475
        %v573 = vpop.xlane.xlu0 %572
        %574 = vadd.xlane.f32.xlu0 %v476
        %v575 = vpop.xlane.xlu0 %574
        %576 = vadd.xlane.f32.xlu0 %v477
        %v577 = vpop.xlane.xlu0 %576
        %578 = vadd.xlane.f32.xlu0 %v478
        %v579 = vpop.xlane.xlu0 %578
        %580 = vadd.xlane.f32.xlu0 %v479
        %v581 = vpop.xlane.xlu0 %580
        %582 = vadd.xlane.f32.xlu0 %v480
        %v583 = vpop.xlane.xlu0 %582
        %584 = vadd.xlane.f32.xlu0 %v481
        %v585 = vpop.xlane.xlu0 %584
        %586 = vadd.xlane.f32.xlu0 %v482
        %v587 = vpop.xlane.xlu0 %586
        %588 = vadd.xlane.f32.xlu0 %v483
        %v589 = vpop.xlane.xlu0 %588
        %590 = vadd.xlane.f32.xlu0 %v484
        %v591 = vpop.xlane.xlu0 %590
        %592 = vadd.xlane.f32.xlu0 %v485
        %v593 = vpop.xlane.xlu0 %592
        %594 = vadd.xlane.f32.xlu0 %v486
        %v595 = vpop.xlane.xlu0 %594
        %596 = vadd.xlane.f32.xlu0 %v487
        %v597 = vpop.xlane.xlu0 %596
        %598 = vadd.xlane.f32.xlu0 %v488
        %v599 = vpop.xlane.xlu0 %598
        %600 = vadd.xlane.f32.xlu0 %v489
        %v601 = vpop.xlane.xlu0 %600
        %602 = vadd.xlane.f32.xlu0 %v490
        %v603 = vpop.xlane.xlu0 %602
        %604 = vadd.xlane.f32.xlu0 %v491
        %v605 = vpop.xlane.xlu0 %604
        %606 = vadd.xlane.f32.xlu0 %v492
        %v607 = vpop.xlane.xlu0 %606
        %608 = vadd.xlane.f32.xlu0 %v493
        %v609 = vpop.xlane.xlu0 %608
        %610 = vadd.xlane.f32.xlu0 %v494
        %v611 = vpop.xlane.xlu0 %610
        %612 = vadd.xlane.f32.xlu0 %v495
        %v613 = vpop.xlane.xlu0 %612
        %614 = vadd.xlane.f32.xlu0 %v496
        %v615 = vpop.xlane.xlu0 %614
        %616 = vadd.xlane.f32.xlu0 %v497
        %v617 = vpop.xlane.xlu0 %616
        %618 = vadd.xlane.f32.xlu0 %v498
        %v619 = vpop.xlane.xlu0 %618
        %620 = vadd.xlane.f32.xlu0 %v499
        %v621 = vpop.xlane.xlu0 %620
        %622 = vadd.xlane.f32.xlu0 %v500
        %v623 = vpop.xlane.xlu0 %622
        %624 = vadd.xlane.f32.xlu0 %v501
        %v625 = vpop.xlane.xlu0 %624
        %626 = vadd.xlane.f32.xlu0 %v502
        %v627 = vpop.xlane.xlu0 %626
        %628 = vadd.xlane.f32.xlu0 %v503
        %v629 = vpop.xlane.xlu0 %628
        %630 = vadd.xlane.f32.xlu0 %v504
        %v631 = vpop.xlane.xlu0 %630
        %632 = vadd.xlane.f32.xlu0 %v505
        %v633 = vpop.xlane.xlu0 %632
        %v634 = vrcp.pop 128.0
        %v635 = vmul.f32 128.0, %v634
        %v636 = vsub.f32 1.0, %v635
        %v637 = vmul.f32 %v634, %v636
        %v638 = vadd.f32 %v634, %v637
        %vm639 = vweird.f32 %v634
        %v640 = vsel %vm639, %v634, %v638
        %v641 = vmul.f32 %v507, %v640
        %v642 = vmul.f32 %v509, %v640
        %v643 = vmul.f32 %v511, %v640
        %v644 = vmul.f32 %v513, %v640
        %v645 = vmul.f32 %v515, %v640
        %v646 = vmul.f32 %v517, %v640
        %v647 = vmul.f32 %v519, %v640
        %v648 = vmul.f32 %v521, %v640
        %v649 = vmul.f32 %v523, %v640
        %v650 = vmul.f32 %v525, %v640
        %v651 = vmul.f32 %v527, %v640
        %v652 = vmul.f32 %v529, %v640
        %v653 = vmul.f32 %v531, %v640
        %v654 = vmul.f32 %v533, %v640
        %v655 = vmul.f32 %v535, %v640
        %v656 = vmul.f32 %v537, %v640
        %v657 = vmul.f32 %v539, %v640
        %v658 = vmul.f32 %v541, %v640
        %v659 = vmul.f32 %v543, %v640
        %v660 = vmul.f32 %v545, %v640
        %v661 = vmul.f32 %v547, %v640
        %v662 = vmul.f32 %v549, %v640
        %v663 = vmul.f32 %v551, %v640
        %v664 = vmul.f32 %v553, %v640
        %v665 = vmul.f32 %v555, %v640
        %v666 = vmul.f32 %v557, %v640
        %v667 = vmul.f32 %v559, %v640
        %v668 = vmul.f32 %v561, %v640
        %v669 = vmul.f32 %v563, %v640
        %v670 = vmul.f32 %v565, %v640
        %v671 = vmul.f32 %v567, %v640
        %v672 = vmul.f32 %v569, %v640
        %v673 = vmul.f32 %v571, %v640
        %v674 = vmul.f32 %v573, %v640
        %v675 = vmul.f32 %v575, %v640
        %v676 = vmul.f32 %v577, %v640
        %v677 = vmul.f32 %v579, %v640
        %v678 = vmul.f32 %v581, %v640
        %v679 = vmul.f32 %v583, %v640
        %v680 = vmul.f32 %v585, %v640
        %v681 = vmul.f32 %v587, %v640
        %v682 = vmul.f32 %v589, %v640
        %v683 = vmul.f32 %v591, %v640
        %v684 = vmul.f32 %v593, %v640
        %v685 = vmul.f32 %v595, %v640
        %v686 = vmul.f32 %v597, %v640
        %v687 = vmul.f32 %v599, %v640
        %v688 = vmul.f32 %v601, %v640
        %v689 = vmul.f32 %v603, %v640
        %v690 = vmul.f32 %v605, %v640
        %v691 = vmul.f32 %v607, %v640
        %v692 = vmul.f32 %v609, %v640
        %v693 = vmul.f32 %v611, %v640
        %v694 = vmul.f32 %v613, %v640
        %v695 = vmul.f32 %v615, %v640
        %v696 = vmul.f32 %v617, %v640
        %v697 = vmul.f32 %v619, %v640
        %v698 = vmul.f32 %v621, %v640
        %v699 = vmul.f32 %v623, %v640
        %v700 = vmul.f32 %v625, %v640
        %v701 = vmul.f32 %v627, %v640
        %v702 = vmul.f32 %v629, %v640
        %v703 = vmul.f32 %v631, %v640
        %v704 = vmul.f32 %v633, %v640
        %v705 = vsub.f32 %v442, %v641
        %v706 = vsub.f32 %v443, %v642
        %v707 = vsub.f32 %v444, %v643
        %v708 = vsub.f32 %v445, %v644
        %v709 = vsub.f32 %v446, %v645
        %v710 = vsub.f32 %v447, %v646
        %v711 = vsub.f32 %v448, %v647
        %v712 = vsub.f32 %v449, %v648
        %v713 = vsub.f32 %v450, %v649
        %v714 = vsub.f32 %v451, %v650
        %v715 = vsub.f32 %v452, %v651
        %v716 = vsub.f32 %v453, %v652
        %v717 = vsub.f32 %v454, %v653
        %v718 = vsub.f32 %v455, %v654
        %v719 = vsub.f32 %v456, %v655
        %v720 = vsub.f32 %v457, %v656
        %v721 = vsub.f32 %v458, %v657
        %v722 = vsub.f32 %v459, %v658
        %v723 = vsub.f32 %v460, %v659
        %v724 = vsub.f32 %v461, %v660
        %v725 = vsub.f32 %v462, %v661
        %v726 = vsub.f32 %v463, %v662
        %v727 = vsub.f32 %v464, %v663
        %v728 = vsub.f32 %v465, %v664
        %v729 = vsub.f32 %v466, %v665
        %v730 = vsub.f32 %v467, %v666
        %v731 = vsub.f32 %v468, %v667
        %v732 = vsub.f32 %v469, %v668
        %v733 = vsub.f32 %v470, %v669
        %v734 = vsub.f32 %v471, %v670
        %v735 = vsub.f32 %v472, %v671
        %v736 = vsub.f32 %v473, %v672
        %v737 = vsub.f32 %v474, %v673
        %v738 = vsub.f32 %v475, %v674
        %v739 = vsub.f32 %v476, %v675
        %v740 = vsub.f32 %v477, %v676
        %v741 = vsub.f32 %v478, %v677
        %v742 = vsub.f32 %v479, %v678
        %v743 = vsub.f32 %v480, %v679
        %v744 = vsub.f32 %v481, %v680
        %v745 = vsub.f32 %v482, %v681
        %v746 = vsub.f32 %v483, %v682
        %v747 = vsub.f32 %v484, %v683
        %v748 = vsub.f32 %v485, %v684
        %v749 = vsub.f32 %v486, %v685
        %v750 = vsub.f32 %v487, %v686
        %v751 = vsub.f32 %v488, %v687
        %v752 = vsub.f32 %v489, %v688
        %v753 = vsub.f32 %v490, %v689
        %v754 = vsub.f32 %v491, %v690
        %v755 = vsub.f32 %v492, %v691
        %v756 = vsub.f32 %v493, %v692
        %v757 = vsub.f32 %v494, %v693
        %v758 = vsub.f32 %v495, %v694
        %v759 = vsub.f32 %v496, %v695
        %v760 = vsub.f32 %v497, %v696
        %v761 = vsub.f32 %v498, %v697
        %v762 = vsub.f32 %v499, %v698
        %v763 = vsub.f32 %v500, %v699
        %v764 = vsub.f32 %v501, %v700
        %v765 = vsub.f32 %v502, %v701
        %v766 = vsub.f32 %v503, %v702
        %v767 = vsub.f32 %v504, %v703
        %v768 = vsub.f32 %v505, %v704
        %v769 = vmul.f32 %v705, %v705
        %v770 = vmul.f32 %v706, %v706
        %v771 = vmul.f32 %v707, %v707
        %v772 = vmul.f32 %v708, %v708
        %v773 = vmul.f32 %v709, %v709
        %v774 = vmul.f32 %v710, %v710
        %v775 = vmul.f32 %v711, %v711
        %v776 = vmul.f32 %v712, %v712
        %v777 = vmul.f32 %v713, %v713
        %v778 = vmul.f32 %v714, %v714
        %v779 = vmul.f32 %v715, %v715
        %v780 = vmul.f32 %v716, %v716
        %v781 = vmul.f32 %v717, %v717
        %v782 = vmul.f32 %v718, %v718
        %v783 = vmul.f32 %v719, %v719
        %v784 = vmul.f32 %v720, %v720
        %v785 = vmul.f32 %v721, %v721
        %v786 = vmul.f32 %v722, %v722
        %v787 = vmul.f32 %v723, %v723
        %v788 = vmul.f32 %v724, %v724
        %v789 = vmul.f32 %v725, %v725
        %v790 = vmul.f32 %v726, %v726
        %v791 = vmul.f32 %v727, %v727
        %v792 = vmul.f32 %v728, %v728
        %v793 = vmul.f32 %v729, %v729
        %v794 = vmul.f32 %v730, %v730
        %v795 = vmul.f32 %v731, %v731
        %v796 = vmul.f32 %v732, %v732
        %v797 = vmul.f32 %v733, %v733
        %v798 = vmul.f32 %v734, %v734
        %v799 = vmul.f32 %v735, %v735
        %v800 = vmul.f32 %v736, %v736
        %v801 = vmul.f32 %v737, %v737
        %v802 = vmul.f32 %v738, %v738
        %v803 = vmul.f32 %v739, %v739
        %v804 = vmul.f32 %v740, %v740
        %v805 = vmul.f32 %v741, %v741
        %v806 = vmul.f32 %v742, %v742
        %v807 = vmul.f32 %v743, %v743
        %v808 = vmul.f32 %v744, %v744
        %v809 = vmul.f32 %v745, %v745
        %v810 = vmul.f32 %v746, %v746
        %v811 = vmul.f32 %v747, %v747
        %v812 = vmul.f32 %v748, %v748
        %v813 = vmul.f32 %v749, %v749
        %v814 = vmul.f32 %v750, %v750
        %v815 = vmul.f32 %v751, %v751
        %v816 = vmul.f32 %v752, %v752
        %v817 = vmul.f32 %v753, %v753
        %v818 = vmul.f32 %v754, %v754
        %v819 = vmul.f32 %v755, %v755
        %v820 = vmul.f32 %v756, %v756
        %v821 = vmul.f32 %v757, %v757
        %v822 = vmul.f32 %v758, %v758
        %v823 = vmul.f32 %v759, %v759
        %v824 = vmul.f32 %v760, %v760
        %v825 = vmul.f32 %v761, %v761
        %v826 = vmul.f32 %v762, %v762
        %v827 = vmul.f32 %v763, %v763
        %v828 = vmul.f32 %v764, %v764
        %v829 = vmul.f32 %v765, %v765
        %v830 = vmul.f32 %v766, %v766
        %v831 = vmul.f32 %v767, %v767
        %v832 = vmul.f32 %v768, %v768
        %833 = vadd.xlane.f32.xlu0 %v769
        %v834 = vpop.xlane.xlu0 %833
        %835 = vadd.xlane.f32.xlu0 %v770
        %v836 = vpop.xlane.xlu0 %835
        %837 = vadd.xlane.f32.xlu0 %v771
        %v838 = vpop.xlane.xlu0 %837
        %839 = vadd.xlane.f32.xlu0 %v772
        %v840 = vpop.xlane.xlu0 %839
        %841 = vadd.xlane.f32.xlu0 %v773
        %v842 = vpop.xlane.xlu0 %841
        %843 = vadd.xlane.f32.xlu0 %v774
        %v844 = vpop.xlane.xlu0 %843
        %845 = vadd.xlane.f32.xlu0 %v775
        %v846 = vpop.xlane.xlu0 %845
        %847 = vadd.xlane.f32.xlu0 %v776
        %v848 = vpop.xlane.xlu0 %847
        %849 = vadd.xlane.f32.xlu0 %v777
        %v850 = vpop.xlane.xlu0 %849
        %851 = vadd.xlane.f32.xlu0 %v778
        %v852 = vpop.xlane.xlu0 %851
        %853 = vadd.xlane.f32.xlu0 %v779
        %v854 = vpop.xlane.xlu0 %853
        %855 = vadd.xlane.f32.xlu0 %v780
        %v856 = vpop.xlane.xlu0 %855
        %857 = vadd.xlane.f32.xlu0 %v781
        %v858 = vpop.xlane.xlu0 %857
        %859 = vadd.xlane.f32.xlu0 %v782
        %v860 = vpop.xlane.xlu0 %859
        %861 = vadd.xlane.f32.xlu0 %v783
        %v862 = vpop.xlane.xlu0 %861
        %863 = vadd.xlane.f32.xlu0 %v784
        %v864 = vpop.xlane.xlu0 %863
        %865 = vadd.xlane.f32.xlu0 %v785
        %v866 = vpop.xlane.xlu0 %865
        %867 = vadd.xlane.f32.xlu0 %v786
        %v868 = vpop.xlane.xlu0 %867
        %869 = vadd.xlane.f32.xlu0 %v787
        %v870 = vpop.xlane.xlu0 %869
        %871 = vadd.xlane.f32.xlu0 %v788
        %v872 = vpop.xlane.xlu0 %871
        %873 = vadd.xlane.f32.xlu0 %v789
        %v874 = vpop.xlane.xlu0 %873
        %875 = vadd.xlane.f32.xlu0 %v790
        %v876 = vpop.xlane.xlu0 %875
        %877 = vadd.xlane.f32.xlu0 %v791
        %v878 = vpop.xlane.xlu0 %877
        %879 = vadd.xlane.f32.xlu0 %v792
        %v880 = vpop.xlane.xlu0 %879
        %881 = vadd.xlane.f32.xlu0 %v793
        %v882 = vpop.xlane.xlu0 %881
        %883 = vadd.xlane.f32.xlu0 %v794
        %v884 = vpop.xlane.xlu0 %883
        %885 = vadd.xlane.f32.xlu0 %v795
        %v886 = vpop.xlane.xlu0 %885
        %887 = vadd.xlane.f32.xlu0 %v796
        %v888 = vpop.xlane.xlu0 %887
        %889 = vadd.xlane.f32.xlu0 %v797
        %v890 = vpop.xlane.xlu0 %889
        %891 = vadd.xlane.f32.xlu0 %v798
        %v892 = vpop.xlane.xlu0 %891
        %893 = vadd.xlane.f32.xlu0 %v799
        %v894 = vpop.xlane.xlu0 %893
        %895 = vadd.xlane.f32.xlu0 %v800
        %v896 = vpop.xlane.xlu0 %895
        %897 = vadd.xlane.f32.xlu0 %v801
        %v898 = vpop.xlane.xlu0 %897
        %899 = vadd.xlane.f32.xlu0 %v802
        %v900 = vpop.xlane.xlu0 %899
        %901 = vadd.xlane.f32.xlu0 %v803
        %v902 = vpop.xlane.xlu0 %901
        %903 = vadd.xlane.f32.xlu0 %v804
        %v904 = vpop.xlane.xlu0 %903
        %905 = vadd.xlane.f32.xlu0 %v805
        %v906 = vpop.xlane.xlu0 %905
        %907 = vadd.xlane.f32.xlu0 %v806
        %v908 = vpop.xlane.xlu0 %907
        %909 = vadd.xlane.f32.xlu0 %v807
        %v910 = vpop.xlane.xlu0 %909
        %911 = vadd.xlane.f32.xlu0 %v808
        %v912 = vpop.xlane.xlu0 %911
        %913 = vadd.xlane.f32.xlu0 %v809
        %v914 = vpop.xlane.xlu0 %913
        %915 = vadd.xlane.f32.xlu0 %v810
        %v916 = vpop.xlane.xlu0 %915
        %917 = vadd.xlane.f32.xlu0 %v811
        %v918 = vpop.xlane.xlu0 %917
        %919 = vadd.xlane.f32.xlu0 %v812
        %v920 = vpop.xlane.xlu0 %919
        %921 = vadd.xlane.f32.xlu0 %v813
        %v922 = vpop.xlane.xlu0 %921
        %923 = vadd.xlane.f32.xlu0 %v814
        %v924 = vpop.xlane.xlu0 %923
        %925 = vadd.xlane.f32.xlu0 %v815
        %v926 = vpop.xlane.xlu0 %925
        %927 = vadd.xlane.f32.xlu0 %v816
        %v928 = vpop.xlane.xlu0 %927
        %929 = vadd.xlane.f32.xlu0 %v817
        %v930 = vpop.xlane.xlu0 %929
        %931 = vadd.xlane.f32.xlu0 %v818
        %v932 = vpop.xlane.xlu0 %931
        %933 = vadd.xlane.f32.xlu0 %v819
        %v934 = vpop.xlane.xlu0 %933
        %935 = vadd.xlane.f32.xlu0 %v820
        %v936 = vpop.xlane.xlu0 %935
        %937 = vadd.xlane.f32.xlu0 %v821
        %v938 = vpop.xlane.xlu0 %937
        %939 = vadd.xlane.f32.xlu0 %v822
        %v940 = vpop.xlane.xlu0 %939
        %941 = vadd.xlane.f32.xlu0 %v823
        %v942 = vpop.xlane.xlu0 %941
        %943 = vadd.xlane.f32.xlu0 %v824
        %v944 = vpop.xlane.xlu0 %943
        %945 = vadd.xlane.f32.xlu0 %v825
        %v946 = vpop.xlane.xlu0 %945
        %947 = vadd.xlane.f32.xlu0 %v826
        %v948 = vpop.xlane.xlu0 %947
        %949 = vadd.xlane.f32.xlu0 %v827
        %v950 = vpop.xlane.xlu0 %949
        %951 = vadd.xlane.f32.xlu0 %v828
        %v952 = vpop.xlane.xlu0 %951
        %953 = vadd.xlane.f32.xlu0 %v829
        %v954 = vpop.xlane.xlu0 %953
        %955 = vadd.xlane.f32.xlu0 %v830
        %v956 = vpop.xlane.xlu0 %955
        %957 = vadd.xlane.f32.xlu0 %v831
        %v958 = vpop.xlane.xlu0 %957
        %959 = vadd.xlane.f32.xlu0 %v832
        %v960 = vpop.xlane.xlu0 %959
        %v961 = vmul.f32 %v834, %v640
        %v962 = vmul.f32 %v836, %v640
        %v963 = vmul.f32 %v838, %v640
        %v964 = vmul.f32 %v840, %v640
        %v965 = vmul.f32 %v842, %v640
        %v966 = vmul.f32 %v844, %v640
        %v967 = vmul.f32 %v846, %v640
        %v968 = vmul.f32 %v848, %v640
        %v969 = vmul.f32 %v850, %v640
        %v970 = vmul.f32 %v852, %v640
        %v971 = vmul.f32 %v854, %v640
        %v972 = vmul.f32 %v856, %v640
        %v973 = vmul.f32 %v858, %v640
        %v974 = vmul.f32 %v860, %v640
        %v975 = vmul.f32 %v862, %v640
        %v976 = vmul.f32 %v864, %v640
        %v977 = vmul.f32 %v866, %v640
        %v978 = vmul.f32 %v868, %v640
        %v979 = vmul.f32 %v870, %v640
        %v980 = vmul.f32 %v872, %v640
        %v981 = vmul.f32 %v874, %v640
        %v982 = vmul.f32 %v876, %v640
        %v983 = vmul.f32 %v878, %v640
        %v984 = vmul.f32 %v880, %v640
        %v985 = vmul.f32 %v882, %v640
        %v986 = vmul.f32 %v884, %v640
        %v987 = vmul.f32 %v886, %v640
        %v988 = vmul.f32 %v888, %v640
        %v989 = vmul.f32 %v890, %v640
        %v990 = vmul.f32 %v892, %v640
        %v991 = vmul.f32 %v894, %v640
        %v992 = vmul.f32 %v896, %v640
        %v993 = vmul.f32 %v898, %v640
        %v994 = vmul.f32 %v900, %v640
        %v995 = vmul.f32 %v902, %v640
        %v996 = vmul.f32 %v904, %v640
        %v997 = vmul.f32 %v906, %v640
        %v998 = vmul.f32 %v908, %v640
        %v999 = vmul.f32 %v910, %v640
        %v1000 = vmul.f32 %v912, %v640
        %v1001 = vmul.f32 %v914, %v640
        %v1002 = vmul.f32 %v916, %v640
        %v1003 = vmul.f32 %v918, %v640
        %v1004 = vmul.f32 %v920, %v640
        %v1005 = vmul.f32 %v922, %v640
        %v1006 = vmul.f32 %v924, %v640
        %v1007 = vmul.f32 %v926, %v640
        %v1008 = vmul.f32 %v928, %v640
        %v1009 = vmul.f32 %v930, %v640
        %v1010 = vmul.f32 %v932, %v640
        %v1011 = vmul.f32 %v934, %v640
        %v1012 = vmul.f32 %v936, %v640
        %v1013 = vmul.f32 %v938, %v640
        %v1014 = vmul.f32 %v940, %v640
        %v1015 = vmul.f32 %v942, %v640
        %v1016 = vmul.f32 %v944, %v640
        %v1017 = vmul.f32 %v946, %v640
        %v1018 = vmul.f32 %v948, %v640
        %v1019 = vmul.f32 %v950, %v640
        %v1020 = vmul.f32 %v952, %v640
        %v1021 = vmul.f32 %v954, %v640
        %v1022 = vmul.f32 %v956, %v640
        %v1023 = vmul.f32 %v958, %v640
        %v1024 = vmul.f32 %v960, %v640
        %v1025 = vadd.f32 %v961, 1e-06
        %v1026 = vadd.f32 %v962, 1e-06
        %v1027 = vadd.f32 %v963, 1e-06
        %v1028 = vadd.f32 %v964, 1e-06
        %v1029 = vadd.f32 %v965, 1e-06
        %v1030 = vadd.f32 %v966, 1e-06
        %v1031 = vadd.f32 %v967, 1e-06
        %v1032 = vadd.f32 %v968, 1e-06
        %v1033 = vadd.f32 %v969, 1e-06
        %v1034 = vadd.f32 %v970, 1e-06
        %v1035 = vadd.f32 %v971, 1e-06
        %v1036 = vadd.f32 %v972, 1e-06
        %v1037 = vadd.f32 %v973, 1e-06
        %v1038 = vadd.f32 %v974, 1e-06
        %v1039 = vadd.f32 %v975, 1e-06
        %v1040 = vadd.f32 %v976, 1e-06
        %v1041 = vadd.f32 %v977, 1e-06
        %v1042 = vadd.f32 %v978, 1e-06
        %v1043 = vadd.f32 %v979, 1e-06
        %v1044 = vadd.f32 %v980, 1e-06
        %v1045 = vadd.f32 %v981, 1e-06
        %v1046 = vadd.f32 %v982, 1e-06
        %v1047 = vadd.f32 %v983, 1e-06
        %v1048 = vadd.f32 %v984, 1e-06
        %v1049 = vadd.f32 %v985, 1e-06
        %v1050 = vadd.f32 %v986, 1e-06
        %v1051 = vadd.f32 %v987, 1e-06
        %v1052 = vadd.f32 %v988, 1e-06
        %v1053 = vadd.f32 %v989, 1e-06
        %v1054 = vadd.f32 %v990, 1e-06
        %v1055 = vadd.f32 %v991, 1e-06
        %v1056 = vadd.f32 %v992, 1e-06
        %v1057 = vadd.f32 %v993, 1e-06
        %v1058 = vadd.f32 %v994, 1e-06
        %v1059 = vadd.f32 %v995, 1e-06
        %v1060 = vadd.f32 %v996, 1e-06
        %v1061 = vadd.f32 %v997, 1e-06
        %v1062 = vadd.f32 %v998, 1e-06
        %v1063 = vadd.f32 %v999, 1e-06
        %v1064 = vadd.f32 %v1000, 1e-06
        %v1065 = vadd.f32 %v1001, 1e-06
        %v1066 = vadd.f32 %v1002, 1e-06
        %v1067 = vadd.f32 %v1003, 1e-06
        %v1068 = vadd.f32 %v1004, 1e-06
        %v1069 = vadd.f32 %v1005, 1e-06
        %v1070 = vadd.f32 %v1006, 1e-06
        %v1071 = vadd.f32 %v1007, 1e-06
        %v1072 = vadd.f32 %v1008, 1e-06
        %v1073 = vadd.f32 %v1009, 1e-06
        %v1074 = vadd.f32 %v1010, 1e-06
        %v1075 = vadd.f32 %v1011, 1e-06
        %v1076 = vadd.f32 %v1012, 1e-06
        %v1077 = vadd.f32 %v1013, 1e-06
        %v1078 = vadd.f32 %v1014, 1e-06
        %v1079 = vadd.f32 %v1015, 1e-06
        %v1080 = vadd.f32 %v1016, 1e-06
        %v1081 = vadd.f32 %v1017, 1e-06
        %v1082 = vadd.f32 %v1018, 1e-06
        %v1083 = vadd.f32 %v1019, 1e-06
        %v1084 = vadd.f32 %v1020, 1e-06
        %v1085 = vadd.f32 %v1021, 1e-06
        %v1086 = vadd.f32 %v1022, 1e-06
        %v1087 = vadd.f32 %v1023, 1e-06
        %v1088 = vadd.f32 %v1024, 1e-06
        %v1089 = vrsqrt.pop %v1025
        %v1090 = vmul.f32 %v1089, %v1025
        %v1091 = vmul.f32 %v1090, %v1089
        %v1092 = vmul.f32 0.5, %v1091
        %v1093 = vsub.f32 1.5, %v1092
        %v1094 = vmul.f32 %v1089, %v1093
        %vm1095 = vweird.f32 %v1025
        %vm1096 = vweird.f32 %v1089
        %vm1097 = vmor %vm1095, %vm1096
        %v1098 = vsel %vm1097, %v1089, %v1094
        %v1099 = vrsqrt.pop %v1026
        %v1100 = vmul.f32 %v1099, %v1026
        %v1101 = vmul.f32 %v1100, %v1099
        %v1102 = vmul.f32 0.5, %v1101
        %v1103 = vsub.f32 1.5, %v1102
        %v1104 = vmul.f32 %v1099, %v1103
        %vm1105 = vweird.f32 %v1026
        %vm1106 = vweird.f32 %v1099
        %vm1107 = vmor %vm1105, %vm1106
        %v1108 = vsel %vm1107, %v1099, %v1104
        %v1109 = vrsqrt.pop %v1027
        %v1110 = vmul.f32 %v1109, %v1027
        %v1111 = vmul.f32 %v1110, %v1109
        %v1112 = vmul.f32 0.5, %v1111
        %v1113 = vsub.f32 1.5, %v1112
        %v1114 = vmul.f32 %v1109, %v1113
        %vm1115 = vweird.f32 %v1027
        %vm1116 = vweird.f32 %v1109
        %vm1117 = vmor %vm1115, %vm1116
        %v1118 = vsel %vm1117, %v1109, %v1114
        %v1119 = vrsqrt.pop %v1028
        %v1120 = vmul.f32 %v1119, %v1028
        %v1121 = vmul.f32 %v1120, %v1119
        %v1122 = vmul.f32 0.5, %v1121
        %v1123 = vsub.f32 1.5, %v1122
        %v1124 = vmul.f32 %v1119, %v1123
        %vm1125 = vweird.f32 %v1028
        %vm1126 = vweird.f32 %v1119
        %vm1127 = vmor %vm1125, %vm1126
        %v1128 = vsel %vm1127, %v1119, %v1124
        %v1129 = vrsqrt.pop %v1029
        %v1130 = vmul.f32 %v1129, %v1029
        %v1131 = vmul.f32 %v1130, %v1129
        %v1132 = vmul.f32 0.5, %v1131
        %v1133 = vsub.f32 1.5, %v1132
        %v1134 = vmul.f32 %v1129, %v1133
        %vm1135 = vweird.f32 %v1029
        %vm1136 = vweird.f32 %v1129
        %vm1137 = vmor %vm1135, %vm1136
        %v1138 = vsel %vm1137, %v1129, %v1134
        %v1139 = vrsqrt.pop %v1030
        %v1140 = vmul.f32 %v1139, %v1030
        %v1141 = vmul.f32 %v1140, %v1139
        %v1142 = vmul.f32 0.5, %v1141
        %v1143 = vsub.f32 1.5, %v1142
        %v1144 = vmul.f32 %v1139, %v1143
        %vm1145 = vweird.f32 %v1030
        %vm1146 = vweird.f32 %v1139
        %vm1147 = vmor %vm1145, %vm1146
        %v1148 = vsel %vm1147, %v1139, %v1144
        %v1149 = vrsqrt.pop %v1031
        %v1150 = vmul.f32 %v1149, %v1031
        %v1151 = vmul.f32 %v1150, %v1149
        %v1152 = vmul.f32 0.5, %v1151
        %v1153 = vsub.f32 1.5, %v1152
        %v1154 = vmul.f32 %v1149, %v1153
        %vm1155 = vweird.f32 %v1031
        %vm1156 = vweird.f32 %v1149
        %vm1157 = vmor %vm1155, %vm1156
        %v1158 = vsel %vm1157, %v1149, %v1154
        %v1159 = vrsqrt.pop %v1032
        %v1160 = vmul.f32 %v1159, %v1032
        %v1161 = vmul.f32 %v1160, %v1159
        %v1162 = vmul.f32 0.5, %v1161
        %v1163 = vsub.f32 1.5, %v1162
        %v1164 = vmul.f32 %v1159, %v1163
        %vm1165 = vweird.f32 %v1032
        %vm1166 = vweird.f32 %v1159
        %vm1167 = vmor %vm1165, %vm1166
        %v1168 = vsel %vm1167, %v1159, %v1164
        %v1169 = vrsqrt.pop %v1033
        %v1170 = vmul.f32 %v1169, %v1033
        %v1171 = vmul.f32 %v1170, %v1169
        %v1172 = vmul.f32 0.5, %v1171
        %v1173 = vsub.f32 1.5, %v1172
        %v1174 = vmul.f32 %v1169, %v1173
        %vm1175 = vweird.f32 %v1033
        %vm1176 = vweird.f32 %v1169
        %vm1177 = vmor %vm1175, %vm1176
        %v1178 = vsel %vm1177, %v1169, %v1174
        %v1179 = vrsqrt.pop %v1034
        %v1180 = vmul.f32 %v1179, %v1034
        %v1181 = vmul.f32 %v1180, %v1179
        %v1182 = vmul.f32 0.5, %v1181
        %v1183 = vsub.f32 1.5, %v1182
        %v1184 = vmul.f32 %v1179, %v1183
        %vm1185 = vweird.f32 %v1034
        %vm1186 = vweird.f32 %v1179
        %vm1187 = vmor %vm1185, %vm1186
        %v1188 = vsel %vm1187, %v1179, %v1184
        %v1189 = vrsqrt.pop %v1035
        %v1190 = vmul.f32 %v1189, %v1035
        %v1191 = vmul.f32 %v1190, %v1189
        %v1192 = vmul.f32 0.5, %v1191
        %v1193 = vsub.f32 1.5, %v1192
        %v1194 = vmul.f32 %v1189, %v1193
        %vm1195 = vweird.f32 %v1035
        %vm1196 = vweird.f32 %v1189
        %vm1197 = vmor %vm1195, %vm1196
        %v1198 = vsel %vm1197, %v1189, %v1194
        %v1199 = vrsqrt.pop %v1036
        %v1200 = vmul.f32 %v1199, %v1036
        %v1201 = vmul.f32 %v1200, %v1199
        %v1202 = vmul.f32 0.5, %v1201
        %v1203 = vsub.f32 1.5, %v1202
        %v1204 = vmul.f32 %v1199, %v1203
        %vm1205 = vweird.f32 %v1036
        %vm1206 = vweird.f32 %v1199
        %vm1207 = vmor %vm1205, %vm1206
        %v1208 = vsel %vm1207, %v1199, %v1204
        %v1209 = vrsqrt.pop %v1037
        %v1210 = vmul.f32 %v1209, %v1037
        %v1211 = vmul.f32 %v1210, %v1209
        %v1212 = vmul.f32 0.5, %v1211
        %v1213 = vsub.f32 1.5, %v1212
        %v1214 = vmul.f32 %v1209, %v1213
        %vm1215 = vweird.f32 %v1037
        %vm1216 = vweird.f32 %v1209
        %vm1217 = vmor %vm1215, %vm1216
        %v1218 = vsel %vm1217, %v1209, %v1214
        %v1219 = vrsqrt.pop %v1038
        %v1220 = vmul.f32 %v1219, %v1038
        %v1221 = vmul.f32 %v1220, %v1219
        %v1222 = vmul.f32 0.5, %v1221
        %v1223 = vsub.f32 1.5, %v1222
        %v1224 = vmul.f32 %v1219, %v1223
        %vm1225 = vweird.f32 %v1038
        %vm1226 = vweird.f32 %v1219
        %vm1227 = vmor %vm1225, %vm1226
        %v1228 = vsel %vm1227, %v1219, %v1224
        %v1229 = vrsqrt.pop %v1039
        %v1230 = vmul.f32 %v1229, %v1039
        %v1231 = vmul.f32 %v1230, %v1229
        %v1232 = vmul.f32 0.5, %v1231
        %v1233 = vsub.f32 1.5, %v1232
        %v1234 = vmul.f32 %v1229, %v1233
        %vm1235 = vweird.f32 %v1039
        %vm1236 = vweird.f32 %v1229
        %vm1237 = vmor %vm1235, %vm1236
        %v1238 = vsel %vm1237, %v1229, %v1234
        %v1239 = vrsqrt.pop %v1040
        %v1240 = vmul.f32 %v1239, %v1040
        %v1241 = vmul.f32 %v1240, %v1239
        %v1242 = vmul.f32 0.5, %v1241
        %v1243 = vsub.f32 1.5, %v1242
        %v1244 = vmul.f32 %v1239, %v1243
        %vm1245 = vweird.f32 %v1040
        %vm1246 = vweird.f32 %v1239
        %vm1247 = vmor %vm1245, %vm1246
        %v1248 = vsel %vm1247, %v1239, %v1244
        %v1249 = vrsqrt.pop %v1041
        %v1250 = vmul.f32 %v1249, %v1041
        %v1251 = vmul.f32 %v1250, %v1249
        %v1252 = vmul.f32 0.5, %v1251
        %v1253 = vsub.f32 1.5, %v1252
        %v1254 = vmul.f32 %v1249, %v1253
        %vm1255 = vweird.f32 %v1041
        %vm1256 = vweird.f32 %v1249
        %vm1257 = vmor %vm1255, %vm1256
        %v1258 = vsel %vm1257, %v1249, %v1254
        %v1259 = vrsqrt.pop %v1042
        %v1260 = vmul.f32 %v1259, %v1042
        %v1261 = vmul.f32 %v1260, %v1259
        %v1262 = vmul.f32 0.5, %v1261
        %v1263 = vsub.f32 1.5, %v1262
        %v1264 = vmul.f32 %v1259, %v1263
        %vm1265 = vweird.f32 %v1042
        %vm1266 = vweird.f32 %v1259
        %vm1267 = vmor %vm1265, %vm1266
        %v1268 = vsel %vm1267, %v1259, %v1264
        %v1269 = vrsqrt.pop %v1043
        %v1270 = vmul.f32 %v1269, %v1043
        %v1271 = vmul.f32 %v1270, %v1269
        %v1272 = vmul.f32 0.5, %v1271
        %v1273 = vsub.f32 1.5, %v1272
        %v1274 = vmul.f32 %v1269, %v1273
        %vm1275 = vweird.f32 %v1043
        %vm1276 = vweird.f32 %v1269
        %vm1277 = vmor %vm1275, %vm1276
        %v1278 = vsel %vm1277, %v1269, %v1274
        %v1279 = vrsqrt.pop %v1044
        %v1280 = vmul.f32 %v1279, %v1044
        %v1281 = vmul.f32 %v1280, %v1279
        %v1282 = vmul.f32 0.5, %v1281
        %v1283 = vsub.f32 1.5, %v1282
        %v1284 = vmul.f32 %v1279, %v1283
        %vm1285 = vweird.f32 %v1044
        %vm1286 = vweird.f32 %v1279
        %vm1287 = vmor %vm1285, %vm1286
        %v1288 = vsel %vm1287, %v1279, %v1284
        %v1289 = vrsqrt.pop %v1045
        %v1290 = vmul.f32 %v1289, %v1045
        %v1291 = vmul.f32 %v1290, %v1289
        %v1292 = vmul.f32 0.5, %v1291
        %v1293 = vsub.f32 1.5, %v1292
        %v1294 = vmul.f32 %v1289, %v1293
        %vm1295 = vweird.f32 %v1045
        %vm1296 = vweird.f32 %v1289
        %vm1297 = vmor %vm1295, %vm1296
        %v1298 = vsel %vm1297, %v1289, %v1294
        %v1299 = vrsqrt.pop %v1046
        %v1300 = vmul.f32 %v1299, %v1046
        %v1301 = vmul.f32 %v1300, %v1299
        %v1302 = vmul.f32 0.5, %v1301
        %v1303 = vsub.f32 1.5, %v1302
        %v1304 = vmul.f32 %v1299, %v1303
        %vm1305 = vweird.f32 %v1046
        %vm1306 = vweird.f32 %v1299
        %vm1307 = vmor %vm1305, %vm1306
        %v1308 = vsel %vm1307, %v1299, %v1304
        %v1309 = vrsqrt.pop %v1047
        %v1310 = vmul.f32 %v1309, %v1047
        %v1311 = vmul.f32 %v1310, %v1309
        %v1312 = vmul.f32 0.5, %v1311
        %v1313 = vsub.f32 1.5, %v1312
        %v1314 = vmul.f32 %v1309, %v1313
        %vm1315 = vweird.f32 %v1047
        %vm1316 = vweird.f32 %v1309
        %vm1317 = vmor %vm1315, %vm1316
        %v1318 = vsel %vm1317, %v1309, %v1314
        %v1319 = vrsqrt.pop %v1048
        %v1320 = vmul.f32 %v1319, %v1048
        %v1321 = vmul.f32 %v1320, %v1319
        %v1322 = vmul.f32 0.5, %v1321
        %v1323 = vsub.f32 1.5, %v1322
        %v1324 = vmul.f32 %v1319, %v1323
        %vm1325 = vweird.f32 %v1048
        %vm1326 = vweird.f32 %v1319
        %vm1327 = vmor %vm1325, %vm1326
        %v1328 = vsel %vm1327, %v1319, %v1324
        %v1329 = vrsqrt.pop %v1049
        %v1330 = vmul.f32 %v1329, %v1049
        %v1331 = vmul.f32 %v1330, %v1329
        %v1332 = vmul.f32 0.5, %v1331
        %v1333 = vsub.f32 1.5, %v1332
        %v1334 = vmul.f32 %v1329, %v1333
        %vm1335 = vweird.f32 %v1049
        %vm1336 = vweird.f32 %v1329
        %vm1337 = vmor %vm1335, %vm1336
        %v1338 = vsel %vm1337, %v1329, %v1334
        %v1339 = vrsqrt.pop %v1050
        %v1340 = vmul.f32 %v1339, %v1050
        %v1341 = vmul.f32 %v1340, %v1339
        %v1342 = vmul.f32 0.5, %v1341
        %v1343 = vsub.f32 1.5, %v1342
        %v1344 = vmul.f32 %v1339, %v1343
        %vm1345 = vweird.f32 %v1050
        %vm1346 = vweird.f32 %v1339
        %vm1347 = vmor %vm1345, %vm1346
        %v1348 = vsel %vm1347, %v1339, %v1344
        %v1349 = vrsqrt.pop %v1051
        %v1350 = vmul.f32 %v1349, %v1051
        %v1351 = vmul.f32 %v1350, %v1349
        %v1352 = vmul.f32 0.5, %v1351
        %v1353 = vsub.f32 1.5, %v1352
        %v1354 = vmul.f32 %v1349, %v1353
        %vm1355 = vweird.f32 %v1051
        %vm1356 = vweird.f32 %v1349
        %vm1357 = vmor %vm1355, %vm1356
        %v1358 = vsel %vm1357, %v1349, %v1354
        %v1359 = vrsqrt.pop %v1052
        %v1360 = vmul.f32 %v1359, %v1052
        %v1361 = vmul.f32 %v1360, %v1359
        %v1362 = vmul.f32 0.5, %v1361
        %v1363 = vsub.f32 1.5, %v1362
        %v1364 = vmul.f32 %v1359, %v1363
        %vm1365 = vweird.f32 %v1052
        %vm1366 = vweird.f32 %v1359
        %vm1367 = vmor %vm1365, %vm1366
        %v1368 = vsel %vm1367, %v1359, %v1364
        %v1369 = vrsqrt.pop %v1053
        %v1370 = vmul.f32 %v1369, %v1053
        %v1371 = vmul.f32 %v1370, %v1369
        %v1372 = vmul.f32 0.5, %v1371
        %v1373 = vsub.f32 1.5, %v1372
        %v1374 = vmul.f32 %v1369, %v1373
        %vm1375 = vweird.f32 %v1053
        %vm1376 = vweird.f32 %v1369
        %vm1377 = vmor %vm1375, %vm1376
        %v1378 = vsel %vm1377, %v1369, %v1374
        %v1379 = vrsqrt.pop %v1054
        %v1380 = vmul.f32 %v1379, %v1054
        %v1381 = vmul.f32 %v1380, %v1379
        %v1382 = vmul.f32 0.5, %v1381
        %v1383 = vsub.f32 1.5, %v1382
        %v1384 = vmul.f32 %v1379, %v1383
        %vm1385 = vweird.f32 %v1054
        %vm1386 = vweird.f32 %v1379
        %vm1387 = vmor %vm1385, %vm1386
        %v1388 = vsel %vm1387, %v1379, %v1384
        %v1389 = vrsqrt.pop %v1055
        %v1390 = vmul.f32 %v1389, %v1055
        %v1391 = vmul.f32 %v1390, %v1389
        %v1392 = vmul.f32 0.5, %v1391
        %v1393 = vsub.f32 1.5, %v1392
        %v1394 = vmul.f32 %v1389, %v1393
        %vm1395 = vweird.f32 %v1055
        %vm1396 = vweird.f32 %v1389
        %vm1397 = vmor %vm1395, %vm1396
        %v1398 = vsel %vm1397, %v1389, %v1394
        %v1399 = vrsqrt.pop %v1056
        %v1400 = vmul.f32 %v1399, %v1056
        %v1401 = vmul.f32 %v1400, %v1399
        %v1402 = vmul.f32 0.5, %v1401
        %v1403 = vsub.f32 1.5, %v1402
        %v1404 = vmul.f32 %v1399, %v1403
        %vm1405 = vweird.f32 %v1056
        %vm1406 = vweird.f32 %v1399
        %vm1407 = vmor %vm1405, %vm1406
        %v1408 = vsel %vm1407, %v1399, %v1404
        %v1409 = vrsqrt.pop %v1057
        %v1410 = vmul.f32 %v1409, %v1057
        %v1411 = vmul.f32 %v1410, %v1409
        %v1412 = vmul.f32 0.5, %v1411
        %v1413 = vsub.f32 1.5, %v1412
        %v1414 = vmul.f32 %v1409, %v1413
        %vm1415 = vweird.f32 %v1057
        %vm1416 = vweird.f32 %v1409
        %vm1417 = vmor %vm1415, %vm1416
        %v1418 = vsel %vm1417, %v1409, %v1414
        %v1419 = vrsqrt.pop %v1058
        %v1420 = vmul.f32 %v1419, %v1058
        %v1421 = vmul.f32 %v1420, %v1419
        %v1422 = vmul.f32 0.5, %v1421
        %v1423 = vsub.f32 1.5, %v1422
        %v1424 = vmul.f32 %v1419, %v1423
        %vm1425 = vweird.f32 %v1058
        %vm1426 = vweird.f32 %v1419
        %vm1427 = vmor %vm1425, %vm1426
        %v1428 = vsel %vm1427, %v1419, %v1424
        %v1429 = vrsqrt.pop %v1059
        %v1430 = vmul.f32 %v1429, %v1059
        %v1431 = vmul.f32 %v1430, %v1429
        %v1432 = vmul.f32 0.5, %v1431
        %v1433 = vsub.f32 1.5, %v1432
        %v1434 = vmul.f32 %v1429, %v1433
        %vm1435 = vweird.f32 %v1059
        %vm1436 = vweird.f32 %v1429
        %vm1437 = vmor %vm1435, %vm1436
        %v1438 = vsel %vm1437, %v1429, %v1434
        %v1439 = vrsqrt.pop %v1060
        %v1440 = vmul.f32 %v1439, %v1060
        %v1441 = vmul.f32 %v1440, %v1439
        %v1442 = vmul.f32 0.5, %v1441
        %v1443 = vsub.f32 1.5, %v1442
        %v1444 = vmul.f32 %v1439, %v1443
        %vm1445 = vweird.f32 %v1060
        %vm1446 = vweird.f32 %v1439
        %vm1447 = vmor %vm1445, %vm1446
        %v1448 = vsel %vm1447, %v1439, %v1444
        %v1449 = vrsqrt.pop %v1061
        %v1450 = vmul.f32 %v1449, %v1061
        %v1451 = vmul.f32 %v1450, %v1449
        %v1452 = vmul.f32 0.5, %v1451
        %v1453 = vsub.f32 1.5, %v1452
        %v1454 = vmul.f32 %v1449, %v1453
        %vm1455 = vweird.f32 %v1061
        %vm1456 = vweird.f32 %v1449
        %vm1457 = vmor %vm1455, %vm1456
        %v1458 = vsel %vm1457, %v1449, %v1454
        %v1459 = vrsqrt.pop %v1062
        %v1460 = vmul.f32 %v1459, %v1062
        %v1461 = vmul.f32 %v1460, %v1459
        %v1462 = vmul.f32 0.5, %v1461
        %v1463 = vsub.f32 1.5, %v1462
        %v1464 = vmul.f32 %v1459, %v1463
        %vm1465 = vweird.f32 %v1062
        %vm1466 = vweird.f32 %v1459
        %vm1467 = vmor %vm1465, %vm1466
        %v1468 = vsel %vm1467, %v1459, %v1464
        %v1469 = vrsqrt.pop %v1063
        %v1470 = vmul.f32 %v1469, %v1063
        %v1471 = vmul.f32 %v1470, %v1469
        %v1472 = vmul.f32 0.5, %v1471
        %v1473 = vsub.f32 1.5, %v1472
        %v1474 = vmul.f32 %v1469, %v1473
        %vm1475 = vweird.f32 %v1063
        %vm1476 = vweird.f32 %v1469
        %vm1477 = vmor %vm1475, %vm1476
        %v1478 = vsel %vm1477, %v1469, %v1474
        %v1479 = vrsqrt.pop %v1064
        %v1480 = vmul.f32 %v1479, %v1064
        %v1481 = vmul.f32 %v1480, %v1479
        %v1482 = vmul.f32 0.5, %v1481
        %v1483 = vsub.f32 1.5, %v1482
        %v1484 = vmul.f32 %v1479, %v1483
        %vm1485 = vweird.f32 %v1064
        %vm1486 = vweird.f32 %v1479
        %vm1487 = vmor %vm1485, %vm1486
        %v1488 = vsel %vm1487, %v1479, %v1484
        %v1489 = vrsqrt.pop %v1065
        %v1490 = vmul.f32 %v1489, %v1065
        %v1491 = vmul.f32 %v1490, %v1489
        %v1492 = vmul.f32 0.5, %v1491
        %v1493 = vsub.f32 1.5, %v1492
        %v1494 = vmul.f32 %v1489, %v1493
        %vm1495 = vweird.f32 %v1065
        %vm1496 = vweird.f32 %v1489
        %vm1497 = vmor %vm1495, %vm1496
        %v1498 = vsel %vm1497, %v1489, %v1494
        %v1499 = vrsqrt.pop %v1066
        %v1500 = vmul.f32 %v1499, %v1066
        %v1501 = vmul.f32 %v1500, %v1499
        %v1502 = vmul.f32 0.5, %v1501
        %v1503 = vsub.f32 1.5, %v1502
        %v1504 = vmul.f32 %v1499, %v1503
        %vm1505 = vweird.f32 %v1066
        %vm1506 = vweird.f32 %v1499
        %vm1507 = vmor %vm1505, %vm1506
        %v1508 = vsel %vm1507, %v1499, %v1504
        %v1509 = vrsqrt.pop %v1067
        %v1510 = vmul.f32 %v1509, %v1067
        %v1511 = vmul.f32 %v1510, %v1509
        %v1512 = vmul.f32 0.5, %v1511
        %v1513 = vsub.f32 1.5, %v1512
        %v1514 = vmul.f32 %v1509, %v1513
        %vm1515 = vweird.f32 %v1067
        %vm1516 = vweird.f32 %v1509
        %vm1517 = vmor %vm1515, %vm1516
        %v1518 = vsel %vm1517, %v1509, %v1514
        %v1519 = vrsqrt.pop %v1068
        %v1520 = vmul.f32 %v1519, %v1068
        %v1521 = vmul.f32 %v1520, %v1519
        %v1522 = vmul.f32 0.5, %v1521
        %v1523 = vsub.f32 1.5, %v1522
        %v1524 = vmul.f32 %v1519, %v1523
        %vm1525 = vweird.f32 %v1068
        %vm1526 = vweird.f32 %v1519
        %vm1527 = vmor %vm1525, %vm1526
        %v1528 = vsel %vm1527, %v1519, %v1524
        %v1529 = vrsqrt.pop %v1069
        %v1530 = vmul.f32 %v1529, %v1069
        %v1531 = vmul.f32 %v1530, %v1529
        %v1532 = vmul.f32 0.5, %v1531
        %v1533 = vsub.f32 1.5, %v1532
        %v1534 = vmul.f32 %v1529, %v1533
        %vm1535 = vweird.f32 %v1069
        %vm1536 = vweird.f32 %v1529
        %vm1537 = vmor %vm1535, %vm1536
        %v1538 = vsel %vm1537, %v1529, %v1534
        %v1539 = vrsqrt.pop %v1070
        %v1540 = vmul.f32 %v1539, %v1070
        %v1541 = vmul.f32 %v1540, %v1539
        %v1542 = vmul.f32 0.5, %v1541
        %v1543 = vsub.f32 1.5, %v1542
        %v1544 = vmul.f32 %v1539, %v1543
        %vm1545 = vweird.f32 %v1070
        %vm1546 = vweird.f32 %v1539
        %vm1547 = vmor %vm1545, %vm1546
        %v1548 = vsel %vm1547, %v1539, %v1544
        %v1549 = vrsqrt.pop %v1071
        %v1550 = vmul.f32 %v1549, %v1071
        %v1551 = vmul.f32 %v1550, %v1549
        %v1552 = vmul.f32 0.5, %v1551
        %v1553 = vsub.f32 1.5, %v1552
        %v1554 = vmul.f32 %v1549, %v1553
        %vm1555 = vweird.f32 %v1071
        %vm1556 = vweird.f32 %v1549
        %vm1557 = vmor %vm1555, %vm1556
        %v1558 = vsel %vm1557, %v1549, %v1554
        %v1559 = vrsqrt.pop %v1072
        %v1560 = vmul.f32 %v1559, %v1072
        %v1561 = vmul.f32 %v1560, %v1559
        %v1562 = vmul.f32 0.5, %v1561
        %v1563 = vsub.f32 1.5, %v1562
        %v1564 = vmul.f32 %v1559, %v1563
        %vm1565 = vweird.f32 %v1072
        %vm1566 = vweird.f32 %v1559
        %vm1567 = vmor %vm1565, %vm1566
        %v1568 = vsel %vm1567, %v1559, %v1564
        %v1569 = vrsqrt.pop %v1073
        %v1570 = vmul.f32 %v1569, %v1073
        %v1571 = vmul.f32 %v1570, %v1569
        %v1572 = vmul.f32 0.5, %v1571
        %v1573 = vsub.f32 1.5, %v1572
        %v1574 = vmul.f32 %v1569, %v1573
        %vm1575 = vweird.f32 %v1073
        %vm1576 = vweird.f32 %v1569
        %vm1577 = vmor %vm1575, %vm1576
        %v1578 = vsel %vm1577, %v1569, %v1574
        %v1579 = vrsqrt.pop %v1074
        %v1580 = vmul.f32 %v1579, %v1074
        %v1581 = vmul.f32 %v1580, %v1579
        %v1582 = vmul.f32 0.5, %v1581
        %v1583 = vsub.f32 1.5, %v1582
        %v1584 = vmul.f32 %v1579, %v1583
        %vm1585 = vweird.f32 %v1074
        %vm1586 = vweird.f32 %v1579
        %vm1587 = vmor %vm1585, %vm1586
        %v1588 = vsel %vm1587, %v1579, %v1584
        %v1589 = vrsqrt.pop %v1075
        %v1590 = vmul.f32 %v1589, %v1075
        %v1591 = vmul.f32 %v1590, %v1589
        %v1592 = vmul.f32 0.5, %v1591
        %v1593 = vsub.f32 1.5, %v1592
        %v1594 = vmul.f32 %v1589, %v1593
        %vm1595 = vweird.f32 %v1075
        %vm1596 = vweird.f32 %v1589
        %vm1597 = vmor %vm1595, %vm1596
        %v1598 = vsel %vm1597, %v1589, %v1594
        %v1599 = vrsqrt.pop %v1076
        %v1600 = vmul.f32 %v1599, %v1076
        %v1601 = vmul.f32 %v1600, %v1599
        %v1602 = vmul.f32 0.5, %v1601
        %v1603 = vsub.f32 1.5, %v1602
        %v1604 = vmul.f32 %v1599, %v1603
        %vm1605 = vweird.f32 %v1076
        %vm1606 = vweird.f32 %v1599
        %vm1607 = vmor %vm1605, %vm1606
        %v1608 = vsel %vm1607, %v1599, %v1604
        %v1609 = vrsqrt.pop %v1077
        %v1610 = vmul.f32 %v1609, %v1077
        %v1611 = vmul.f32 %v1610, %v1609
        %v1612 = vmul.f32 0.5, %v1611
        %v1613 = vsub.f32 1.5, %v1612
        %v1614 = vmul.f32 %v1609, %v1613
        %vm1615 = vweird.f32 %v1077
        %vm1616 = vweird.f32 %v1609
        %vm1617 = vmor %vm1615, %vm1616
        %v1618 = vsel %vm1617, %v1609, %v1614
        %v1619 = vrsqrt.pop %v1078
        %v1620 = vmul.f32 %v1619, %v1078
        %v1621 = vmul.f32 %v1620, %v1619
        %v1622 = vmul.f32 0.5, %v1621
        %v1623 = vsub.f32 1.5, %v1622
        %v1624 = vmul.f32 %v1619, %v1623
        %vm1625 = vweird.f32 %v1078
        %vm1626 = vweird.f32 %v1619
        %vm1627 = vmor %vm1625, %vm1626
        %v1628 = vsel %vm1627, %v1619, %v1624
        %v1629 = vrsqrt.pop %v1079
        %v1630 = vmul.f32 %v1629, %v1079
        %v1631 = vmul.f32 %v1630, %v1629
        %v1632 = vmul.f32 0.5, %v1631
        %v1633 = vsub.f32 1.5, %v1632
        %v1634 = vmul.f32 %v1629, %v1633
        %vm1635 = vweird.f32 %v1079
        %vm1636 = vweird.f32 %v1629
        %vm1637 = vmor %vm1635, %vm1636
        %v1638 = vsel %vm1637, %v1629, %v1634
        %v1639 = vrsqrt.pop %v1080
        %v1640 = vmul.f32 %v1639, %v1080
        %v1641 = vmul.f32 %v1640, %v1639
        %v1642 = vmul.f32 0.5, %v1641
        %v1643 = vsub.f32 1.5, %v1642
        %v1644 = vmul.f32 %v1639, %v1643
        %vm1645 = vweird.f32 %v1080
        %vm1646 = vweird.f32 %v1639
        %vm1647 = vmor %vm1645, %vm1646
        %v1648 = vsel %vm1647, %v1639, %v1644
        %v1649 = vrsqrt.pop %v1081
        %v1650 = vmul.f32 %v1649, %v1081
        %v1651 = vmul.f32 %v1650, %v1649
        %v1652 = vmul.f32 0.5, %v1651
        %v1653 = vsub.f32 1.5, %v1652
        %v1654 = vmul.f32 %v1649, %v1653
        %vm1655 = vweird.f32 %v1081
        %vm1656 = vweird.f32 %v1649
        %vm1657 = vmor %vm1655, %vm1656
        %v1658 = vsel %vm1657, %v1649, %v1654
        %v1659 = vrsqrt.pop %v1082
        %v1660 = vmul.f32 %v1659, %v1082
        %v1661 = vmul.f32 %v1660, %v1659
        %v1662 = vmul.f32 0.5, %v1661
        %v1663 = vsub.f32 1.5, %v1662
        %v1664 = vmul.f32 %v1659, %v1663
        %vm1665 = vweird.f32 %v1082
        %vm1666 = vweird.f32 %v1659
        %vm1667 = vmor %vm1665, %vm1666
        %v1668 = vsel %vm1667, %v1659, %v1664
        %v1669 = vrsqrt.pop %v1083
        %v1670 = vmul.f32 %v1669, %v1083
        %v1671 = vmul.f32 %v1670, %v1669
        %v1672 = vmul.f32 0.5, %v1671
        %v1673 = vsub.f32 1.5, %v1672
        %v1674 = vmul.f32 %v1669, %v1673
        %vm1675 = vweird.f32 %v1083
        %vm1676 = vweird.f32 %v1669
        %vm1677 = vmor %vm1675, %vm1676
        %v1678 = vsel %vm1677, %v1669, %v1674
        %v1679 = vrsqrt.pop %v1084
        %v1680 = vmul.f32 %v1679, %v1084
        %v1681 = vmul.f32 %v1680, %v1679
        %v1682 = vmul.f32 0.5, %v1681
        %v1683 = vsub.f32 1.5, %v1682
        %v1684 = vmul.f32 %v1679, %v1683
        %vm1685 = vweird.f32 %v1084
        %vm1686 = vweird.f32 %v1679
        %vm1687 = vmor %vm1685, %vm1686
        %v1688 = vsel %vm1687, %v1679, %v1684
        %v1689 = vrsqrt.pop %v1085
        %v1690 = vmul.f32 %v1689, %v1085
        %v1691 = vmul.f32 %v1690, %v1689
        %v1692 = vmul.f32 0.5, %v1691
        %v1693 = vsub.f32 1.5, %v1692
        %v1694 = vmul.f32 %v1689, %v1693
        %vm1695 = vweird.f32 %v1085
        %vm1696 = vweird.f32 %v1689
        %vm1697 = vmor %vm1695, %vm1696
        %v1698 = vsel %vm1697, %v1689, %v1694
        %v1699 = vrsqrt.pop %v1086
        %v1700 = vmul.f32 %v1699, %v1086
        %v1701 = vmul.f32 %v1700, %v1699
        %v1702 = vmul.f32 0.5, %v1701
        %v1703 = vsub.f32 1.5, %v1702
        %v1704 = vmul.f32 %v1699, %v1703
        %vm1705 = vweird.f32 %v1086
        %vm1706 = vweird.f32 %v1699
        %vm1707 = vmor %vm1705, %vm1706
        %v1708 = vsel %vm1707, %v1699, %v1704
        %v1709 = vrsqrt.pop %v1087
        %v1710 = vmul.f32 %v1709, %v1087
        %v1711 = vmul.f32 %v1710, %v1709
        %v1712 = vmul.f32 0.5, %v1711
        %v1713 = vsub.f32 1.5, %v1712
        %v1714 = vmul.f32 %v1709, %v1713
        %vm1715 = vweird.f32 %v1087
        %vm1716 = vweird.f32 %v1709
        %vm1717 = vmor %vm1715, %vm1716
        %v1718 = vsel %vm1717, %v1709, %v1714
        %v1719 = vrsqrt.pop %v1088
        %v1720 = vmul.f32 %v1719, %v1088
        %v1721 = vmul.f32 %v1720, %v1719
        %v1722 = vmul.f32 0.5, %v1721
        %v1723 = vsub.f32 1.5, %v1722
        %v1724 = vmul.f32 %v1719, %v1723
        %vm1725 = vweird.f32 %v1088
        %vm1726 = vweird.f32 %v1719
        %vm1727 = vmor %vm1725, %vm1726
        %v1728 = vsel %vm1727, %v1719, %v1724
        %v1729 = vmul.f32 %v705, %v1098
        %v1730 = vmul.f32 %v706, %v1108
        %v1731 = vmul.f32 %v707, %v1118
        %v1732 = vmul.f32 %v708, %v1128
        %v1733 = vmul.f32 %v709, %v1138
        %v1734 = vmul.f32 %v710, %v1148
        %v1735 = vmul.f32 %v711, %v1158
        %v1736 = vmul.f32 %v712, %v1168
        %v1737 = vmul.f32 %v713, %v1178
        %v1738 = vmul.f32 %v714, %v1188
        %v1739 = vmul.f32 %v715, %v1198
        %v1740 = vmul.f32 %v716, %v1208
        %v1741 = vmul.f32 %v717, %v1218
        %v1742 = vmul.f32 %v718, %v1228
        %v1743 = vmul.f32 %v719, %v1238
        %v1744 = vmul.f32 %v720, %v1248
        %v1745 = vmul.f32 %v721, %v1258
        %v1746 = vmul.f32 %v722, %v1268
        %v1747 = vmul.f32 %v723, %v1278
        %v1748 = vmul.f32 %v724, %v1288
        %v1749 = vmul.f32 %v725, %v1298
        %v1750 = vmul.f32 %v726, %v1308
        %v1751 = vmul.f32 %v727, %v1318
        %v1752 = vmul.f32 %v728, %v1328
        %v1753 = vmul.f32 %v729, %v1338
        %v1754 = vmul.f32 %v730, %v1348
        %v1755 = vmul.f32 %v731, %v1358
        %v1756 = vmul.f32 %v732, %v1368
        %v1757 = vmul.f32 %v733, %v1378
        %v1758 = vmul.f32 %v734, %v1388
        %v1759 = vmul.f32 %v735, %v1398
        %v1760 = vmul.f32 %v736, %v1408
        %v1761 = vmul.f32 %v737, %v1418
        %v1762 = vmul.f32 %v738, %v1428
        %v1763 = vmul.f32 %v739, %v1438
        %v1764 = vmul.f32 %v740, %v1448
        %v1765 = vmul.f32 %v741, %v1458
        %v1766 = vmul.f32 %v742, %v1468
        %v1767 = vmul.f32 %v743, %v1478
        %v1768 = vmul.f32 %v744, %v1488
        %v1769 = vmul.f32 %v745, %v1498
        %v1770 = vmul.f32 %v746, %v1508
        %v1771 = vmul.f32 %v747, %v1518
        %v1772 = vmul.f32 %v748, %v1528
        %v1773 = vmul.f32 %v749, %v1538
        %v1774 = vmul.f32 %v750, %v1548
        %v1775 = vmul.f32 %v751, %v1558
        %v1776 = vmul.f32 %v752, %v1568
        %v1777 = vmul.f32 %v753, %v1578
        %v1778 = vmul.f32 %v754, %v1588
        %v1779 = vmul.f32 %v755, %v1598
        %v1780 = vmul.f32 %v756, %v1608
        %v1781 = vmul.f32 %v757, %v1618
        %v1782 = vmul.f32 %v758, %v1628
        %v1783 = vmul.f32 %v759, %v1638
        %v1784 = vmul.f32 %v760, %v1648
        %v1785 = vmul.f32 %v761, %v1658
        %v1786 = vmul.f32 %v762, %v1668
        %v1787 = vmul.f32 %v763, %v1678
        %v1788 = vmul.f32 %v764, %v1688
        %v1789 = vmul.f32 %v765, %v1698
        %v1790 = vmul.f32 %v766, %v1708
        %v1791 = vmul.f32 %v767, %v1718
        %v1792 = vmul.f32 %v768, %v1728
        %v1793 = vld [vmem:[%s1] sm:$0x1]
        %v1795 = vperm.slane %v1793, 0
        %v1797 = vmul.f32 %v1729, %v1795
        %v1798 = vmul.f32 %v1730, %v1795
        %v1799 = vmul.f32 %v1731, %v1795
        %v1800 = vmul.f32 %v1732, %v1795
        %v1801 = vmul.f32 %v1733, %v1795
        %v1802 = vmul.f32 %v1734, %v1795
        %v1803 = vmul.f32 %v1735, %v1795
        %v1804 = vmul.f32 %v1736, %v1795
        %v1805 = vmul.f32 %v1737, %v1795
        %v1806 = vmul.f32 %v1738, %v1795
        %v1807 = vmul.f32 %v1739, %v1795
        %v1808 = vmul.f32 %v1740, %v1795
        %v1809 = vmul.f32 %v1741, %v1795
        %v1810 = vmul.f32 %v1742, %v1795
        %v1811 = vmul.f32 %v1743, %v1795
        %v1812 = vmul.f32 %v1744, %v1795
        %v1813 = vmul.f32 %v1745, %v1795
        %v1814 = vmul.f32 %v1746, %v1795
        %v1815 = vmul.f32 %v1747, %v1795
        %v1816 = vmul.f32 %v1748, %v1795
        %v1817 = vmul.f32 %v1749, %v1795
        %v1818 = vmul.f32 %v1750, %v1795
        %v1819 = vmul.f32 %v1751, %v1795
        %v1820 = vmul.f32 %v1752, %v1795
        %v1821 = vmul.f32 %v1753, %v1795
        %v1822 = vmul.f32 %v1754, %v1795
        %v1823 = vmul.f32 %v1755, %v1795
        %v1824 = vmul.f32 %v1756, %v1795
        %v1825 = vmul.f32 %v1757, %v1795
        %v1826 = vmul.f32 %v1758, %v1795
        %v1827 = vmul.f32 %v1759, %v1795
        %v1828 = vmul.f32 %v1760, %v1795
        %v1829 = vmul.f32 %v1761, %v1795
        %v1830 = vmul.f32 %v1762, %v1795
        %v1831 = vmul.f32 %v1763, %v1795
        %v1832 = vmul.f32 %v1764, %v1795
        %v1833 = vmul.f32 %v1765, %v1795
        %v1834 = vmul.f32 %v1766, %v1795
        %v1835 = vmul.f32 %v1767, %v1795
        %v1836 = vmul.f32 %v1768, %v1795
        %v1837 = vmul.f32 %v1769, %v1795
        %v1838 = vmul.f32 %v1770, %v1795
        %v1839 = vmul.f32 %v1771, %v1795
        %v1840 = vmul.f32 %v1772, %v1795
        %v1841 = vmul.f32 %v1773, %v1795
        %v1842 = vmul.f32 %v1774, %v1795
        %v1843 = vmul.f32 %v1775, %v1795
        %v1844 = vmul.f32 %v1776, %v1795
        %v1845 = vmul.f32 %v1777, %v1795
        %v1846 = vmul.f32 %v1778, %v1795
        %v1847 = vmul.f32 %v1779, %v1795
        %v1848 = vmul.f32 %v1780, %v1795
        %v1849 = vmul.f32 %v1781, %v1795
        %v1850 = vmul.f32 %v1782, %v1795
        %v1851 = vmul.f32 %v1783, %v1795
        %v1852 = vmul.f32 %v1784, %v1795
        %v1853 = vmul.f32 %v1785, %v1795
        %v1854 = vmul.f32 %v1786, %v1795
        %v1855 = vmul.f32 %v1787, %v1795
        %v1856 = vmul.f32 %v1788, %v1795
        %v1857 = vmul.f32 %v1789, %v1795
        %v1858 = vmul.f32 %v1790, %v1795
        %v1859 = vmul.f32 %v1791, %v1795
        %v1860 = vmul.f32 %v1792, %v1795
        %v1861 = vld [vmem:[%s2] sm:$0x1]
        %v1863 = vperm.slane %v1861, 0
        %v1865 = vadd.f32 %v1797, %v1863
        %v1866 = vadd.f32 %v1798, %v1863
        %v1867 = vadd.f32 %v1799, %v1863
        %v1868 = vadd.f32 %v1800, %v1863
        %v1869 = vadd.f32 %v1801, %v1863
        %v1870 = vadd.f32 %v1802, %v1863
        %v1871 = vadd.f32 %v1803, %v1863
        %v1872 = vadd.f32 %v1804, %v1863
        %v1873 = vadd.f32 %v1805, %v1863
        %v1874 = vadd.f32 %v1806, %v1863
        %v1875 = vadd.f32 %v1807, %v1863
        %v1876 = vadd.f32 %v1808, %v1863
        %v1877 = vadd.f32 %v1809, %v1863
        %v1878 = vadd.f32 %v1810, %v1863
        %v1879 = vadd.f32 %v1811, %v1863
        %v1880 = vadd.f32 %v1812, %v1863
        %v1881 = vadd.f32 %v1813, %v1863
        %v1882 = vadd.f32 %v1814, %v1863
        %v1883 = vadd.f32 %v1815, %v1863
        %v1884 = vadd.f32 %v1816, %v1863
        %v1885 = vadd.f32 %v1817, %v1863
        %v1886 = vadd.f32 %v1818, %v1863
        %v1887 = vadd.f32 %v1819, %v1863
        %v1888 = vadd.f32 %v1820, %v1863
        %v1889 = vadd.f32 %v1821, %v1863
        %v1890 = vadd.f32 %v1822, %v1863
        %v1891 = vadd.f32 %v1823, %v1863
        %v1892 = vadd.f32 %v1824, %v1863
        %v1893 = vadd.f32 %v1825, %v1863
        %v1894 = vadd.f32 %v1826, %v1863
        %v1895 = vadd.f32 %v1827, %v1863
        %v1896 = vadd.f32 %v1828, %v1863
        %v1897 = vadd.f32 %v1829, %v1863
        %v1898 = vadd.f32 %v1830, %v1863
        %v1899 = vadd.f32 %v1831, %v1863
        %v1900 = vadd.f32 %v1832, %v1863
        %v1901 = vadd.f32 %v1833, %v1863
        %v1902 = vadd.f32 %v1834, %v1863
        %v1903 = vadd.f32 %v1835, %v1863
        %v1904 = vadd.f32 %v1836, %v1863
        %v1905 = vadd.f32 %v1837, %v1863
        %v1906 = vadd.f32 %v1838, %v1863
        %v1907 = vadd.f32 %v1839, %v1863
        %v1908 = vadd.f32 %v1840, %v1863
        %v1909 = vadd.f32 %v1841, %v1863
        %v1910 = vadd.f32 %v1842, %v1863
        %v1911 = vadd.f32 %v1843, %v1863
        %v1912 = vadd.f32 %v1844, %v1863
        %v1913 = vadd.f32 %v1845, %v1863
        %v1914 = vadd.f32 %v1846, %v1863
        %v1915 = vadd.f32 %v1847, %v1863
        %v1916 = vadd.f32 %v1848, %v1863
        %v1917 = vadd.f32 %v1849, %v1863
        %v1918 = vadd.f32 %v1850, %v1863
        %v1919 = vadd.f32 %v1851, %v1863
        %v1920 = vadd.f32 %v1852, %v1863
        %v1921 = vadd.f32 %v1853, %v1863
        %v1922 = vadd.f32 %v1854, %v1863
        %v1923 = vadd.f32 %v1855, %v1863
        %v1924 = vadd.f32 %v1856, %v1863
        %v1925 = vadd.f32 %v1857, %v1863
        %v1926 = vadd.f32 %v1858, %v1863
        %v1927 = vadd.f32 %v1859, %v1863
        %v1928 = vadd.f32 %v1860, %v1863
        %v1929 = vpack.c.bf16 %v1865, %v1865
        %v1930 = vpack.c.bf16 %v1866, %v1866
        %v1931 = vpack.c.bf16 %v1867, %v1867
        %v1932 = vpack.c.bf16 %v1868, %v1868
        %v1933 = vpack.c.bf16 %v1869, %v1869
        %v1934 = vpack.c.bf16 %v1870, %v1870
        %v1935 = vpack.c.bf16 %v1871, %v1871
        %v1936 = vpack.c.bf16 %v1872, %v1872
        %v1937 = vpack.c.bf16 %v1873, %v1873
        %v1938 = vpack.c.bf16 %v1874, %v1874
        %v1939 = vpack.c.bf16 %v1875, %v1875
        %v1940 = vpack.c.bf16 %v1876, %v1876
        %v1941 = vpack.c.bf16 %v1877, %v1877
        %v1942 = vpack.c.bf16 %v1878, %v1878
        %v1943 = vpack.c.bf16 %v1879, %v1879
        %v1944 = vpack.c.bf16 %v1880, %v1880
        %v1945 = vpack.c.bf16 %v1881, %v1881
        %v1946 = vpack.c.bf16 %v1882, %v1882
        %v1947 = vpack.c.bf16 %v1883, %v1883
        %v1948 = vpack.c.bf16 %v1884, %v1884
        %v1949 = vpack.c.bf16 %v1885, %v1885
        %v1950 = vpack.c.bf16 %v1886, %v1886
        %v1951 = vpack.c.bf16 %v1887, %v1887
        %v1952 = vpack.c.bf16 %v1888, %v1888
        %v1953 = vpack.c.bf16 %v1889, %v1889
        %v1954 = vpack.c.bf16 %v1890, %v1890
        %v1955 = vpack.c.bf16 %v1891, %v1891
        %v1956 = vpack.c.bf16 %v1892, %v1892
        %v1957 = vpack.c.bf16 %v1893, %v1893
        %v1958 = vpack.c.bf16 %v1894, %v1894
        %v1959 = vpack.c.bf16 %v1895, %v1895
        %v1960 = vpack.c.bf16 %v1896, %v1896
        %v1961 = vpack.c.bf16 %v1897, %v1897
        %v1962 = vpack.c.bf16 %v1898, %v1898
        %v1963 = vpack.c.bf16 %v1899, %v1899
        %v1964 = vpack.c.bf16 %v1900, %v1900
        %v1965 = vpack.c.bf16 %v1901, %v1901
        %v1966 = vpack.c.bf16 %v1902, %v1902
        %v1967 = vpack.c.bf16 %v1903, %v1903
        %v1968 = vpack.c.bf16 %v1904, %v1904
        %v1969 = vpack.c.bf16 %v1905, %v1905
        %v1970 = vpack.c.bf16 %v1906, %v1906
        %v1971 = vpack.c.bf16 %v1907, %v1907
        %v1972 = vpack.c.bf16 %v1908, %v1908
        %v1973 = vpack.c.bf16 %v1909, %v1909
        %v1974 = vpack.c.bf16 %v1910, %v1910
        %v1975 = vpack.c.bf16 %v1911, %v1911
        %v1976 = vpack.c.bf16 %v1912, %v1912
        %v1977 = vpack.c.bf16 %v1913, %v1913
        %v1978 = vpack.c.bf16 %v1914, %v1914
        %v1979 = vpack.c.bf16 %v1915, %v1915
        %v1980 = vpack.c.bf16 %v1916, %v1916
        %v1981 = vpack.c.bf16 %v1917, %v1917
        %v1982 = vpack.c.bf16 %v1918, %v1918
        %v1983 = vpack.c.bf16 %v1919, %v1919
        %v1984 = vpack.c.bf16 %v1920, %v1920
        %v1985 = vpack.c.bf16 %v1921, %v1921
        %v1986 = vpack.c.bf16 %v1922, %v1922
        %v1987 = vpack.c.bf16 %v1923, %v1923
        %v1988 = vpack.c.bf16 %v1924, %v1924
        %v1989 = vpack.c.bf16 %v1925, %v1925
        %v1990 = vpack.c.bf16 %v1926, %v1926
        %v1991 = vpack.c.bf16 %v1927, %v1927
        %v1992 = vpack.c.bf16 %v1928, %v1928
        %v1993 = vld [vmem:[#allocation6] sm:$0x7]
        %v1995 = vpack.i.b16 %v1993, %v1993
        %v1997 = vperm.slane %v1995, 1
        %v1998 = vunpack.c.l.bf16 %v1929
        %v1999 = vunpack.c.l.bf16 %v1930
        %v2000 = vunpack.c.l.bf16 %v1931
        %v2001 = vunpack.c.l.bf16 %v1932
        %v2002 = vunpack.c.l.bf16 %v1933
        %v2003 = vunpack.c.l.bf16 %v1934
        %v2004 = vunpack.c.l.bf16 %v1935
        %v2005 = vunpack.c.l.bf16 %v1936
        %v2006 = vunpack.c.l.bf16 %v1937
        %v2007 = vunpack.c.l.bf16 %v1938
        %v2008 = vunpack.c.l.bf16 %v1939
        %v2009 = vunpack.c.l.bf16 %v1940
        %v2010 = vunpack.c.l.bf16 %v1941
        %v2011 = vunpack.c.l.bf16 %v1942
        %v2012 = vunpack.c.l.bf16 %v1943
        %v2013 = vunpack.c.l.bf16 %v1944
        %v2014 = vunpack.c.l.bf16 %v1945
        %v2015 = vunpack.c.l.bf16 %v1946
        %v2016 = vunpack.c.l.bf16 %v1947
        %v2017 = vunpack.c.l.bf16 %v1948
        %v2018 = vunpack.c.l.bf16 %v1949
        %v2019 = vunpack.c.l.bf16 %v1950
        %v2020 = vunpack.c.l.bf16 %v1951
        %v2021 = vunpack.c.l.bf16 %v1952
        %v2022 = vunpack.c.l.bf16 %v1953
        %v2023 = vunpack.c.l.bf16 %v1954
        %v2024 = vunpack.c.l.bf16 %v1955
        %v2025 = vunpack.c.l.bf16 %v1956
        %v2026 = vunpack.c.l.bf16 %v1957
        %v2027 = vunpack.c.l.bf16 %v1958
        %v2028 = vunpack.c.l.bf16 %v1959
        %v2029 = vunpack.c.l.bf16 %v1960
        %v2030 = vunpack.c.l.bf16 %v1961
        %v2031 = vunpack.c.l.bf16 %v1962
        %v2032 = vunpack.c.l.bf16 %v1963
        %v2033 = vunpack.c.l.bf16 %v1964
        %v2034 = vunpack.c.l.bf16 %v1965
        %v2035 = vunpack.c.l.bf16 %v1966
        %v2036 = vunpack.c.l.bf16 %v1967
        %v2037 = vunpack.c.l.bf16 %v1968
        %v2038 = vunpack.c.l.bf16 %v1969
        %v2039 = vunpack.c.l.bf16 %v1970
        %v2040 = vunpack.c.l.bf16 %v1971
        %v2041 = vunpack.c.l.bf16 %v1972
        %v2042 = vunpack.c.l.bf16 %v1973
        %v2043 = vunpack.c.l.bf16 %v1974
        %v2044 = vunpack.c.l.bf16 %v1975
        %v2045 = vunpack.c.l.bf16 %v1976
        %v2046 = vunpack.c.l.bf16 %v1977
        %v2047 = vunpack.c.l.bf16 %v1978
        %v2048 = vunpack.c.l.bf16 %v1979
        %v2049 = vunpack.c.l.bf16 %v1980
        %v2050 = vunpack.c.l.bf16 %v1981
        %v2051 = vunpack.c.l.bf16 %v1982
        %v2052 = vunpack.c.l.bf16 %v1983
        %v2053 = vunpack.c.l.bf16 %v1984
        %v2054 = vunpack.c.l.bf16 %v1985
        %v2055 = vunpack.c.l.bf16 %v1986
        %v2056 = vunpack.c.l.bf16 %v1987
        %v2057 = vunpack.c.l.bf16 %v1988
        %v2058 = vunpack.c.l.bf16 %v1989
        %v2059 = vunpack.c.l.bf16 %v1990
        %v2060 = vunpack.c.l.bf16 %v1991
        %v2061 = vunpack.c.l.bf16 %v1992
        %v2062 = vunpack.c.l.bf16 %v1997
        %v2063 = vmul.f32 %v1998, %v2062
        %v2064 = vmul.f32 %v1999, %v2062
        %v2065 = vmul.f32 %v2000, %v2062
        %v2066 = vmul.f32 %v2001, %v2062
        %v2067 = vmul.f32 %v2002, %v2062
        %v2068 = vmul.f32 %v2003, %v2062
        %v2069 = vmul.f32 %v2004, %v2062
        %v2070 = vmul.f32 %v2005, %v2062
        %v2071 = vmul.f32 %v2006, %v2062
        %v2072 = vmul.f32 %v2007, %v2062
        %v2073 = vmul.f32 %v2008, %v2062
        %v2074 = vmul.f32 %v2009, %v2062
        %v2075 = vmul.f32 %v2010, %v2062
        %v2076 = vmul.f32 %v2011, %v2062
        %v2077 = vmul.f32 %v2012, %v2062
        %v2078 = vmul.f32 %v2013, %v2062
        %v2079 = vmul.f32 %v2014, %v2062
        %v2080 = vmul.f32 %v2015, %v2062
        %v2081 = vmul.f32 %v2016, %v2062
        %v2082 = vmul.f32 %v2017, %v2062
        %v2083 = vmul.f32 %v2018, %v2062
        %v2084 = vmul.f32 %v2019, %v2062
        %v2085 = vmul.f32 %v2020, %v2062
        %v2086 = vmul.f32 %v2021, %v2062
        %v2087 = vmul.f32 %v2022, %v2062
        %v2088 = vmul.f32 %v2023, %v2062
        %v2089 = vmul.f32 %v2024, %v2062
        %v2090 = vmul.f32 %v2025, %v2062
        %v2091 = vmul.f32 %v2026, %v2062
        %v2092 = vmul.f32 %v2027, %v2062
        %v2093 = vmul.f32 %v2028, %v2062
        %v2094 = vmul.f32 %v2029, %v2062
        %v2095 = vmul.f32 %v2030, %v2062
        %v2096 = vmul.f32 %v2031, %v2062
        %v2097 = vmul.f32 %v2032, %v2062
        %v2098 = vmul.f32 %v2033, %v2062
        %v2099 = vmul.f32 %v2034, %v2062
        %v2100 = vmul.f32 %v2035, %v2062
        %v2101 = vmul.f32 %v2036, %v2062
        %v2102 = vmul.f32 %v2037, %v2062
        %v2103 = vmul.f32 %v2038, %v2062
        %v2104 = vmul.f32 %v2039, %v2062
        %v2105 = vmul.f32 %v2040, %v2062
        %v2106 = vmul.f32 %v2041, %v2062
        %v2107 = vmul.f32 %v2042, %v2062
        %v2108 = vmul.f32 %v2043, %v2062
        %v2109 = vmul.f32 %v2044, %v2062
        %v2110 = vmul.f32 %v2045, %v2062
        %v2111 = vmul.f32 %v2046, %v2062
        %v2112 = vmul.f32 %v2047, %v2062
        %v2113 = vmul.f32 %v2048, %v2062
        %v2114 = vmul.f32 %v2049, %v2062
        %v2115 = vmul.f32 %v2050, %v2062
        %v2116 = vmul.f32 %v2051, %v2062
        %v2117 = vmul.f32 %v2052, %v2062
        %v2118 = vmul.f32 %v2053, %v2062
        %v2119 = vmul.f32 %v2054, %v2062
        %v2120 = vmul.f32 %v2055, %v2062
        %v2121 = vmul.f32 %v2056, %v2062
        %v2122 = vmul.f32 %v2057, %v2062
        %v2123 = vmul.f32 %v2058, %v2062
        %v2124 = vmul.f32 %v2059, %v2062
        %v2125 = vmul.f32 %v2060, %v2062
        %v2126 = vmul.f32 %v2061, %v2062
        %v2127 = vpack.c.bf16 %v2063, %v2063
        %v2128 = vpack.c.bf16 %v2064, %v2064
        %v2129 = vpack.c.bf16 %v2065, %v2065
        %v2130 = vpack.c.bf16 %v2066, %v2066
        %v2131 = vpack.c.bf16 %v2067, %v2067
        %v2132 = vpack.c.bf16 %v2068, %v2068
        %v2133 = vpack.c.bf16 %v2069, %v2069
        %v2134 = vpack.c.bf16 %v2070, %v2070
        %v2135 = vpack.c.bf16 %v2071, %v2071
        %v2136 = vpack.c.bf16 %v2072, %v2072
        %v2137 = vpack.c.bf16 %v2073, %v2073
        %v2138 = vpack.c.bf16 %v2074, %v2074
        %v2139 = vpack.c.bf16 %v2075, %v2075
        %v2140 = vpack.c.bf16 %v2076, %v2076
        %v2141 = vpack.c.bf16 %v2077, %v2077
        %v2142 = vpack.c.bf16 %v2078, %v2078
        %v2143 = vpack.c.bf16 %v2079, %v2079
        %v2144 = vpack.c.bf16 %v2080, %v2080
        %v2145 = vpack.c.bf16 %v2081, %v2081
        %v2146 = vpack.c.bf16 %v2082, %v2082
        %v2147 = vpack.c.bf16 %v2083, %v2083
        %v2148 = vpack.c.bf16 %v2084, %v2084
        %v2149 = vpack.c.bf16 %v2085, %v2085
        %v2150 = vpack.c.bf16 %v2086, %v2086
        %v2151 = vpack.c.bf16 %v2087, %v2087
        %v2152 = vpack.c.bf16 %v2088, %v2088
        %v2153 = vpack.c.bf16 %v2089, %v2089
        %v2154 = vpack.c.bf16 %v2090, %v2090
        %v2155 = vpack.c.bf16 %v2091, %v2091
        %v2156 = vpack.c.bf16 %v2092, %v2092
        %v2157 = vpack.c.bf16 %v2093, %v2093
        %v2158 = vpack.c.bf16 %v2094, %v2094
        %v2159 = vpack.c.bf16 %v2095, %v2095
        %v2160 = vpack.c.bf16 %v2096, %v2096
        %v2161 = vpack.c.bf16 %v2097, %v2097
        %v2162 = vpack.c.bf16 %v2098, %v2098
        %v2163 = vpack.c.bf16 %v2099, %v2099
        %v2164 = vpack.c.bf16 %v2100, %v2100
        %v2165 = vpack.c.bf16 %v2101, %v2101
        %v2166 = vpack.c.bf16 %v2102, %v2102
        %v2167 = vpack.c.bf16 %v2103, %v2103
        %v2168 = vpack.c.bf16 %v2104, %v2104
        %v2169 = vpack.c.bf16 %v2105, %v2105
        %v2170 = vpack.c.bf16 %v2106, %v2106
        %v2171 = vpack.c.bf16 %v2107, %v2107
        %v2172 = vpack.c.bf16 %v2108, %v2108
        %v2173 = vpack.c.bf16 %v2109, %v2109
        %v2174 = vpack.c.bf16 %v2110, %v2110
        %v2175 = vpack.c.bf16 %v2111, %v2111
        %v2176 = vpack.c.bf16 %v2112, %v2112
        %v2177 = vpack.c.bf16 %v2113, %v2113
        %v2178 = vpack.c.bf16 %v2114, %v2114
        %v2179 = vpack.c.bf16 %v2115, %v2115
        %v2180 = vpack.c.bf16 %v2116, %v2116
        %v2181 = vpack.c.bf16 %v2117, %v2117
        %v2182 = vpack.c.bf16 %v2118, %v2118
        %v2183 = vpack.c.bf16 %v2119, %v2119
        %v2184 = vpack.c.bf16 %v2120, %v2120
        %v2185 = vpack.c.bf16 %v2121, %v2121
        %v2186 = vpack.c.bf16 %v2122, %v2122
        %v2187 = vpack.c.bf16 %v2123, %v2123
        %v2188 = vpack.c.bf16 %v2124, %v2124
        %v2189 = vpack.c.bf16 %v2125, %v2125
        %v2190 = vpack.c.bf16 %v2126, %v2126
        %2191 = vst [vmem:[#allocation2] sm:$0xf] %v2127
        %2192 = vst [vmem:[#allocation2 + $0x4] sm:$0xf] %v2128
        %2193 = vst [vmem:[#allocation2 + $0x8] sm:$0xf] %v2129
        %2194 = vst [vmem:[#allocation2 + $0xc] sm:$0xf] %v2130
        %2195 = vst [vmem:[#allocation2 + $0x10] sm:$0xf] %v2131
        %2196 = vst [vmem:[#allocation2 + $0x14] sm:$0xf] %v2132
        %2197 = vst [vmem:[#allocation2 + $0x18] sm:$0xf] %v2133
        %2198 = vst [vmem:[#allocation2 + $0x1c] sm:$0xf] %v2134
        %2199 = vst [vmem:[#allocation2 + $0x20] sm:$0xf] %v2135
        %2200 = vst [vmem:[#allocation2 + $0x24] sm:$0xf] %v2136
        %2201 = vst [vmem:[#allocation2 + $0x28] sm:$0xf] %v2137
        %2202 = vst [vmem:[#allocation2 + $0x2c] sm:$0xf] %v2138
        %2203 = vst [vmem:[#allocation2 + $0x30] sm:$0xf] %v2139
        %2204 = vst [vmem:[#allocation2 + $0x34] sm:$0xf] %v2140
        %2205 = vst [vmem:[#allocation2 + $0x38] sm:$0xf] %v2141
        %2206 = vst [vmem:[#allocation2 + $0x3c] sm:$0xf] %v2142
        %2207 = vst [vmem:[#allocation2 + $0x40] sm:$0xf] %v2143
        %2208 = vst [vmem:[#allocation2 + $0x44] sm:$0xf] %v2144
        %2209 = vst [vmem:[#allocation2 + $0x48] sm:$0xf] %v2145
        %2210 = vst [vmem:[#allocation2 + $0x4c] sm:$0xf] %v2146
        %2211 = vst [vmem:[#allocation2 + $0x50] sm:$0xf] %v2147
        %2212 = vst [vmem:[#allocation2 + $0x54] sm:$0xf] %v2148
        %2213 = vst [vmem:[#allocation2 + $0x58] sm:$0xf] %v2149
        %2214 = vst [vmem:[#allocation2 + $0x5c] sm:$0xf] %v2150
        %2215 = vst [vmem:[#allocation2 + $0x60] sm:$0xf] %v2151
        %2216 = vst [vmem:[#allocation2 + $0x64] sm:$0xf] %v2152
        %2217 = vst [vmem:[#allocation2 + $0x68] sm:$0xf] %v2153
        %2218 = vst [vmem:[#allocation2 + $0x6c] sm:$0xf] %v2154
        %2219 = vst [vmem:[#allocation2 + $0x70] sm:$0xf] %v2155
        %2220 = vst [vmem:[#allocation2 + $0x74] sm:$0xf] %v2156
        %2221 = vst [vmem:[#allocation2 + $0x78] sm:$0xf] %v2157
        %2222 = vst [vmem:[#allocation2 + $0x7c] sm:$0xf] %v2158
        %2223 = vst [vmem:[#allocation2 + $0x80] sm:$0xf] %v2159
        %2224 = vst [vmem:[#allocation2 + $0x84] sm:$0xf] %v2160
        %2225 = vst [vmem:[#allocation2 + $0x88] sm:$0xf] %v2161
        %2226 = vst [vmem:[#allocation2 + $0x8c] sm:$0xf] %v2162
        %2227 = vst [vmem:[#allocation2 + $0x90] sm:$0xf] %v2163
        %2228 = vst [vmem:[#allocation2 + $0x94] sm:$0xf] %v2164
        %2229 = vst [vmem:[#allocation2 + $0x98] sm:$0xf] %v2165
        %2230 = vst [vmem:[#allocation2 + $0x9c] sm:$0xf] %v2166
        %2231 = vst [vmem:[#allocation2 + $0xa0] sm:$0xf] %v2167
        %2232 = vst [vmem:[#allocation2 + $0xa4] sm:$0xf] %v2168
        %2233 = vst [vmem:[#allocation2 + $0xa8] sm:$0xf] %v2169
        %2234 = vst [vmem:[#allocation2 + $0xac] sm:$0xf] %v2170
        %2235 = vst [vmem:[#allocation2 + $0xb0] sm:$0xf] %v2171
        %2236 = vst [vmem:[#allocation2 + $0xb4] sm:$0xf] %v2172
        %2237 = vst [vmem:[#allocation2 + $0xb8] sm:$0xf] %v2173
        %2238 = vst [vmem:[#allocation2 + $0xbc] sm:$0xf] %v2174
        %2239 = vst [vmem:[#allocation2 + $0xc0] sm:$0xf] %v2175
        %2240 = vst [vmem:[#allocation2 + $0xc4] sm:$0xf] %v2176
        %2241 = vst [vmem:[#allocation2 + $0xc8] sm:$0xf] %v2177
        %2242 = vst [vmem:[#allocation2 + $0xcc] sm:$0xf] %v2178
        %2243 = vst [vmem:[#allocation2 + $0xd0] sm:$0xf] %v2179
        %2244 = vst [vmem:[#allocation2 + $0xd4] sm:$0xf] %v2180
        %2245 = vst [vmem:[#allocation2 + $0xd8] sm:$0xf] %v2181
        %2246 = vst [vmem:[#allocation2 + $0xdc] sm:$0xf] %v2182
        %2247 = vst [vmem:[#allocation2 + $0xe0] sm:$0xf] %v2183
        %2248 = vst [vmem:[#allocation2 + $0xe4] sm:$0xf] %v2184
        %2249 = vst [vmem:[#allocation2 + $0xe8] sm:$0xf] %v2185
        %2250 = vst [vmem:[#allocation2 + $0xec] sm:$0xf] %v2186
        %2251 = vst [vmem:[#allocation2 + $0xf0] sm:$0xf] %v2187
        %2252 = vst [vmem:[#allocation2 + $0xf4] sm:$0xf] %v2188
        %2253 = vst [vmem:[#allocation2 + $0xf8] sm:$0xf] %v2189
        %2254 = vst [vmem:[#allocation2 + $0xfc] sm:$0xf] %v2190
        %v2255 = vld [vmem:[#allocation2 + $0x10] sm:$0xf]
        %v2256 = vld [vmem:[#allocation2 + $0x14] sm:$0xf]
        %v2257 = vld [vmem:[#allocation2 + $0x18] sm:$0xf]
        %v2258 = vld [vmem:[#allocation2 + $0x1c] sm:$0xf]
        %v2259 = vld [vmem:[#allocation2 + $0x20] sm:$0xf]
        %v2260 = vld [vmem:[#allocation2 + $0x24] sm:$0xf]
        %v2261 = vld [vmem:[#allocation2 + $0x28] sm:$0xf]
        %v2262 = vld [vmem:[#allocation2 + $0x2c] sm:$0xf]
        %v2263 = vld [vmem:[#allocation2 + $0x30] sm:$0xf]
        %v2264 = vld [vmem:[#allocation2 + $0x34] sm:$0xf]
        %v2265 = vld [vmem:[#allocation2 + $0x38] sm:$0xf]
        %v2266 = vld [vmem:[#allocation2 + $0x3c] sm:$0xf]
        %v2267 = vld [vmem:[#allocation2 + $0x40] sm:$0xf]
        %v2268 = vld [vmem:[#allocation2 + $0x44] sm:$0xf]
        %v2269 = vld [vmem:[#allocation2 + $0x48] sm:$0xf]
        %v2270 = vld [vmem:[#allocation2 + $0x4c] sm:$0xf]
        %v2271 = vld [vmem:[#allocation2 + $0x50] sm:$0xf]
        %v2272 = vld [vmem:[#allocation2 + $0x54] sm:$0xf]
        %v2273 = vld [vmem:[#allocation2 + $0x58] sm:$0xf]
        %v2274 = vld [vmem:[#allocation2 + $0x5c] sm:$0xf]
        %v2275 = vld [vmem:[#allocation2 + $0x60] sm:$0xf]
        %v2276 = vld [vmem:[#allocation2 + $0x64] sm:$0xf]
        %v2277 = vld [vmem:[#allocation2 + $0x68] sm:$0xf]
        %v2278 = vld [vmem:[#allocation2 + $0x6c] sm:$0xf]
        %v2279 = vld [vmem:[#allocation2 + $0x70] sm:$0xf]
        %v2280 = vld [vmem:[#allocation2 + $0x74] sm:$0xf]
        %v2281 = vld [vmem:[#allocation2 + $0x78] sm:$0xf]
        %v2282 = vld [vmem:[#allocation2 + $0x7c] sm:$0xf]
        %v2283 = vld [vmem:[#allocation2 + $0x80] sm:$0xf]
        %v2284 = vld [vmem:[#allocation2 + $0x84] sm:$0xf]
        %v2285 = vld [vmem:[#allocation2 + $0x88] sm:$0xf]
        %v2286 = vld [vmem:[#allocation2 + $0x8c] sm:$0xf]
        %v2287 = vld [vmem:[#allocation2 + $0x90] sm:$0xf]
        %v2288 = vld [vmem:[#allocation2 + $0x94] sm:$0xf]
        %v2289 = vld [vmem:[#allocation2 + $0x98] sm:$0xf]
        %v2290 = vld [vmem:[#allocation2 + $0x9c] sm:$0xf]
        %v2291 = vld [vmem:[#allocation2 + $0xa0] sm:$0xf]
        %v2292 = vld [vmem:[#allocation2 + $0xa4] sm:$0xf]
        %v2293 = vld [vmem:[#allocation2 + $0xa8] sm:$0xf]
        %v2294 = vld [vmem:[#allocation2 + $0xac] sm:$0xf]
        %v2295 = vld [vmem:[#allocation2 + $0xb0] sm:$0xf]
        %v2296 = vld [vmem:[#allocation2 + $0xb4] sm:$0xf]
        %v2297 = vld [vmem:[#allocation2 + $0xb8] sm:$0xf]
        %v2298 = vld [vmem:[#allocation2 + $0xbc] sm:$0xf]
        %v2299 = vld [vmem:[#allocation2 + $0xc0] sm:$0xf]
        %v2300 = vld [vmem:[#allocation2 + $0xc4] sm:$0xf]
        %v2301 = vld [vmem:[#allocation2 + $0xc8] sm:$0xf]
        %v2302 = vld [vmem:[#allocation2 + $0xcc] sm:$0xf]
        %v2303 = vld [vmem:[#allocation2 + $0xd0] sm:$0xf]
        %v2304 = vld [vmem:[#allocation2 + $0xd4] sm:$0xf]
        %v2305 = vld [vmem:[#allocation2 + $0xd8] sm:$0xf]
        %v2306 = vld [vmem:[#allocation2 + $0xdc] sm:$0xf]
        %v2307 = vld [vmem:[#allocation2 + $0xe0] sm:$0xf]
        %v2308 = vld [vmem:[#allocation2 + $0xe4] sm:$0xf]
        %v2309 = vld [vmem:[#allocation2 + $0xe8] sm:$0xf]
        %v2310 = vld [vmem:[#allocation2 + $0xec] sm:$0xf]
        %v2311 = vld [vmem:[#allocation2 + $0xf0] sm:$0xf]
        %v2312 = vld [vmem:[#allocation2 + $0xf4] sm:$0xf]
        %v2313 = vld [vmem:[#allocation2 + $0xf8] sm:$0xf]
        %v2314 = vld [vmem:[#allocation2 + $0xfc] sm:$0xf]
        %v2315 = vperm.slane %v1995, 0
        %v2316 = vunpack.c.l.bf16 %v2315
        %v2317 = vmul.f32 %v1998, %v2316
        %v2318 = vmul.f32 %v1999, %v2316
        %v2319 = vmul.f32 %v2000, %v2316
        %v2320 = vmul.f32 %v2001, %v2316
        %v2321 = vmul.f32 %v2002, %v2316
        %v2322 = vmul.f32 %v2003, %v2316
        %v2323 = vmul.f32 %v2004, %v2316
        %v2324 = vmul.f32 %v2005, %v2316
        %v2325 = vmul.f32 %v2006, %v2316
        %v2326 = vmul.f32 %v2007, %v2316
        %v2327 = vmul.f32 %v2008, %v2316
        %v2328 = vmul.f32 %v2009, %v2316
        %v2329 = vmul.f32 %v2010, %v2316
        %v2330 = vmul.f32 %v2011, %v2316
        %v2331 = vmul.f32 %v2012, %v2316
        %v2332 = vmul.f32 %v2013, %v2316
        %v2333 = vmul.f32 %v2014, %v2316
        %v2334 = vmul.f32 %v2015, %v2316
        %v2335 = vmul.f32 %v2016, %v2316
        %v2336 = vmul.f32 %v2017, %v2316
        %v2337 = vmul.f32 %v2018, %v2316
        %v2338 = vmul.f32 %v2019, %v2316
        %v2339 = vmul.f32 %v2020, %v2316
        %v2340 = vmul.f32 %v2021, %v2316
        %v2341 = vmul.f32 %v2022, %v2316
        %v2342 = vmul.f32 %v2023, %v2316
        %v2343 = vmul.f32 %v2024, %v2316
        %v2344 = vmul.f32 %v2025, %v2316
        %v2345 = vmul.f32 %v2026, %v2316
        %v2346 = vmul.f32 %v2027, %v2316
        %v2347 = vmul.f32 %v2028, %v2316
        %v2348 = vmul.f32 %v2029, %v2316
        %v2349 = vmul.f32 %v2030, %v2316
        %v2350 = vmul.f32 %v2031, %v2316
        %v2351 = vmul.f32 %v2032, %v2316
        %v2352 = vmul.f32 %v2033, %v2316
        %v2353 = vmul.f32 %v2034, %v2316
        %v2354 = vmul.f32 %v2035, %v2316
        %v2355 = vmul.f32 %v2036, %v2316
        %v2356 = vmul.f32 %v2037, %v2316
        %v2357 = vmul.f32 %v2038, %v2316
        %v2358 = vmul.f32 %v2039, %v2316
        %v2359 = vmul.f32 %v2040, %v2316
        %v2360 = vmul.f32 %v2041, %v2316
        %v2361 = vmul.f32 %v2042, %v2316
        %v2362 = vmul.f32 %v2043, %v2316
        %v2363 = vmul.f32 %v2044, %v2316
        %v2364 = vmul.f32 %v2045, %v2316
        %v2365 = vmul.f32 %v2046, %v2316
        %v2366 = vmul.f32 %v2047, %v2316
        %v2367 = vmul.f32 %v2048, %v2316
        %v2368 = vmul.f32 %v2049, %v2316
        %v2369 = vmul.f32 %v2050, %v2316
        %v2370 = vmul.f32 %v2051, %v2316
        %v2371 = vmul.f32 %v2052, %v2316
        %v2372 = vmul.f32 %v2053, %v2316
        %v2373 = vmul.f32 %v2054, %v2316
        %v2374 = vmul.f32 %v2055, %v2316
        %v2375 = vmul.f32 %v2056, %v2316
        %v2376 = vmul.f32 %v2057, %v2316
        %v2377 = vpack.c.bf16 %v2317, %v2317
        %v2378 = vpack.c.bf16 %v2318, %v2318
        %v2379 = vpack.c.bf16 %v2319, %v2319
        %v2380 = vpack.c.bf16 %v2320, %v2320
        %v2381 = vpack.c.bf16 %v2321, %v2321
        %v2382 = vpack.c.bf16 %v2322, %v2322
        %v2383 = vpack.c.bf16 %v2323, %v2323
        %v2384 = vpack.c.bf16 %v2324, %v2324
        %v2385 = vpack.c.bf16 %v2325, %v2325
        %v2386 = vpack.c.bf16 %v2326, %v2326
        %v2387 = vpack.c.bf16 %v2327, %v2327
        %v2388 = vpack.c.bf16 %v2328, %v2328
        %v2389 = vpack.c.bf16 %v2329, %v2329
        %v2390 = vpack.c.bf16 %v2330, %v2330
        %v2391 = vpack.c.bf16 %v2331, %v2331
        %v2392 = vpack.c.bf16 %v2332, %v2332
        %v2393 = vpack.c.bf16 %v2333, %v2333
        %v2394 = vpack.c.bf16 %v2334, %v2334
        %v2395 = vpack.c.bf16 %v2335, %v2335
        %v2396 = vpack.c.bf16 %v2336, %v2336
        %v2397 = vpack.c.bf16 %v2337, %v2337
        %v2398 = vpack.c.bf16 %v2338, %v2338
        %v2399 = vpack.c.bf16 %v2339, %v2339
        %v2400 = vpack.c.bf16 %v2340, %v2340
        %v2401 = vpack.c.bf16 %v2341, %v2341
        %v2402 = vpack.c.bf16 %v2342, %v2342
        %v2403 = vpack.c.bf16 %v2343, %v2343
        %v2404 = vpack.c.bf16 %v2344, %v2344
        %v2405 = vpack.c.bf16 %v2345, %v2345
        %v2406 = vpack.c.bf16 %v2346, %v2346
        %v2407 = vpack.c.bf16 %v2347, %v2347
        %v2408 = vpack.c.bf16 %v2348, %v2348
        %v2409 = vpack.c.bf16 %v2349, %v2349
        %v2410 = vpack.c.bf16 %v2350, %v2350
        %v2411 = vpack.c.bf16 %v2351, %v2351
        %v2412 = vpack.c.bf16 %v2352, %v2352
        %v2413 = vpack.c.bf16 %v2353, %v2353
        %v2414 = vpack.c.bf16 %v2354, %v2354
        %v2415 = vpack.c.bf16 %v2355, %v2355
        %v2416 = vpack.c.bf16 %v2356, %v2356
        %v2417 = vpack.c.bf16 %v2357, %v2357
        %v2418 = vpack.c.bf16 %v2358, %v2358
        %v2419 = vpack.c.bf16 %v2359, %v2359
        %v2420 = vpack.c.bf16 %v2360, %v2360
        %v2421 = vpack.c.bf16 %v2361, %v2361
        %v2422 = vpack.c.bf16 %v2362, %v2362
        %v2423 = vpack.c.bf16 %v2363, %v2363
        %v2424 = vpack.c.bf16 %v2364, %v2364
        %v2425 = vpack.c.bf16 %v2365, %v2365
        %v2426 = vpack.c.bf16 %v2366, %v2366
        %v2427 = vpack.c.bf16 %v2367, %v2367
        %v2428 = vpack.c.bf16 %v2368, %v2368
        %v2429 = vpack.c.bf16 %v2369, %v2369
        %v2430 = vpack.c.bf16 %v2370, %v2370
        %v2431 = vpack.c.bf16 %v2371, %v2371
        %v2432 = vpack.c.bf16 %v2372, %v2372
        %v2433 = vpack.c.bf16 %v2373, %v2373
        %v2434 = vpack.c.bf16 %v2374, %v2374
        %v2435 = vpack.c.bf16 %v2375, %v2375
        %v2436 = vpack.c.bf16 %v2376, %v2376
        %v2437 = vunpack.c.l.bf16 %v2255
        %v2438 = vunpack.c.l.bf16 %v2256
        %v2439 = vunpack.c.l.bf16 %v2257
        %v2440 = vunpack.c.l.bf16 %v2258
        %v2441 = vunpack.c.l.bf16 %v2259
        %v2442 = vunpack.c.l.bf16 %v2260
        %v2443 = vunpack.c.l.bf16 %v2261
        %v2444 = vunpack.c.l.bf16 %v2262
        %v2445 = vunpack.c.l.bf16 %v2263
        %v2446 = vunpack.c.l.bf16 %v2264
        %v2447 = vunpack.c.l.bf16 %v2265
        %v2448 = vunpack.c.l.bf16 %v2266
        %v2449 = vunpack.c.l.bf16 %v2267
        %v2450 = vunpack.c.l.bf16 %v2268
        %v2451 = vunpack.c.l.bf16 %v2269
        %v2452 = vunpack.c.l.bf16 %v2270
        %v2453 = vunpack.c.l.bf16 %v2271
        %v2454 = vunpack.c.l.bf16 %v2272
        %v2455 = vunpack.c.l.bf16 %v2273
        %v2456 = vunpack.c.l.bf16 %v2274
        %v2457 = vunpack.c.l.bf16 %v2275
        %v2458 = vunpack.c.l.bf16 %v2276
        %v2459 = vunpack.c.l.bf16 %v2277
        %v2460 = vunpack.c.l.bf16 %v2278
        %v2461 = vunpack.c.l.bf16 %v2279
        %v2462 = vunpack.c.l.bf16 %v2280
        %v2463 = vunpack.c.l.bf16 %v2281
        %v2464 = vunpack.c.l.bf16 %v2282
        %v2465 = vunpack.c.l.bf16 %v2283
        %v2466 = vunpack.c.l.bf16 %v2284
        %v2467 = vunpack.c.l.bf16 %v2285
        %v2468 = vunpack.c.l.bf16 %v2286
        %v2469 = vunpack.c.l.bf16 %v2287
        %v2470 = vunpack.c.l.bf16 %v2288
        %v2471 = vunpack.c.l.bf16 %v2289
        %v2472 = vunpack.c.l.bf16 %v2290
        %v2473 = vunpack.c.l.bf16 %v2291
        %v2474 = vunpack.c.l.bf16 %v2292
        %v2475 = vunpack.c.l.bf16 %v2293
        %v2476 = vunpack.c.l.bf16 %v2294
        %v2477 = vunpack.c.l.bf16 %v2295
        %v2478 = vunpack.c.l.bf16 %v2296
        %v2479 = vunpack.c.l.bf16 %v2297
        %v2480 = vunpack.c.l.bf16 %v2298
        %v2481 = vunpack.c.l.bf16 %v2299
        %v2482 = vunpack.c.l.bf16 %v2300
        %v2483 = vunpack.c.l.bf16 %v2301
        %v2484 = vunpack.c.l.bf16 %v2302
        %v2485 = vunpack.c.l.bf16 %v2303
        %v2486 = vunpack.c.l.bf16 %v2304
        %v2487 = vunpack.c.l.bf16 %v2305
        %v2488 = vunpack.c.l.bf16 %v2306
        %v2489 = vunpack.c.l.bf16 %v2307
        %v2490 = vunpack.c.l.bf16 %v2308
        %v2491 = vunpack.c.l.bf16 %v2309
        %v2492 = vunpack.c.l.bf16 %v2310
        %v2493 = vunpack.c.l.bf16 %v2311
        %v2494 = vunpack.c.l.bf16 %v2312
        %v2495 = vunpack.c.l.bf16 %v2313
        %v2496 = vunpack.c.l.bf16 %v2314
        %v2497 = vunpack.c.l.bf16 %v2377
        %v2498 = vunpack.c.l.bf16 %v2378
        %v2499 = vunpack.c.l.bf16 %v2379
        %v2500 = vunpack.c.l.bf16 %v2380
        %v2501 = vunpack.c.l.bf16 %v2381
        %v2502 = vunpack.c.l.bf16 %v2382
        %v2503 = vunpack.c.l.bf16 %v2383
        %v2504 = vunpack.c.l.bf16 %v2384
        %v2505 = vunpack.c.l.bf16 %v2385
        %v2506 = vunpack.c.l.bf16 %v2386
        %v2507 = vunpack.c.l.bf16 %v2387
        %v2508 = vunpack.c.l.bf16 %v2388
        %v2509 = vunpack.c.l.bf16 %v2389
        %v2510 = vunpack.c.l.bf16 %v2390
        %v2511 = vunpack.c.l.bf16 %v2391
        %v2512 = vunpack.c.l.bf16 %v2392
        %v2513 = vunpack.c.l.bf16 %v2393
        %v2514 = vunpack.c.l.bf16 %v2394
        %v2515 = vunpack.c.l.bf16 %v2395
        %v2516 = vunpack.c.l.bf16 %v2396
        %v2517 = vunpack.c.l.bf16 %v2397
        %v2518 = vunpack.c.l.bf16 %v2398
        %v2519 = vunpack.c.l.bf16 %v2399
        %v2520 = vunpack.c.l.bf16 %v2400
        %v2521 = vunpack.c.l.bf16 %v2401
        %v2522 = vunpack.c.l.bf16 %v2402
        %v2523 = vunpack.c.l.bf16 %v2403
        %v2524 = vunpack.c.l.bf16 %v2404
        %v2525 = vunpack.c.l.bf16 %v2405
        %v2526 = vunpack.c.l.bf16 %v2406
        %v2527 = vunpack.c.l.bf16 %v2407
        %v2528 = vunpack.c.l.bf16 %v2408
        %v2529 = vunpack.c.l.bf16 %v2409
        %v2530 = vunpack.c.l.bf16 %v2410
        %v2531 = vunpack.c.l.bf16 %v2411
        %v2532 = vunpack.c.l.bf16 %v2412
        %v2533 = vunpack.c.l.bf16 %v2413
        %v2534 = vunpack.c.l.bf16 %v2414
        %v2535 = vunpack.c.l.bf16 %v2415
        %v2536 = vunpack.c.l.bf16 %v2416
        %v2537 = vunpack.c.l.bf16 %v2417
        %v2538 = vunpack.c.l.bf16 %v2418
        %v2539 = vunpack.c.l.bf16 %v2419
        %v2540 = vunpack.c.l.bf16 %v2420
        %v2541 = vunpack.c.l.bf16 %v2421
        %v2542 = vunpack.c.l.bf16 %v2422
        %v2543 = vunpack.c.l.bf16 %v2423
        %v2544 = vunpack.c.l.bf16 %v2424
        %v2545 = vunpack.c.l.bf16 %v2425
        %v2546 = vunpack.c.l.bf16 %v2426
        %v2547 = vunpack.c.l.bf16 %v2427
        %v2548 = vunpack.c.l.bf16 %v2428
        %v2549 = vunpack.c.l.bf16 %v2429
        %v2550 = vunpack.c.l.bf16 %v2430
        %v2551 = vunpack.c.l.bf16 %v2431
        %v2552 = vunpack.c.l.bf16 %v2432
        %v2553 = vunpack.c.l.bf16 %v2433
        %v2554 = vunpack.c.l.bf16 %v2434
        %v2555 = vunpack.c.l.bf16 %v2435
        %v2556 = vunpack.c.l.bf16 %v2436
        %v2557 = vadd.f32 %v2437, %v2497
        %v2558 = vadd.f32 %v2438, %v2498
        %v2559 = vadd.f32 %v2439, %v2499
        %v2560 = vadd.f32 %v2440, %v2500
        %v2561 = vadd.f32 %v2441, %v2501
        %v2562 = vadd.f32 %v2442, %v2502
        %v2563 = vadd.f32 %v2443, %v2503
        %v2564 = vadd.f32 %v2444, %v2504
        %v2565 = vadd.f32 %v2445, %v2505
        %v2566 = vadd.f32 %v2446, %v2506
        %v2567 = vadd.f32 %v2447, %v2507
        %v2568 = vadd.f32 %v2448, %v2508
        %v2569 = vadd.f32 %v2449, %v2509
        %v2570 = vadd.f32 %v2450, %v2510
        %v2571 = vadd.f32 %v2451, %v2511
        %v2572 = vadd.f32 %v2452, %v2512
        %v2573 = vadd.f32 %v2453, %v2513
        %v2574 = vadd.f32 %v2454, %v2514
        %v2575 = vadd.f32 %v2455, %v2515
        %v2576 = vadd.f32 %v2456, %v2516
        %v2577 = vadd.f32 %v2457, %v2517
        %v2578 = vadd.f32 %v2458, %v2518
        %v2579 = vadd.f32 %v2459, %v2519
        %v2580 = vadd.f32 %v2460, %v2520
        %v2581 = vadd.f32 %v2461, %v2521
        %v2582 = vadd.f32 %v2462, %v2522
        %v2583 = vadd.f32 %v2463, %v2523
        %v2584 = vadd.f32 %v2464, %v2524
        %v2585 = vadd.f32 %v2465, %v2525
        %v2586 = vadd.f32 %v2466, %v2526
        %v2587 = vadd.f32 %v2467, %v2527
        %v2588 = vadd.f32 %v2468, %v2528
        %v2589 = vadd.f32 %v2469, %v2529
        %v2590 = vadd.f32 %v2470, %v2530
        %v2591 = vadd.f32 %v2471, %v2531
        %v2592 = vadd.f32 %v2472, %v2532
        %v2593 = vadd.f32 %v2473, %v2533
        %v2594 = vadd.f32 %v2474, %v2534
        %v2595 = vadd.f32 %v2475, %v2535
        %v2596 = vadd.f32 %v2476, %v2536
        %v2597 = vadd.f32 %v2477, %v2537
        %v2598 = vadd.f32 %v2478, %v2538
        %v2599 = vadd.f32 %v2479, %v2539
        %v2600 = vadd.f32 %v2480, %v2540
        %v2601 = vadd.f32 %v2481, %v2541
        %v2602 = vadd.f32 %v2482, %v2542
        %v2603 = vadd.f32 %v2483, %v2543
        %v2604 = vadd.f32 %v2484, %v2544
        %v2605 = vadd.f32 %v2485, %v2545
        %v2606 = vadd.f32 %v2486, %v2546
        %v2607 = vadd.f32 %v2487, %v2547
        %v2608 = vadd.f32 %v2488, %v2548
        %v2609 = vadd.f32 %v2489, %v2549
        %v2610 = vadd.f32 %v2490, %v2550
        %v2611 = vadd.f32 %v2491, %v2551
        %v2612 = vadd.f32 %v2492, %v2552
        %v2613 = vadd.f32 %v2493, %v2553
        %v2614 = vadd.f32 %v2494, %v2554
        %v2615 = vadd.f32 %v2495, %v2555
        %v2616 = vadd.f32 %v2496, %v2556
        %v2617 = vpack.c.bf16 %v2557, %v2557
        %v2618 = vpack.c.bf16 %v2558, %v2558
        %v2619 = vpack.c.bf16 %v2559, %v2559
        %v2620 = vpack.c.bf16 %v2560, %v2560
        %v2621 = vpack.c.bf16 %v2561, %v2561
        %v2622 = vpack.c.bf16 %v2562, %v2562
        %v2623 = vpack.c.bf16 %v2563, %v2563
        %v2624 = vpack.c.bf16 %v2564, %v2564
        %v2625 = vpack.c.bf16 %v2565, %v2565
        %v2626 = vpack.c.bf16 %v2566, %v2566
        %v2627 = vpack.c.bf16 %v2567, %v2567
        %v2628 = vpack.c.bf16 %v2568, %v2568
        %v2629 = vpack.c.bf16 %v2569, %v2569
        %v2630 = vpack.c.bf16 %v2570, %v2570
        %v2631 = vpack.c.bf16 %v2571, %v2571
        %v2632 = vpack.c.bf16 %v2572, %v2572
        %v2633 = vpack.c.bf16 %v2573, %v2573
        %v2634 = vpack.c.bf16 %v2574, %v2574
        %v2635 = vpack.c.bf16 %v2575, %v2575
        %v2636 = vpack.c.bf16 %v2576, %v2576
        %v2637 = vpack.c.bf16 %v2577, %v2577
        %v2638 = vpack.c.bf16 %v2578, %v2578
        %v2639 = vpack.c.bf16 %v2579, %v2579
        %v2640 = vpack.c.bf16 %v2580, %v2580
        %v2641 = vpack.c.bf16 %v2581, %v2581
        %v2642 = vpack.c.bf16 %v2582, %v2582
        %v2643 = vpack.c.bf16 %v2583, %v2583
        %v2644 = vpack.c.bf16 %v2584, %v2584
        %v2645 = vpack.c.bf16 %v2585, %v2585
        %v2646 = vpack.c.bf16 %v2586, %v2586
        %v2647 = vpack.c.bf16 %v2587, %v2587
        %v2648 = vpack.c.bf16 %v2588, %v2588
        %v2649 = vpack.c.bf16 %v2589, %v2589
        %v2650 = vpack.c.bf16 %v2590, %v2590
        %v2651 = vpack.c.bf16 %v2591, %v2591
        %v2652 = vpack.c.bf16 %v2592, %v2592
        %v2653 = vpack.c.bf16 %v2593, %v2593
        %v2654 = vpack.c.bf16 %v2594, %v2594
        %v2655 = vpack.c.bf16 %v2595, %v2595
        %v2656 = vpack.c.bf16 %v2596, %v2596
        %v2657 = vpack.c.bf16 %v2597, %v2597
        %v2658 = vpack.c.bf16 %v2598, %v2598
        %v2659 = vpack.c.bf16 %v2599, %v2599
        %v2660 = vpack.c.bf16 %v2600, %v2600
        %v2661 = vpack.c.bf16 %v2601, %v2601
        %v2662 = vpack.c.bf16 %v2602, %v2602
        %v2663 = vpack.c.bf16 %v2603, %v2603
        %v2664 = vpack.c.bf16 %v2604, %v2604
        %v2665 = vpack.c.bf16 %v2605, %v2605
        %v2666 = vpack.c.bf16 %v2606, %v2606
        %v2667 = vpack.c.bf16 %v2607, %v2607
        %v2668 = vpack.c.bf16 %v2608, %v2608
        %v2669 = vpack.c.bf16 %v2609, %v2609
        %v2670 = vpack.c.bf16 %v2610, %v2610
        %v2671 = vpack.c.bf16 %v2611, %v2611
        %v2672 = vpack.c.bf16 %v2612, %v2612
        %v2673 = vpack.c.bf16 %v2613, %v2613
        %v2674 = vpack.c.bf16 %v2614, %v2614
        %v2675 = vpack.c.bf16 %v2615, %v2615
        %v2676 = vpack.c.bf16 %v2616, %v2616
        %2677 = vst [vmem:[#allocation2 + $0x10] sm:$0xf] %v2617
        %2678 = vst [vmem:[#allocation2 + $0x14] sm:$0xf] %v2618
        %2679 = vst [vmem:[#allocation2 + $0x18] sm:$0xf] %v2619
        %2680 = vst [vmem:[#allocation2 + $0x1c] sm:$0xf] %v2620
        %2681 = vst [vmem:[#allocation2 + $0x20] sm:$0xf] %v2621
        %2682 = vst [vmem:[#allocation2 + $0x24] sm:$0xf] %v2622
        %2683 = vst [vmem:[#allocation2 + $0x28] sm:$0xf] %v2623
        %2684 = vst [vmem:[#allocation2 + $0x2c] sm:$0xf] %v2624
        %2685 = vst [vmem:[#allocation2 + $0x30] sm:$0xf] %v2625
        %2686 = vst [vmem:[#allocation2 + $0x34] sm:$0xf] %v2626
        %2687 = vst [vmem:[#allocation2 + $0x38] sm:$0xf] %v2627
        %2688 = vst [vmem:[#allocation2 + $0x3c] sm:$0xf] %v2628
        %2689 = vst [vmem:[#allocation2 + $0x40] sm:$0xf] %v2629
        %2690 = vst [vmem:[#allocation2 + $0x44] sm:$0xf] %v2630
        %2691 = vst [vmem:[#allocation2 + $0x48] sm:$0xf] %v2631
        %2692 = vst [vmem:[#allocation2 + $0x4c] sm:$0xf] %v2632
        %2693 = vst [vmem:[#allocation2 + $0x50] sm:$0xf] %v2633
        %2694 = vst [vmem:[#allocation2 + $0x54] sm:$0xf] %v2634
        %2695 = vst [vmem:[#allocation2 + $0x58] sm:$0xf] %v2635
        %2696 = vst [vmem:[#allocation2 + $0x5c] sm:$0xf] %v2636
        %2697 = vst [vmem:[#allocation2 + $0x60] sm:$0xf] %v2637
        %2698 = vst [vmem:[#allocation2 + $0x64] sm:$0xf] %v2638
        %2699 = vst [vmem:[#allocation2 + $0x68] sm:$0xf] %v2639
        %2700 = vst [vmem:[#allocation2 + $0x6c] sm:$0xf] %v2640
        %2701 = vst [vmem:[#allocation2 + $0x70] sm:$0xf] %v2641
        %2702 = vst [vmem:[#allocation2 + $0x74] sm:$0xf] %v2642
        %2703 = vst [vmem:[#allocation2 + $0x78] sm:$0xf] %v2643
        %2704 = vst [vmem:[#allocation2 + $0x7c] sm:$0xf] %v2644
        %2705 = vst [vmem:[#allocation2 + $0x80] sm:$0xf] %v2645
        %2706 = vst [vmem:[#allocation2 + $0x84] sm:$0xf] %v2646
        %2707 = vst [vmem:[#allocation2 + $0x88] sm:$0xf] %v2647
        %2708 = vst [vmem:[#allocation2 + $0x8c] sm:$0xf] %v2648
        %2709 = vst [vmem:[#allocation2 + $0x90] sm:$0xf] %v2649
        %2710 = vst [vmem:[#allocation2 + $0x94] sm:$0xf] %v2650
        %2711 = vst [vmem:[#allocation2 + $0x98] sm:$0xf] %v2651
        %2712 = vst [vmem:[#allocation2 + $0x9c] sm:$0xf] %v2652
        %2713 = vst [vmem:[#allocation2 + $0xa0] sm:$0xf] %v2653
        %2714 = vst [vmem:[#allocation2 + $0xa4] sm:$0xf] %v2654
        %2715 = vst [vmem:[#allocation2 + $0xa8] sm:$0xf] %v2655
        %2716 = vst [vmem:[#allocation2 + $0xac] sm:$0xf] %v2656
        %2717 = vst [vmem:[#allocation2 + $0xb0] sm:$0xf] %v2657
        %2718 = vst [vmem:[#allocation2 + $0xb4] sm:$0xf] %v2658
        %2719 = vst [vmem:[#allocation2 + $0xb8] sm:$0xf] %v2659
        %2720 = vst [vmem:[#allocation2 + $0xbc] sm:$0xf] %v2660
        %2721 = vst [vmem:[#allocation2 + $0xc0] sm:$0xf] %v2661
        %2722 = vst [vmem:[#allocation2 + $0xc4] sm:$0xf] %v2662
        %2723 = vst [vmem:[#allocation2 + $0xc8] sm:$0xf] %v2663
        %2724 = vst [vmem:[#allocation2 + $0xcc] sm:$0xf] %v2664
        %2725 = vst [vmem:[#allocation2 + $0xd0] sm:$0xf] %v2665
        %2726 = vst [vmem:[#allocation2 + $0xd4] sm:$0xf] %v2666
        %2727 = vst [vmem:[#allocation2 + $0xd8] sm:$0xf] %v2667
        %2728 = vst [vmem:[#allocation2 + $0xdc] sm:$0xf] %v2668
        %2729 = vst [vmem:[#allocation2 + $0xe0] sm:$0xf] %v2669
        %2730 = vst [vmem:[#allocation2 + $0xe4] sm:$0xf] %v2670
        %2731 = vst [vmem:[#allocation2 + $0xe8] sm:$0xf] %v2671
        %2732 = vst [vmem:[#allocation2 + $0xec] sm:$0xf] %v2672
        %2733 = vst [vmem:[#allocation2 + $0xf0] sm:$0xf] %v2673
        %2734 = vst [vmem:[#allocation2 + $0xf4] sm:$0xf] %v2674
        %2735 = vst [vmem:[#allocation2 + $0xf8] sm:$0xf] %v2675
        %2736 = vst [vmem:[#allocation2 + $0xfc] sm:$0xf] %v2676
        %v2737 = vld [vmem:[#allocation2 + $0x8] sm:$0xf]
        %v2738 = vld [vmem:[#allocation2 + $0xc] sm:$0xf]
        %v2739 = vld [vmem:[#allocation2 + $0x10] sm:$0xf]
        %v2740 = vld [vmem:[#allocation2 + $0x14] sm:$0xf]
        %v2741 = vld [vmem:[#allocation2 + $0x18] sm:$0xf]
        %v2742 = vld [vmem:[#allocation2 + $0x1c] sm:$0xf]
        %v2743 = vld [vmem:[#allocation2 + $0x20] sm:$0xf]
        %v2744 = vld [vmem:[#allocation2 + $0x24] sm:$0xf]
        %v2745 = vld [vmem:[#allocation2 + $0x28] sm:$0xf]
        %v2746 = vld [vmem:[#allocation2 + $0x2c] sm:$0xf]
        %v2747 = vld [vmem:[#allocation2 + $0x30] sm:$0xf]
        %v2748 = vld [vmem:[#allocation2 + $0x34] sm:$0xf]
        %v2749 = vld [vmem:[#allocation2 + $0x38] sm:$0xf]
        %v2750 = vld [vmem:[#allocation2 + $0x3c] sm:$0xf]
        %v2751 = vld [vmem:[#allocation2 + $0x40] sm:$0xf]
        %v2752 = vld [vmem:[#allocation2 + $0x44] sm:$0xf]
        %v2753 = vld [vmem:[#allocation2 + $0x48] sm:$0xf]
        %v2754 = vld [vmem:[#allocation2 + $0x4c] sm:$0xf]
        %v2755 = vld [vmem:[#allocation2 + $0x50] sm:$0xf]
        %v2756 = vld [vmem:[#allocation2 + $0x54] sm:$0xf]
        %v2757 = vld [vmem:[#allocation2 + $0x58] sm:$0xf]
        %v2758 = vld [vmem:[#allocation2 + $0x5c] sm:$0xf]
        %v2759 = vld [vmem:[#allocation2 + $0x60] sm:$0xf]
        %v2760 = vld [vmem:[#allocation2 + $0x64] sm:$0xf]
        %v2761 = vld [vmem:[#allocation2 + $0x68] sm:$0xf]
        %v2762 = vld [vmem:[#allocation2 + $0x6c] sm:$0xf]
        %v2763 = vld [vmem:[#allocation2 + $0x70] sm:$0xf]
        %v2764 = vld [vmem:[#allocation2 + $0x74] sm:$0xf]
        %v2765 = vld [vmem:[#allocation2 + $0x78] sm:$0xf]
        %v2766 = vld [vmem:[#allocation2 + $0x7c] sm:$0xf]
        %v2767 = vld [vmem:[#allocation2 + $0x80] sm:$0xf]
        %v2768 = vld [vmem:[#allocation2 + $0x84] sm:$0xf]
        %v2769 = vld [vmem:[#allocation2 + $0x88] sm:$0xf]
        %v2770 = vld [vmem:[#allocation2 + $0x8c] sm:$0xf]
        %v2771 = vld [vmem:[#allocation2 + $0x90] sm:$0xf]
        %v2772 = vld [vmem:[#allocation2 + $0x94] sm:$0xf]
        %v2773 = vld [vmem:[#allocation2 + $0x98] sm:$0xf]
        %v2774 = vld [vmem:[#allocation2 + $0x9c] sm:$0xf]
        %v2775 = vld [vmem:[#allocation2 + $0xa0] sm:$0xf]
        %v2776 = vld [vmem:[#allocation2 + $0xa4] sm:$0xf]
        %v2777 = vld [vmem:[#allocation2 + $0xa8] sm:$0xf]
        %v2778 = vld [vmem:[#allocation2 + $0xac] sm:$0xf]
        %v2779 = vld [vmem:[#allocation2 + $0xb0] sm:$0xf]
        %v2780 = vld [vmem:[#allocation2 + $0xb4] sm:$0xf]
        %v2781 = vld [vmem:[#allocation2 + $0xb8] sm:$0xf]
        %v2782 = vld [vmem:[#allocation2 + $0xbc] sm:$0xf]
        %v2783 = vld [vmem:[#allocation2 + $0xc0] sm:$0xf]
        %v2784 = vld [vmem:[#allocation2 + $0xc4] sm:$0xf]
        %v2785 = vld [vmem:[#allocation2 + $0xc8] sm:$0xf]
        %v2786 = vld [vmem:[#allocation2 + $0xcc] sm:$0xf]
        %v2787 = vld [vmem:[#allocation2 + $0xd0] sm:$0xf]
        %v2788 = vld [vmem:[#allocation2 + $0xd4] sm:$0xf]
        %v2789 = vld [vmem:[#allocation2 + $0xd8] sm:$0xf]
        %v2790 = vld [vmem:[#allocation2 + $0xdc] sm:$0xf]
        %v2791 = vld [vmem:[#allocation2 + $0xe0] sm:$0xf]
        %v2792 = vld [vmem:[#allocation2 + $0xe4] sm:$0xf]
        %v2793 = vld [vmem:[#allocation2 + $0xe8] sm:$0xf]
        %v2794 = vld [vmem:[#allocation2 + $0xec] sm:$0xf]
        %v2795 = vld [vmem:[#allocation2 + $0xf0] sm:$0xf]
        %v2796 = vld [vmem:[#allocation2 + $0xf4] sm:$0xf]
        %v2797 = vld [vmem:[#allocation2 + $0xf8] sm:$0xf]
        %v2798 = vld [vmem:[#allocation2 + $0xfc] sm:$0xf]
        %v2799 = vshrl.u32 %v1993, 16
        %v2800 = vpack.i.b16 %v2799, %v2799
        %v2802 = vperm.slane %v2800, 0
        %v2803 = vunpack.c.l.bf16 %v2802
        %v2804 = vmul.f32 %v1998, %v2803
        %v2805 = vmul.f32 %v1999, %v2803
        %v2806 = vmul.f32 %v2000, %v2803
        %v2807 = vmul.f32 %v2001, %v2803
        %v2808 = vmul.f32 %v2002, %v2803
        %v2809 = vmul.f32 %v2003, %v2803
        %v2810 = vmul.f32 %v2004, %v2803
        %v2811 = vmul.f32 %v2005, %v2803
        %v2812 = vmul.f32 %v2006, %v2803
        %v2813 = vmul.f32 %v2007, %v2803
        %v2814 = vmul.f32 %v2008, %v2803
        %v2815 = vmul.f32 %v2009, %v2803
        %v2816 = vmul.f32 %v2010, %v2803
        %v2817 = vmul.f32 %v2011, %v2803
        %v2818 = vmul.f32 %v2012, %v2803
        %v2819 = vmul.f32 %v2013, %v2803
        %v2820 = vmul.f32 %v2014, %v2803
        %v2821 = vmul.f32 %v2015, %v2803
        %v2822 = vmul.f32 %v2016, %v2803
        %v2823 = vmul.f32 %v2017, %v2803
        %v2824 = vmul.f32 %v2018, %v2803
        %v2825 = vmul.f32 %v2019, %v2803
        %v2826 = vmul.f32 %v2020, %v2803
        %v2827 = vmul.f32 %v2021, %v2803
        %v2828 = vmul.f32 %v2022, %v2803
        %v2829 = vmul.f32 %v2023, %v2803
        %v2830 = vmul.f32 %v2024, %v2803
        %v2831 = vmul.f32 %v2025, %v2803
        %v2832 = vmul.f32 %v2026, %v2803
        %v2833 = vmul.f32 %v2027, %v2803
        %v2834 = vmul.f32 %v2028, %v2803
        %v2835 = vmul.f32 %v2029, %v2803
        %v2836 = vmul.f32 %v2030, %v2803
        %v2837 = vmul.f32 %v2031, %v2803
        %v2838 = vmul.f32 %v2032, %v2803
        %v2839 = vmul.f32 %v2033, %v2803
        %v2840 = vmul.f32 %v2034, %v2803
        %v2841 = vmul.f32 %v2035, %v2803
        %v2842 = vmul.f32 %v2036, %v2803
        %v2843 = vmul.f32 %v2037, %v2803
        %v2844 = vmul.f32 %v2038, %v2803
        %v2845 = vmul.f32 %v2039, %v2803
        %v2846 = vmul.f32 %v2040, %v2803
        %v2847 = vmul.f32 %v2041, %v2803
        %v2848 = vmul.f32 %v2042, %v2803
        %v2849 = vmul.f32 %v2043, %v2803
        %v2850 = vmul.f32 %v2044, %v2803
        %v2851 = vmul.f32 %v2045, %v2803
        %v2852 = vmul.f32 %v2046, %v2803
        %v2853 = vmul.f32 %v2047, %v2803
        %v2854 = vmul.f32 %v2048, %v2803
        %v2855 = vmul.f32 %v2049, %v2803
        %v2856 = vmul.f32 %v2050, %v2803
        %v2857 = vmul.f32 %v2051, %v2803
        %v2858 = vmul.f32 %v2052, %v2803
        %v2859 = vmul.f32 %v2053, %v2803
        %v2860 = vmul.f32 %v2054, %v2803
        %v2861 = vmul.f32 %v2055, %v2803
        %v2862 = vmul.f32 %v2056, %v2803
        %v2863 = vmul.f32 %v2057, %v2803
        %v2864 = vmul.f32 %v2058, %v2803
        %v2865 = vmul.f32 %v2059, %v2803
        %v2866 = vpack.c.bf16 %v2804, %v2804
        %v2867 = vpack.c.bf16 %v2805, %v2805
        %v2868 = vpack.c.bf16 %v2806, %v2806
        %v2869 = vpack.c.bf16 %v2807, %v2807
        %v2870 = vpack.c.bf16 %v2808, %v2808
        %v2871 = vpack.c.bf16 %v2809, %v2809
        %v2872 = vpack.c.bf16 %v2810, %v2810
        %v2873 = vpack.c.bf16 %v2811, %v2811
        %v2874 = vpack.c.bf16 %v2812, %v2812
        %v2875 = vpack.c.bf16 %v2813, %v2813
        %v2876 = vpack.c.bf16 %v2814, %v2814
        %v2877 = vpack.c.bf16 %v2815, %v2815
        %v2878 = vpack.c.bf16 %v2816, %v2816
        %v2879 = vpack.c.bf16 %v2817, %v2817
        %v2880 = vpack.c.bf16 %v2818, %v2818
        %v2881 = vpack.c.bf16 %v2819, %v2819
        %v2882 = vpack.c.bf16 %v2820, %v2820
        %v2883 = vpack.c.bf16 %v2821, %v2821
        %v2884 = vpack.c.bf16 %v2822, %v2822
        %v2885 = vpack.c.bf16 %v2823, %v2823
        %v2886 = vpack.c.bf16 %v2824, %v2824
        %v2887 = vpack.c.bf16 %v2825, %v2825
        %v2888 = vpack.c.bf16 %v2826, %v2826
        %v2889 = vpack.c.bf16 %v2827, %v2827
        %v2890 = vpack.c.bf16 %v2828, %v2828
        %v2891 = vpack.c.bf16 %v2829, %v2829
        %v2892 = vpack.c.bf16 %v2830, %v2830
        %v2893 = vpack.c.bf16 %v2831, %v2831
        %v2894 = vpack.c.bf16 %v2832, %v2832
        %v2895 = vpack.c.bf16 %v2833, %v2833
        %v2896 = vpack.c.bf16 %v2834, %v2834
        %v2897 = vpack.c.bf16 %v2835, %v2835
        %v2898 = vpack.c.bf16 %v2836, %v2836
        %v2899 = vpack.c.bf16 %v2837, %v2837
        %v2900 = vpack.c.bf16 %v2838, %v2838
        %v2901 = vpack.c.bf16 %v2839, %v2839
        %v2902 = vpack.c.bf16 %v2840, %v2840
        %v2903 = vpack.c.bf16 %v2841, %v2841
        %v2904 = vpack.c.bf16 %v2842, %v2842
        %v2905 = vpack.c.bf16 %v2843, %v2843
        %v2906 = vpack.c.bf16 %v2844, %v2844
        %v2907 = vpack.c.bf16 %v2845, %v2845
        %v2908 = vpack.c.bf16 %v2846, %v2846
        %v2909 = vpack.c.bf16 %v2847, %v2847
        %v2910 = vpack.c.bf16 %v2848, %v2848
        %v2911 = vpack.c.bf16 %v2849, %v2849
        %v2912 = vpack.c.bf16 %v2850, %v2850
        %v2913 = vpack.c.bf16 %v2851, %v2851
        %v2914 = vpack.c.bf16 %v2852, %v2852
        %v2915 = vpack.c.bf16 %v2853, %v2853
        %v2916 = vpack.c.bf16 %v2854, %v2854
        %v2917 = vpack.c.bf16 %v2855, %v2855
        %v2918 = vpack.c.bf16 %v2856, %v2856
        %v2919 = vpack.c.bf16 %v2857, %v2857
        %v2920 = vpack.c.bf16 %v2858, %v2858
        %v2921 = vpack.c.bf16 %v2859, %v2859
        %v2922 = vpack.c.bf16 %v2860, %v2860
        %v2923 = vpack.c.bf16 %v2861, %v2861
        %v2924 = vpack.c.bf16 %v2862, %v2862
        %v2925 = vpack.c.bf16 %v2863, %v2863
        %v2926 = vpack.c.bf16 %v2864, %v2864
        %v2927 = vpack.c.bf16 %v2865, %v2865
        %v2928 = vunpack.c.l.bf16 %v2737
        %v2929 = vunpack.c.l.bf16 %v2738
        %v2930 = vunpack.c.l.bf16 %v2739
        %v2931 = vunpack.c.l.bf16 %v2740
        %v2932 = vunpack.c.l.bf16 %v2741
        %v2933 = vunpack.c.l.bf16 %v2742
        %v2934 = vunpack.c.l.bf16 %v2743
        %v2935 = vunpack.c.l.bf16 %v2744
        %v2936 = vunpack.c.l.bf16 %v2745
        %v2937 = vunpack.c.l.bf16 %v2746
        %v2938 = vunpack.c.l.bf16 %v2747
        %v2939 = vunpack.c.l.bf16 %v2748
        %v2940 = vunpack.c.l.bf16 %v2749
        %v2941 = vunpack.c.l.bf16 %v2750
        %v2942 = vunpack.c.l.bf16 %v2751
        %v2943 = vunpack.c.l.bf16 %v2752
        %v2944 = vunpack.c.l.bf16 %v2753
        %v2945 = vunpack.c.l.bf16 %v2754
        %v2946 = vunpack.c.l.bf16 %v2755
        %v2947 = vunpack.c.l.bf16 %v2756
        %v2948 = vunpack.c.l.bf16 %v2757
        %v2949 = vunpack.c.l.bf16 %v2758
        %v2950 = vunpack.c.l.bf16 %v2759
        %v2951 = vunpack.c.l.bf16 %v2760
        %v2952 = vunpack.c.l.bf16 %v2761
        %v2953 = vunpack.c.l.bf16 %v2762
        %v2954 = vunpack.c.l.bf16 %v2763
        %v2955 = vunpack.c.l.bf16 %v2764
        %v2956 = vunpack.c.l.bf16 %v2765
        %v2957 = vunpack.c.l.bf16 %v2766
        %v2958 = vunpack.c.l.bf16 %v2767
        %v2959 = vunpack.c.l.bf16 %v2768
        %v2960 = vunpack.c.l.bf16 %v2769
        %v2961 = vunpack.c.l.bf16 %v2770
        %v2962 = vunpack.c.l.bf16 %v2771
        %v2963 = vunpack.c.l.bf16 %v2772
        %v2964 = vunpack.c.l.bf16 %v2773
        %v2965 = vunpack.c.l.bf16 %v2774
        %v2966 = vunpack.c.l.bf16 %v2775
        %v2967 = vunpack.c.l.bf16 %v2776
        %v2968 = vunpack.c.l.bf16 %v2777
        %v2969 = vunpack.c.l.bf16 %v2778
        %v2970 = vunpack.c.l.bf16 %v2779
        %v2971 = vunpack.c.l.bf16 %v2780
        %v2972 = vunpack.c.l.bf16 %v2781
        %v2973 = vunpack.c.l.bf16 %v2782
        %v2974 = vunpack.c.l.bf16 %v2783
        %v2975 = vunpack.c.l.bf16 %v2784
        %v2976 = vunpack.c.l.bf16 %v2785
        %v2977 = vunpack.c.l.bf16 %v2786
        %v2978 = vunpack.c.l.bf16 %v2787
        %v2979 = vunpack.c.l.bf16 %v2788
        %v2980 = vunpack.c.l.bf16 %v2789
        %v2981 = vunpack.c.l.bf16 %v2790
        %v2982 = vunpack.c.l.bf16 %v2791
        %v2983 = vunpack.c.l.bf16 %v2792
        %v2984 = vunpack.c.l.bf16 %v2793
        %v2985 = vunpack.c.l.bf16 %v2794
        %v2986 = vunpack.c.l.bf16 %v2795
        %v2987 = vunpack.c.l.bf16 %v2796
        %v2988 = vunpack.c.l.bf16 %v2797
        %v2989 = vunpack.c.l.bf16 %v2798
        %v2990 = vunpack.c.l.bf16 %v2866
        %v2991 = vunpack.c.l.bf16 %v2867
        %v2992 = vunpack.c.l.bf16 %v2868
        %v2993 = vunpack.c.l.bf16 %v2869
        %v2994 = vunpack.c.l.bf16 %v2870
        %v2995 = vunpack.c.l.bf16 %v2871
        %v2996 = vunpack.c.l.bf16 %v2872
        %v2997 = vunpack.c.l.bf16 %v2873
        %v2998 = vunpack.c.l.bf16 %v2874
        %v2999 = vunpack.c.l.bf16 %v2875
        %v3000 = vunpack.c.l.bf16 %v2876
        %v3001 = vunpack.c.l.bf16 %v2877
        %v3002 = vunpack.c.l.bf16 %v2878
        %v3003 = vunpack.c.l.bf16 %v2879
        %v3004 = vunpack.c.l.bf16 %v2880
        %v3005 = vunpack.c.l.bf16 %v2881
        %v3006 = vunpack.c.l.bf16 %v2882
        %v3007 = vunpack.c.l.bf16 %v2883
        %v3008 = vunpack.c.l.bf16 %v2884
        %v3009 = vunpack.c.l.bf16 %v2885
        %v3010 = vunpack.c.l.bf16 %v2886
        %v3011 = vunpack.c.l.bf16 %v2887
        %v3012 = vunpack.c.l.bf16 %v2888
        %v3013 = vunpack.c.l.bf16 %v2889
        %v3014 = vunpack.c.l.bf16 %v2890
        %v3015 = vunpack.c.l.bf16 %v2891
        %v3016 = vunpack.c.l.bf16 %v2892
        %v3017 = vunpack.c.l.bf16 %v2893
        %v3018 = vunpack.c.l.bf16 %v2894
        %v3019 = vunpack.c.l.bf16 %v2895
        %v3020 = vunpack.c.l.bf16 %v2896
        %v3021 = vunpack.c.l.bf16 %v2897
        %v3022 = vunpack.c.l.bf16 %v2898
        %v3023 = vunpack.c.l.bf16 %v2899
        %v3024 = vunpack.c.l.bf16 %v2900
        %v3025 = vunpack.c.l.bf16 %v2901
        %v3026 = vunpack.c.l.bf16 %v2902
        %v3027 = vunpack.c.l.bf16 %v2903
        %v3028 = vunpack.c.l.bf16 %v2904
        %v3029 = vunpack.c.l.bf16 %v2905
        %v3030 = vunpack.c.l.bf16 %v2906
        %v3031 = vunpack.c.l.bf16 %v2907
        %v3032 = vunpack.c.l.bf16 %v2908
        %v3033 = vunpack.c.l.bf16 %v2909
        %v3034 = vunpack.c.l.bf16 %v2910
        %v3035 = vunpack.c.l.bf16 %v2911
        %v3036 = vunpack.c.l.bf16 %v2912
        %v3037 = vunpack.c.l.bf16 %v2913
        %v3038 = vunpack.c.l.bf16 %v2914
        %v3039 = vunpack.c.l.bf16 %v2915
        %v3040 = vunpack.c.l.bf16 %v2916
        %v3041 = vunpack.c.l.bf16 %v2917
        %v3042 = vunpack.c.l.bf16 %v2918
        %v3043 = vunpack.c.l.bf16 %v2919
        %v3044 = vunpack.c.l.bf16 %v2920
        %v3045 = vunpack.c.l.bf16 %v2921
        %v3046 = vunpack.c.l.bf16 %v2922
        %v3047 = vunpack.c.l.bf16 %v2923
        %v3048 = vunpack.c.l.bf16 %v2924
        %v3049 = vunpack.c.l.bf16 %v2925
        %v3050 = vunpack.c.l.bf16 %v2926
        %v3051 = vunpack.c.l.bf16 %v2927
        %v3052 = vadd.f32 %v2928, %v2990
        %v3053 = vadd.f32 %v2929, %v2991
        %v3054 = vadd.f32 %v2930, %v2992
        %v3055 = vadd.f32 %v2931, %v2993
        %v3056 = vadd.f32 %v2932, %v2994
        %v3057 = vadd.f32 %v2933, %v2995
        %v3058 = vadd.f32 %v2934, %v2996
        %v3059 = vadd.f32 %v2935, %v2997
        %v3060 = vadd.f32 %v2936, %v2998
        %v3061 = vadd.f32 %v2937, %v2999
        %v3062 = vadd.f32 %v2938, %v3000
        %v3063 = vadd.f32 %v2939, %v3001
        %v3064 = vadd.f32 %v2940, %v3002
        %v3065 = vadd.f32 %v2941, %v3003
        %v3066 = vadd.f32 %v2942, %v3004
        %v3067 = vadd.f32 %v2943, %v3005
        %v3068 = vadd.f32 %v2944, %v3006
        %v3069 = vadd.f32 %v2945, %v3007
        %v3070 = vadd.f32 %v2946, %v3008
        %v3071 = vadd.f32 %v2947, %v3009
        %v3072 = vadd.f32 %v2948, %v3010
        %v3073 = vadd.f32 %v2949, %v3011
        %v3074 = vadd.f32 %v2950, %v3012
        %v3075 = vadd.f32 %v2951, %v3013
        %v3076 = vadd.f32 %v2952, %v3014
        %v3077 = vadd.f32 %v2953, %v3015
        %v3078 = vadd.f32 %v2954, %v3016
        %v3079 = vadd.f32 %v2955, %v3017
        %v3080 = vadd.f32 %v2956, %v3018
        %v3081 = vadd.f32 %v2957, %v3019
        %v3082 = vadd.f32 %v2958, %v3020
        %v3083 = vadd.f32 %v2959, %v3021
        %v3084 = vadd.f32 %v2960, %v3022
        %v3085 = vadd.f32 %v2961, %v3023
        %v3086 = vadd.f32 %v2962, %v3024
        %v3087 = vadd.f32 %v2963, %v3025
        %v3088 = vadd.f32 %v2964, %v3026
        %v3089 = vadd.f32 %v2965, %v3027
        %v3090 = vadd.f32 %v2966, %v3028
        %v3091 = vadd.f32 %v2967, %v3029
        %v3092 = vadd.f32 %v2968, %v3030
        %v3093 = vadd.f32 %v2969, %v3031
        %v3094 = vadd.f32 %v2970, %v3032
        %v3095 = vadd.f32 %v2971, %v3033
        %v3096 = vadd.f32 %v2972, %v3034
        %v3097 = vadd.f32 %v2973, %v3035
        %v3098 = vadd.f32 %v2974, %v3036
        %v3099 = vadd.f32 %v2975, %v3037
        %v3100 = vadd.f32 %v2976, %v3038
        %v3101 = vadd.f32 %v2977, %v3039
        %v3102 = vadd.f32 %v2978, %v3040
        %v3103 = vadd.f32 %v2979, %v3041
        %v3104 = vadd.f32 %v2980, %v3042
        %v3105 = vadd.f32 %v2981, %v3043
        %v3106 = vadd.f32 %v2982, %v3044
        %v3107 = vadd.f32 %v2983, %v3045
        %v3108 = vadd.f32 %v2984, %v3046
        %v3109 = vadd.f32 %v2985, %v3047
        %v3110 = vadd.f32 %v2986, %v3048
        %v3111 = vadd.f32 %v2987, %v3049
        %v3112 = vadd.f32 %v2988, %v3050
        %v3113 = vadd.f32 %v2989, %v3051
        %v3114 = vpack.c.bf16 %v3052, %v3052
        %v3115 = vpack.c.bf16 %v3053, %v3053
        %v3116 = vpack.c.bf16 %v3054, %v3054
        %v3117 = vpack.c.bf16 %v3055, %v3055
        %v3118 = vpack.c.bf16 %v3056, %v3056
        %v3119 = vpack.c.bf16 %v3057, %v3057
        %v3120 = vpack.c.bf16 %v3058, %v3058
        %v3121 = vpack.c.bf16 %v3059, %v3059
        %v3122 = vpack.c.bf16 %v3060, %v3060
        %v3123 = vpack.c.bf16 %v3061, %v3061
        %v3124 = vpack.c.bf16 %v3062, %v3062
        %v3125 = vpack.c.bf16 %v3063, %v3063
        %v3126 = vpack.c.bf16 %v3064, %v3064
        %v3127 = vpack.c.bf16 %v3065, %v3065
        %v3128 = vpack.c.bf16 %v3066, %v3066
        %v3129 = vpack.c.bf16 %v3067, %v3067
        %v3130 = vpack.c.bf16 %v3068, %v3068
        %v3131 = vpack.c.bf16 %v3069, %v3069
        %v3132 = vpack.c.bf16 %v3070, %v3070
        %v3133 = vpack.c.bf16 %v3071, %v3071
        %v3134 = vpack.c.bf16 %v3072, %v3072
        %v3135 = vpack.c.bf16 %v3073, %v3073
        %v3136 = vpack.c.bf16 %v3074, %v3074
        %v3137 = vpack.c.bf16 %v3075, %v3075
        %v3138 = vpack.c.bf16 %v3076, %v3076
        %v3139 = vpack.c.bf16 %v3077, %v3077
        %v3140 = vpack.c.bf16 %v3078, %v3078
        %v3141 = vpack.c.bf16 %v3079, %v3079
        %v3142 = vpack.c.bf16 %v3080, %v3080
        %v3143 = vpack.c.bf16 %v3081, %v3081
        %v3144 = vpack.c.bf16 %v3082, %v3082
        %v3145 = vpack.c.bf16 %v3083, %v3083
        %v3146 = vpack.c.bf16 %v3084, %v3084
        %v3147 = vpack.c.bf16 %v3085, %v3085
        %v3148 = vpack.c.bf16 %v3086, %v3086
        %v3149 = vpack.c.bf16 %v3087, %v3087
        %v3150 = vpack.c.bf16 %v3088, %v3088
        %v3151 = vpack.c.bf16 %v3089, %v3089
        %v3152 = vpack.c.bf16 %v3090, %v3090
        %v3153 = vpack.c.bf16 %v3091, %v3091
        %v3154 = vpack.c.bf16 %v3092, %v3092
        %v3155 = vpack.c.bf16 %v3093, %v3093
        %v3156 = vpack.c.bf16 %v3094, %v3094
        %v3157 = vpack.c.bf16 %v3095, %v3095
        %v3158 = vpack.c.bf16 %v3096, %v3096
        %v3159 = vpack.c.bf16 %v3097, %v3097
        %v3160 = vpack.c.bf16 %v3098, %v3098
        %v3161 = vpack.c.bf16 %v3099, %v3099
        %v3162 = vpack.c.bf16 %v3100, %v3100
        %v3163 = vpack.c.bf16 %v3101, %v3101
        %v3164 = vpack.c.bf16 %v3102, %v3102
        %v3165 = vpack.c.bf16 %v3103, %v3103
        %v3166 = vpack.c.bf16 %v3104, %v3104
        %v3167 = vpack.c.bf16 %v3105, %v3105
        %v3168 = vpack.c.bf16 %v3106, %v3106
        %v3169 = vpack.c.bf16 %v3107, %v3107
        %v3170 = vpack.c.bf16 %v3108, %v3108
        %v3171 = vpack.c.bf16 %v3109, %v3109
        %v3172 = vpack.c.bf16 %v3110, %v3110
        %v3173 = vpack.c.bf16 %v3111, %v3111
        %v3174 = vpack.c.bf16 %v3112, %v3112
        %v3175 = vpack.c.bf16 %v3113, %v3113
        %3176 = vst [vmem:[#allocation2 + $0x8] sm:$0xf] %v3114
        %3177 = vst [vmem:[#allocation2 + $0xc] sm:$0xf] %v3115
        %3178 = vst [vmem:[#allocation2 + $0x10] sm:$0xf] %v3116
        %3179 = vst [vmem:[#allocation2 + $0x14] sm:$0xf] %v3117
        %3180 = vst [vmem:[#allocation2 + $0x18] sm:$0xf] %v3118
        %3181 = vst [vmem:[#allocation2 + $0x1c] sm:$0xf] %v3119
        %3182 = vst [vmem:[#allocation2 + $0x20] sm:$0xf] %v3120
        %3183 = vst [vmem:[#allocation2 + $0x24] sm:$0xf] %v3121
        %3184 = vst [vmem:[#allocation2 + $0x28] sm:$0xf] %v3122
        %3185 = vst [vmem:[#allocation2 + $0x2c] sm:$0xf] %v3123
        %3186 = vst [vmem:[#allocation2 + $0x30] sm:$0xf] %v3124
        %3187 = vst [vmem:[#allocation2 + $0x34] sm:$0xf] %v3125
        %3188 = vst [vmem:[#allocation2 + $0x38] sm:$0xf] %v3126
        %3189 = vst [vmem:[#allocation2 + $0x3c] sm:$0xf] %v3127
        %3190 = vst [vmem:[#allocation2 + $0x40] sm:$0xf] %v3128
        %3191 = vst [vmem:[#allocation2 + $0x44] sm:$0xf] %v3129
        %3192 = vst [vmem:[#allocation2 + $0x48] sm:$0xf] %v3130
        %3193 = vst [vmem:[#allocation2 + $0x4c] sm:$0xf] %v3131
        %3194 = vst [vmem:[#allocation2 + $0x50] sm:$0xf] %v3132
        %3195 = vst [vmem:[#allocation2 + $0x54] sm:$0xf] %v3133
        %3196 = vst [vmem:[#allocation2 + $0x58] sm:$0xf] %v3134
        %3197 = vst [vmem:[#allocation2 + $0x5c] sm:$0xf] %v3135
        %3198 = vst [vmem:[#allocation2 + $0x60] sm:$0xf] %v3136
        %3199 = vst [vmem:[#allocation2 + $0x64] sm:$0xf] %v3137
        %3200 = vst [vmem:[#allocation2 + $0x68] sm:$0xf] %v3138
        %3201 = vst [vmem:[#allocation2 + $0x6c] sm:$0xf] %v3139
        %3202 = vst [vmem:[#allocation2 + $0x70] sm:$0xf] %v3140
        %3203 = vst [vmem:[#allocation2 + $0x74] sm:$0xf] %v3141
        %3204 = vst [vmem:[#allocation2 + $0x78] sm:$0xf] %v3142
        %3205 = vst [vmem:[#allocation2 + $0x7c] sm:$0xf] %v3143
        %3206 = vst [vmem:[#allocation2 + $0x80] sm:$0xf] %v3144
        %3207 = vst [vmem:[#allocation2 + $0x84] sm:$0xf] %v3145
        %3208 = vst [vmem:[#allocation2 + $0x88] sm:$0xf] %v3146
        %3209 = vst [vmem:[#allocation2 + $0x8c] sm:$0xf] %v3147
        %3210 = vst [vmem:[#allocation2 + $0x90] sm:$0xf] %v3148
        %3211 = vst [vmem:[#allocation2 + $0x94] sm:$0xf] %v3149
        %3212 = vst [vmem:[#allocation2 + $0x98] sm:$0xf] %v3150
        %3213 = vst [vmem:[#allocation2 + $0x9c] sm:$0xf] %v3151
        %3214 = vst [vmem:[#allocation2 + $0xa0] sm:$0xf] %v3152
        %3215 = vst [vmem:[#allocation2 + $0xa4] sm:$0xf] %v3153
        %3216 = vst [vmem:[#allocation2 + $0xa8] sm:$0xf] %v3154
        %3217 = vst [vmem:[#allocation2 + $0xac] sm:$0xf] %v3155
        %3218 = vst [vmem:[#allocation2 + $0xb0] sm:$0xf] %v3156
        %3219 = vst [vmem:[#allocation2 + $0xb4] sm:$0xf] %v3157
        %3220 = vst [vmem:[#allocation2 + $0xb8] sm:$0xf] %v3158
        %3221 = vst [vmem:[#allocation2 + $0xbc] sm:$0xf] %v3159
        %3222 = vst [vmem:[#allocation2 + $0xc0] sm:$0xf] %v3160
        %3223 = vst [vmem:[#allocation2 + $0xc4] sm:$0xf] %v3161
        %3224 = vst [vmem:[#allocation2 + $0xc8] sm:$0xf] %v3162
        %3225 = vst [vmem:[#allocation2 + $0xcc] sm:$0xf] %v3163
        %3226 = vst [vmem:[#allocation2 + $0xd0] sm:$0xf] %v3164
        %3227 = vst [vmem:[#allocation2 + $0xd4] sm:$0xf] %v3165
        %3228 = vst [vmem:[#allocation2 + $0xd8] sm:$0xf] %v3166
        %3229 = vst [vmem:[#allocation2 + $0xdc] sm:$0xf] %v3167
        %3230 = vst [vmem:[#allocation2 + $0xe0] sm:$0xf] %v3168
        %3231 = vst [vmem:[#allocation2 + $0xe4] sm:$0xf] %v3169
        %3232 = vst [vmem:[#allocation2 + $0xe8] sm:$0xf] %v3170
        %3233 = vst [vmem:[#allocation2 + $0xec] sm:$0xf] %v3171
        %3234 = vst [vmem:[#allocation2 + $0xf0] sm:$0xf] %v3172
        %3235 = vst [vmem:[#allocation2 + $0xf4] sm:$0xf] %v3173
        %3236 = vst [vmem:[#allocation2 + $0xf8] sm:$0xf] %v3174
        %3237 = vst [vmem:[#allocation2 + $0xfc] sm:$0xf] %v3175
        %v3238 = vld [vmem:[#allocation2] sm:$0xf]
        %v3239 = vld [vmem:[#allocation2 + $0x4] sm:$0xf]
        %v3240 = vld [vmem:[#allocation2 + $0x8] sm:$0xf]
        %v3241 = vld [vmem:[#allocation2 + $0xc] sm:$0xf]
        %v3242 = vld [vmem:[#allocation2 + $0x10] sm:$0xf]
        %v3243 = vld [vmem:[#allocation2 + $0x14] sm:$0xf]
        %v3244 = vld [vmem:[#allocation2 + $0x18] sm:$0xf]
        %v3245 = vld [vmem:[#allocation2 + $0x1c] sm:$0xf]
        %v3246 = vld [vmem:[#allocation2 + $0x20] sm:$0xf]
        %v3247 = vld [vmem:[#allocation2 + $0x24] sm:$0xf]
        %v3248 = vld [vmem:[#allocation2 + $0x28] sm:$0xf]
        %v3249 = vld [vmem:[#allocation2 + $0x2c] sm:$0xf]
        %v3250 = vld [vmem:[#allocation2 + $0x30] sm:$0xf]
        %v3251 = vld [vmem:[#allocation2 + $0x34] sm:$0xf]
        %v3252 = vld [vmem:[#allocation2 + $0x38] sm:$0xf]
        %v3253 = vld [vmem:[#allocation2 + $0x3c] sm:$0xf]
        %v3254 = vld [vmem:[#allocation2 + $0x40] sm:$0xf]
        %v3255 = vld [vmem:[#allocation2 + $0x44] sm:$0xf]
        %v3256 = vld [vmem:[#allocation2 + $0x48] sm:$0xf]
        %v3257 = vld [vmem:[#allocation2 + $0x4c] sm:$0xf]
        %v3258 = vld [vmem:[#allocation2 + $0x50] sm:$0xf]
        %v3259 = vld [vmem:[#allocation2 + $0x54] sm:$0xf]
        %v3260 = vld [vmem:[#allocation2 + $0x58] sm:$0xf]
        %v3261 = vld [vmem:[#allocation2 + $0x5c] sm:$0xf]
        %v3262 = vld [vmem:[#allocation2 + $0x60] sm:$0xf]
        %v3263 = vld [vmem:[#allocation2 + $0x64] sm:$0xf]
        %v3264 = vld [vmem:[#allocation2 + $0x68] sm:$0xf]
        %v3265 = vld [vmem:[#allocation2 + $0x6c] sm:$0xf]
        %v3266 = vld [vmem:[#allocation2 + $0x70] sm:$0xf]
        %v3267 = vld [vmem:[#allocation2 + $0x74] sm:$0xf]
        %v3268 = vld [vmem:[#allocation2 + $0x78] sm:$0xf]
        %v3269 = vld [vmem:[#allocation2 + $0x7c] sm:$0xf]
        %v3270 = vld [vmem:[#allocation2 + $0x80] sm:$0xf]
        %v3271 = vld [vmem:[#allocation2 + $0x84] sm:$0xf]
        %v3272 = vld [vmem:[#allocation2 + $0x88] sm:$0xf]
        %v3273 = vld [vmem:[#allocation2 + $0x8c] sm:$0xf]
        %v3274 = vld [vmem:[#allocation2 + $0x90] sm:$0xf]
        %v3275 = vld [vmem:[#allocation2 + $0x94] sm:$0xf]
        %v3276 = vld [vmem:[#allocation2 + $0x98] sm:$0xf]
        %v3277 = vld [vmem:[#allocation2 + $0x9c] sm:$0xf]
        %v3278 = vld [vmem:[#allocation2 + $0xa0] sm:$0xf]
        %v3279 = vld [vmem:[#allocation2 + $0xa4] sm:$0xf]
        %v3280 = vld [vmem:[#allocation2 + $0xa8] sm:$0xf]
        %v3281 = vld [vmem:[#allocation2 + $0xac] sm:$0xf]
        %v3282 = vld [vmem:[#allocation2 + $0xb0] sm:$0xf]
        %v3283 = vld [vmem:[#allocation2 + $0xb4] sm:$0xf]
        %v3284 = vld [vmem:[#allocation2 + $0xb8] sm:$0xf]
        %v3285 = vld [vmem:[#allocation2 + $0xbc] sm:$0xf]
        %v3286 = vld [vmem:[#allocation2 + $0xc0] sm:$0xf]
        %v3287 = vld [vmem:[#allocation2 + $0xc4] sm:$0xf]
        %v3288 = vld [vmem:[#allocation2 + $0xc8] sm:$0xf]
        %v3289 = vld [vmem:[#allocation2 + $0xcc] sm:$0xf]
        %v3290 = vld [vmem:[#allocation2 + $0xd0] sm:$0xf]
        %v3291 = vld [vmem:[#allocation2 + $0xd4] sm:$0xf]
        %v3292 = vld [vmem:[#allocation2 + $0xd8] sm:$0xf]
        %v3293 = vld [vmem:[#allocation2 + $0xdc] sm:$0xf]
        %v3294 = vld [vmem:[#allocation2 + $0xe0] sm:$0xf]
        %v3295 = vld [vmem:[#allocation2 + $0xe4] sm:$0xf]
        %v3296 = vld [vmem:[#allocation2 + $0xe8] sm:$0xf]
        %v3297 = vld [vmem:[#allocation2 + $0xec] sm:$0xf]
        %v3298 = vld [vmem:[#allocation2 + $0xf0] sm:$0xf]
        %v3299 = vld [vmem:[#allocation2 + $0xf4] sm:$0xf]
        %v3300 = vperm.slane %v2800, 1
        %v3301 = vunpack.c.l.bf16 %v3300
        %v3302 = vmul.f32 %v2000, %v3301
        %v3303 = vmul.f32 %v2001, %v3301
        %v3304 = vmul.f32 %v2002, %v3301
        %v3305 = vmul.f32 %v2003, %v3301
        %v3306 = vmul.f32 %v2004, %v3301
        %v3307 = vmul.f32 %v2005, %v3301
        %v3308 = vmul.f32 %v2006, %v3301
        %v3309 = vmul.f32 %v2007, %v3301
        %v3310 = vmul.f32 %v2008, %v3301
        %v3311 = vmul.f32 %v2009, %v3301
        %v3312 = vmul.f32 %v2010, %v3301
        %v3313 = vmul.f32 %v2011, %v3301
        %v3314 = vmul.f32 %v2012, %v3301
        %v3315 = vmul.f32 %v2013, %v3301
        %v3316 = vmul.f32 %v2014, %v3301
        %v3317 = vmul.f32 %v2015, %v3301
        %v3318 = vmul.f32 %v2016, %v3301
        %v3319 = vmul.f32 %v2017, %v3301
        %v3320 = vmul.f32 %v2018, %v3301
        %v3321 = vmul.f32 %v2019, %v3301
        %v3322 = vmul.f32 %v2020, %v3301
        %v3323 = vmul.f32 %v2021, %v3301
        %v3324 = vmul.f32 %v2022, %v3301
        %v3325 = vmul.f32 %v2023, %v3301
        %v3326 = vmul.f32 %v2024, %v3301
        %v3327 = vmul.f32 %v2025, %v3301
        %v3328 = vmul.f32 %v2026, %v3301
        %v3329 = vmul.f32 %v2027, %v3301
        %v3330 = vmul.f32 %v2028, %v3301
        %v3331 = vmul.f32 %v2029, %v3301
        %v3332 = vmul.f32 %v2030, %v3301
        %v3333 = vmul.f32 %v2031, %v3301
        %v3334 = vmul.f32 %v2032, %v3301
        %v3335 = vmul.f32 %v2033, %v3301
        %v3336 = vmul.f32 %v2034, %v3301
        %v3337 = vmul.f32 %v2035, %v3301
        %v3338 = vmul.f32 %v2036, %v3301
        %v3339 = vmul.f32 %v2037, %v3301
        %v3340 = vmul.f32 %v2038, %v3301
        %v3341 = vmul.f32 %v2039, %v3301
        %v3342 = vmul.f32 %v2040, %v3301
        %v3343 = vmul.f32 %v2041, %v3301
        %v3344 = vmul.f32 %v2042, %v3301
        %v3345 = vmul.f32 %v2043, %v3301
        %v3346 = vmul.f32 %v2044, %v3301
        %v3347 = vmul.f32 %v2045, %v3301
        %v3348 = vmul.f32 %v2046, %v3301
        %v3349 = vmul.f32 %v2047, %v3301
        %v3350 = vmul.f32 %v2048, %v3301
        %v3351 = vmul.f32 %v2049, %v3301
        %v3352 = vmul.f32 %v2050, %v3301
        %v3353 = vmul.f32 %v2051, %v3301
        %v3354 = vmul.f32 %v2052, %v3301
        %v3355 = vmul.f32 %v2053, %v3301
        %v3356 = vmul.f32 %v2054, %v3301
        %v3357 = vmul.f32 %v2055, %v3301
        %v3358 = vmul.f32 %v2056, %v3301
        %v3359 = vmul.f32 %v2057, %v3301
        %v3360 = vmul.f32 %v2058, %v3301
        %v3361 = vmul.f32 %v2059, %v3301
        %v3362 = vmul.f32 %v2060, %v3301
        %v3363 = vmul.f32 %v2061, %v3301
        %v3364 = vpack.c.bf16 %v3302, %v3302
        %v3365 = vpack.c.bf16 %v3303, %v3303
        %v3366 = vpack.c.bf16 %v3304, %v3304
        %v3367 = vpack.c.bf16 %v3305, %v3305
        %v3368 = vpack.c.bf16 %v3306, %v3306
        %v3369 = vpack.c.bf16 %v3307, %v3307
        %v3370 = vpack.c.bf16 %v3308, %v3308
        %v3371 = vpack.c.bf16 %v3309, %v3309
        %v3372 = vpack.c.bf16 %v3310, %v3310
        %v3373 = vpack.c.bf16 %v3311, %v3311
        %v3374 = vpack.c.bf16 %v3312, %v3312
        %v3375 = vpack.c.bf16 %v3313, %v3313
        %v3376 = vpack.c.bf16 %v3314, %v3314
        %v3377 = vpack.c.bf16 %v3315, %v3315
        %v3378 = vpack.c.bf16 %v3316, %v3316
        %v3379 = vpack.c.bf16 %v3317, %v3317
        %v3380 = vpack.c.bf16 %v3318, %v3318
        %v3381 = vpack.c.bf16 %v3319, %v3319
        %v3382 = vpack.c.bf16 %v3320, %v3320
        %v3383 = vpack.c.bf16 %v3321, %v3321
        %v3384 = vpack.c.bf16 %v3322, %v3322
        %v3385 = vpack.c.bf16 %v3323, %v3323
        %v3386 = vpack.c.bf16 %v3324, %v3324
        %v3387 = vpack.c.bf16 %v3325, %v3325
        %v3388 = vpack.c.bf16 %v3326, %v3326
        %v3389 = vpack.c.bf16 %v3327, %v3327
        %v3390 = vpack.c.bf16 %v3328, %v3328
        %v3391 = vpack.c.bf16 %v3329, %v3329
        %v3392 = vpack.c.bf16 %v3330, %v3330
        %v3393 = vpack.c.bf16 %v3331, %v3331
        %v3394 = vpack.c.bf16 %v3332, %v3332
        %v3395 = vpack.c.bf16 %v3333, %v3333
        %v3396 = vpack.c.bf16 %v3334, %v3334
        %v3397 = vpack.c.bf16 %v3335, %v3335
        %v3398 = vpack.c.bf16 %v3336, %v3336
        %v3399 = vpack.c.bf16 %v3337, %v3337
        %v3400 = vpack.c.bf16 %v3338, %v3338
        %v3401 = vpack.c.bf16 %v3339, %v3339
        %v3402 = vpack.c.bf16 %v3340, %v3340
        %v3403 = vpack.c.bf16 %v3341, %v3341
        %v3404 = vpack.c.bf16 %v3342, %v3342
        %v3405 = vpack.c.bf16 %v3343, %v3343
        %v3406 = vpack.c.bf16 %v3344, %v3344
        %v3407 = vpack.c.bf16 %v3345, %v3345
        %v3408 = vpack.c.bf16 %v3346, %v3346
        %v3409 = vpack.c.bf16 %v3347, %v3347
        %v3410 = vpack.c.bf16 %v3348, %v3348
        %v3411 = vpack.c.bf16 %v3349, %v3349
        %v3412 = vpack.c.bf16 %v3350, %v3350
        %v3413 = vpack.c.bf16 %v3351, %v3351
        %v3414 = vpack.c.bf16 %v3352, %v3352
        %v3415 = vpack.c.bf16 %v3353, %v3353
        %v3416 = vpack.c.bf16 %v3354, %v3354
        %v3417 = vpack.c.bf16 %v3355, %v3355
        %v3418 = vpack.c.bf16 %v3356, %v3356
        %v3419 = vpack.c.bf16 %v3357, %v3357
        %v3420 = vpack.c.bf16 %v3358, %v3358
        %v3421 = vpack.c.bf16 %v3359, %v3359
        %v3422 = vpack.c.bf16 %v3360, %v3360
        %v3423 = vpack.c.bf16 %v3361, %v3361
        %v3424 = vpack.c.bf16 %v3362, %v3362
        %v3425 = vpack.c.bf16 %v3363, %v3363
        %v3426 = vunpack.c.l.bf16 %v3238
        %v3427 = vunpack.c.l.bf16 %v3239
        %v3428 = vunpack.c.l.bf16 %v3240
        %v3429 = vunpack.c.l.bf16 %v3241
        %v3430 = vunpack.c.l.bf16 %v3242
        %v3431 = vunpack.c.l.bf16 %v3243
        %v3432 = vunpack.c.l.bf16 %v3244
        %v3433 = vunpack.c.l.bf16 %v3245
        %v3434 = vunpack.c.l.bf16 %v3246
        %v3435 = vunpack.c.l.bf16 %v3247
        %v3436 = vunpack.c.l.bf16 %v3248
        %v3437 = vunpack.c.l.bf16 %v3249
        %v3438 = vunpack.c.l.bf16 %v3250
        %v3439 = vunpack.c.l.bf16 %v3251
        %v3440 = vunpack.c.l.bf16 %v3252
        %v3441 = vunpack.c.l.bf16 %v3253
        %v3442 = vunpack.c.l.bf16 %v3254
        %v3443 = vunpack.c.l.bf16 %v3255
        %v3444 = vunpack.c.l.bf16 %v3256
        %v3445 = vunpack.c.l.bf16 %v3257
        %v3446 = vunpack.c.l.bf16 %v3258
        %v3447 = vunpack.c.l.bf16 %v3259
        %v3448 = vunpack.c.l.bf16 %v3260
        %v3449 = vunpack.c.l.bf16 %v3261
        %v3450 = vunpack.c.l.bf16 %v3262
        %v3451 = vunpack.c.l.bf16 %v3263
        %v3452 = vunpack.c.l.bf16 %v3264
        %v3453 = vunpack.c.l.bf16 %v3265
        %v3454 = vunpack.c.l.bf16 %v3266
        %v3455 = vunpack.c.l.bf16 %v3267
        %v3456 = vunpack.c.l.bf16 %v3268
        %v3457 = vunpack.c.l.bf16 %v3269
        %v3458 = vunpack.c.l.bf16 %v3270
        %v3459 = vunpack.c.l.bf16 %v3271
        %v3460 = vunpack.c.l.bf16 %v3272
        %v3461 = vunpack.c.l.bf16 %v3273
        %v3462 = vunpack.c.l.bf16 %v3274
        %v3463 = vunpack.c.l.bf16 %v3275
        %v3464 = vunpack.c.l.bf16 %v3276
        %v3465 = vunpack.c.l.bf16 %v3277
        %v3466 = vunpack.c.l.bf16 %v3278
        %v3467 = vunpack.c.l.bf16 %v3279
        %v3468 = vunpack.c.l.bf16 %v3280
        %v3469 = vunpack.c.l.bf16 %v3281
        %v3470 = vunpack.c.l.bf16 %v3282
        %v3471 = vunpack.c.l.bf16 %v3283
        %v3472 = vunpack.c.l.bf16 %v3284
        %v3473 = vunpack.c.l.bf16 %v3285
        %v3474 = vunpack.c.l.bf16 %v3286
        %v3475 = vunpack.c.l.bf16 %v3287
        %v3476 = vunpack.c.l.bf16 %v3288
        %v3477 = vunpack.c.l.bf16 %v3289
        %v3478 = vunpack.c.l.bf16 %v3290
        %v3479 = vunpack.c.l.bf16 %v3291
        %v3480 = vunpack.c.l.bf16 %v3292
        %v3481 = vunpack.c.l.bf16 %v3293
        %v3482 = vunpack.c.l.bf16 %v3294
        %v3483 = vunpack.c.l.bf16 %v3295
        %v3484 = vunpack.c.l.bf16 %v3296
        %v3485 = vunpack.c.l.bf16 %v3297
        %v3486 = vunpack.c.l.bf16 %v3298
        %v3487 = vunpack.c.l.bf16 %v3299
        %v3488 = vunpack.c.l.bf16 %v3364
        %v3489 = vunpack.c.l.bf16 %v3365
        %v3490 = vunpack.c.l.bf16 %v3366
        %v3491 = vunpack.c.l.bf16 %v3367
        %v3492 = vunpack.c.l.bf16 %v3368
        %v3493 = vunpack.c.l.bf16 %v3369
        %v3494 = vunpack.c.l.bf16 %v3370
        %v3495 = vunpack.c.l.bf16 %v3371
        %v3496 = vunpack.c.l.bf16 %v3372
        %v3497 = vunpack.c.l.bf16 %v3373
        %v3498 = vunpack.c.l.bf16 %v3374
        %v3499 = vunpack.c.l.bf16 %v3375
        %v3500 = vunpack.c.l.bf16 %v3376
        %v3501 = vunpack.c.l.bf16 %v3377
        %v3502 = vunpack.c.l.bf16 %v3378
        %v3503 = vunpack.c.l.bf16 %v3379
        %v3504 = vunpack.c.l.bf16 %v3380
        %v3505 = vunpack.c.l.bf16 %v3381
        %v3506 = vunpack.c.l.bf16 %v3382
        %v3507 = vunpack.c.l.bf16 %v3383
        %v3508 = vunpack.c.l.bf16 %v3384
        %v3509 = vunpack.c.l.bf16 %v3385
        %v3510 = vunpack.c.l.bf16 %v3386
        %v3511 = vunpack.c.l.bf16 %v3387
        %v3512 = vunpack.c.l.bf16 %v3388
        %v3513 = vunpack.c.l.bf16 %v3389
        %v3514 = vunpack.c.l.bf16 %v3390
        %v3515 = vunpack.c.l.bf16 %v3391
        %v3516 = vunpack.c.l.bf16 %v3392
        %v3517 = vunpack.c.l.bf16 %v3393
        %v3518 = vunpack.c.l.bf16 %v3394
        %v3519 = vunpack.c.l.bf16 %v3395
        %v3520 = vunpack.c.l.bf16 %v3396
        %v3521 = vunpack.c.l.bf16 %v3397
        %v3522 = vunpack.c.l.bf16 %v3398
        %v3523 = vunpack.c.l.bf16 %v3399
        %v3524 = vunpack.c.l.bf16 %v3400
        %v3525 = vunpack.c.l.bf16 %v3401
        %v3526 = vunpack.c.l.bf16 %v3402
        %v3527 = vunpack.c.l.bf16 %v3403
        %v3528 = vunpack.c.l.bf16 %v3404
        %v3529 = vunpack.c.l.bf16 %v3405
        %v3530 = vunpack.c.l.bf16 %v3406
        %v3531 = vunpack.c.l.bf16 %v3407
        %v3532 = vunpack.c.l.bf16 %v3408
        %v3533 = vunpack.c.l.bf16 %v3409
        %v3534 = vunpack.c.l.bf16 %v3410
        %v3535 = vunpack.c.l.bf16 %v3411
        %v3536 = vunpack.c.l.bf16 %v3412
        %v3537 = vunpack.c.l.bf16 %v3413
        %v3538 = vunpack.c.l.bf16 %v3414
        %v3539 = vunpack.c.l.bf16 %v3415
        %v3540 = vunpack.c.l.bf16 %v3416
        %v3541 = vunpack.c.l.bf16 %v3417
        %v3542 = vunpack.c.l.bf16 %v3418
        %v3543 = vunpack.c.l.bf16 %v3419
        %v3544 = vunpack.c.l.bf16 %v3420
        %v3545 = vunpack.c.l.bf16 %v3421
        %v3546 = vunpack.c.l.bf16 %v3422
        %v3547 = vunpack.c.l.bf16 %v3423
        %v3548 = vunpack.c.l.bf16 %v3424
        %v3549 = vunpack.c.l.bf16 %v3425
        %v3550 = vadd.f32 %v3426, %v3488
        %v3551 = vadd.f32 %v3427, %v3489
        %v3552 = vadd.f32 %v3428, %v3490
        %v3553 = vadd.f32 %v3429, %v3491
        %v3554 = vadd.f32 %v3430, %v3492
        %v3555 = vadd.f32 %v3431, %v3493
        %v3556 = vadd.f32 %v3432, %v3494
        %v3557 = vadd.f32 %v3433, %v3495
        %v3558 = vadd.f32 %v3434, %v3496
        %v3559 = vadd.f32 %v3435, %v3497
        %v3560 = vadd.f32 %v3436, %v3498
        %v3561 = vadd.f32 %v3437, %v3499
        %v3562 = vadd.f32 %v3438, %v3500
        %v3563 = vadd.f32 %v3439, %v3501
        %v3564 = vadd.f32 %v3440, %v3502
        %v3565 = vadd.f32 %v3441, %v3503
        %v3566 = vadd.f32 %v3442, %v3504
        %v3567 = vadd.f32 %v3443, %v3505
        %v3568 = vadd.f32 %v3444, %v3506
        %v3569 = vadd.f32 %v3445, %v3507
        %v3570 = vadd.f32 %v3446, %v3508
        %v3571 = vadd.f32 %v3447, %v3509
        %v3572 = vadd.f32 %v3448, %v3510
        %v3573 = vadd.f32 %v3449, %v3511
        %v3574 = vadd.f32 %v3450, %v3512
        %v3575 = vadd.f32 %v3451, %v3513
        %v3576 = vadd.f32 %v3452, %v3514
        %v3577 = vadd.f32 %v3453, %v3515
        %v3578 = vadd.f32 %v3454, %v3516
        %v3579 = vadd.f32 %v3455, %v3517
        %v3580 = vadd.f32 %v3456, %v3518
        %v3581 = vadd.f32 %v3457, %v3519
        %v3582 = vadd.f32 %v3458, %v3520
        %v3583 = vadd.f32 %v3459, %v3521
        %v3584 = vadd.f32 %v3460, %v3522
        %v3585 = vadd.f32 %v3461, %v3523
        %v3586 = vadd.f32 %v3462, %v3524
        %v3587 = vadd.f32 %v3463, %v3525
        %v3588 = vadd.f32 %v3464, %v3526
        %v3589 = vadd.f32 %v3465, %v3527
        %v3590 = vadd.f32 %v3466, %v3528
        %v3591 = vadd.f32 %v3467, %v3529
        %v3592 = vadd.f32 %v3468, %v3530
        %v3593 = vadd.f32 %v3469, %v3531
        %v3594 = vadd.f32 %v3470, %v3532
        %v3595 = vadd.f32 %v3471, %v3533
        %v3596 = vadd.f32 %v3472, %v3534
        %v3597 = vadd.f32 %v3473, %v3535
        %v3598 = vadd.f32 %v3474, %v3536
        %v3599 = vadd.f32 %v3475, %v3537
        %v3600 = vadd.f32 %v3476, %v3538
        %v3601 = vadd.f32 %v3477, %v3539
        %v3602 = vadd.f32 %v3478, %v3540
        %v3603 = vadd.f32 %v3479, %v3541
        %v3604 = vadd.f32 %v3480, %v3542
        %v3605 = vadd.f32 %v3481, %v3543
        %v3606 = vadd.f32 %v3482, %v3544
        %v3607 = vadd.f32 %v3483, %v3545
        %v3608 = vadd.f32 %v3484, %v3546
        %v3609 = vadd.f32 %v3485, %v3547
        %v3610 = vadd.f32 %v3486, %v3548
        %v3611 = vadd.f32 %v3487, %v3549
        %v3612 = vpack.c.bf16 %v3550, %v3550
        %v3613 = vpack.c.bf16 %v3551, %v3551
        %v3614 = vpack.c.bf16 %v3552, %v3552
        %v3615 = vpack.c.bf16 %v3553, %v3553
        %v3616 = vpack.c.bf16 %v3554, %v3554
        %v3617 = vpack.c.bf16 %v3555, %v3555
        %v3618 = vpack.c.bf16 %v3556, %v3556
        %v3619 = vpack.c.bf16 %v3557, %v3557
        %v3620 = vpack.c.bf16 %v3558, %v3558
        %v3621 = vpack.c.bf16 %v3559, %v3559
        %v3622 = vpack.c.bf16 %v3560, %v3560
        %v3623 = vpack.c.bf16 %v3561, %v3561
        %v3624 = vpack.c.bf16 %v3562, %v3562
        %v3625 = vpack.c.bf16 %v3563, %v3563
        %v3626 = vpack.c.bf16 %v3564, %v3564
        %v3627 = vpack.c.bf16 %v3565, %v3565
        %v3628 = vpack.c.bf16 %v3566, %v3566
        %v3629 = vpack.c.bf16 %v3567, %v3567
        %v3630 = vpack.c.bf16 %v3568, %v3568
        %v3631 = vpack.c.bf16 %v3569, %v3569
        %v3632 = vpack.c.bf16 %v3570, %v3570
        %v3633 = vpack.c.bf16 %v3571, %v3571
        %v3634 = vpack.c.bf16 %v3572, %v3572
        %v3635 = vpack.c.bf16 %v3573, %v3573
        %v3636 = vpack.c.bf16 %v3574, %v3574
        %v3637 = vpack.c.bf16 %v3575, %v3575
        %v3638 = vpack.c.bf16 %v3576, %v3576
        %v3639 = vpack.c.bf16 %v3577, %v3577
        %v3640 = vpack.c.bf16 %v3578, %v3578
        %v3641 = vpack.c.bf16 %v3579, %v3579
        %v3642 = vpack.c.bf16 %v3580, %v3580
        %v3643 = vpack.c.bf16 %v3581, %v3581
        %v3644 = vpack.c.bf16 %v3582, %v3582
        %v3645 = vpack.c.bf16 %v3583, %v3583
        %v3646 = vpack.c.bf16 %v3584, %v3584
        %v3647 = vpack.c.bf16 %v3585, %v3585
        %v3648 = vpack.c.bf16 %v3586, %v3586
        %v3649 = vpack.c.bf16 %v3587, %v3587
        %v3650 = vpack.c.bf16 %v3588, %v3588
        %v3651 = vpack.c.bf16 %v3589, %v3589
        %v3652 = vpack.c.bf16 %v3590, %v3590
        %v3653 = vpack.c.bf16 %v3591, %v3591
        %v3654 = vpack.c.bf16 %v3592, %v3592
        %v3655 = vpack.c.bf16 %v3593, %v3593
        %v3656 = vpack.c.bf16 %v3594, %v3594
        %v3657 = vpack.c.bf16 %v3595, %v3595
        %v3658 = vpack.c.bf16 %v3596, %v3596
        %v3659 = vpack.c.bf16 %v3597, %v3597
        %v3660 = vpack.c.bf16 %v3598, %v3598
        %v3661 = vpack.c.bf16 %v3599, %v3599
        %v3662 = vpack.c.bf16 %v3600, %v3600
        %v3663 = vpack.c.bf16 %v3601, %v3601
        %v3664 = vpack.c.bf16 %v3602, %v3602
        %v3665 = vpack.c.bf16 %v3603, %v3603
        %v3666 = vpack.c.bf16 %v3604, %v3604
        %v3667 = vpack.c.bf16 %v3605, %v3605
        %v3668 = vpack.c.bf16 %v3606, %v3606
        %v3669 = vpack.c.bf16 %v3607, %v3607
        %v3670 = vpack.c.bf16 %v3608, %v3608
        %v3671 = vpack.c.bf16 %v3609, %v3609
        %v3672 = vpack.c.bf16 %v3610, %v3610
        %v3673 = vpack.c.bf16 %v3611, %v3611
        %3674 = vst [vmem:[#allocation2] sm:$0xf] %v3612
        %3675 = vst [vmem:[#allocation2 + $0x4] sm:$0xf] %v3613
        %3676 = vst [vmem:[#allocation2 + $0x8] sm:$0xf] %v3614
        %3677 = vst [vmem:[#allocation2 + $0xc] sm:$0xf] %v3615
        %3678 = vst [vmem:[#allocation2 + $0x10] sm:$0xf] %v3616
        %3679 = vst [vmem:[#allocation2 + $0x14] sm:$0xf] %v3617
        %3680 = vst [vmem:[#allocation2 + $0x18] sm:$0xf] %v3618
        %3681 = vst [vmem:[#allocation2 + $0x1c] sm:$0xf] %v3619
        %3682 = vst [vmem:[#allocation2 + $0x20] sm:$0xf] %v3620
        %3683 = vst [vmem:[#allocation2 + $0x24] sm:$0xf] %v3621
        %3684 = vst [vmem:[#allocation2 + $0x28] sm:$0xf] %v3622
        %3685 = vst [vmem:[#allocation2 + $0x2c] sm:$0xf] %v3623
        %3686 = vst [vmem:[#allocation2 + $0x30] sm:$0xf] %v3624
        %3687 = vst [vmem:[#allocation2 + $0x34] sm:$0xf] %v3625
        %3688 = vst [vmem:[#allocation2 + $0x38] sm:$0xf] %v3626
        %3689 = vst [vmem:[#allocation2 + $0x3c] sm:$0xf] %v3627
        %3690 = vst [vmem:[#allocation2 + $0x40] sm:$0xf] %v3628
        %3691 = vst [vmem:[#allocation2 + $0x44] sm:$0xf] %v3629
        %3692 = vst [vmem:[#allocation2 + $0x48] sm:$0xf] %v3630
        %3693 = vst [vmem:[#allocation2 + $0x4c] sm:$0xf] %v3631
        %3694 = vst [vmem:[#allocation2 + $0x50] sm:$0xf] %v3632
        %3695 = vst [vmem:[#allocation2 + $0x54] sm:$0xf] %v3633
        %3696 = vst [vmem:[#allocation2 + $0x58] sm:$0xf] %v3634
        %3697 = vst [vmem:[#allocation2 + $0x5c] sm:$0xf] %v3635
        %3698 = vst [vmem:[#allocation2 + $0x60] sm:$0xf] %v3636
        %3699 = vst [vmem:[#allocation2 + $0x64] sm:$0xf] %v3637
        %3700 = vst [vmem:[#allocation2 + $0x68] sm:$0xf] %v3638
        %3701 = vst [vmem:[#allocation2 + $0x6c] sm:$0xf] %v3639
        %3702 = vst [vmem:[#allocation2 + $0x70] sm:$0xf] %v3640
        %3703 = vst [vmem:[#allocation2 + $0x74] sm:$0xf] %v3641
        %3704 = vst [vmem:[#allocation2 + $0x78] sm:$0xf] %v3642
        %3705 = vst [vmem:[#allocation2 + $0x7c] sm:$0xf] %v3643
        %3706 = vst [vmem:[#allocation2 + $0x80] sm:$0xf] %v3644
        %3707 = vst [vmem:[#allocation2 + $0x84] sm:$0xf] %v3645
        %3708 = vst [vmem:[#allocation2 + $0x88] sm:$0xf] %v3646
        %3709 = vst [vmem:[#allocation2 + $0x8c] sm:$0xf] %v3647
        %3710 = vst [vmem:[#allocation2 + $0x90] sm:$0xf] %v3648
        %3711 = vst [vmem:[#allocation2 + $0x94] sm:$0xf] %v3649
        %3712 = vst [vmem:[#allocation2 + $0x98] sm:$0xf] %v3650
        %3713 = vst [vmem:[#allocation2 + $0x9c] sm:$0xf] %v3651
        %3714 = vst [vmem:[#allocation2 + $0xa0] sm:$0xf] %v3652
        %3715 = vst [vmem:[#allocation2 + $0xa4] sm:$0xf] %v3653
        %3716 = vst [vmem:[#allocation2 + $0xa8] sm:$0xf] %v3654
        %3717 = vst [vmem:[#allocation2 + $0xac] sm:$0xf] %v3655
        %3718 = vst [vmem:[#allocation2 + $0xb0] sm:$0xf] %v3656
        %3719 = vst [vmem:[#allocation2 + $0xb4] sm:$0xf] %v3657
        %3720 = vst [vmem:[#allocation2 + $0xb8] sm:$0xf] %v3658
        %3721 = vst [vmem:[#allocation2 + $0xbc] sm:$0xf] %v3659
        %3722 = vst [vmem:[#allocation2 + $0xc0] sm:$0xf] %v3660
        %3723 = vst [vmem:[#allocation2 + $0xc4] sm:$0xf] %v3661
        %3724 = vst [vmem:[#allocation2 + $0xc8] sm:$0xf] %v3662
        %3725 = vst [vmem:[#allocation2 + $0xcc] sm:$0xf] %v3663
        %3726 = vst [vmem:[#allocation2 + $0xd0] sm:$0xf] %v3664
        %3727 = vst [vmem:[#allocation2 + $0xd4] sm:$0xf] %v3665
        %3728 = vst [vmem:[#allocation2 + $0xd8] sm:$0xf] %v3666
        %3729 = vst [vmem:[#allocation2 + $0xdc] sm:$0xf] %v3667
        %3730 = vst [vmem:[#allocation2 + $0xe0] sm:$0xf] %v3668
        %3731 = vst [vmem:[#allocation2 + $0xe4] sm:$0xf] %v3669
        %3732 = vst [vmem:[#allocation2 + $0xe8] sm:$0xf] %v3670
        %3733 = vst [vmem:[#allocation2 + $0xec] sm:$0xf] %v3671
        %3734 = vst [vmem:[#allocation2 + $0xf0] sm:$0xf] %v3672
        %3735 = vst [vmem:[#allocation2 + $0xf4] sm:$0xf] %v3673
        %v3736 = vld [vmem:[#allocation2] sm:$0xf]
        %v3737 = vld [vmem:[#allocation2 + $0x4] sm:$0xf]
        %v3738 = vld [vmem:[#allocation2 + $0x8] sm:$0xf]
        %v3739 = vld [vmem:[#allocation2 + $0xc] sm:$0xf]
        %v3740 = vld [vmem:[#allocation2 + $0x10] sm:$0xf]
        %v3741 = vld [vmem:[#allocation2 + $0x14] sm:$0xf]
        %v3742 = vld [vmem:[#allocation2 + $0x18] sm:$0xf]
        %v3743 = vld [vmem:[#allocation2 + $0x1c] sm:$0xf]
        %v3744 = vld [vmem:[#allocation2 + $0x20] sm:$0xf]
        %v3745 = vld [vmem:[#allocation2 + $0x24] sm:$0xf]
        %v3746 = vld [vmem:[#allocation2 + $0x28] sm:$0xf]
        %v3747 = vld [vmem:[#allocation2 + $0x2c] sm:$0xf]
        %v3748 = vld [vmem:[#allocation2 + $0x30] sm:$0xf]
        %v3749 = vld [vmem:[#allocation2 + $0x34] sm:$0xf]
        %v3750 = vld [vmem:[#allocation2 + $0x38] sm:$0xf]
        %v3751 = vld [vmem:[#allocation2 + $0x3c] sm:$0xf]
        %v3752 = vld [vmem:[#allocation2 + $0x40] sm:$0xf]
        %v3753 = vld [vmem:[#allocation2 + $0x44] sm:$0xf]
        %v3754 = vld [vmem:[#allocation2 + $0x48] sm:$0xf]
        %v3755 = vld [vmem:[#allocation2 + $0x4c] sm:$0xf]
        %v3756 = vld [vmem:[#allocation2 + $0x50] sm:$0xf]
        %v3757 = vld [vmem:[#allocation2 + $0x54] sm:$0xf]
        %v3758 = vld [vmem:[#allocation2 + $0x58] sm:$0xf]
        %v3759 = vld [vmem:[#allocation2 + $0x5c] sm:$0xf]
        %v3760 = vld [vmem:[#allocation2 + $0x60] sm:$0xf]
        %v3761 = vld [vmem:[#allocation2 + $0x64] sm:$0xf]
        %v3762 = vld [vmem:[#allocation2 + $0x68] sm:$0xf]
        %v3763 = vld [vmem:[#allocation2 + $0x6c] sm:$0xf]
        %v3764 = vld [vmem:[#allocation2 + $0x70] sm:$0xf]
        %v3765 = vld [vmem:[#allocation2 + $0x74] sm:$0xf]
        %v3766 = vld [vmem:[#allocation2 + $0x78] sm:$0xf]
        %v3767 = vld [vmem:[#allocation2 + $0x7c] sm:$0xf]
        %v3768 = vld [vmem:[#allocation2 + $0x80] sm:$0xf]
        %v3769 = vld [vmem:[#allocation2 + $0x84] sm:$0xf]
        %v3770 = vld [vmem:[#allocation2 + $0x88] sm:$0xf]
        %v3771 = vld [vmem:[#allocation2 + $0x8c] sm:$0xf]
        %v3772 = vld [vmem:[#allocation2 + $0x90] sm:$0xf]
        %v3773 = vld [vmem:[#allocation2 + $0x94] sm:$0xf]
        %v3774 = vld [vmem:[#allocation2 + $0x98] sm:$0xf]
        %v3775 = vld [vmem:[#allocation2 + $0x9c] sm:$0xf]
        %v3776 = vld [vmem:[#allocation2 + $0xa0] sm:$0xf]
        %v3777 = vld [vmem:[#allocation2 + $0xa4] sm:$0xf]
        %v3778 = vld [vmem:[#allocation2 + $0xa8] sm:$0xf]
        %v3779 = vld [vmem:[#allocation2 + $0xac] sm:$0xf]
        %v3780 = vld [vmem:[#allocation2 + $0xb0] sm:$0xf]
        %v3781 = vld [vmem:[#allocation2 + $0xb4] sm:$0xf]
        %v3782 = vld [vmem:[#allocation2 + $0xb8] sm:$0xf]
        %v3783 = vld [vmem:[#allocation2 + $0xbc] sm:$0xf]
        %v3784 = vld [vmem:[#allocation2 + $0xc0] sm:$0xf]
        %v3785 = vld [vmem:[#allocation2 + $0xc4] sm:$0xf]
        %v3786 = vld [vmem:[#allocation2 + $0xc8] sm:$0xf]
        %v3787 = vld [vmem:[#allocation2 + $0xcc] sm:$0xf]
        %v3788 = vld [vmem:[#allocation2 + $0xd0] sm:$0xf]
        %v3789 = vld [vmem:[#allocation2 + $0xd4] sm:$0xf]
        %v3790 = vld [vmem:[#allocation2 + $0xd8] sm:$0xf]
        %v3791 = vld [vmem:[#allocation2 + $0xdc] sm:$0xf]
        %v3792 = vld [vmem:[#allocation2 + $0xe0] sm:$0xf]
        %v3793 = vld [vmem:[#allocation2 + $0xe4] sm:$0xf]
        %v3794 = vld [vmem:[#allocation2 + $0xe8] sm:$0xf]
        %v3795 = vld [vmem:[#allocation2 + $0xec] sm:$0xf]
        %v3796 = vperm.slane %v1995, 2
        %v3797 = vunpack.c.l.bf16 %v3796
        %v3798 = vmul.f32 %v2002, %v3797
        %v3799 = vmul.f32 %v2003, %v3797
        %v3800 = vmul.f32 %v2004, %v3797
        %v3801 = vmul.f32 %v2005, %v3797
        %v3802 = vmul.f32 %v2006, %v3797
        %v3803 = vmul.f32 %v2007, %v3797
        %v3804 = vmul.f32 %v2008, %v3797
        %v3805 = vmul.f32 %v2009, %v3797
        %v3806 = vmul.f32 %v2010, %v3797
        %v3807 = vmul.f32 %v2011, %v3797
        %v3808 = vmul.f32 %v2012, %v3797
        %v3809 = vmul.f32 %v2013, %v3797
        %v3810 = vmul.f32 %v2014, %v3797
        %v3811 = vmul.f32 %v2015, %v3797
        %v3812 = vmul.f32 %v2016, %v3797
        %v3813 = vmul.f32 %v2017, %v3797
        %v3814 = vmul.f32 %v2018, %v3797
        %v3815 = vmul.f32 %v2019, %v3797
        %v3816 = vmul.f32 %v2020, %v3797
        %v3817 = vmul.f32 %v2021, %v3797
        %v3818 = vmul.f32 %v2022, %v3797
        %v3819 = vmul.f32 %v2023, %v3797
        %v3820 = vmul.f32 %v2024, %v3797
        %v3821 = vmul.f32 %v2025, %v3797
        %v3822 = vmul.f32 %v2026, %v3797
        %v3823 = vmul.f32 %v2027, %v3797
        %v3824 = vmul.f32 %v2028, %v3797
        %v3825 = vmul.f32 %v2029, %v3797
        %v3826 = vmul.f32 %v2030, %v3797
        %v3827 = vmul.f32 %v2031, %v3797
        %v3828 = vmul.f32 %v2032, %v3797
        %v3829 = vmul.f32 %v2033, %v3797
        %v3830 = vmul.f32 %v2034, %v3797
        %v3831 = vmul.f32 %v2035, %v3797
        %v3832 = vmul.f32 %v2036, %v3797
        %v3833 = vmul.f32 %v2037, %v3797
        %v3834 = vmul.f32 %v2038, %v3797
        %v3835 = vmul.f32 %v2039, %v3797
        %v3836 = vmul.f32 %v2040, %v3797
        %v3837 = vmul.f32 %v2041, %v3797
        %v3838 = vmul.f32 %v2042, %v3797
        %v3839 = vmul.f32 %v2043, %v3797
        %v3840 = vmul.f32 %v2044, %v3797
        %v3841 = vmul.f32 %v2045, %v3797
        %v3842 = vmul.f32 %v2046, %v3797
        %v3843 = vmul.f32 %v2047, %v3797
        %v3844 = vmul.f32 %v2048, %v3797
        %v3845 = vmul.f32 %v2049, %v3797
        %v3846 = vmul.f32 %v2050, %v3797
        %v3847 = vmul.f32 %v2051, %v3797
        %v3848 = vmul.f32 %v2052, %v3797
        %v3849 = vmul.f32 %v2053, %v3797
        %v3850 = vmul.f32 %v2054, %v3797
        %v3851 = vmul.f32 %v2055, %v3797
        %v3852 = vmul.f32 %v2056, %v3797
        %v3853 = vmul.f32 %v2057, %v3797
        %v3854 = vmul.f32 %v2058, %v3797
        %v3855 = vmul.f32 %v2059, %v3797
        %v3856 = vmul.f32 %v2060, %v3797
        %v3857 = vmul.f32 %v2061, %v3797
        %v3858 = vpack.c.bf16 %v3798, %v3798
        %v3859 = vpack.c.bf16 %v3799, %v3799
        %v3860 = vpack.c.bf16 %v3800, %v3800
        %v3861 = vpack.c.bf16 %v3801, %v3801
        %v3862 = vpack.c.bf16 %v3802, %v3802
        %v3863 = vpack.c.bf16 %v3803, %v3803
        %v3864 = vpack.c.bf16 %v3804, %v3804
        %v3865 = vpack.c.bf16 %v3805, %v3805
        %v3866 = vpack.c.bf16 %v3806, %v3806
        %v3867 = vpack.c.bf16 %v3807, %v3807
        %v3868 = vpack.c.bf16 %v3808, %v3808
        %v3869 = vpack.c.bf16 %v3809, %v3809
        %v3870 = vpack.c.bf16 %v3810, %v3810
        %v3871 = vpack.c.bf16 %v3811, %v3811
        %v3872 = vpack.c.bf16 %v3812, %v3812
        %v3873 = vpack.c.bf16 %v3813, %v3813
        %v3874 = vpack.c.bf16 %v3814, %v3814
        %v3875 = vpack.c.bf16 %v3815, %v3815
        %v3876 = vpack.c.bf16 %v3816, %v3816
        %v3877 = vpack.c.bf16 %v3817, %v3817
        %v3878 = vpack.c.bf16 %v3818, %v3818
        %v3879 = vpack.c.bf16 %v3819, %v3819
        %v3880 = vpack.c.bf16 %v3820, %v3820
        %v3881 = vpack.c.bf16 %v3821, %v3821
        %v3882 = vpack.c.bf16 %v3822, %v3822
        %v3883 = vpack.c.bf16 %v3823, %v3823
        %v3884 = vpack.c.bf16 %v3824, %v3824
        %v3885 = vpack.c.bf16 %v3825, %v3825
        %v3886 = vpack.c.bf16 %v3826, %v3826
        %v3887 = vpack.c.bf16 %v3827, %v3827
        %v3888 = vpack.c.bf16 %v3828, %v3828
        %v3889 = vpack.c.bf16 %v3829, %v3829
        %v3890 = vpack.c.bf16 %v3830, %v3830
        %v3891 = vpack.c.bf16 %v3831, %v3831
        %v3892 = vpack.c.bf16 %v3832, %v3832
        %v3893 = vpack.c.bf16 %v3833, %v3833
        %v3894 = vpack.c.bf16 %v3834, %v3834
        %v3895 = vpack.c.bf16 %v3835, %v3835
        %v3896 = vpack.c.bf16 %v3836, %v3836
        %v3897 = vpack.c.bf16 %v3837, %v3837
        %v3898 = vpack.c.bf16 %v3838, %v3838
        %v3899 = vpack.c.bf16 %v3839, %v3839
        %v3900 = vpack.c.bf16 %v3840, %v3840
        %v3901 = vpack.c.bf16 %v3841, %v3841
        %v3902 = vpack.c.bf16 %v3842, %v3842
        %v3903 = vpack.c.bf16 %v3843, %v3843
        %v3904 = vpack.c.bf16 %v3844, %v3844
        %v3905 = vpack.c.bf16 %v3845, %v3845
        %v3906 = vpack.c.bf16 %v3846, %v3846
        %v3907 = vpack.c.bf16 %v3847, %v3847
        %v3908 = vpack.c.bf16 %v3848, %v3848
        %v3909 = vpack.c.bf16 %v3849, %v3849
        %v3910 = vpack.c.bf16 %v3850, %v3850
        %v3911 = vpack.c.bf16 %v3851, %v3851
        %v3912 = vpack.c.bf16 %v3852, %v3852
        %v3913 = vpack.c.bf16 %v3853, %v3853
        %v3914 = vpack.c.bf16 %v3854, %v3854
        %v3915 = vpack.c.bf16 %v3855, %v3855
        %v3916 = vpack.c.bf16 %v3856, %v3856
        %v3917 = vpack.c.bf16 %v3857, %v3857
        %v3918 = vunpack.c.l.bf16 %v3736
        %v3919 = vunpack.c.l.bf16 %v3737
        %v3920 = vunpack.c.l.bf16 %v3738
        %v3921 = vunpack.c.l.bf16 %v3739
        %v3922 = vunpack.c.l.bf16 %v3740
        %v3923 = vunpack.c.l.bf16 %v3741
        %v3924 = vunpack.c.l.bf16 %v3742
        %v3925 = vunpack.c.l.bf16 %v3743
        %v3926 = vunpack.c.l.bf16 %v3744
        %v3927 = vunpack.c.l.bf16 %v3745
        %v3928 = vunpack.c.l.bf16 %v3746
        %v3929 = vunpack.c.l.bf16 %v3747
        %v3930 = vunpack.c.l.bf16 %v3748
        %v3931 = vunpack.c.l.bf16 %v3749
        %v3932 = vunpack.c.l.bf16 %v3750
        %v3933 = vunpack.c.l.bf16 %v3751
        %v3934 = vunpack.c.l.bf16 %v3752
        %v3935 = vunpack.c.l.bf16 %v3753
        %v3936 = vunpack.c.l.bf16 %v3754
        %v3937 = vunpack.c.l.bf16 %v3755
        %v3938 = vunpack.c.l.bf16 %v3756
        %v3939 = vunpack.c.l.bf16 %v3757
        %v3940 = vunpack.c.l.bf16 %v3758
        %v3941 = vunpack.c.l.bf16 %v3759
        %v3942 = vunpack.c.l.bf16 %v3760
        %v3943 = vunpack.c.l.bf16 %v3761
        %v3944 = vunpack.c.l.bf16 %v3762
        %v3945 = vunpack.c.l.bf16 %v3763
        %v3946 = vunpack.c.l.bf16 %v3764
        %v3947 = vunpack.c.l.bf16 %v3765
        %v3948 = vunpack.c.l.bf16 %v3766
        %v3949 = vunpack.c.l.bf16 %v3767
        %v3950 = vunpack.c.l.bf16 %v3768
        %v3951 = vunpack.c.l.bf16 %v3769
        %v3952 = vunpack.c.l.bf16 %v3770
        %v3953 = vunpack.c.l.bf16 %v3771
        %v3954 = vunpack.c.l.bf16 %v3772
        %v3955 = vunpack.c.l.bf16 %v3773
        %v3956 = vunpack.c.l.bf16 %v3774
        %v3957 = vunpack.c.l.bf16 %v3775
        %v3958 = vunpack.c.l.bf16 %v3776
        %v3959 = vunpack.c.l.bf16 %v3777
        %v3960 = vunpack.c.l.bf16 %v3778
        %v3961 = vunpack.c.l.bf16 %v3779
        %v3962 = vunpack.c.l.bf16 %v3780
        %v3963 = vunpack.c.l.bf16 %v3781
        %v3964 = vunpack.c.l.bf16 %v3782
        %v3965 = vunpack.c.l.bf16 %v3783
        %v3966 = vunpack.c.l.bf16 %v3784
        %v3967 = vunpack.c.l.bf16 %v3785
        %v3968 = vunpack.c.l.bf16 %v3786
        %v3969 = vunpack.c.l.bf16 %v3787
        %v3970 = vunpack.c.l.bf16 %v3788
        %v3971 = vunpack.c.l.bf16 %v3789
        %v3972 = vunpack.c.l.bf16 %v3790
        %v3973 = vunpack.c.l.bf16 %v3791
        %v3974 = vunpack.c.l.bf16 %v3792
        %v3975 = vunpack.c.l.bf16 %v3793
        %v3976 = vunpack.c.l.bf16 %v3794
        %v3977 = vunpack.c.l.bf16 %v3795
        %v3978 = vunpack.c.l.bf16 %v3858
        %v3979 = vunpack.c.l.bf16 %v3859
        %v3980 = vunpack.c.l.bf16 %v3860
        %v3981 = vunpack.c.l.bf16 %v3861
        %v3982 = vunpack.c.l.bf16 %v3862
        %v3983 = vunpack.c.l.bf16 %v3863
        %v3984 = vunpack.c.l.bf16 %v3864
        %v3985 = vunpack.c.l.bf16 %v3865
        %v3986 = vunpack.c.l.bf16 %v3866
        %v3987 = vunpack.c.l.bf16 %v3867
        %v3988 = vunpack.c.l.bf16 %v3868
        %v3989 = vunpack.c.l.bf16 %v3869
        %v3990 = vunpack.c.l.bf16 %v3870
        %v3991 = vunpack.c.l.bf16 %v3871
        %v3992 = vunpack.c.l.bf16 %v3872
        %v3993 = vunpack.c.l.bf16 %v3873
        %v3994 = vunpack.c.l.bf16 %v3874
        %v3995 = vunpack.c.l.bf16 %v3875
        %v3996 = vunpack.c.l.bf16 %v3876
        %v3997 = vunpack.c.l.bf16 %v3877
        %v3998 = vunpack.c.l.bf16 %v3878
        %v3999 = vunpack.c.l.bf16 %v3879
        %v4000 = vunpack.c.l.bf16 %v3880
        %v4001 = vunpack.c.l.bf16 %v3881
        %v4002 = vunpack.c.l.bf16 %v3882
        %v4003 = vunpack.c.l.bf16 %v3883
        %v4004 = vunpack.c.l.bf16 %v3884
        %v4005 = vunpack.c.l.bf16 %v3885
        %v4006 = vunpack.c.l.bf16 %v3886
        %v4007 = vunpack.c.l.bf16 %v3887
        %v4008 = vunpack.c.l.bf16 %v3888
        %v4009 = vunpack.c.l.bf16 %v3889
        %v4010 = vunpack.c.l.bf16 %v3890
        %v4011 = vunpack.c.l.bf16 %v3891
        %v4012 = vunpack.c.l.bf16 %v3892
        %v4013 = vunpack.c.l.bf16 %v3893
        %v4014 = vunpack.c.l.bf16 %v3894
        %v4015 = vunpack.c.l.bf16 %v3895
        %v4016 = vunpack.c.l.bf16 %v3896
        %v4017 = vunpack.c.l.bf16 %v3897
        %v4018 = vunpack.c.l.bf16 %v3898
        %v4019 = vunpack.c.l.bf16 %v3899
        %v4020 = vunpack.c.l.bf16 %v3900
        %v4021 = vunpack.c.l.bf16 %v3901
        %v4022 = vunpack.c.l.bf16 %v3902
        %v4023 = vunpack.c.l.bf16 %v3903
        %v4024 = vunpack.c.l.bf16 %v3904
        %v4025 = vunpack.c.l.bf16 %v3905
        %v4026 = vunpack.c.l.bf16 %v3906
        %v4027 = vunpack.c.l.bf16 %v3907
        %v4028 = vunpack.c.l.bf16 %v3908
        %v4029 = vunpack.c.l.bf16 %v3909
        %v4030 = vunpack.c.l.bf16 %v3910
        %v4031 = vunpack.c.l.bf16 %v3911
        %v4032 = vunpack.c.l.bf16 %v3912
        %v4033 = vunpack.c.l.bf16 %v3913
        %v4034 = vunpack.c.l.bf16 %v3914
        %v4035 = vunpack.c.l.bf16 %v3915
        %v4036 = vunpack.c.l.bf16 %v3916
        %v4037 = vunpack.c.l.bf16 %v3917
        %v4038 = vadd.f32 %v3918, %v3978
        %v4039 = vadd.f32 %v3919, %v3979
        %v4040 = vadd.f32 %v3920, %v3980
        %v4041 = vadd.f32 %v3921, %v3981
        %v4042 = vadd.f32 %v3922, %v3982
        %v4043 = vadd.f32 %v3923, %v3983
        %v4044 = vadd.f32 %v3924, %v3984
        %v4045 = vadd.f32 %v3925, %v3985
        %v4046 = vadd.f32 %v3926, %v3986
        %v4047 = vadd.f32 %v3927, %v3987
        %v4048 = vadd.f32 %v3928, %v3988
        %v4049 = vadd.f32 %v3929, %v3989
        %v4050 = vadd.f32 %v3930, %v3990
        %v4051 = vadd.f32 %v3931, %v3991
        %v4052 = vadd.f32 %v3932, %v3992
        %v4053 = vadd.f32 %v3933, %v3993
        %v4054 = vadd.f32 %v3934, %v3994
        %v4055 = vadd.f32 %v3935, %v3995
        %v4056 = vadd.f32 %v3936, %v3996
        %v4057 = vadd.f32 %v3937, %v3997
        %v4058 = vadd.f32 %v3938, %v3998
        %v4059 = vadd.f32 %v3939, %v3999
        %v4060 = vadd.f32 %v3940, %v4000
        %v4061 = vadd.f32 %v3941, %v4001
        %v4062 = vadd.f32 %v3942, %v4002
        %v4063 = vadd.f32 %v3943, %v4003
        %v4064 = vadd.f32 %v3944, %v4004
        %v4065 = vadd.f32 %v3945, %v4005
        %v4066 = vadd.f32 %v3946, %v4006
        %v4067 = vadd.f32 %v3947, %v4007
        %v4068 = vadd.f32 %v3948, %v4008
        %v4069 = vadd.f32 %v3949, %v4009
        %v4070 = vadd.f32 %v3950, %v4010
        %v4071 = vadd.f32 %v3951, %v4011
        %v4072 = vadd.f32 %v3952, %v4012
        %v4073 = vadd.f32 %v3953, %v4013
        %v4074 = vadd.f32 %v3954, %v4014
        %v4075 = vadd.f32 %v3955, %v4015
        %v4076 = vadd.f32 %v3956, %v4016
        %v4077 = vadd.f32 %v3957, %v4017
        %v4078 = vadd.f32 %v3958, %v4018
        %v4079 = vadd.f32 %v3959, %v4019
        %v4080 = vadd.f32 %v3960, %v4020
        %v4081 = vadd.f32 %v3961, %v4021
        %v4082 = vadd.f32 %v3962, %v4022
        %v4083 = vadd.f32 %v3963, %v4023
        %v4084 = vadd.f32 %v3964, %v4024
        %v4085 = vadd.f32 %v3965, %v4025
        %v4086 = vadd.f32 %v3966, %v4026
        %v4087 = vadd.f32 %v3967, %v4027
        %v4088 = vadd.f32 %v3968, %v4028
        %v4089 = vadd.f32 %v3969, %v4029
        %v4090 = vadd.f32 %v3970, %v4030
        %v4091 = vadd.f32 %v3971, %v4031
        %v4092 = vadd.f32 %v3972, %v4032
        %v4093 = vadd.f32 %v3973, %v4033
        %v4094 = vadd.f32 %v3974, %v4034
        %v4095 = vadd.f32 %v3975, %v4035
        %v4096 = vadd.f32 %v3976, %v4036
        %v4097 = vadd.f32 %v3977, %v4037
        %v4098 = vpack.c.bf16 %v4038, %v4038
        %v4099 = vpack.c.bf16 %v4039, %v4039
        %v4100 = vpack.c.bf16 %v4040, %v4040
        %v4101 = vpack.c.bf16 %v4041, %v4041
        %v4102 = vpack.c.bf16 %v4042, %v4042
        %v4103 = vpack.c.bf16 %v4043, %v4043
        %v4104 = vpack.c.bf16 %v4044, %v4044
        %v4105 = vpack.c.bf16 %v4045, %v4045
        %v4106 = vpack.c.bf16 %v4046, %v4046
        %v4107 = vpack.c.bf16 %v4047, %v4047
        %v4108 = vpack.c.bf16 %v4048, %v4048
        %v4109 = vpack.c.bf16 %v4049, %v4049
        %v4110 = vpack.c.bf16 %v4050, %v4050
        %v4111 = vpack.c.bf16 %v4051, %v4051
        %v4112 = vpack.c.bf16 %v4052, %v4052
        %v4113 = vpack.c.bf16 %v4053, %v4053
        %v4114 = vpack.c.bf16 %v4054, %v4054
        %v4115 = vpack.c.bf16 %v4055, %v4055
        %v4116 = vpack.c.bf16 %v4056, %v4056
        %v4117 = vpack.c.bf16 %v4057, %v4057
        %v4118 = vpack.c.bf16 %v4058, %v4058
        %v4119 = vpack.c.bf16 %v4059, %v4059
        %v4120 = vpack.c.bf16 %v4060, %v4060
        %v4121 = vpack.c.bf16 %v4061, %v4061
        %v4122 = vpack.c.bf16 %v4062, %v4062
        %v4123 = vpack.c.bf16 %v4063, %v4063
        %v4124 = vpack.c.bf16 %v4064, %v4064
        %v4125 = vpack.c.bf16 %v4065, %v4065
        %v4126 = vpack.c.bf16 %v4066, %v4066
        %v4127 = vpack.c.bf16 %v4067, %v4067
        %v4128 = vpack.c.bf16 %v4068, %v4068
        %v4129 = vpack.c.bf16 %v4069, %v4069
        %v4130 = vpack.c.bf16 %v4070, %v4070
        %v4131 = vpack.c.bf16 %v4071, %v4071
        %v4132 = vpack.c.bf16 %v4072, %v4072
        %v4133 = vpack.c.bf16 %v4073, %v4073
        %v4134 = vpack.c.bf16 %v4074, %v4074
        %v4135 = vpack.c.bf16 %v4075, %v4075
        %v4136 = vpack.c.bf16 %v4076, %v4076
        %v4137 = vpack.c.bf16 %v4077, %v4077
        %v4138 = vpack.c.bf16 %v4078, %v4078
        %v4139 = vpack.c.bf16 %v4079, %v4079
        %v4140 = vpack.c.bf16 %v4080, %v4080
        %v4141 = vpack.c.bf16 %v4081, %v4081
        %v4142 = vpack.c.bf16 %v4082, %v4082
        %v4143 = vpack.c.bf16 %v4083, %v4083
        %v4144 = vpack.c.bf16 %v4084, %v4084
        %v4145 = vpack.c.bf16 %v4085, %v4085
        %v4146 = vpack.c.bf16 %v4086, %v4086
        %v4147 = vpack.c.bf16 %v4087, %v4087
        %v4148 = vpack.c.bf16 %v4088, %v4088
        %v4149 = vpack.c.bf16 %v4089, %v4089
        %v4150 = vpack.c.bf16 %v4090, %v4090
        %v4151 = vpack.c.bf16 %v4091, %v4091
        %v4152 = vpack.c.bf16 %v4092, %v4092
        %v4153 = vpack.c.bf16 %v4093, %v4093
        %v4154 = vpack.c.bf16 %v4094, %v4094
        %v4155 = vpack.c.bf16 %v4095, %v4095
        %v4156 = vpack.c.bf16 %v4096, %v4096
        %v4157 = vpack.c.bf16 %v4097, %v4097
        %4158 = vst [vmem:[#allocation2] sm:$0xf] %v4098
        %4159 = vst [vmem:[#allocation2 + $0x4] sm:$0xf] %v4099
        %4160 = vst [vmem:[#allocation2 + $0x8] sm:$0xf] %v4100
        %4161 = vst [vmem:[#allocation2 + $0xc] sm:$0xf] %v4101
        %4162 = vst [vmem:[#allocation2 + $0x10] sm:$0xf] %v4102
        %4163 = vst [vmem:[#allocation2 + $0x14] sm:$0xf] %v4103
        %4164 = vst [vmem:[#allocation2 + $0x18] sm:$0xf] %v4104
        %4165 = vst [vmem:[#allocation2 + $0x1c] sm:$0xf] %v4105
        %4166 = vst [vmem:[#allocation2 + $0x20] sm:$0xf] %v4106
        %4167 = vst [vmem:[#allocation2 + $0x24] sm:$0xf] %v4107
        %4168 = vst [vmem:[#allocation2 + $0x28] sm:$0xf] %v4108
        %4169 = vst [vmem:[#allocation2 + $0x2c] sm:$0xf] %v4109
        %4170 = vst [vmem:[#allocation2 + $0x30] sm:$0xf] %v4110
        %4171 = vst [vmem:[#allocation2 + $0x34] sm:$0xf] %v4111
        %4172 = vst [vmem:[#allocation2 + $0x38] sm:$0xf] %v4112
        %4173 = vst [vmem:[#allocation2 + $0x3c] sm:$0xf] %v4113
        %4174 = vst [vmem:[#allocation2 + $0x40] sm:$0xf] %v4114
        %4175 = vst [vmem:[#allocation2 + $0x44] sm:$0xf] %v4115
        %4176 = vst [vmem:[#allocation2 + $0x48] sm:$0xf] %v4116
        %4177 = vst [vmem:[#allocation2 + $0x4c] sm:$0xf] %v4117
        %4178 = vst [vmem:[#allocation2 + $0x50] sm:$0xf] %v4118
        %4179 = vst [vmem:[#allocation2 + $0x54] sm:$0xf] %v4119
        %4180 = vst [vmem:[#allocation2 + $0x58] sm:$0xf] %v4120
        %4181 = vst [vmem:[#allocation2 + $0x5c] sm:$0xf] %v4121
        %4182 = vst [vmem:[#allocation2 + $0x60] sm:$0xf] %v4122
        %4183 = vst [vmem:[#allocation2 + $0x64] sm:$0xf] %v4123
        %4184 = vst [vmem:[#allocation2 + $0x68] sm:$0xf] %v4124
        %4185 = vst [vmem:[#allocation2 + $0x6c] sm:$0xf] %v4125
        %4186 = vst [vmem:[#allocation2 + $0x70] sm:$0xf] %v4126
        %4187 = vst [vmem:[#allocation2 + $0x74] sm:$0xf] %v4127
        %4188 = vst [vmem:[#allocation2 + $0x78] sm:$0xf] %v4128
        %4189 = vst [vmem:[#allocation2 + $0x7c] sm:$0xf] %v4129
        %4190 = vst [vmem:[#allocation2 + $0x80] sm:$0xf] %v4130
        %4191 = vst [vmem:[#allocation2 + $0x84] sm:$0xf] %v4131
        %4192 = vst [vmem:[#allocation2 + $0x88] sm:$0xf] %v4132
        %4193 = vst [vmem:[#allocation2 + $0x8c] sm:$0xf] %v4133
        %4194 = vst [vmem:[#allocation2 + $0x90] sm:$0xf] %v4134
        %4195 = vst [vmem:[#allocation2 + $0x94] sm:$0xf] %v4135
        %4196 = vst [vmem:[#allocation2 + $0x98] sm:$0xf] %v4136
        %4197 = vst [vmem:[#allocation2 + $0x9c] sm:$0xf] %v4137
        %4198 = vst [vmem:[#allocation2 + $0xa0] sm:$0xf] %v4138
        %4199 = vst [vmem:[#allocation2 + $0xa4] sm:$0xf] %v4139
        %4200 = vst [vmem:[#allocation2 + $0xa8] sm:$0xf] %v4140
        %4201 = vst [vmem:[#allocation2 + $0xac] sm:$0xf] %v4141
        %4202 = vst [vmem:[#allocation2 + $0xb0] sm:$0xf] %v4142
        %4203 = vst [vmem:[#allocation2 + $0xb4] sm:$0xf] %v4143
        %4204 = vst [vmem:[#allocation2 + $0xb8] sm:$0xf] %v4144
        %4205 = vst [vmem:[#allocation2 + $0xbc] sm:$0xf] %v4145
        %4206 = vst [vmem:[#allocation2 + $0xc0] sm:$0xf] %v4146
        %4207 = vst [vmem:[#allocation2 + $0xc4] sm:$0xf] %v4147
        %4208 = vst [vmem:[#allocation2 + $0xc8] sm:$0xf] %v4148
        %4209 = vst [vmem:[#allocation2 + $0xcc] sm:$0xf] %v4149
        %4210 = vst [vmem:[#allocation2 + $0xd0] sm:$0xf] %v4150
        %4211 = vst [vmem:[#allocation2 + $0xd4] sm:$0xf] %v4151
        %4212 = vst [vmem:[#allocation2 + $0xd8] sm:$0xf] %v4152
        %4213 = vst [vmem:[#allocation2 + $0xdc] sm:$0xf] %v4153
        %4214 = vst [vmem:[#allocation2 + $0xe0] sm:$0xf] %v4154
        %4215 = vst [vmem:[#allocation2 + $0xe4] sm:$0xf] %v4155
        %4216 = vst [vmem:[#allocation2 + $0xe8] sm:$0xf] %v4156
        %4217 = vst [vmem:[#allocation2 + $0xec] sm:$0xf] %v4157
        %v4218 = vld [vmem:[#allocation2] sm:$0xf]
        %v4219 = vld [vmem:[#allocation2 + $0x4] sm:$0xf]
        %v4220 = vld [vmem:[#allocation2 + $0x8] sm:$0xf]
        %v4221 = vld [vmem:[#allocation2 + $0xc] sm:$0xf]
        %v4222 = vld [vmem:[#allocation2 + $0x10] sm:$0xf]
        %v4223 = vld [vmem:[#allocation2 + $0x14] sm:$0xf]
        %v4224 = vld [vmem:[#allocation2 + $0x18] sm:$0xf]
        %v4225 = vld [vmem:[#allocation2 + $0x1c] sm:$0xf]
        %v4226 = vld [vmem:[#allocation2 + $0x20] sm:$0xf]
        %v4227 = vld [vmem:[#allocation2 + $0x24] sm:$0xf]
        %v4228 = vld [vmem:[#allocation2 + $0x28] sm:$0xf]
        %v4229 = vld [vmem:[#allocation2 + $0x2c] sm:$0xf]
        %v4230 = vld [vmem:[#allocation2 + $0x30] sm:$0xf]
        %v4231 = vld [vmem:[#allocation2 + $0x34] sm:$0xf]
        %v4232 = vld [vmem:[#allocation2 + $0x38] sm:$0xf]
        %v4233 = vld [vmem:[#allocation2 + $0x3c] sm:$0xf]
        %v4234 = vld [vmem:[#allocation2 + $0x40] sm:$0xf]
        %v4235 = vld [vmem:[#allocation2 + $0x44] sm:$0xf]
        %v4236 = vld [vmem:[#allocation2 + $0x48] sm:$0xf]
        %v4237 = vld [vmem:[#allocation2 + $0x4c] sm:$0xf]
        %v4238 = vld [vmem:[#allocation2 + $0x50] sm:$0xf]
        %v4239 = vld [vmem:[#allocation2 + $0x54] sm:$0xf]
        %v4240 = vld [vmem:[#allocation2 + $0x58] sm:$0xf]
        %v4241 = vld [vmem:[#allocation2 + $0x5c] sm:$0xf]
        %v4242 = vld [vmem:[#allocation2 + $0x60] sm:$0xf]
        %v4243 = vld [vmem:[#allocation2 + $0x64] sm:$0xf]
        %v4244 = vld [vmem:[#allocation2 + $0x68] sm:$0xf]
        %v4245 = vld [vmem:[#allocation2 + $0x6c] sm:$0xf]
        %v4246 = vld [vmem:[#allocation2 + $0x70] sm:$0xf]
        %v4247 = vld [vmem:[#allocation2 + $0x74] sm:$0xf]
        %v4248 = vld [vmem:[#allocation2 + $0x78] sm:$0xf]
        %v4249 = vld [vmem:[#allocation2 + $0x7c] sm:$0xf]
        %v4250 = vld [vmem:[#allocation2 + $0x80] sm:$0xf]
        %v4251 = vld [vmem:[#allocation2 + $0x84] sm:$0xf]
        %v4252 = vld [vmem:[#allocation2 + $0x88] sm:$0xf]
        %v4253 = vld [vmem:[#allocation2 + $0x8c] sm:$0xf]
        %v4254 = vld [vmem:[#allocation2 + $0x90] sm:$0xf]
        %v4255 = vld [vmem:[#allocation2 + $0x94] sm:$0xf]
        %v4256 = vld [vmem:[#allocation2 + $0x98] sm:$0xf]
        %v4257 = vld [vmem:[#allocation2 + $0x9c] sm:$0xf]
        %v4258 = vld [vmem:[#allocation2 + $0xa0] sm:$0xf]
        %v4259 = vld [vmem:[#allocation2 + $0xa4] sm:$0xf]
        %v4260 = vld [vmem:[#allocation2 + $0xa8] sm:$0xf]
        %v4261 = vld [vmem:[#allocation2 + $0xac] sm:$0xf]
        %v4262 = vld [vmem:[#allocation2 + $0xb0] sm:$0xf]
        %v4263 = vld [vmem:[#allocation2 + $0xb4] sm:$0xf]
        %v4264 = vld [vmem:[#allocation2 + $0xb8] sm:$0xf]
        %v4265 = vld [vmem:[#allocation2 + $0xbc] sm:$0xf]
        %v4266 = vld [vmem:[#allocation2 + $0xc0] sm:$0xf]
        %v4267 = vld [vmem:[#allocation2 + $0xc4] sm:$0xf]
        %v4268 = vld [vmem:[#allocation2 + $0xc8] sm:$0xf]
        %v4269 = vld [vmem:[#allocation2 + $0xcc] sm:$0xf]
        %v4270 = vld [vmem:[#allocation2 + $0xd0] sm:$0xf]
        %v4271 = vld [vmem:[#allocation2 + $0xd4] sm:$0xf]
        %v4272 = vld [vmem:[#allocation2 + $0xd8] sm:$0xf]
        %v4273 = vld [vmem:[#allocation2 + $0xdc] sm:$0xf]
        %v4274 = vld [vmem:[#allocation2 + $0xe0] sm:$0xf]
        %v4275 = vld [vmem:[#allocation2 + $0xe4] sm:$0xf]
        %v4276 = vld [vmem:[#allocation2 + $0xe8] sm:$0xf]
        %v4277 = vld [vmem:[#allocation2 + $0xec] sm:$0xf]
        %v4278 = vld [vmem:[#allocation2 + $0xf0] sm:$0xf]
        %v4279 = vld [vmem:[#allocation2 + $0xf4] sm:$0xf]
        %v4280 = vld [vmem:[#allocation2 + $0xf8] sm:$0xf]
        %v4281 = vld [vmem:[#allocation2 + $0xfc] sm:$0xf]
        %v4282 = vld [vmem:[#allocation8] sm:$0xf]
        %v4283 = vld [vmem:[#allocation8 + $0x4] sm:$0xf]
        %v4284 = vld [vmem:[#allocation8 + $0x8] sm:$0xf]
        %v4285 = vld [vmem:[#allocation8 + $0xc] sm:$0xf]
        %v4286 = vld [vmem:[#allocation8 + $0x10] sm:$0xf]
        %v4287 = vld [vmem:[#allocation8 + $0x14] sm:$0xf]
        %v4288 = vld [vmem:[#allocation8 + $0x18] sm:$0xf]
        %v4289 = vld [vmem:[#allocation8 + $0x1c] sm:$0xf]
        %v4290 = vld [vmem:[#allocation8 + $0x20] sm:$0xf]
        %v4291 = vld [vmem:[#allocation8 + $0x24] sm:$0xf]
        %v4292 = vld [vmem:[#allocation8 + $0x28] sm:$0xf]
        %v4293 = vld [vmem:[#allocation8 + $0x2c] sm:$0xf]
        %v4294 = vld [vmem:[#allocation8 + $0x30] sm:$0xf]
        %v4295 = vld [vmem:[#allocation8 + $0x34] sm:$0xf]
        %v4296 = vld [vmem:[#allocation8 + $0x38] sm:$0xf]
        %v4297 = vld [vmem:[#allocation8 + $0x3c] sm:$0xf]
        %v4298 = vld [vmem:[%s5] sm:$0x1]
        %v4300 = vperm.slane %v4298, 0
        %v4366 = vunpack.c.l.b16 %v4218
        %v4367 = vunpack.c.l.b16 %v4219
        %v4368 = vunpack.c.l.b16 %v4220
        %v4369 = vunpack.c.l.b16 %v4221
        %v4370 = vunpack.c.l.b16 %v4222
        %v4371 = vunpack.c.l.b16 %v4223
        %v4372 = vunpack.c.l.b16 %v4224
        %v4373 = vunpack.c.l.b16 %v4225
        %v4374 = vunpack.c.l.b16 %v4226
        %v4375 = vunpack.c.l.b16 %v4227
        %v4376 = vunpack.c.l.b16 %v4228
        %v4377 = vunpack.c.l.b16 %v4229
        %v4378 = vunpack.c.l.b16 %v4230
        %v4379 = vunpack.c.l.b16 %v4231
        %v4380 = vunpack.c.l.b16 %v4232
        %v4381 = vunpack.c.l.b16 %v4233
        %v4382 = vunpack.c.l.b16 %v4234
        %v4383 = vunpack.c.l.b16 %v4235
        %v4384 = vunpack.c.l.b16 %v4236
        %v4385 = vunpack.c.l.b16 %v4237
        %v4386 = vunpack.c.l.b16 %v4238
        %v4387 = vunpack.c.l.b16 %v4239
        %v4388 = vunpack.c.l.b16 %v4240
        %v4389 = vunpack.c.l.b16 %v4241
        %v4390 = vunpack.c.l.b16 %v4242
        %v4391 = vunpack.c.l.b16 %v4243
        %v4392 = vunpack.c.l.b16 %v4244
        %v4393 = vunpack.c.l.b16 %v4245
        %v4394 = vunpack.c.l.b16 %v4246
        %v4395 = vunpack.c.l.b16 %v4247
        %v4396 = vunpack.c.l.b16 %v4248
        %v4397 = vunpack.c.l.b16 %v4249
        %v4398 = vunpack.c.l.b16 %v4250
        %v4399 = vunpack.c.l.b16 %v4251
        %v4400 = vunpack.c.l.b16 %v4252
        %v4401 = vunpack.c.l.b16 %v4253
        %v4402 = vunpack.c.l.b16 %v4254
        %v4403 = vunpack.c.l.b16 %v4255
        %v4404 = vunpack.c.l.b16 %v4256
        %v4405 = vunpack.c.l.b16 %v4257
        %v4406 = vunpack.c.l.b16 %v4258
        %v4407 = vunpack.c.l.b16 %v4259
        %v4408 = vunpack.c.l.b16 %v4260
        %v4409 = vunpack.c.l.b16 %v4261
        %v4410 = vunpack.c.l.b16 %v4262
        %v4411 = vunpack.c.l.b16 %v4263
        %v4412 = vunpack.c.l.b16 %v4264
        %v4413 = vunpack.c.l.b16 %v4265
        %v4414 = vunpack.c.l.b16 %v4266
        %v4415 = vunpack.c.l.b16 %v4267
        %v4416 = vunpack.c.l.b16 %v4268
        %v4417 = vunpack.c.l.b16 %v4269
        %v4418 = vunpack.c.l.b16 %v4270
        %v4419 = vunpack.c.l.b16 %v4271
        %v4420 = vunpack.c.l.b16 %v4272
        %v4421 = vunpack.c.l.b16 %v4273
        %v4422 = vunpack.c.l.b16 %v4274
        %v4423 = vunpack.c.l.b16 %v4275
        %v4424 = vunpack.c.l.b16 %v4276
        %v4425 = vunpack.c.l.b16 %v4277
        %v4426 = vunpack.c.l.b16 %v4278
        %v4427 = vunpack.c.l.b16 %v4279
        %v4428 = vunpack.c.l.b16 %v4280
        %v4429 = vunpack.c.l.b16 %v4281
        %v4430 = vpack.c.b16 %v4367, %v4366
        %v4431 = vpack.c.b16 %v4369, %v4368
        %v4432 = vpack.c.b16 %v4371, %v4370
        %v4433 = vpack.c.b16 %v4373, %v4372
        %v4434 = vpack.c.b16 %v4375, %v4374
        %v4435 = vpack.c.b16 %v4377, %v4376
        %v4436 = vpack.c.b16 %v4379, %v4378
        %v4437 = vpack.c.b16 %v4381, %v4380
        %v4438 = vpack.c.b16 %v4383, %v4382
        %v4439 = vpack.c.b16 %v4385, %v4384
        %v4440 = vpack.c.b16 %v4387, %v4386
        %v4441 = vpack.c.b16 %v4389, %v4388
        %v4442 = vpack.c.b16 %v4391, %v4390
        %v4443 = vpack.c.b16 %v4393, %v4392
        %v4444 = vpack.c.b16 %v4395, %v4394
        %v4445 = vpack.c.b16 %v4397, %v4396
        %v4446 = vpack.c.b16 %v4399, %v4398
        %v4447 = vpack.c.b16 %v4401, %v4400
        %v4448 = vpack.c.b16 %v4403, %v4402
        %v4449 = vpack.c.b16 %v4405, %v4404
        %v4450 = vpack.c.b16 %v4407, %v4406
        %v4451 = vpack.c.b16 %v4409, %v4408
        %v4452 = vpack.c.b16 %v4411, %v4410
        %v4453 = vpack.c.b16 %v4413, %v4412
        %v4454 = vpack.c.b16 %v4415, %v4414
        %v4455 = vpack.c.b16 %v4417, %v4416
        %v4456 = vpack.c.b16 %v4419, %v4418
        %v4457 = vpack.c.b16 %v4421, %v4420
        %v4458 = vpack.c.b16 %v4423, %v4422
        %v4459 = vpack.c.b16 %v4425, %v4424
        %v4460 = vpack.c.b16 %v4427, %v4426
        %v4461 = vpack.c.b16 %v4429, %v4428
        %v4510 = vunpack.c.l.b16 %v4282
        %v4511 = vunpack.c.l.b16 %v4283
        %v4512 = vunpack.c.l.b16 %v4284
        %v4513 = vunpack.c.l.b16 %v4285
        %v4514 = vunpack.c.l.b16 %v4286
        %v4515 = vunpack.c.l.b16 %v4287
        %v4516 = vunpack.c.l.b16 %v4288
        %v4517 = vunpack.c.l.b16 %v4289
        %v4518 = vunpack.c.l.b16 %v4290
        %v4519 = vunpack.c.l.b16 %v4291
        %v4520 = vunpack.c.l.b16 %v4292
        %v4521 = vunpack.c.l.b16 %v4293
        %v4522 = vunpack.c.l.b16 %v4294
        %v4523 = vunpack.c.l.b16 %v4295
        %v4524 = vunpack.c.l.b16 %v4296
        %v4525 = vunpack.c.l.b16 %v4297
        %v4526 = vpack.c.b16 %v4511, %v4510
        %v4527 = vpack.c.b16 %v4513, %v4512
        %v4528 = vpack.c.b16 %v4515, %v4514
        %v4529 = vpack.c.b16 %v4517, %v4516
        %v4530 = vpack.c.b16 %v4519, %v4518
        %v4531 = vpack.c.b16 %v4521, %v4520
        %v4532 = vpack.c.b16 %v4523, %v4522
        %v4533 = vpack.c.b16 %v4525, %v4524
        %4542 = vmatpush.bf16.msra.mxu0 %v4533
        %4543 = vmatpush.bf16.msra.mxu0 %v4532
        %4544 = vmatpush.bf16.msra.mxu0 %v4531
        %4545 = vmatpush.bf16.msra.mxu0 %v4530
        %4546 = vmatpush.bf16.msra.mxu0 %v4529
        %4547 = vmatpush.bf16.msra.mxu0 %v4528
        %4548 = vmatpush.bf16.msra.mxu0 %v4527
        %4549 = vmatpush.bf16.msra.mxu0 %v4526
        %4550 = vmatmul.bf16.gmra.mxu0 %v4430
        %v4551 = vpop.f32.mrf.mxu0
        %v4552 = vadd.f32 %v4300, %v4551
        %v4553 = vpop.f32.mrf.mxu0
        %v4554 = vadd.f32 %v4300, %v4553
        %4555 = vmatmul.bf16.gmra.mxu0 %v4431
        %v4556 = vpop.f32.mrf.mxu0
        %v4557 = vadd.f32 %v4300, %v4556
        %v4558 = vpop.f32.mrf.mxu0
        %v4559 = vadd.f32 %v4300, %v4558
        %4560 = vmatmul.bf16.gmra.mxu0 %v4432
        %v4561 = vpop.f32.mrf.mxu0
        %v4562 = vadd.f32 %v4300, %v4561
        %v4563 = vpop.f32.mrf.mxu0
        %v4564 = vadd.f32 %v4300, %v4563
        %4565 = vmatmul.bf16.gmra.mxu0 %v4433
        %v4566 = vpop.f32.mrf.mxu0
        %v4567 = vadd.f32 %v4300, %v4566
        %v4568 = vpop.f32.mrf.mxu0
        %v4569 = vadd.f32 %v4300, %v4568
        %4570 = vmatmul.bf16.gmra.mxu0 %v4434
        %v4571 = vpop.f32.mrf.mxu0
        %v4572 = vadd.f32 %v4300, %v4571
        %v4573 = vpop.f32.mrf.mxu0
        %v4574 = vadd.f32 %v4300, %v4573
        %4575 = vmatmul.bf16.gmra.mxu0 %v4435
        %v4576 = vpop.f32.mrf.mxu0
        %v4577 = vadd.f32 %v4300, %v4576
        %v4578 = vpop.f32.mrf.mxu0
        %v4579 = vadd.f32 %v4300, %v4578
        %4580 = vmatmul.bf16.gmra.mxu0 %v4436
        %v4581 = vpop.f32.mrf.mxu0
        %v4582 = vadd.f32 %v4300, %v4581
        %v4583 = vpop.f32.mrf.mxu0
        %v4584 = vadd.f32 %v4300, %v4583
        %4585 = vmatmul.bf16.gmra.mxu0 %v4437
        %v4586 = vpop.f32.mrf.mxu0
        %v4587 = vadd.f32 %v4300, %v4586
        %v4588 = vpop.f32.mrf.mxu0
        %v4589 = vadd.f32 %v4300, %v4588
        %4590 = vmatmul.bf16.gmra.mxu0 %v4438
        %v4591 = vpop.f32.mrf.mxu0
        %v4592 = vadd.f32 %v4300, %v4591
        %v4593 = vpop.f32.mrf.mxu0
        %v4594 = vadd.f32 %v4300, %v4593
        %4595 = vmatmul.bf16.gmra.mxu0 %v4439
        %v4596 = vpop.f32.mrf.mxu0
        %v4597 = vadd.f32 %v4300, %v4596
        %v4598 = vpop.f32.mrf.mxu0
        %v4599 = vadd.f32 %v4300, %v4598
        %4600 = vmatmul.bf16.gmra.mxu0 %v4440
        %v4601 = vpop.f32.mrf.mxu0
        %v4602 = vadd.f32 %v4300, %v4601
        %v4603 = vpop.f32.mrf.mxu0
        %v4604 = vadd.f32 %v4300, %v4603
        %4605 = vmatmul.bf16.gmra.mxu0 %v4441
        %v4606 = vpop.f32.mrf.mxu0
        %v4607 = vadd.f32 %v4300, %v4606
        %v4608 = vpop.f32.mrf.mxu0
        %v4609 = vadd.f32 %v4300, %v4608
        %4610 = vmatmul.bf16.gmra.mxu0 %v4442
        %v4611 = vpop.f32.mrf.mxu0
        %v4612 = vadd.f32 %v4300, %v4611
        %v4613 = vpop.f32.mrf.mxu0
        %v4614 = vadd.f32 %v4300, %v4613
        %4615 = vmatmul.bf16.gmra.mxu0 %v4443
        %v4616 = vpop.f32.mrf.mxu0
        %v4617 = vadd.f32 %v4300, %v4616
        %v4618 = vpop.f32.mrf.mxu0
        %v4619 = vadd.f32 %v4300, %v4618
        %4620 = vmatmul.bf16.gmra.mxu0 %v4444
        %v4621 = vpop.f32.mrf.mxu0
        %v4622 = vadd.f32 %v4300, %v4621
        %v4623 = vpop.f32.mrf.mxu0
        %v4624 = vadd.f32 %v4300, %v4623
        %4625 = vmatmul.bf16.gmra.mxu0 %v4445
        %v4626 = vpop.f32.mrf.mxu0
        %v4627 = vadd.f32 %v4300, %v4626
        %v4628 = vpop.f32.mrf.mxu0
        %v4629 = vadd.f32 %v4300, %v4628
        %4630 = vmatmul.bf16.gmra.mxu0 %v4446
        %v4631 = vpop.f32.mrf.mxu0
        %v4632 = vadd.f32 %v4300, %v4631
        %v4633 = vpop.f32.mrf.mxu0
        %v4634 = vadd.f32 %v4300, %v4633
        %4635 = vmatmul.bf16.gmra.mxu0 %v4447
        %v4636 = vpop.f32.mrf.mxu0
        %v4637 = vadd.f32 %v4300, %v4636
        %v4638 = vpop.f32.mrf.mxu0
        %v4639 = vadd.f32 %v4300, %v4638
        %4640 = vmatmul.bf16.gmra.mxu0 %v4448
        %v4641 = vpop.f32.mrf.mxu0
        %v4642 = vadd.f32 %v4300, %v4641
        %v4643 = vpop.f32.mrf.mxu0
        %v4644 = vadd.f32 %v4300, %v4643
        %4645 = vmatmul.bf16.gmra.mxu0 %v4449
        %v4646 = vpop.f32.mrf.mxu0
        %v4647 = vadd.f32 %v4300, %v4646
        %v4648 = vpop.f32.mrf.mxu0
        %v4649 = vadd.f32 %v4300, %v4648
        %4650 = vmatmul.bf16.gmra.mxu0 %v4450
        %v4651 = vpop.f32.mrf.mxu0
        %v4652 = vadd.f32 %v4300, %v4651
        %v4653 = vpop.f32.mrf.mxu0
        %v4654 = vadd.f32 %v4300, %v4653
        %4655 = vmatmul.bf16.gmra.mxu0 %v4451
        %v4656 = vpop.f32.mrf.mxu0
        %v4657 = vadd.f32 %v4300, %v4656
        %v4658 = vpop.f32.mrf.mxu0
        %v4659 = vadd.f32 %v4300, %v4658
        %4660 = vmatmul.bf16.gmra.mxu0 %v4452
        %v4661 = vpop.f32.mrf.mxu0
        %v4662 = vadd.f32 %v4300, %v4661
        %v4663 = vpop.f32.mrf.mxu0
        %v4664 = vadd.f32 %v4300, %v4663
        %4665 = vmatmul.bf16.gmra.mxu0 %v4453
        %v4666 = vpop.f32.mrf.mxu0
        %v4667 = vadd.f32 %v4300, %v4666
        %v4668 = vpop.f32.mrf.mxu0
        %v4669 = vadd.f32 %v4300, %v4668
        %4670 = vmatmul.bf16.gmra.mxu0 %v4454
        %v4671 = vpop.f32.mrf.mxu0
        %v4672 = vadd.f32 %v4300, %v4671
        %v4673 = vpop.f32.mrf.mxu0
        %v4674 = vadd.f32 %v4300, %v4673
        %4675 = vmatmul.bf16.gmra.mxu0 %v4455
        %v4676 = vpop.f32.mrf.mxu0
        %v4677 = vadd.f32 %v4300, %v4676
        %v4678 = vpop.f32.mrf.mxu0
        %v4679 = vadd.f32 %v4300, %v4678
        %4680 = vmatmul.bf16.gmra.mxu0 %v4456
        %v4681 = vpop.f32.mrf.mxu0
        %v4682 = vadd.f32 %v4300, %v4681
        %v4683 = vpop.f32.mrf.mxu0
        %v4684 = vadd.f32 %v4300, %v4683
        %4685 = vmatmul.bf16.gmra.mxu0 %v4457
        %v4686 = vpop.f32.mrf.mxu0
        %v4687 = vadd.f32 %v4300, %v4686
        %v4688 = vpop.f32.mrf.mxu0
        %v4689 = vadd.f32 %v4300, %v4688
        %4690 = vmatmul.bf16.gmra.mxu0 %v4458
        %v4691 = vpop.f32.mrf.mxu0
        %v4692 = vadd.f32 %v4300, %v4691
        %v4693 = vpop.f32.mrf.mxu0
        %v4694 = vadd.f32 %v4300, %v4693
        %4695 = vmatmul.bf16.gmra.mxu0 %v4459
        %v4696 = vpop.f32.mrf.mxu0
        %v4697 = vadd.f32 %v4300, %v4696
        %v4698 = vpop.f32.mrf.mxu0
        %v4699 = vadd.f32 %v4300, %v4698
        %4700 = vmatmul.bf16.gmra.mxu0 %v4460
        %v4701 = vpop.f32.mrf.mxu0
        %v4702 = vadd.f32 %v4300, %v4701
        %v4703 = vpop.f32.mrf.mxu0
        %v4704 = vadd.f32 %v4300, %v4703
        %4705 = vmatmul.bf16.gmra.mxu0 %v4461
        %v4706 = vpop.f32.mrf.mxu0
        %v4707 = vadd.f32 %v4300, %v4706
        %v4708 = vpop.f32.mrf.mxu0
        %v4709 = vadd.f32 %v4300, %v4708
        %4710 = vdwg.mxu0
        %v4711 = vmax.f32 %v4552, 0.0
        %v4712 = vmax.f32 %v4554, 0.0
        %v4713 = vmax.f32 %v4557, 0.0
        %v4714 = vmax.f32 %v4559, 0.0
        %v4715 = vmax.f32 %v4562, 0.0
        %v4716 = vmax.f32 %v4564, 0.0
        %v4717 = vmax.f32 %v4567, 0.0
        %v4718 = vmax.f32 %v4569, 0.0
        %v4719 = vmax.f32 %v4572, 0.0
        %v4720 = vmax.f32 %v4574, 0.0
        %v4721 = vmax.f32 %v4577, 0.0
        %v4722 = vmax.f32 %v4579, 0.0
        %v4723 = vmax.f32 %v4582, 0.0
        %v4724 = vmax.f32 %v4584, 0.0
        %v4725 = vmax.f32 %v4587, 0.0
        %v4726 = vmax.f32 %v4589, 0.0
        %v4727 = vmax.f32 %v4592, 0.0
        %v4728 = vmax.f32 %v4594, 0.0
        %v4729 = vmax.f32 %v4597, 0.0
        %v4730 = vmax.f32 %v4599, 0.0
        %v4731 = vmax.f32 %v4602, 0.0
        %v4732 = vmax.f32 %v4604, 0.0
        %v4733 = vmax.f32 %v4607, 0.0
        %v4734 = vmax.f32 %v4609, 0.0
        %v4735 = vmax.f32 %v4612, 0.0
        %v4736 = vmax.f32 %v4614, 0.0
        %v4737 = vmax.f32 %v4617, 0.0
        %v4738 = vmax.f32 %v4619, 0.0
        %v4739 = vmax.f32 %v4622, 0.0
        %v4740 = vmax.f32 %v4624, 0.0
        %v4741 = vmax.f32 %v4627, 0.0
        %v4742 = vmax.f32 %v4629, 0.0
        %v4743 = vmax.f32 %v4632, 0.0
        %v4744 = vmax.f32 %v4634, 0.0
        %v4745 = vmax.f32 %v4637, 0.0
        %v4746 = vmax.f32 %v4639, 0.0
        %v4747 = vmax.f32 %v4642, 0.0
        %v4748 = vmax.f32 %v4644, 0.0
        %v4749 = vmax.f32 %v4647, 0.0
        %v4750 = vmax.f32 %v4649, 0.0
        %v4751 = vmax.f32 %v4652, 0.0
        %v4752 = vmax.f32 %v4654, 0.0
        %v4753 = vmax.f32 %v4657, 0.0
        %v4754 = vmax.f32 %v4659, 0.0
        %v4755 = vmax.f32 %v4662, 0.0
        %v4756 = vmax.f32 %v4664, 0.0
        %v4757 = vmax.f32 %v4667, 0.0
        %v4758 = vmax.f32 %v4669, 0.0
        %v4759 = vmax.f32 %v4672, 0.0
        %v4760 = vmax.f32 %v4674, 0.0
        %v4761 = vmax.f32 %v4677, 0.0
        %v4762 = vmax.f32 %v4679, 0.0
        %v4763 = vmax.f32 %v4682, 0.0
        %v4764 = vmax.f32 %v4684, 0.0
        %v4765 = vmax.f32 %v4687, 0.0
        %v4766 = vmax.f32 %v4689, 0.0
        %v4767 = vmax.f32 %v4692, 0.0
        %v4768 = vmax.f32 %v4694, 0.0
        %v4769 = vmax.f32 %v4697, 0.0
        %v4770 = vmax.f32 %v4699, 0.0
        %v4771 = vmax.f32 %v4702, 0.0
        %v4772 = vmax.f32 %v4704, 0.0
        %v4773 = vmax.f32 %v4707, 0.0
        %v4774 = vmax.f32 %v4709, 0.0
        %v4775 = vpack.c.bf16 %v4711, %v4711
        %v4776 = vpack.c.bf16 %v4712, %v4712
        %v4777 = vpack.c.bf16 %v4713, %v4713
        %v4778 = vpack.c.bf16 %v4714, %v4714
        %v4779 = vpack.c.bf16 %v4715, %v4715
        %v4780 = vpack.c.bf16 %v4716, %v4716
        %v4781 = vpack.c.bf16 %v4717, %v4717
        %v4782 = vpack.c.bf16 %v4718, %v4718
        %v4783 = vpack.c.bf16 %v4719, %v4719
        %v4784 = vpack.c.bf16 %v4720, %v4720
        %v4785 = vpack.c.bf16 %v4721, %v4721
        %v4786 = vpack.c.bf16 %v4722, %v4722
        %v4787 = vpack.c.bf16 %v4723, %v4723
        %v4788 = vpack.c.bf16 %v4724, %v4724
        %v4789 = vpack.c.bf16 %v4725, %v4725
        %v4790 = vpack.c.bf16 %v4726, %v4726
        %v4791 = vpack.c.bf16 %v4727, %v4727
        %v4792 = vpack.c.bf16 %v4728, %v4728
        %v4793 = vpack.c.bf16 %v4729, %v4729
        %v4794 = vpack.c.bf16 %v4730, %v4730
        %v4795 = vpack.c.bf16 %v4731, %v4731
        %v4796 = vpack.c.bf16 %v4732, %v4732
        %v4797 = vpack.c.bf16 %v4733, %v4733
        %v4798 = vpack.c.bf16 %v4734, %v4734
        %v4799 = vpack.c.bf16 %v4735, %v4735
        %v4800 = vpack.c.bf16 %v4736, %v4736
        %v4801 = vpack.c.bf16 %v4737, %v4737
        %v4802 = vpack.c.bf16 %v4738, %v4738
        %v4803 = vpack.c.bf16 %v4739, %v4739
        %v4804 = vpack.c.bf16 %v4740, %v4740
        %v4805 = vpack.c.bf16 %v4741, %v4741
        %v4806 = vpack.c.bf16 %v4742, %v4742
        %v4807 = vpack.c.bf16 %v4743, %v4743
        %v4808 = vpack.c.bf16 %v4744, %v4744
        %v4809 = vpack.c.bf16 %v4745, %v4745
        %v4810 = vpack.c.bf16 %v4746, %v4746
        %v4811 = vpack.c.bf16 %v4747, %v4747
        %v4812 = vpack.c.bf16 %v4748, %v4748
        %v4813 = vpack.c.bf16 %v4749, %v4749
        %v4814 = vpack.c.bf16 %v4750, %v4750
        %v4815 = vpack.c.bf16 %v4751, %v4751
        %v4816 = vpack.c.bf16 %v4752, %v4752
        %v4817 = vpack.c.bf16 %v4753, %v4753
        %v4818 = vpack.c.bf16 %v4754, %v4754
        %v4819 = vpack.c.bf16 %v4755, %v4755
        %v4820 = vpack.c.bf16 %v4756, %v4756
        %v4821 = vpack.c.bf16 %v4757, %v4757
        %v4822 = vpack.c.bf16 %v4758, %v4758
        %v4823 = vpack.c.bf16 %v4759, %v4759
        %v4824 = vpack.c.bf16 %v4760, %v4760
        %v4825 = vpack.c.bf16 %v4761, %v4761
        %v4826 = vpack.c.bf16 %v4762, %v4762
        %v4827 = vpack.c.bf16 %v4763, %v4763
        %v4828 = vpack.c.bf16 %v4764, %v4764
        %v4829 = vpack.c.bf16 %v4765, %v4765
        %v4830 = vpack.c.bf16 %v4766, %v4766
        %v4831 = vpack.c.bf16 %v4767, %v4767
        %v4832 = vpack.c.bf16 %v4768, %v4768
        %v4833 = vpack.c.bf16 %v4769, %v4769
        %v4834 = vpack.c.bf16 %v4770, %v4770
        %v4835 = vpack.c.bf16 %v4771, %v4771
        %v4836 = vpack.c.bf16 %v4772, %v4772
        %v4837 = vpack.c.bf16 %v4773, %v4773
        %v4838 = vpack.c.bf16 %v4774, %v4774
        %v4839 = vld [vmem:[#allocation9] sm:$0x7]
        %v4841 = vpack.i.b16 %v4839, %v4839
        %v4843 = vperm.slane %v4841, 1
        %v4844 = vunpack.c.l.bf16 %v4775
        %v4845 = vunpack.c.l.bf16 %v4776
        %v4846 = vunpack.c.l.bf16 %v4777
        %v4847 = vunpack.c.l.bf16 %v4778
        %v4848 = vunpack.c.l.bf16 %v4779
        %v4849 = vunpack.c.l.bf16 %v4780
        %v4850 = vunpack.c.l.bf16 %v4781
        %v4851 = vunpack.c.l.bf16 %v4782
        %v4852 = vunpack.c.l.bf16 %v4783
        %v4853 = vunpack.c.l.bf16 %v4784
        %v4854 = vunpack.c.l.bf16 %v4785
        %v4855 = vunpack.c.l.bf16 %v4786
        %v4856 = vunpack.c.l.bf16 %v4787
        %v4857 = vunpack.c.l.bf16 %v4788
        %v4858 = vunpack.c.l.bf16 %v4789
        %v4859 = vunpack.c.l.bf16 %v4790
        %v4860 = vunpack.c.l.bf16 %v4791
        %v4861 = vunpack.c.l.bf16 %v4792
        %v4862 = vunpack.c.l.bf16 %v4793
        %v4863 = vunpack.c.l.bf16 %v4794
        %v4864 = vunpack.c.l.bf16 %v4795
        %v4865 = vunpack.c.l.bf16 %v4796
        %v4866 = vunpack.c.l.bf16 %v4797
        %v4867 = vunpack.c.l.bf16 %v4798
        %v4868 = vunpack.c.l.bf16 %v4799
        %v4869 = vunpack.c.l.bf16 %v4800
        %v4870 = vunpack.c.l.bf16 %v4801
        %v4871 = vunpack.c.l.bf16 %v4802
        %v4872 = vunpack.c.l.bf16 %v4803
        %v4873 = vunpack.c.l.bf16 %v4804
        %v4874 = vunpack.c.l.bf16 %v4805
        %v4875 = vunpack.c.l.bf16 %v4806
        %v4876 = vunpack.c.l.bf16 %v4807
        %v4877 = vunpack.c.l.bf16 %v4808
        %v4878 = vunpack.c.l.bf16 %v4809
        %v4879 = vunpack.c.l.bf16 %v4810
        %v4880 = vunpack.c.l.bf16 %v4811
        %v4881 = vunpack.c.l.bf16 %v4812
        %v4882 = vunpack.c.l.bf16 %v4813
        %v4883 = vunpack.c.l.bf16 %v4814
        %v4884 = vunpack.c.l.bf16 %v4815
        %v4885 = vunpack.c.l.bf16 %v4816
        %v4886 = vunpack.c.l.bf16 %v4817
        %v4887 = vunpack.c.l.bf16 %v4818
        %v4888 = vunpack.c.l.bf16 %v4819
        %v4889 = vunpack.c.l.bf16 %v4820
        %v4890 = vunpack.c.l.bf16 %v4821
        %v4891 = vunpack.c.l.bf16 %v4822
        %v4892 = vunpack.c.l.bf16 %v4823
        %v4893 = vunpack.c.l.bf16 %v4824
        %v4894 = vunpack.c.l.bf16 %v4825
        %v4895 = vunpack.c.l.bf16 %v4826
        %v4896 = vunpack.c.l.bf16 %v4827
        %v4897 = vunpack.c.l.bf16 %v4828
        %v4898 = vunpack.c.l.bf16 %v4829
        %v4899 = vunpack.c.l.bf16 %v4830
        %v4900 = vunpack.c.l.bf16 %v4831
        %v4901 = vunpack.c.l.bf16 %v4832
        %v4902 = vunpack.c.l.bf16 %v4833
        %v4903 = vunpack.c.l.bf16 %v4834
        %v4904 = vunpack.c.l.bf16 %v4835
        %v4905 = vunpack.c.l.bf16 %v4836
        %v4906 = vunpack.c.l.bf16 %v4837
        %v4907 = vunpack.c.l.bf16 %v4838
        %v4908 = vunpack.c.l.bf16 %v4843
        %v4909 = vmul.f32 %v4844, %v4908
        %v4910 = vmul.f32 %v4845, %v4908
        %v4911 = vmul.f32 %v4846, %v4908
        %v4912 = vmul.f32 %v4847, %v4908
        %v4913 = vmul.f32 %v4848, %v4908
        %v4914 = vmul.f32 %v4849, %v4908
        %v4915 = vmul.f32 %v4850, %v4908
        %v4916 = vmul.f32 %v4851, %v4908
        %v4917 = vmul.f32 %v4852, %v4908
        %v4918 = vmul.f32 %v4853, %v4908
        %v4919 = vmul.f32 %v4854, %v4908
        %v4920 = vmul.f32 %v4855, %v4908
        %v4921 = vmul.f32 %v4856, %v4908
        %v4922 = vmul.f32 %v4857, %v4908
        %v4923 = vmul.f32 %v4858, %v4908
        %v4924 = vmul.f32 %v4859, %v4908
        %v4925 = vmul.f32 %v4860, %v4908
        %v4926 = vmul.f32 %v4861, %v4908
        %v4927 = vmul.f32 %v4862, %v4908
        %v4928 = vmul.f32 %v4863, %v4908
        %v4929 = vmul.f32 %v4864, %v4908
        %v4930 = vmul.f32 %v4865, %v4908
        %v4931 = vmul.f32 %v4866, %v4908
        %v4932 = vmul.f32 %v4867, %v4908
        %v4933 = vmul.f32 %v4868, %v4908
        %v4934 = vmul.f32 %v4869, %v4908
        %v4935 = vmul.f32 %v4870, %v4908
        %v4936 = vmul.f32 %v4871, %v4908
        %v4937 = vmul.f32 %v4872, %v4908
        %v4938 = vmul.f32 %v4873, %v4908
        %v4939 = vmul.f32 %v4874, %v4908
        %v4940 = vmul.f32 %v4875, %v4908
        %v4941 = vmul.f32 %v4876, %v4908
        %v4942 = vmul.f32 %v4877, %v4908
        %v4943 = vmul.f32 %v4878, %v4908
        %v4944 = vmul.f32 %v4879, %v4908
        %v4945 = vmul.f32 %v4880, %v4908
        %v4946 = vmul.f32 %v4881, %v4908
        %v4947 = vmul.f32 %v4882, %v4908
        %v4948 = vmul.f32 %v4883, %v4908
        %v4949 = vmul.f32 %v4884, %v4908
        %v4950 = vmul.f32 %v4885, %v4908
        %v4951 = vmul.f32 %v4886, %v4908
        %v4952 = vmul.f32 %v4887, %v4908
        %v4953 = vmul.f32 %v4888, %v4908
        %v4954 = vmul.f32 %v4889, %v4908
        %v4955 = vmul.f32 %v4890, %v4908
        %v4956 = vmul.f32 %v4891, %v4908
        %v4957 = vmul.f32 %v4892, %v4908
        %v4958 = vmul.f32 %v4893, %v4908
        %v4959 = vmul.f32 %v4894, %v4908
        %v4960 = vmul.f32 %v4895, %v4908
        %v4961 = vmul.f32 %v4896, %v4908
        %v4962 = vmul.f32 %v4897, %v4908
        %v4963 = vmul.f32 %v4898, %v4908
        %v4964 = vmul.f32 %v4899, %v4908
        %v4965 = vmul.f32 %v4900, %v4908
        %v4966 = vmul.f32 %v4901, %v4908
        %v4967 = vmul.f32 %v4902, %v4908
        %v4968 = vmul.f32 %v4903, %v4908
        %v4969 = vmul.f32 %v4904, %v4908
        %v4970 = vmul.f32 %v4905, %v4908
        %v4971 = vmul.f32 %v4906, %v4908
        %v4972 = vmul.f32 %v4907, %v4908
        %v4973 = vpack.c.bf16 %v4909, %v4909
        %v4974 = vpack.c.bf16 %v4910, %v4910
        %v4975 = vpack.c.bf16 %v4911, %v4911
        %v4976 = vpack.c.bf16 %v4912, %v4912
        %v4977 = vpack.c.bf16 %v4913, %v4913
        %v4978 = vpack.c.bf16 %v4914, %v4914
        %v4979 = vpack.c.bf16 %v4915, %v4915
        %v4980 = vpack.c.bf16 %v4916, %v4916
        %v4981 = vpack.c.bf16 %v4917, %v4917
        %v4982 = vpack.c.bf16 %v4918, %v4918
        %v4983 = vpack.c.bf16 %v4919, %v4919
        %v4984 = vpack.c.bf16 %v4920, %v4920
        %v4985 = vpack.c.bf16 %v4921, %v4921
        %v4986 = vpack.c.bf16 %v4922, %v4922
        %v4987 = vpack.c.bf16 %v4923, %v4923
        %v4988 = vpack.c.bf16 %v4924, %v4924
        %v4989 = vpack.c.bf16 %v4925, %v4925
        %v4990 = vpack.c.bf16 %v4926, %v4926
        %v4991 = vpack.c.bf16 %v4927, %v4927
        %v4992 = vpack.c.bf16 %v4928, %v4928
        %v4993 = vpack.c.bf16 %v4929, %v4929
        %v4994 = vpack.c.bf16 %v4930, %v4930
        %v4995 = vpack.c.bf16 %v4931, %v4931
        %v4996 = vpack.c.bf16 %v4932, %v4932
        %v4997 = vpack.c.bf16 %v4933, %v4933
        %v4998 = vpack.c.bf16 %v4934, %v4934
        %v4999 = vpack.c.bf16 %v4935, %v4935
        %v5000 = vpack.c.bf16 %v4936, %v4936
        %v5001 = vpack.c.bf16 %v4937, %v4937
        %v5002 = vpack.c.bf16 %v4938, %v4938
        %v5003 = vpack.c.bf16 %v4939, %v4939
        %v5004 = vpack.c.bf16 %v4940, %v4940
        %v5005 = vpack.c.bf16 %v4941, %v4941
        %v5006 = vpack.c.bf16 %v4942, %v4942
        %v5007 = vpack.c.bf16 %v4943, %v4943
        %v5008 = vpack.c.bf16 %v4944, %v4944
        %v5009 = vpack.c.bf16 %v4945, %v4945
        %v5010 = vpack.c.bf16 %v4946, %v4946
        %v5011 = vpack.c.bf16 %v4947, %v4947
        %v5012 = vpack.c.bf16 %v4948, %v4948
        %v5013 = vpack.c.bf16 %v4949, %v4949
        %v5014 = vpack.c.bf16 %v4950, %v4950
        %v5015 = vpack.c.bf16 %v4951, %v4951
        %v5016 = vpack.c.bf16 %v4952, %v4952
        %v5017 = vpack.c.bf16 %v4953, %v4953
        %v5018 = vpack.c.bf16 %v4954, %v4954
        %v5019 = vpack.c.bf16 %v4955, %v4955
        %v5020 = vpack.c.bf16 %v4956, %v4956
        %v5021 = vpack.c.bf16 %v4957, %v4957
        %v5022 = vpack.c.bf16 %v4958, %v4958
        %v5023 = vpack.c.bf16 %v4959, %v4959
        %v5024 = vpack.c.bf16 %v4960, %v4960
        %v5025 = vpack.c.bf16 %v4961, %v4961
        %v5026 = vpack.c.bf16 %v4962, %v4962
        %v5027 = vpack.c.bf16 %v4963, %v4963
        %v5028 = vpack.c.bf16 %v4964, %v4964
        %v5029 = vpack.c.bf16 %v4965, %v4965
        %v5030 = vpack.c.bf16 %v4966, %v4966
        %v5031 = vpack.c.bf16 %v4967, %v4967
        %v5032 = vpack.c.bf16 %v4968, %v4968
        %v5033 = vpack.c.bf16 %v4969, %v4969
        %v5034 = vpack.c.bf16 %v4970, %v4970
        %v5035 = vpack.c.bf16 %v4971, %v4971
        %v5036 = vpack.c.bf16 %v4972, %v4972
        %5037 = vst [vmem:[#allocation2] sm:$0xf] %v4973
        %5038 = vst [vmem:[#allocation2 + $0x4] sm:$0xf] %v4974
        %5039 = vst [vmem:[#allocation2 + $0x8] sm:$0xf] %v4975
        %5040 = vst [vmem:[#allocation2 + $0xc] sm:$0xf] %v4976
        %5041 = vst [vmem:[#allocation2 + $0x10] sm:$0xf] %v4977
        %5042 = vst [vmem:[#allocation2 + $0x14] sm:$0xf] %v4978
        %5043 = vst [vmem:[#allocation2 + $0x18] sm:$0xf] %v4979
        %5044 = vst [vmem:[#allocation2 + $0x1c] sm:$0xf] %v4980
        %5045 = vst [vmem:[#allocation2 + $0x20] sm:$0xf] %v4981
        %5046 = vst [vmem:[#allocation2 + $0x24] sm:$0xf] %v4982
        %5047 = vst [vmem:[#allocation2 + $0x28] sm:$0xf] %v4983
        %5048 = vst [vmem:[#allocation2 + $0x2c] sm:$0xf] %v4984
        %5049 = vst [vmem:[#allocation2 + $0x30] sm:$0xf] %v4985
        %5050 = vst [vmem:[#allocation2 + $0x34] sm:$0xf] %v4986
        %5051 = vst [vmem:[#allocation2 + $0x38] sm:$0xf] %v4987
        %5052 = vst [vmem:[#allocation2 + $0x3c] sm:$0xf] %v4988
        %5053 = vst [vmem:[#allocation2 + $0x40] sm:$0xf] %v4989
        %5054 = vst [vmem:[#allocation2 + $0x44] sm:$0xf] %v4990
        %5055 = vst [vmem:[#allocation2 + $0x48] sm:$0xf] %v4991
        %5056 = vst [vmem:[#allocation2 + $0x4c] sm:$0xf] %v4992
        %5057 = vst [vmem:[#allocation2 + $0x50] sm:$0xf] %v4993
        %5058 = vst [vmem:[#allocation2 + $0x54] sm:$0xf] %v4994
        %5059 = vst [vmem:[#allocation2 + $0x58] sm:$0xf] %v4995
        %5060 = vst [vmem:[#allocation2 + $0x5c] sm:$0xf] %v4996
        %5061 = vst [vmem:[#allocation2 + $0x60] sm:$0xf] %v4997
        %5062 = vst [vmem:[#allocation2 + $0x64] sm:$0xf] %v4998
        %5063 = vst [vmem:[#allocation2 + $0x68] sm:$0xf] %v4999
        %5064 = vst [vmem:[#allocation2 + $0x6c] sm:$0xf] %v5000
        %5065 = vst [vmem:[#allocation2 + $0x70] sm:$0xf] %v5001
        %5066 = vst [vmem:[#allocation2 + $0x74] sm:$0xf] %v5002
        %5067 = vst [vmem:[#allocation2 + $0x78] sm:$0xf] %v5003
        %5068 = vst [vmem:[#allocation2 + $0x7c] sm:$0xf] %v5004
        %5069 = vst [vmem:[#allocation2 + $0x80] sm:$0xf] %v5005
        %5070 = vst [vmem:[#allocation2 + $0x84] sm:$0xf] %v5006
        %5071 = vst [vmem:[#allocation2 + $0x88] sm:$0xf] %v5007
        %5072 = vst [vmem:[#allocation2 + $0x8c] sm:$0xf] %v5008
        %5073 = vst [vmem:[#allocation2 + $0x90] sm:$0xf] %v5009
        %5074 = vst [vmem:[#allocation2 + $0x94] sm:$0xf] %v5010
        %5075 = vst [vmem:[#allocation2 + $0x98] sm:$0xf] %v5011
        %5076 = vst [vmem:[#allocation2 + $0x9c] sm:$0xf] %v5012
        %5077 = vst [vmem:[#allocation2 + $0xa0] sm:$0xf] %v5013
        %5078 = vst [vmem:[#allocation2 + $0xa4] sm:$0xf] %v5014
        %5079 = vst [vmem:[#allocation2 + $0xa8] sm:$0xf] %v5015
        %5080 = vst [vmem:[#allocation2 + $0xac] sm:$0xf] %v5016
        %5081 = vst [vmem:[#allocation2 + $0xb0] sm:$0xf] %v5017
        %5082 = vst [vmem:[#allocation2 + $0xb4] sm:$0xf] %v5018
        %5083 = vst [vmem:[#allocation2 + $0xb8] sm:$0xf] %v5019
        %5084 = vst [vmem:[#allocation2 + $0xbc] sm:$0xf] %v5020
        %5085 = vst [vmem:[#allocation2 + $0xc0] sm:$0xf] %v5021
        %5086 = vst [vmem:[#allocation2 + $0xc4] sm:$0xf] %v5022
        %5087 = vst [vmem:[#allocation2 + $0xc8] sm:$0xf] %v5023
        %5088 = vst [vmem:[#allocation2 + $0xcc] sm:$0xf] %v5024
        %5089 = vst [vmem:[#allocation2 + $0xd0] sm:$0xf] %v5025
        %5090 = vst [vmem:[#allocation2 + $0xd4] sm:$0xf] %v5026
        %5091 = vst [vmem:[#allocation2 + $0xd8] sm:$0xf] %v5027
        %5092 = vst [vmem:[#allocation2 + $0xdc] sm:$0xf] %v5028
        %5093 = vst [vmem:[#allocation2 + $0xe0] sm:$0xf] %v5029
        %5094 = vst [vmem:[#allocation2 + $0xe4] sm:$0xf] %v5030
        %5095 = vst [vmem:[#allocation2 + $0xe8] sm:$0xf] %v5031
        %5096 = vst [vmem:[#allocation2 + $0xec] sm:$0xf] %v5032
        %5097 = vst [vmem:[#allocation2 + $0xf0] sm:$0xf] %v5033
        %5098 = vst [vmem:[#allocation2 + $0xf4] sm:$0xf] %v5034
        %5099 = vst [vmem:[#allocation2 + $0xf8] sm:$0xf] %v5035
        %5100 = vst [vmem:[#allocation2 + $0xfc] sm:$0xf] %v5036
        %v5101 = vld [vmem:[#allocation2 + $0x10] sm:$0xf]
        %v5102 = vld [vmem:[#allocation2 + $0x14] sm:$0xf]
        %v5103 = vld [vmem:[#allocation2 + $0x18] sm:$0xf]
        %v5104 = vld [vmem:[#allocation2 + $0x1c] sm:$0xf]
        %v5105 = vld [vmem:[#allocation2 + $0x20] sm:$0xf]
        %v5106 = vld [vmem:[#allocation2 + $0x24] sm:$0xf]
        %v5107 = vld [vmem:[#allocation2 + $0x28] sm:$0xf]
        %v5108 = vld [vmem:[#allocation2 + $0x2c] sm:$0xf]
        %v5109 = vld [vmem:[#allocation2 + $0x30] sm:$0xf]
        %v5110 = vld [vmem:[#allocation2 + $0x34] sm:$0xf]
        %v5111 = vld [vmem:[#allocation2 + $0x38] sm:$0xf]
        %v5112 = vld [vmem:[#allocation2 + $0x3c] sm:$0xf]
        %v5113 = vld [vmem:[#allocation2 + $0x40] sm:$0xf]
        %v5114 = vld [vmem:[#allocation2 + $0x44] sm:$0xf]
        %v5115 = vld [vmem:[#allocation2 + $0x48] sm:$0xf]
        %v5116 = vld [vmem:[#allocation2 + $0x4c] sm:$0xf]
        %v5117 = vld [vmem:[#allocation2 + $0x50] sm:$0xf]
        %v5118 = vld [vmem:[#allocation2 + $0x54] sm:$0xf]
        %v5119 = vld [vmem:[#allocation2 + $0x58] sm:$0xf]
        %v5120 = vld [vmem:[#allocation2 + $0x5c] sm:$0xf]
        %v5121 = vld [vmem:[#allocation2 + $0x60] sm:$0xf]
        %v5122 = vld [vmem:[#allocation2 + $0x64] sm:$0xf]
        %v5123 = vld [vmem:[#allocation2 + $0x68] sm:$0xf]
        %v5124 = vld [vmem:[#allocation2 + $0x6c] sm:$0xf]
        %v5125 = vld [vmem:[#allocation2 + $0x70] sm:$0xf]
        %v5126 = vld [vmem:[#allocation2 + $0x74] sm:$0xf]
        %v5127 = vld [vmem:[#allocation2 + $0x78] sm:$0xf]
        %v5128 = vld [vmem:[#allocation2 + $0x7c] sm:$0xf]
        %v5129 = vld [vmem:[#allocation2 + $0x80] sm:$0xf]
        %v5130 = vld [vmem:[#allocation2 + $0x84] sm:$0xf]
        %v5131 = vld [vmem:[#allocation2 + $0x88] sm:$0xf]
        %v5132 = vld [vmem:[#allocation2 + $0x8c] sm:$0xf]
        %v5133 = vld [vmem:[#allocation2 + $0x90] sm:$0xf]
        %v5134 = vld [vmem:[#allocation2 + $0x94] sm:$0xf]
        %v5135 = vld [vmem:[#allocation2 + $0x98] sm:$0xf]
        %v5136 = vld [vmem:[#allocation2 + $0x9c] sm:$0xf]
        %v5137 = vld [vmem:[#allocation2 + $0xa0] sm:$0xf]
        %v5138 = vld [vmem:[#allocation2 + $0xa4] sm:$0xf]
        %v5139 = vld [vmem:[#allocation2 + $0xa8] sm:$0xf]
        %v5140 = vld [vmem:[#allocation2 + $0xac] sm:$0xf]
        %v5141 = vld [vmem:[#allocation2 + $0xb0] sm:$0xf]
        %v5142 = vld [vmem:[#allocation2 + $0xb4] sm:$0xf]
        %v5143 = vld [vmem:[#allocation2 + $0xb8] sm:$0xf]
        %v5144 = vld [vmem:[#allocation2 + $0xbc] sm:$0xf]
        %v5145 = vld [vmem:[#allocation2 + $0xc0] sm:$0xf]
        %v5146 = vld [vmem:[#allocation2 + $0xc4] sm:$0xf]
        %v5147 = vld [vmem:[#allocation2 + $0xc8] sm:$0xf]
        %v5148 = vld [vmem:[#allocation2 + $0xcc] sm:$0xf]
        %v5149 = vld [vmem:[#allocation2 + $0xd0] sm:$0xf]
        %v5150 = vld [vmem:[#allocation2 + $0xd4] sm:$0xf]
        %v5151 = vld [vmem:[#allocation2 + $0xd8] sm:$0xf]
        %v5152 = vld [vmem:[#allocation2 + $0xdc] sm:$0xf]
        %v5153 = vld [vmem:[#allocation2 + $0xe0] sm:$0xf]
        %v5154 = vld [vmem:[#allocation2 + $0xe4] sm:$0xf]
        %v5155 = vld [vmem:[#allocation2 + $0xe8] sm:$0xf]
        %v5156 = vld [vmem:[#allocation2 + $0xec] sm:$0xf]
        %v5157 = vld [vmem:[#allocation2 + $0xf0] sm:$0xf]
        %v5158 = vld [vmem:[#allocation2 + $0xf4] sm:$0xf]
        %v5159 = vld [vmem:[#allocation2 + $0xf8] sm:$0xf]
        %v5160 = vld [vmem:[#allocation2 + $0xfc] sm:$0xf]
        %v5161 = vperm.slane %v4841, 0
        %v5162 = vunpack.c.l.bf16 %v5161
        %v5163 = vmul.f32 %v4844, %v5162
        %v5164 = vmul.f32 %v4845, %v5162
        %v5165 = vmul.f32 %v4846, %v5162
        %v5166 = vmul.f32 %v4847, %v5162
        %v5167 = vmul.f32 %v4848, %v5162
        %v5168 = vmul.f32 %v4849, %v5162
        %v5169 = vmul.f32 %v4850, %v5162
        %v5170 = vmul.f32 %v4851, %v5162
        %v5171 = vmul.f32 %v4852, %v5162
        %v5172 = vmul.f32 %v4853, %v5162
        %v5173 = vmul.f32 %v4854, %v5162
        %v5174 = vmul.f32 %v4855, %v5162
        %v5175 = vmul.f32 %v4856, %v5162
        %v5176 = vmul.f32 %v4857, %v5162
        %v5177 = vmul.f32 %v4858, %v5162
        %v5178 = vmul.f32 %v4859, %v5162
        %v5179 = vmul.f32 %v4860, %v5162
        %v5180 = vmul.f32 %v4861, %v5162
        %v5181 = vmul.f32 %v4862, %v5162
        %v5182 = vmul.f32 %v4863, %v5162
        %v5183 = vmul.f32 %v4864, %v5162
        %v5184 = vmul.f32 %v4865, %v5162
        %v5185 = vmul.f32 %v4866, %v5162
        %v5186 = vmul.f32 %v4867, %v5162
        %v5187 = vmul.f32 %v4868, %v5162
        %v5188 = vmul.f32 %v4869, %v5162
        %v5189 = vmul.f32 %v4870, %v5162
        %v5190 = vmul.f32 %v4871, %v5162
        %v5191 = vmul.f32 %v4872, %v5162
        %v5192 = vmul.f32 %v4873, %v5162
        %v5193 = vmul.f32 %v4874, %v5162
        %v5194 = vmul.f32 %v4875, %v5162
        %v5195 = vmul.f32 %v4876, %v5162
        %v5196 = vmul.f32 %v4877, %v5162
        %v5197 = vmul.f32 %v4878, %v5162
        %v5198 = vmul.f32 %v4879, %v5162
        %v5199 = vmul.f32 %v4880, %v5162
        %v5200 = vmul.f32 %v4881, %v5162
        %v5201 = vmul.f32 %v4882, %v5162
        %v5202 = vmul.f32 %v4883, %v5162
        %v5203 = vmul.f32 %v4884, %v5162
        %v5204 = vmul.f32 %v4885, %v5162
        %v5205 = vmul.f32 %v4886, %v5162
        %v5206 = vmul.f32 %v4887, %v5162
        %v5207 = vmul.f32 %v4888, %v5162
        %v5208 = vmul.f32 %v4889, %v5162
        %v5209 = vmul.f32 %v4890, %v5162
        %v5210 = vmul.f32 %v4891, %v5162
        %v5211 = vmul.f32 %v4892, %v5162
        %v5212 = vmul.f32 %v4893, %v5162
        %v5213 = vmul.f32 %v4894, %v5162
        %v5214 = vmul.f32 %v4895, %v5162
        %v5215 = vmul.f32 %v4896, %v5162
        %v5216 = vmul.f32 %v4897, %v5162
        %v5217 = vmul.f32 %v4898, %v5162
        %v5218 = vmul.f32 %v4899, %v5162
        %v5219 = vmul.f32 %v4900, %v5162
        %v5220 = vmul.f32 %v4901, %v5162
        %v5221 = vmul.f32 %v4902, %v5162
        %v5222 = vmul.f32 %v4903, %v5162
        %v5223 = vpack.c.bf16 %v5163, %v5163
        %v5224 = vpack.c.bf16 %v5164, %v5164
        %v5225 = vpack.c.bf16 %v5165, %v5165
        %v5226 = vpack.c.bf16 %v5166, %v5166
        %v5227 = vpack.c.bf16 %v5167, %v5167
        %v5228 = vpack.c.bf16 %v5168, %v5168
        %v5229 = vpack.c.bf16 %v5169, %v5169
        %v5230 = vpack.c.bf16 %v5170, %v5170
        %v5231 = vpack.c.bf16 %v5171, %v5171
        %v5232 = vpack.c.bf16 %v5172, %v5172
        %v5233 = vpack.c.bf16 %v5173, %v5173
        %v5234 = vpack.c.bf16 %v5174, %v5174
        %v5235 = vpack.c.bf16 %v5175, %v5175
        %v5236 = vpack.c.bf16 %v5176, %v5176
        %v5237 = vpack.c.bf16 %v5177, %v5177
        %v5238 = vpack.c.bf16 %v5178, %v5178
        %v5239 = vpack.c.bf16 %v5179, %v5179
        %v5240 = vpack.c.bf16 %v5180, %v5180
        %v5241 = vpack.c.bf16 %v5181, %v5181
        %v5242 = vpack.c.bf16 %v5182, %v5182
        %v5243 = vpack.c.bf16 %v5183, %v5183
        %v5244 = vpack.c.bf16 %v5184, %v5184
        %v5245 = vpack.c.bf16 %v5185, %v5185
        %v5246 = vpack.c.bf16 %v5186, %v5186
        %v5247 = vpack.c.bf16 %v5187, %v5187
        %v5248 = vpack.c.bf16 %v5188, %v5188
        %v5249 = vpack.c.bf16 %v5189, %v5189
        %v5250 = vpack.c.bf16 %v5190, %v5190
        %v5251 = vpack.c.bf16 %v5191, %v5191
        %v5252 = vpack.c.bf16 %v5192, %v5192
        %v5253 = vpack.c.bf16 %v5193, %v5193
        %v5254 = vpack.c.bf16 %v5194, %v5194
        %v5255 = vpack.c.bf16 %v5195, %v5195
        %v5256 = vpack.c.bf16 %v5196, %v5196
        %v5257 = vpack.c.bf16 %v5197, %v5197
        %v5258 = vpack.c.bf16 %v5198, %v5198
        %v5259 = vpack.c.bf16 %v5199, %v5199
        %v5260 = vpack.c.bf16 %v5200, %v5200
        %v5261 = vpack.c.bf16 %v5201, %v5201
        %v5262 = vpack.c.bf16 %v5202, %v5202
        %v5263 = vpack.c.bf16 %v5203, %v5203
        %v5264 = vpack.c.bf16 %v5204, %v5204
        %v5265 = vpack.c.bf16 %v5205, %v5205
        %v5266 = vpack.c.bf16 %v5206, %v5206
        %v5267 = vpack.c.bf16 %v5207, %v5207
        %v5268 = vpack.c.bf16 %v5208, %v5208
        %v5269 = vpack.c.bf16 %v5209, %v5209
        %v5270 = vpack.c.bf16 %v5210, %v5210
        %v5271 = vpack.c.bf16 %v5211, %v5211
        %v5272 = vpack.c.bf16 %v5212, %v5212
        %v5273 = vpack.c.bf16 %v5213, %v5213
        %v5274 = vpack.c.bf16 %v5214, %v5214
        %v5275 = vpack.c.bf16 %v5215, %v5215
        %v5276 = vpack.c.bf16 %v5216, %v5216
        %v5277 = vpack.c.bf16 %v5217, %v5217
        %v5278 = vpack.c.bf16 %v5218, %v5218
        %v5279 = vpack.c.bf16 %v5219, %v5219
        %v5280 = vpack.c.bf16 %v5220, %v5220
        %v5281 = vpack.c.bf16 %v5221, %v5221
        %v5282 = vpack.c.bf16 %v5222, %v5222
        %v5283 = vunpack.c.l.bf16 %v5101
        %v5284 = vunpack.c.l.bf16 %v5102
        %v5285 = vunpack.c.l.bf16 %v5103
        %v5286 = vunpack.c.l.bf16 %v5104
        %v5287 = vunpack.c.l.bf16 %v5105
        %v5288 = vunpack.c.l.bf16 %v5106
        %v5289 = vunpack.c.l.bf16 %v5107
        %v5290 = vunpack.c.l.bf16 %v5108
        %v5291 = vunpack.c.l.bf16 %v5109
        %v5292 = vunpack.c.l.bf16 %v5110
        %v5293 = vunpack.c.l.bf16 %v5111
        %v5294 = vunpack.c.l.bf16 %v5112
        %v5295 = vunpack.c.l.bf16 %v5113
        %v5296 = vunpack.c.l.bf16 %v5114
        %v5297 = vunpack.c.l.bf16 %v5115
        %v5298 = vunpack.c.l.bf16 %v5116
        %v5299 = vunpack.c.l.bf16 %v5117
        %v5300 = vunpack.c.l.bf16 %v5118
        %v5301 = vunpack.c.l.bf16 %v5119
        %v5302 = vunpack.c.l.bf16 %v5120
        %v5303 = vunpack.c.l.bf16 %v5121
        %v5304 = vunpack.c.l.bf16 %v5122
        %v5305 = vunpack.c.l.bf16 %v5123
        %v5306 = vunpack.c.l.bf16 %v5124
        %v5307 = vunpack.c.l.bf16 %v5125
        %v5308 = vunpack.c.l.bf16 %v5126
        %v5309 = vunpack.c.l.bf16 %v5127
        %v5310 = vunpack.c.l.bf16 %v5128
        %v5311 = vunpack.c.l.bf16 %v5129
        %v5312 = vunpack.c.l.bf16 %v5130
        %v5313 = vunpack.c.l.bf16 %v5131
        %v5314 = vunpack.c.l.bf16 %v5132
        %v5315 = vunpack.c.l.bf16 %v5133
        %v5316 = vunpack.c.l.bf16 %v5134
        %v5317 = vunpack.c.l.bf16 %v5135
        %v5318 = vunpack.c.l.bf16 %v5136
        %v5319 = vunpack.c.l.bf16 %v5137
        %v5320 = vunpack.c.l.bf16 %v5138
        %v5321 = vunpack.c.l.bf16 %v5139
        %v5322 = vunpack.c.l.bf16 %v5140
        %v5323 = vunpack.c.l.bf16 %v5141
        %v5324 = vunpack.c.l.bf16 %v5142
        %v5325 = vunpack.c.l.bf16 %v5143
        %v5326 = vunpack.c.l.bf16 %v5144
        %v5327 = vunpack.c.l.bf16 %v5145
        %v5328 = vunpack.c.l.bf16 %v5146
        %v5329 = vunpack.c.l.bf16 %v5147
        %v5330 = vunpack.c.l.bf16 %v5148
        %v5331 = vunpack.c.l.bf16 %v5149
        %v5332 = vunpack.c.l.bf16 %v5150
        %v5333 = vunpack.c.l.bf16 %v5151
        %v5334 = vunpack.c.l.bf16 %v5152
        %v5335 = vunpack.c.l.bf16 %v5153
        %v5336 = vunpack.c.l.bf16 %v5154
        %v5337 = vunpack.c.l.bf16 %v5155
        %v5338 = vunpack.c.l.bf16 %v5156
        %v5339 = vunpack.c.l.bf16 %v5157
        %v5340 = vunpack.c.l.bf16 %v5158
        %v5341 = vunpack.c.l.bf16 %v5159
        %v5342 = vunpack.c.l.bf16 %v5160
        %v5343 = vunpack.c.l.bf16 %v5223
        %v5344 = vunpack.c.l.bf16 %v5224
        %v5345 = vunpack.c.l.bf16 %v5225
        %v5346 = vunpack.c.l.bf16 %v5226
        %v5347 = vunpack.c.l.bf16 %v5227
        %v5348 = vunpack.c.l.bf16 %v5228
        %v5349 = vunpack.c.l.bf16 %v5229
        %v5350 = vunpack.c.l.bf16 %v5230
        %v5351 = vunpack.c.l.bf16 %v5231
        %v5352 = vunpack.c.l.bf16 %v5232
        %v5353 = vunpack.c.l.bf16 %v5233
        %v5354 = vunpack.c.l.bf16 %v5234
        %v5355 = vunpack.c.l.bf16 %v5235
        %v5356 = vunpack.c.l.bf16 %v5236
        %v5357 = vunpack.c.l.bf16 %v5237
        %v5358 = vunpack.c.l.bf16 %v5238
        %v5359 = vunpack.c.l.bf16 %v5239
        %v5360 = vunpack.c.l.bf16 %v5240
        %v5361 = vunpack.c.l.bf16 %v5241
        %v5362 = vunpack.c.l.bf16 %v5242
        %v5363 = vunpack.c.l.bf16 %v5243
        %v5364 = vunpack.c.l.bf16 %v5244
        %v5365 = vunpack.c.l.bf16 %v5245
        %v5366 = vunpack.c.l.bf16 %v5246
        %v5367 = vunpack.c.l.bf16 %v5247
        %v5368 = vunpack.c.l.bf16 %v5248
        %v5369 = vunpack.c.l.bf16 %v5249
        %v5370 = vunpack.c.l.bf16 %v5250
        %v5371 = vunpack.c.l.bf16 %v5251
        %v5372 = vunpack.c.l.bf16 %v5252
        %v5373 = vunpack.c.l.bf16 %v5253
        %v5374 = vunpack.c.l.bf16 %v5254
        %v5375 = vunpack.c.l.bf16 %v5255
        %v5376 = vunpack.c.l.bf16 %v5256
        %v5377 = vunpack.c.l.bf16 %v5257
        %v5378 = vunpack.c.l.bf16 %v5258
        %v5379 = vunpack.c.l.bf16 %v5259
        %v5380 = vunpack.c.l.bf16 %v5260
        %v5381 = vunpack.c.l.bf16 %v5261
        %v5382 = vunpack.c.l.bf16 %v5262
        %v5383 = vunpack.c.l.bf16 %v5263
        %v5384 = vunpack.c.l.bf16 %v5264
        %v5385 = vunpack.c.l.bf16 %v5265
        %v5386 = vunpack.c.l.bf16 %v5266
        %v5387 = vunpack.c.l.bf16 %v5267
        %v5388 = vunpack.c.l.bf16 %v5268
        %v5389 = vunpack.c.l.bf16 %v5269
        %v5390 = vunpack.c.l.bf16 %v5270
        %v5391 = vunpack.c.l.bf16 %v5271
        %v5392 = vunpack.c.l.bf16 %v5272
        %v5393 = vunpack.c.l.bf16 %v5273
        %v5394 = vunpack.c.l.bf16 %v5274
        %v5395 = vunpack.c.l.bf16 %v5275
        %v5396 = vunpack.c.l.bf16 %v5276
        %v5397 = vunpack.c.l.bf16 %v5277
        %v5398 = vunpack.c.l.bf16 %v5278
        %v5399 = vunpack.c.l.bf16 %v5279
        %v5400 = vunpack.c.l.bf16 %v5280
        %v5401 = vunpack.c.l.bf16 %v5281
        %v5402 = vunpack.c.l.bf16 %v5282
        %v5403 = vadd.f32 %v5283, %v5343
        %v5404 = vadd.f32 %v5284, %v5344
        %v5405 = vadd.f32 %v5285, %v5345
        %v5406 = vadd.f32 %v5286, %v5346
        %v5407 = vadd.f32 %v5287, %v5347
        %v5408 = vadd.f32 %v5288, %v5348
        %v5409 = vadd.f32 %v5289, %v5349
        %v5410 = vadd.f32 %v5290, %v5350
        %v5411 = vadd.f32 %v5291, %v5351
        %v5412 = vadd.f32 %v5292, %v5352
        %v5413 = vadd.f32 %v5293, %v5353
        %v5414 = vadd.f32 %v5294, %v5354
        %v5415 = vadd.f32 %v5295, %v5355
        %v5416 = vadd.f32 %v5296, %v5356
        %v5417 = vadd.f32 %v5297, %v5357
        %v5418 = vadd.f32 %v5298, %v5358
        %v5419 = vadd.f32 %v5299, %v5359
        %v5420 = vadd.f32 %v5300, %v5360
        %v5421 = vadd.f32 %v5301, %v5361
        %v5422 = vadd.f32 %v5302, %v5362
        %v5423 = vadd.f32 %v5303, %v5363
        %v5424 = vadd.f32 %v5304, %v5364
        %v5425 = vadd.f32 %v5305, %v5365
        %v5426 = vadd.f32 %v5306, %v5366
        %v5427 = vadd.f32 %v5307, %v5367
        %v5428 = vadd.f32 %v5308, %v5368
        %v5429 = vadd.f32 %v5309, %v5369
        %v5430 = vadd.f32 %v5310, %v5370
        %v5431 = vadd.f32 %v5311, %v5371
        %v5432 = vadd.f32 %v5312, %v5372
        %v5433 = vadd.f32 %v5313, %v5373
        %v5434 = vadd.f32 %v5314, %v5374
        %v5435 = vadd.f32 %v5315, %v5375
        %v5436 = vadd.f32 %v5316, %v5376
        %v5437 = vadd.f32 %v5317, %v5377
        %v5438 = vadd.f32 %v5318, %v5378
        %v5439 = vadd.f32 %v5319, %v5379
        %v5440 = vadd.f32 %v5320, %v5380
        %v5441 = vadd.f32 %v5321, %v5381
        %v5442 = vadd.f32 %v5322, %v5382
        %v5443 = vadd.f32 %v5323, %v5383
        %v5444 = vadd.f32 %v5324, %v5384
        %v5445 = vadd.f32 %v5325, %v5385
        %v5446 = vadd.f32 %v5326, %v5386
        %v5447 = vadd.f32 %v5327, %v5387
        %v5448 = vadd.f32 %v5328, %v5388
        %v5449 = vadd.f32 %v5329, %v5389
        %v5450 = vadd.f32 %v5330, %v5390
        %v5451 = vadd.f32 %v5331, %v5391
        %v5452 = vadd.f32 %v5332, %v5392
        %v5453 = vadd.f32 %v5333, %v5393
        %v5454 = vadd.f32 %v5334, %v5394
        %v5455 = vadd.f32 %v5335, %v5395
        %v5456 = vadd.f32 %v5336, %v5396
        %v5457 = vadd.f32 %v5337, %v5397
        %v5458 = vadd.f32 %v5338, %v5398
        %v5459 = vadd.f32 %v5339, %v5399
        %v5460 = vadd.f32 %v5340, %v5400
        %v5461 = vadd.f32 %v5341, %v5401
        %v5462 = vadd.f32 %v5342, %v5402
        %v5463 = vpack.c.bf16 %v5403, %v5403
        %v5464 = vpack.c.bf16 %v5404, %v5404
        %v5465 = vpack.c.bf16 %v5405, %v5405
        %v5466 = vpack.c.bf16 %v5406, %v5406
        %v5467 = vpack.c.bf16 %v5407, %v5407
        %v5468 = vpack.c.bf16 %v5408, %v5408
        %v5469 = vpack.c.bf16 %v5409, %v5409
        %v5470 = vpack.c.bf16 %v5410, %v5410
        %v5471 = vpack.c.bf16 %v5411, %v5411
        %v5472 = vpack.c.bf16 %v5412, %v5412
        %v5473 = vpack.c.bf16 %v5413, %v5413
        %v5474 = vpack.c.bf16 %v5414, %v5414
        %v5475 = vpack.c.bf16 %v5415, %v5415
        %v5476 = vpack.c.bf16 %v5416, %v5416
        %v5477 = vpack.c.bf16 %v5417, %v5417
        %v5478 = vpack.c.bf16 %v5418, %v5418
        %v5479 = vpack.c.bf16 %v5419, %v5419
        %v5480 = vpack.c.bf16 %v5420, %v5420
        %v5481 = vpack.c.bf16 %v5421, %v5421
        %v5482 = vpack.c.bf16 %v5422, %v5422
        %v5483 = vpack.c.bf16 %v5423, %v5423
        %v5484 = vpack.c.bf16 %v5424, %v5424
        %v5485 = vpack.c.bf16 %v5425, %v5425
        %v5486 = vpack.c.bf16 %v5426, %v5426
        %v5487 = vpack.c.bf16 %v5427, %v5427
        %v5488 = vpack.c.bf16 %v5428, %v5428
        %v5489 = vpack.c.bf16 %v5429, %v5429
        %v5490 = vpack.c.bf16 %v5430, %v5430
        %v5491 = vpack.c.bf16 %v5431, %v5431
        %v5492 = vpack.c.bf16 %v5432, %v5432
        %v5493 = vpack.c.bf16 %v5433, %v5433
        %v5494 = vpack.c.bf16 %v5434, %v5434
        %v5495 = vpack.c.bf16 %v5435, %v5435
        %v5496 = vpack.c.bf16 %v5436, %v5436
        %v5497 = vpack.c.bf16 %v5437, %v5437
        %v5498 = vpack.c.bf16 %v5438, %v5438
        %v5499 = vpack.c.bf16 %v5439, %v5439
        %v5500 = vpack.c.bf16 %v5440, %v5440
        %v5501 = vpack.c.bf16 %v5441, %v5441
        %v5502 = vpack.c.bf16 %v5442, %v5442
        %v5503 = vpack.c.bf16 %v5443, %v5443
        %v5504 = vpack.c.bf16 %v5444, %v5444
        %v5505 = vpack.c.bf16 %v5445, %v5445
        %v5506 = vpack.c.bf16 %v5446, %v5446
        %v5507 = vpack.c.bf16 %v5447, %v5447
        %v5508 = vpack.c.bf16 %v5448, %v5448
        %v5509 = vpack.c.bf16 %v5449, %v5449
        %v5510 = vpack.c.bf16 %v5450, %v5450
        %v5511 = vpack.c.bf16 %v5451, %v5451
        %v5512 = vpack.c.bf16 %v5452, %v5452
        %v5513 = vpack.c.bf16 %v5453, %v5453
        %v5514 = vpack.c.bf16 %v5454, %v5454
        %v5515 = vpack.c.bf16 %v5455, %v5455
        %v5516 = vpack.c.bf16 %v5456, %v5456
        %v5517 = vpack.c.bf16 %v5457, %v5457
        %v5518 = vpack.c.bf16 %v5458, %v5458
        %v5519 = vpack.c.bf16 %v5459, %v5459
        %v5520 = vpack.c.bf16 %v5460, %v5460
        %v5521 = vpack.c.bf16 %v5461, %v5461
        %v5522 = vpack.c.bf16 %v5462, %v5462
        %5523 = vst [vmem:[#allocation2 + $0x10] sm:$0xf] %v5463
        %5524 = vst [vmem:[#allocation2 + $0x14] sm:$0xf] %v5464
        %5525 = vst [vmem:[#allocation2 + $0x18] sm:$0xf] %v5465
        %5526 = vst [vmem:[#allocation2 + $0x1c] sm:$0xf] %v5466
        %5527 = vst [vmem:[#allocation2 + $0x20] sm:$0xf] %v5467
        %5528 = vst [vmem:[#allocation2 + $0x24] sm:$0xf] %v5468
        %5529 = vst [vmem:[#allocation2 + $0x28] sm:$0xf] %v5469
        %5530 = vst [vmem:[#allocation2 + $0x2c] sm:$0xf] %v5470
        %5531 = vst [vmem:[#allocation2 + $0x30] sm:$0xf] %v5471
        %5532 = vst [vmem:[#allocation2 + $0x34] sm:$0xf] %v5472
        %5533 = vst [vmem:[#allocation2 + $0x38] sm:$0xf] %v5473
        %5534 = vst [vmem:[#allocation2 + $0x3c] sm:$0xf] %v5474
        %5535 = vst [vmem:[#allocation2 + $0x40] sm:$0xf] %v5475
        %5536 = vst [vmem:[#allocation2 + $0x44] sm:$0xf] %v5476
        %5537 = vst [vmem:[#allocation2 + $0x48] sm:$0xf] %v5477
        %5538 = vst [vmem:[#allocation2 + $0x4c] sm:$0xf] %v5478
        %5539 = vst [vmem:[#allocation2 + $0x50] sm:$0xf] %v5479
        %5540 = vst [vmem:[#allocation2 + $0x54] sm:$0xf] %v5480
        %5541 = vst [vmem:[#allocation2 + $0x58] sm:$0xf] %v5481
        %5542 = vst [vmem:[#allocation2 + $0x5c] sm:$0xf] %v5482
        %5543 = vst [vmem:[#allocation2 + $0x60] sm:$0xf] %v5483
        %5544 = vst [vmem:[#allocation2 + $0x64] sm:$0xf] %v5484
        %5545 = vst [vmem:[#allocation2 + $0x68] sm:$0xf] %v5485
        %5546 = vst [vmem:[#allocation2 + $0x6c] sm:$0xf] %v5486
        %5547 = vst [vmem:[#allocation2 + $0x70] sm:$0xf] %v5487
        %5548 = vst [vmem:[#allocation2 + $0x74] sm:$0xf] %v5488
        %5549 = vst [vmem:[#allocation2 + $0x78] sm:$0xf] %v5489
        %5550 = vst [vmem:[#allocation2 + $0x7c] sm:$0xf] %v5490
        %5551 = vst [vmem:[#allocation2 + $0x80] sm:$0xf] %v5491
        %5552 = vst [vmem:[#allocation2 + $0x84] sm:$0xf] %v5492
        %5553 = vst [vmem:[#allocation2 + $0x88] sm:$0xf] %v5493
        %5554 = vst [vmem:[#allocation2 + $0x8c] sm:$0xf] %v5494
        %5555 = vst [vmem:[#allocation2 + $0x90] sm:$0xf] %v5495
        %5556 = vst [vmem:[#allocation2 + $0x94] sm:$0xf] %v5496
        %5557 = vst [vmem:[#allocation2 + $0x98] sm:$0xf] %v5497
        %5558 = vst [vmem:[#allocation2 + $0x9c] sm:$0xf] %v5498
        %5559 = vst [vmem:[#allocation2 + $0xa0] sm:$0xf] %v5499
        %5560 = vst [vmem:[#allocation2 + $0xa4] sm:$0xf] %v5500
        %5561 = vst [vmem:[#allocation2 + $0xa8] sm:$0xf] %v5501
        %5562 = vst [vmem:[#allocation2 + $0xac] sm:$0xf] %v5502
        %5563 = vst [vmem:[#allocation2 + $0xb0] sm:$0xf] %v5503
        %5564 = vst [vmem:[#allocation2 + $0xb4] sm:$0xf] %v5504
        %5565 = vst [vmem:[#allocation2 + $0xb8] sm:$0xf] %v5505
        %5566 = vst [vmem:[#allocation2 + $0xbc] sm:$0xf] %v5506
        %5567 = vst [vmem:[#allocation2 + $0xc0] sm:$0xf] %v5507
        %5568 = vst [vmem:[#allocation2 + $0xc4] sm:$0xf] %v5508
        %5569 = vst [vmem:[#allocation2 + $0xc8] sm:$0xf] %v5509
        %5570 = vst [vmem:[#allocation2 + $0xcc] sm:$0xf] %v5510
        %5571 = vst [vmem:[#allocation2 + $0xd0] sm:$0xf] %v5511
        %5572 = vst [vmem:[#allocation2 + $0xd4] sm:$0xf] %v5512
        %5573 = vst [vmem:[#allocation2 + $0xd8] sm:$0xf] %v5513
        %5574 = vst [vmem:[#allocation2 + $0xdc] sm:$0xf] %v5514
        %5575 = vst [vmem:[#allocation2 + $0xe0] sm:$0xf] %v5515
        %5576 = vst [vmem:[#allocation2 + $0xe4] sm:$0xf] %v5516
        %5577 = vst [vmem:[#allocation2 + $0xe8] sm:$0xf] %v5517
        %5578 = vst [vmem:[#allocation2 + $0xec] sm:$0xf] %v5518
        %5579 = vst [vmem:[#allocation2 + $0xf0] sm:$0xf] %v5519
        %5580 = vst [vmem:[#allocation2 + $0xf4] sm:$0xf] %v5520
        %5581 = vst [vmem:[#allocation2 + $0xf8] sm:$0xf] %v5521
        %5582 = vst [vmem:[#allocation2 + $0xfc] sm:$0xf] %v5522
        %v5583 = vld [vmem:[#allocation2 + $0x8] sm:$0xf]
        %v5584 = vld [vmem:[#allocation2 + $0xc] sm:$0xf]
        %v5585 = vld [vmem:[#allocation2 + $0x10] sm:$0xf]
        %v5586 = vld [vmem:[#allocation2 + $0x14] sm:$0xf]
        %v5587 = vld [vmem:[#allocation2 + $0x18] sm:$0xf]
        %v5588 = vld [vmem:[#allocation2 + $0x1c] sm:$0xf]
        %v5589 = vld [vmem:[#allocation2 + $0x20] sm:$0xf]
        %v5590 = vld [vmem:[#allocation2 + $0x24] sm:$0xf]
        %v5591 = vld [vmem:[#allocation2 + $0x28] sm:$0xf]
        %v5592 = vld [vmem:[#allocation2 + $0x2c] sm:$0xf]
        %v5593 = vld [vmem:[#allocation2 + $0x30] sm:$0xf]
        %v5594 = vld [vmem:[#allocation2 + $0x34] sm:$0xf]
        %v5595 = vld [vmem:[#allocation2 + $0x38] sm:$0xf]
        %v5596 = vld [vmem:[#allocation2 + $0x3c] sm:$0xf]
        %v5597 = vld [vmem:[#allocation2 + $0x40] sm:$0xf]
        %v5598 = vld [vmem:[#allocation2 + $0x44] sm:$0xf]
        %v5599 = vld [vmem:[#allocation2 + $0x48] sm:$0xf]
        %v5600 = vld [vmem:[#allocation2 + $0x4c] sm:$0xf]
        %v5601 = vld [vmem:[#allocation2 + $0x50] sm:$0xf]
        %v5602 = vld [vmem:[#allocation2 + $0x54] sm:$0xf]
        %v5603 = vld [vmem:[#allocation2 + $0x58] sm:$0xf]
        %v5604 = vld [vmem:[#allocation2 + $0x5c] sm:$0xf]
        %v5605 = vld [vmem:[#allocation2 + $0x60] sm:$0xf]
        %v5606 = vld [vmem:[#allocation2 + $0x64] sm:$0xf]
        %v5607 = vld [vmem:[#allocation2 + $0x68] sm:$0xf]
        %v5608 = vld [vmem:[#allocation2 + $0x6c] sm:$0xf]
        %v5609 = vld [vmem:[#allocation2 + $0x70] sm:$0xf]
        %v5610 = vld [vmem:[#allocation2 + $0x74] sm:$0xf]
        %v5611 = vld [vmem:[#allocation2 + $0x78] sm:$0xf]
        %v5612 = vld [vmem:[#allocation2 + $0x7c] sm:$0xf]
        %v5613 = vld [vmem:[#allocation2 + $0x80] sm:$0xf]
        %v5614 = vld [vmem:[#allocation2 + $0x84] sm:$0xf]
        %v5615 = vld [vmem:[#allocation2 + $0x88] sm:$0xf]
        %v5616 = vld [vmem:[#allocation2 + $0x8c] sm:$0xf]
        %v5617 = vld [vmem:[#allocation2 + $0x90] sm:$0xf]
        %v5618 = vld [vmem:[#allocation2 + $0x94] sm:$0xf]
        %v5619 = vld [vmem:[#allocation2 + $0x98] sm:$0xf]
        %v5620 = vld [vmem:[#allocation2 + $0x9c] sm:$0xf]
        %v5621 = vld [vmem:[#allocation2 + $0xa0] sm:$0xf]
        %v5622 = vld [vmem:[#allocation2 + $0xa4] sm:$0xf]
        %v5623 = vld [vmem:[#allocation2 + $0xa8] sm:$0xf]
        %v5624 = vld [vmem:[#allocation2 + $0xac] sm:$0xf]
        %v5625 = vld [vmem:[#allocation2 + $0xb0] sm:$0xf]
        %v5626 = vld [vmem:[#allocation2 + $0xb4] sm:$0xf]
        %v5627 = vld [vmem:[#allocation2 + $0xb8] sm:$0xf]
        %v5628 = vld [vmem:[#allocation2 + $0xbc] sm:$0xf]
        %v5629 = vld [vmem:[#allocation2 + $0xc0] sm:$0xf]
        %v5630 = vld [vmem:[#allocation2 + $0xc4] sm:$0xf]
        %v5631 = vld [vmem:[#allocation2 + $0xc8] sm:$0xf]
        %v5632 = vld [vmem:[#allocation2 + $0xcc] sm:$0xf]
        %v5633 = vld [vmem:[#allocation2 + $0xd0] sm:$0xf]
        %v5634 = vld [vmem:[#allocation2 + $0xd4] sm:$0xf]
        %v5635 = vld [vmem:[#allocation2 + $0xd8] sm:$0xf]
        %v5636 = vld [vmem:[#allocation2 + $0xdc] sm:$0xf]
        %v5637 = vld [vmem:[#allocation2 + $0xe0] sm:$0xf]
        %v5638 = vld [vmem:[#allocation2 + $0xe4] sm:$0xf]
        %v5639 = vld [vmem:[#allocation2 + $0xe8] sm:$0xf]
        %v5640 = vld [vmem:[#allocation2 + $0xec] sm:$0xf]
        %v5641 = vld [vmem:[#allocation2 + $0xf0] sm:$0xf]
        %v5642 = vld [vmem:[#allocation2 + $0xf4] sm:$0xf]
        %v5643 = vld [vmem:[#allocation2 + $0xf8] sm:$0xf]
        %v5644 = vld [vmem:[#allocation2 + $0xfc] sm:$0xf]
        %v5645 = vshrl.u32 %v4839, 16
        %v5646 = vpack.i.b16 %v5645, %v5645
        %v5648 = vperm.slane %v5646, 0
        %v5649 = vunpack.c.l.bf16 %v5648
        %v5650 = vmul.f32 %v4844, %v5649
        %v5651 = vmul.f32 %v4845, %v5649
        %v5652 = vmul.f32 %v4846, %v5649
        %v5653 = vmul.f32 %v4847, %v5649
        %v5654 = vmul.f32 %v4848, %v5649
        %v5655 = vmul.f32 %v4849, %v5649
        %v5656 = vmul.f32 %v4850, %v5649
        %v5657 = vmul.f32 %v4851, %v5649
        %v5658 = vmul.f32 %v4852, %v5649
        %v5659 = vmul.f32 %v4853, %v5649
        %v5660 = vmul.f32 %v4854, %v5649
        %v5661 = vmul.f32 %v4855, %v5649
        %v5662 = vmul.f32 %v4856, %v5649
        %v5663 = vmul.f32 %v4857, %v5649
        %v5664 = vmul.f32 %v4858, %v5649
        %v5665 = vmul.f32 %v4859, %v5649
        %v5666 = vmul.f32 %v4860, %v5649
        %v5667 = vmul.f32 %v4861, %v5649
        %v5668 = vmul.f32 %v4862, %v5649
        %v5669 = vmul.f32 %v4863, %v5649
        %v5670 = vmul.f32 %v4864, %v5649
        %v5671 = vmul.f32 %v4865, %v5649
        %v5672 = vmul.f32 %v4866, %v5649
        %v5673 = vmul.f32 %v4867, %v5649
        %v5674 = vmul.f32 %v4868, %v5649
        %v5675 = vmul.f32 %v4869, %v5649
        %v5676 = vmul.f32 %v4870, %v5649
        %v5677 = vmul.f32 %v4871, %v5649
        %v5678 = vmul.f32 %v4872, %v5649
        %v5679 = vmul.f32 %v4873, %v5649
        %v5680 = vmul.f32 %v4874, %v5649
        %v5681 = vmul.f32 %v4875, %v5649
        %v5682 = vmul.f32 %v4876, %v5649
        %v5683 = vmul.f32 %v4877, %v5649
        %v5684 = vmul.f32 %v4878, %v5649
        %v5685 = vmul.f32 %v4879, %v5649
        %v5686 = vmul.f32 %v4880, %v5649
        %v5687 = vmul.f32 %v4881, %v5649
        %v5688 = vmul.f32 %v4882, %v5649
        %v5689 = vmul.f32 %v4883, %v5649
        %v5690 = vmul.f32 %v4884, %v5649
        %v5691 = vmul.f32 %v4885, %v5649
        %v5692 = vmul.f32 %v4886, %v5649
        %v5693 = vmul.f32 %v4887, %v5649
        %v5694 = vmul.f32 %v4888, %v5649
        %v5695 = vmul.f32 %v4889, %v5649
        %v5696 = vmul.f32 %v4890, %v5649
        %v5697 = vmul.f32 %v4891, %v5649
        %v5698 = vmul.f32 %v4892, %v5649
        %v5699 = vmul.f32 %v4893, %v5649
        %v5700 = vmul.f32 %v4894, %v5649
        %v5701 = vmul.f32 %v4895, %v5649
        %v5702 = vmul.f32 %v4896, %v5649
        %v5703 = vmul.f32 %v4897, %v5649
        %v5704 = vmul.f32 %v4898, %v5649
        %v5705 = vmul.f32 %v4899, %v5649
        %v5706 = vmul.f32 %v4900, %v5649
        %v5707 = vmul.f32 %v4901, %v5649
        %v5708 = vmul.f32 %v4902, %v5649
        %v5709 = vmul.f32 %v4903, %v5649
        %v5710 = vmul.f32 %v4904, %v5649
        %v5711 = vmul.f32 %v4905, %v5649
        %v5712 = vpack.c.bf16 %v5650, %v5650
        %v5713 = vpack.c.bf16 %v5651, %v5651
        %v5714 = vpack.c.bf16 %v5652, %v5652
        %v5715 = vpack.c.bf16 %v5653, %v5653
        %v5716 = vpack.c.bf16 %v5654, %v5654
        %v5717 = vpack.c.bf16 %v5655, %v5655
        %v5718 = vpack.c.bf16 %v5656, %v5656
        %v5719 = vpack.c.bf16 %v5657, %v5657
        %v5720 = vpack.c.bf16 %v5658, %v5658
        %v5721 = vpack.c.bf16 %v5659, %v5659
        %v5722 = vpack.c.bf16 %v5660, %v5660
        %v5723 = vpack.c.bf16 %v5661, %v5661
        %v5724 = vpack.c.bf16 %v5662, %v5662
        %v5725 = vpack.c.bf16 %v5663, %v5663
        %v5726 = vpack.c.bf16 %v5664, %v5664
        %v5727 = vpack.c.bf16 %v5665, %v5665
        %v5728 = vpack.c.bf16 %v5666, %v5666
        %v5729 = vpack.c.bf16 %v5667, %v5667
        %v5730 = vpack.c.bf16 %v5668, %v5668
        %v5731 = vpack.c.bf16 %v5669, %v5669
        %v5732 = vpack.c.bf16 %v5670, %v5670
        %v5733 = vpack.c.bf16 %v5671, %v5671
        %v5734 = vpack.c.bf16 %v5672, %v5672
        %v5735 = vpack.c.bf16 %v5673, %v5673
        %v5736 = vpack.c.bf16 %v5674, %v5674
        %v5737 = vpack.c.bf16 %v5675, %v5675
        %v5738 = vpack.c.bf16 %v5676, %v5676
        %v5739 = vpack.c.bf16 %v5677, %v5677
        %v5740 = vpack.c.bf16 %v5678, %v5678
        %v5741 = vpack.c.bf16 %v5679, %v5679
        %v5742 = vpack.c.bf16 %v5680, %v5680
        %v5743 = vpack.c.bf16 %v5681, %v5681
        %v5744 = vpack.c.bf16 %v5682, %v5682
        %v5745 = vpack.c.bf16 %v5683, %v5683
        %v5746 = vpack.c.bf16 %v5684, %v5684
        %v5747 = vpack.c.bf16 %v5685, %v5685
        %v5748 = vpack.c.bf16 %v5686, %v5686
        %v5749 = vpack.c.bf16 %v5687, %v5687
        %v5750 = vpack.c.bf16 %v5688, %v5688
        %v5751 = vpack.c.bf16 %v5689, %v5689
        %v5752 = vpack.c.bf16 %v5690, %v5690
        %v5753 = vpack.c.bf16 %v5691, %v5691
        %v5754 = vpack.c.bf16 %v5692, %v5692
        %v5755 = vpack.c.bf16 %v5693, %v5693
        %v5756 = vpack.c.bf16 %v5694, %v5694
        %v5757 = vpack.c.bf16 %v5695, %v5695
        %v5758 = vpack.c.bf16 %v5696, %v5696
        %v5759 = vpack.c.bf16 %v5697, %v5697
        %v5760 = vpack.c.bf16 %v5698, %v5698
        %v5761 = vpack.c.bf16 %v5699, %v5699
        %v5762 = vpack.c.bf16 %v5700, %v5700
        %v5763 = vpack.c.bf16 %v5701, %v5701
        %v5764 = vpack.c.bf16 %v5702, %v5702
        %v5765 = vpack.c.bf16 %v5703, %v5703
        %v5766 = vpack.c.bf16 %v5704, %v5704
        %v5767 = vpack.c.bf16 %v5705, %v5705
        %v5768 = vpack.c.bf16 %v5706, %v5706
        %v5769 = vpack.c.bf16 %v5707, %v5707
        %v5770 = vpack.c.bf16 %v5708, %v5708
        %v5771 = vpack.c.bf16 %v5709, %v5709
        %v5772 = vpack.c.bf16 %v5710, %v5710
        %v5773 = vpack.c.bf16 %v5711, %v5711
        %v5774 = vunpack.c.l.bf16 %v5583
        %v5775 = vunpack.c.l.bf16 %v5584
        %v5776 = vunpack.c.l.bf16 %v5585
        %v5777 = vunpack.c.l.bf16 %v5586
        %v5778 = vunpack.c.l.bf16 %v5587
        %v5779 = vunpack.c.l.bf16 %v5588
        %v5780 = vunpack.c.l.bf16 %v5589
        %v5781 = vunpack.c.l.bf16 %v5590
        %v5782 = vunpack.c.l.bf16 %v5591
        %v5783 = vunpack.c.l.bf16 %v5592
        %v5784 = vunpack.c.l.bf16 %v5593
        %v5785 = vunpack.c.l.bf16 %v5594
        %v5786 = vunpack.c.l.bf16 %v5595
        %v5787 = vunpack.c.l.bf16 %v5596
        %v5788 = vunpack.c.l.bf16 %v5597
        %v5789 = vunpack.c.l.bf16 %v5598
        %v5790 = vunpack.c.l.bf16 %v5599
        %v5791 = vunpack.c.l.bf16 %v5600
        %v5792 = vunpack.c.l.bf16 %v5601
        %v5793 = vunpack.c.l.bf16 %v5602
        %v5794 = vunpack.c.l.bf16 %v5603
        %v5795 = vunpack.c.l.bf16 %v5604
        %v5796 = vunpack.c.l.bf16 %v5605
        %v5797 = vunpack.c.l.bf16 %v5606
        %v5798 = vunpack.c.l.bf16 %v5607
        %v5799 = vunpack.c.l.bf16 %v5608
        %v5800 = vunpack.c.l.bf16 %v5609
        %v5801 = vunpack.c.l.bf16 %v5610
        %v5802 = vunpack.c.l.bf16 %v5611
        %v5803 = vunpack.c.l.bf16 %v5612
        %v5804 = vunpack.c.l.bf16 %v5613
        %v5805 = vunpack.c.l.bf16 %v5614
        %v5806 = vunpack.c.l.bf16 %v5615
        %v5807 = vunpack.c.l.bf16 %v5616
        %v5808 = vunpack.c.l.bf16 %v5617
        %v5809 = vunpack.c.l.bf16 %v5618
        %v5810 = vunpack.c.l.bf16 %v5619
        %v5811 = vunpack.c.l.bf16 %v5620
        %v5812 = vunpack.c.l.bf16 %v5621
        %v5813 = vunpack.c.l.bf16 %v5622
        %v5814 = vunpack.c.l.bf16 %v5623
        %v5815 = vunpack.c.l.bf16 %v5624
        %v5816 = vunpack.c.l.bf16 %v5625
        %v5817 = vunpack.c.l.bf16 %v5626
        %v5818 = vunpack.c.l.bf16 %v5627
        %v5819 = vunpack.c.l.bf16 %v5628
        %v5820 = vunpack.c.l.bf16 %v5629
        %v5821 = vunpack.c.l.bf16 %v5630
        %v5822 = vunpack.c.l.bf16 %v5631
        %v5823 = vunpack.c.l.bf16 %v5632
        %v5824 = vunpack.c.l.bf16 %v5633
        %v5825 = vunpack.c.l.bf16 %v5634
        %v5826 = vunpack.c.l.bf16 %v5635
        %v5827 = vunpack.c.l.bf16 %v5636
        %v5828 = vunpack.c.l.bf16 %v5637
        %v5829 = vunpack.c.l.bf16 %v5638
        %v5830 = vunpack.c.l.bf16 %v5639
        %v5831 = vunpack.c.l.bf16 %v5640
        %v5832 = vunpack.c.l.bf16 %v5641
        %v5833 = vunpack.c.l.bf16 %v5642
        %v5834 = vunpack.c.l.bf16 %v5643
        %v5835 = vunpack.c.l.bf16 %v5644
        %v5836 = vunpack.c.l.bf16 %v5712
        %v5837 = vunpack.c.l.bf16 %v5713
        %v5838 = vunpack.c.l.bf16 %v5714
        %v5839 = vunpack.c.l.bf16 %v5715
        %v5840 = vunpack.c.l.bf16 %v5716
        %v5841 = vunpack.c.l.bf16 %v5717
        %v5842 = vunpack.c.l.bf16 %v5718
        %v5843 = vunpack.c.l.bf16 %v5719
        %v5844 = vunpack.c.l.bf16 %v5720
        %v5845 = vunpack.c.l.bf16 %v5721
        %v5846 = vunpack.c.l.bf16 %v5722
        %v5847 = vunpack.c.l.bf16 %v5723
        %v5848 = vunpack.c.l.bf16 %v5724
        %v5849 = vunpack.c.l.bf16 %v5725
        %v5850 = vunpack.c.l.bf16 %v5726
        %v5851 = vunpack.c.l.bf16 %v5727
        %v5852 = vunpack.c.l.bf16 %v5728
        %v5853 = vunpack.c.l.bf16 %v5729
        %v5854 = vunpack.c.l.bf16 %v5730
        %v5855 = vunpack.c.l.bf16 %v5731
        %v5856 = vunpack.c.l.bf16 %v5732
        %v5857 = vunpack.c.l.bf16 %v5733
        %v5858 = vunpack.c.l.bf16 %v5734
        %v5859 = vunpack.c.l.bf16 %v5735
        %v5860 = vunpack.c.l.bf16 %v5736
        %v5861 = vunpack.c.l.bf16 %v5737
        %v5862 = vunpack.c.l.bf16 %v5738
        %v5863 = vunpack.c.l.bf16 %v5739
        %v5864 = vunpack.c.l.bf16 %v5740
        %v5865 = vunpack.c.l.bf16 %v5741
        %v5866 = vunpack.c.l.bf16 %v5742
        %v5867 = vunpack.c.l.bf16 %v5743
        %v5868 = vunpack.c.l.bf16 %v5744
        %v5869 = vunpack.c.l.bf16 %v5745
        %v5870 = vunpack.c.l.bf16 %v5746
        %v5871 = vunpack.c.l.bf16 %v5747
        %v5872 = vunpack.c.l.bf16 %v5748
        %v5873 = vunpack.c.l.bf16 %v5749
        %v5874 = vunpack.c.l.bf16 %v5750
        %v5875 = vunpack.c.l.bf16 %v5751
        %v5876 = vunpack.c.l.bf16 %v5752
        %v5877 = vunpack.c.l.bf16 %v5753
        %v5878 = vunpack.c.l.bf16 %v5754
        %v5879 = vunpack.c.l.bf16 %v5755
        %v5880 = vunpack.c.l.bf16 %v5756
        %v5881 = vunpack.c.l.bf16 %v5757
        %v5882 = vunpack.c.l.bf16 %v5758
        %v5883 = vunpack.c.l.bf16 %v5759
        %v5884 = vunpack.c.l.bf16 %v5760
        %v5885 = vunpack.c.l.bf16 %v5761
        %v5886 = vunpack.c.l.bf16 %v5762
        %v5887 = vunpack.c.l.bf16 %v5763
        %v5888 = vunpack.c.l.bf16 %v5764
        %v5889 = vunpack.c.l.bf16 %v5765
        %v5890 = vunpack.c.l.bf16 %v5766
        %v5891 = vunpack.c.l.bf16 %v5767
        %v5892 = vunpack.c.l.bf16 %v5768
        %v5893 = vunpack.c.l.bf16 %v5769
        %v5894 = vunpack.c.l.bf16 %v5770
        %v5895 = vunpack.c.l.bf16 %v5771
        %v5896 = vunpack.c.l.bf16 %v5772
        %v5897 = vunpack.c.l.bf16 %v5773
        %v5898 = vadd.f32 %v5774, %v5836
        %v5899 = vadd.f32 %v5775, %v5837
        %v5900 = vadd.f32 %v5776, %v5838
        %v5901 = vadd.f32 %v5777, %v5839
        %v5902 = vadd.f32 %v5778, %v5840
        %v5903 = vadd.f32 %v5779, %v5841
        %v5904 = vadd.f32 %v5780, %v5842
        %v5905 = vadd.f32 %v5781, %v5843
        %v5906 = vadd.f32 %v5782, %v5844
        %v5907 = vadd.f32 %v5783, %v5845
        %v5908 = vadd.f32 %v5784, %v5846
        %v5909 = vadd.f32 %v5785, %v5847
        %v5910 = vadd.f32 %v5786, %v5848
        %v5911 = vadd.f32 %v5787, %v5849
        %v5912 = vadd.f32 %v5788, %v5850
        %v5913 = vadd.f32 %v5789, %v5851
        %v5914 = vadd.f32 %v5790, %v5852
        %v5915 = vadd.f32 %v5791, %v5853
        %v5916 = vadd.f32 %v5792, %v5854
        %v5917 = vadd.f32 %v5793, %v5855
        %v5918 = vadd.f32 %v5794, %v5856
        %v5919 = vadd.f32 %v5795, %v5857
        %v5920 = vadd.f32 %v5796, %v5858
        %v5921 = vadd.f32 %v5797, %v5859
        %v5922 = vadd.f32 %v5798, %v5860
        %v5923 = vadd.f32 %v5799, %v5861
        %v5924 = vadd.f32 %v5800, %v5862
        %v5925 = vadd.f32 %v5801, %v5863
        %v5926 = vadd.f32 %v5802, %v5864
        %v5927 = vadd.f32 %v5803, %v5865
        %v5928 = vadd.f32 %v5804, %v5866
        %v5929 = vadd.f32 %v5805, %v5867
        %v5930 = vadd.f32 %v5806, %v5868
        %v5931 = vadd.f32 %v5807, %v5869
        %v5932 = vadd.f32 %v5808, %v5870
        %v5933 = vadd.f32 %v5809, %v5871
        %v5934 = vadd.f32 %v5810, %v5872
        %v5935 = vadd.f32 %v5811, %v5873
        %v5936 = vadd.f32 %v5812, %v5874
        %v5937 = vadd.f32 %v5813, %v5875
        %v5938 = vadd.f32 %v5814, %v5876
        %v5939 = vadd.f32 %v5815, %v5877
        %v5940 = vadd.f32 %v5816, %v5878
        %v5941 = vadd.f32 %v5817, %v5879
        %v5942 = vadd.f32 %v5818, %v5880
        %v5943 = vadd.f32 %v5819, %v5881
        %v5944 = vadd.f32 %v5820, %v5882
        %v5945 = vadd.f32 %v5821, %v5883
        %v5946 = vadd.f32 %v5822, %v5884
        %v5947 = vadd.f32 %v5823, %v5885
        %v5948 = vadd.f32 %v5824, %v5886
        %v5949 = vadd.f32 %v5825, %v5887
        %v5950 = vadd.f32 %v5826, %v5888
        %v5951 = vadd.f32 %v5827, %v5889
        %v5952 = vadd.f32 %v5828, %v5890
        %v5953 = vadd.f32 %v5829, %v5891
        %v5954 = vadd.f32 %v5830, %v5892
        %v5955 = vadd.f32 %v5831, %v5893
        %v5956 = vadd.f32 %v5832, %v5894
        %v5957 = vadd.f32 %v5833, %v5895
        %v5958 = vadd.f32 %v5834, %v5896
        %v5959 = vadd.f32 %v5835, %v5897
        %v5960 = vpack.c.bf16 %v5898, %v5898
        %v5961 = vpack.c.bf16 %v5899, %v5899
        %v5962 = vpack.c.bf16 %v5900, %v5900
        %v5963 = vpack.c.bf16 %v5901, %v5901
        %v5964 = vpack.c.bf16 %v5902, %v5902
        %v5965 = vpack.c.bf16 %v5903, %v5903
        %v5966 = vpack.c.bf16 %v5904, %v5904
        %v5967 = vpack.c.bf16 %v5905, %v5905
        %v5968 = vpack.c.bf16 %v5906, %v5906
        %v5969 = vpack.c.bf16 %v5907, %v5907
        %v5970 = vpack.c.bf16 %v5908, %v5908
        %v5971 = vpack.c.bf16 %v5909, %v5909
        %v5972 = vpack.c.bf16 %v5910, %v5910
        %v5973 = vpack.c.bf16 %v5911, %v5911
        %v5974 = vpack.c.bf16 %v5912, %v5912
        %v5975 = vpack.c.bf16 %v5913, %v5913
        %v5976 = vpack.c.bf16 %v5914, %v5914
        %v5977 = vpack.c.bf16 %v5915, %v5915
        %v5978 = vpack.c.bf16 %v5916, %v5916
        %v5979 = vpack.c.bf16 %v5917, %v5917
        %v5980 = vpack.c.bf16 %v5918, %v5918
        %v5981 = vpack.c.bf16 %v5919, %v5919
        %v5982 = vpack.c.bf16 %v5920, %v5920
        %v5983 = vpack.c.bf16 %v5921, %v5921
        %v5984 = vpack.c.bf16 %v5922, %v5922
        %v5985 = vpack.c.bf16 %v5923, %v5923
        %v5986 = vpack.c.bf16 %v5924, %v5924
        %v5987 = vpack.c.bf16 %v5925, %v5925
        %v5988 = vpack.c.bf16 %v5926, %v5926
        %v5989 = vpack.c.bf16 %v5927, %v5927
        %v5990 = vpack.c.bf16 %v5928, %v5928
        %v5991 = vpack.c.bf16 %v5929, %v5929
        %v5992 = vpack.c.bf16 %v5930, %v5930
        %v5993 = vpack.c.bf16 %v5931, %v5931
        %v5994 = vpack.c.bf16 %v5932, %v5932
        %v5995 = vpack.c.bf16 %v5933, %v5933
        %v5996 = vpack.c.bf16 %v5934, %v5934
        %v5997 = vpack.c.bf16 %v5935, %v5935
        %v5998 = vpack.c.bf16 %v5936, %v5936
        %v5999 = vpack.c.bf16 %v5937, %v5937
        %v6000 = vpack.c.bf16 %v5938, %v5938
        %v6001 = vpack.c.bf16 %v5939, %v5939
        %v6002 = vpack.c.bf16 %v5940, %v5940
        %v6003 = vpack.c.bf16 %v5941, %v5941
        %v6004 = vpack.c.bf16 %v5942, %v5942
        %v6005 = vpack.c.bf16 %v5943, %v5943
        %v6006 = vpack.c.bf16 %v5944, %v5944
        %v6007 = vpack.c.bf16 %v5945, %v5945
        %v6008 = vpack.c.bf16 %v5946, %v5946
        %v6009 = vpack.c.bf16 %v5947, %v5947
        %v6010 = vpack.c.bf16 %v5948, %v5948
        %v6011 = vpack.c.bf16 %v5949, %v5949
        %v6012 = vpack.c.bf16 %v5950, %v5950
        %v6013 = vpack.c.bf16 %v5951, %v5951
        %v6014 = vpack.c.bf16 %v5952, %v5952
        %v6015 = vpack.c.bf16 %v5953, %v5953
        %v6016 = vpack.c.bf16 %v5954, %v5954
        %v6017 = vpack.c.bf16 %v5955, %v5955
        %v6018 = vpack.c.bf16 %v5956, %v5956
        %v6019 = vpack.c.bf16 %v5957, %v5957
        %v6020 = vpack.c.bf16 %v5958, %v5958
        %v6021 = vpack.c.bf16 %v5959, %v5959
        %6022 = vst [vmem:[#allocation2 + $0x8] sm:$0xf] %v5960
        %6023 = vst [vmem:[#allocation2 + $0xc] sm:$0xf] %v5961
        %6024 = vst [vmem:[#allocation2 + $0x10] sm:$0xf] %v5962
        %6025 = vst [vmem:[#allocation2 + $0x14] sm:$0xf] %v5963
        %6026 = vst [vmem:[#allocation2 + $0x18] sm:$0xf] %v5964
        %6027 = vst [vmem:[#allocation2 + $0x1c] sm:$0xf] %v5965
        %6028 = vst [vmem:[#allocation2 + $0x20] sm:$0xf] %v5966
        %6029 = vst [vmem:[#allocation2 + $0x24] sm:$0xf] %v5967
        %6030 = vst [vmem:[#allocation2 + $0x28] sm:$0xf] %v5968
        %6031 = vst [vmem:[#allocation2 + $0x2c] sm:$0xf] %v5969
        %6032 = vst [vmem:[#allocation2 + $0x30] sm:$0xf] %v5970
        %6033 = vst [vmem:[#allocation2 + $0x34] sm:$0xf] %v5971
        %6034 = vst [vmem:[#allocation2 + $0x38] sm:$0xf] %v5972
        %6035 = vst [vmem:[#allocation2 + $0x3c] sm:$0xf] %v5973
        %6036 = vst [vmem:[#allocation2 + $0x40] sm:$0xf] %v5974
        %6037 = vst [vmem:[#allocation2 + $0x44] sm:$0xf] %v5975
        %6038 = vst [vmem:[#allocation2 + $0x48] sm:$0xf] %v5976
        %6039 = vst [vmem:[#allocation2 + $0x4c] sm:$0xf] %v5977
        %6040 = vst [vmem:[#allocation2 + $0x50] sm:$0xf] %v5978
        %6041 = vst [vmem:[#allocation2 + $0x54] sm:$0xf] %v5979
        %6042 = vst [vmem:[#allocation2 + $0x58] sm:$0xf] %v5980
        %6043 = vst [vmem:[#allocation2 + $0x5c] sm:$0xf] %v5981
        %6044 = vst [vmem:[#allocation2 + $0x60] sm:$0xf] %v5982
        %6045 = vst [vmem:[#allocation2 + $0x64] sm:$0xf] %v5983
        %6046 = vst [vmem:[#allocation2 + $0x68] sm:$0xf] %v5984
        %6047 = vst [vmem:[#allocation2 + $0x6c] sm:$0xf] %v5985
        %6048 = vst [vmem:[#allocation2 + $0x70] sm:$0xf] %v5986
        %6049 = vst [vmem:[#allocation2 + $0x74] sm:$0xf] %v5987
        %6050 = vst [vmem:[#allocation2 + $0x78] sm:$0xf] %v5988
        %6051 = vst [vmem:[#allocation2 + $0x7c] sm:$0xf] %v5989
        %6052 = vst [vmem:[#allocation2 + $0x80] sm:$0xf] %v5990
        %6053 = vst [vmem:[#allocation2 + $0x84] sm:$0xf] %v5991
        %6054 = vst [vmem:[#allocation2 + $0x88] sm:$0xf] %v5992
        %6055 = vst [vmem:[#allocation2 + $0x8c] sm:$0xf] %v5993
        %6056 = vst [vmem:[#allocation2 + $0x90] sm:$0xf] %v5994
        %6057 = vst [vmem:[#allocation2 + $0x94] sm:$0xf] %v5995
        %6058 = vst [vmem:[#allocation2 + $0x98] sm:$0xf] %v5996
        %6059 = vst [vmem:[#allocation2 + $0x9c] sm:$0xf] %v5997
        %6060 = vst [vmem:[#allocation2 + $0xa0] sm:$0xf] %v5998
        %6061 = vst [vmem:[#allocation2 + $0xa4] sm:$0xf] %v5999
        %6062 = vst [vmem:[#allocation2 + $0xa8] sm:$0xf] %v6000
        %6063 = vst [vmem:[#allocation2 + $0xac] sm:$0xf] %v6001
        %6064 = vst [vmem:[#allocation2 + $0xb0] sm:$0xf] %v6002
        %6065 = vst [vmem:[#allocation2 + $0xb4] sm:$0xf] %v6003
        %6066 = vst [vmem:[#allocation2 + $0xb8] sm:$0xf] %v6004
        %6067 = vst [vmem:[#allocation2 + $0xbc] sm:$0xf] %v6005
        %6068 = vst [vmem:[#allocation2 + $0xc0] sm:$0xf] %v6006
        %6069 = vst [vmem:[#allocation2 + $0xc4] sm:$0xf] %v6007
        %6070 = vst [vmem:[#allocation2 + $0xc8] sm:$0xf] %v6008
        %6071 = vst [vmem:[#allocation2 + $0xcc] sm:$0xf] %v6009
        %6072 = vst [vmem:[#allocation2 + $0xd0] sm:$0xf] %v6010
        %6073 = vst [vmem:[#allocation2 + $0xd4] sm:$0xf] %v6011
        %6074 = vst [vmem:[#allocation2 + $0xd8] sm:$0xf] %v6012
        %6075 = vst [vmem:[#allocation2 + $0xdc] sm:$0xf] %v6013
        %6076 = vst [vmem:[#allocation2 + $0xe0] sm:$0xf] %v6014
        %6077 = vst [vmem:[#allocation2 + $0xe4] sm:$0xf] %v6015
        %6078 = vst [vmem:[#allocation2 + $0xe8] sm:$0xf] %v6016
        %6079 = vst [vmem:[#allocation2 + $0xec] sm:$0xf] %v6017
        %6080 = vst [vmem:[#allocation2 + $0xf0] sm:$0xf] %v6018
        %6081 = vst [vmem:[#allocation2 + $0xf4] sm:$0xf] %v6019
        %6082 = vst [vmem:[#allocation2 + $0xf8] sm:$0xf] %v6020
        %6083 = vst [vmem:[#allocation2 + $0xfc] sm:$0xf] %v6021
        %v6084 = vld [vmem:[#allocation2] sm:$0xf]
        %v6085 = vld [vmem:[#allocation2 + $0x4] sm:$0xf]
        %v6086 = vld [vmem:[#allocation2 + $0x8] sm:$0xf]
        %v6087 = vld [vmem:[#allocation2 + $0xc] sm:$0xf]
        %v6088 = vld [vmem:[#allocation2 + $0x10] sm:$0xf]
        %v6089 = vld [vmem:[#allocation2 + $0x14] sm:$0xf]
        %v6090 = vld [vmem:[#allocation2 + $0x18] sm:$0xf]
        %v6091 = vld [vmem:[#allocation2 + $0x1c] sm:$0xf]
        %v6092 = vld [vmem:[#allocation2 + $0x20] sm:$0xf]
        %v6093 = vld [vmem:[#allocation2 + $0x24] sm:$0xf]
        %v6094 = vld [vmem:[#allocation2 + $0x28] sm:$0xf]
        %v6095 = vld [vmem:[#allocation2 + $0x2c] sm:$0xf]
        %v6096 = vld [vmem:[#allocation2 + $0x30] sm:$0xf]
        %v6097 = vld [vmem:[#allocation2 + $0x34] sm:$0xf]
        %v6098 = vld [vmem:[#allocation2 + $0x38] sm:$0xf]
        %v6099 = vld [vmem:[#allocation2 + $0x3c] sm:$0xf]
        %v6100 = vld [vmem:[#allocation2 + $0x40] sm:$0xf]
        %v6101 = vld [vmem:[#allocation2 + $0x44] sm:$0xf]
        %v6102 = vld [vmem:[#allocation2 + $0x48] sm:$0xf]
        %v6103 = vld [vmem:[#allocation2 + $0x4c] sm:$0xf]
        %v6104 = vld [vmem:[#allocation2 + $0x50] sm:$0xf]
        %v6105 = vld [vmem:[#allocation2 + $0x54] sm:$0xf]
        %v6106 = vld [vmem:[#allocation2 + $0x58] sm:$0xf]
        %v6107 = vld [vmem:[#allocation2 + $0x5c] sm:$0xf]
        %v6108 = vld [vmem:[#allocation2 + $0x60] sm:$0xf]
        %v6109 = vld [vmem:[#allocation2 + $0x64] sm:$0xf]
        %v6110 = vld [vmem:[#allocation2 + $0x68] sm:$0xf]
        %v6111 = vld [vmem:[#allocation2 + $0x6c] sm:$0xf]
        %v6112 = vld [vmem:[#allocation2 + $0x70] sm:$0xf]
        %v6113 = vld [vmem:[#allocation2 + $0x74] sm:$0xf]
        %v6114 = vld [vmem:[#allocation2 + $0x78] sm:$0xf]
        %v6115 = vld [vmem:[#allocation2 + $0x7c] sm:$0xf]
        %v6116 = vld [vmem:[#allocation2 + $0x80] sm:$0xf]
        %v6117 = vld [vmem:[#allocation2 + $0x84] sm:$0xf]
        %v6118 = vld [vmem:[#allocation2 + $0x88] sm:$0xf]
        %v6119 = vld [vmem:[#allocation2 + $0x8c] sm:$0xf]
        %v6120 = vld [vmem:[#allocation2 + $0x90] sm:$0xf]
        %v6121 = vld [vmem:[#allocation2 + $0x94] sm:$0xf]
        %v6122 = vld [vmem:[#allocation2 + $0x98] sm:$0xf]
        %v6123 = vld [vmem:[#allocation2 + $0x9c] sm:$0xf]
        %v6124 = vld [vmem:[#allocation2 + $0xa0] sm:$0xf]
        %v6125 = vld [vmem:[#allocation2 + $0xa4] sm:$0xf]
        %v6126 = vld [vmem:[#allocation2 + $0xa8] sm:$0xf]
        %v6127 = vld [vmem:[#allocation2 + $0xac] sm:$0xf]
        %v6128 = vld [vmem:[#allocation2 + $0xb0] sm:$0xf]
        %v6129 = vld [vmem:[#allocation2 + $0xb4] sm:$0xf]
        %v6130 = vld [vmem:[#allocation2 + $0xb8] sm:$0xf]
        %v6131 = vld [vmem:[#allocation2 + $0xbc] sm:$0xf]
        %v6132 = vld [vmem:[#allocation2 + $0xc0] sm:$0xf]
        %v6133 = vld [vmem:[#allocation2 + $0xc4] sm:$0xf]
        %v6134 = vld [vmem:[#allocation2 + $0xc8] sm:$0xf]
        %v6135 = vld [vmem:[#allocation2 + $0xcc] sm:$0xf]
        %v6136 = vld [vmem:[#allocation2 + $0xd0] sm:$0xf]
        %v6137 = vld [vmem:[#allocation2 + $0xd4] sm:$0xf]
        %v6138 = vld [vmem:[#allocation2 + $0xd8] sm:$0xf]
        %v6139 = vld [vmem:[#allocation2 + $0xdc] sm:$0xf]
        %v6140 = vld [vmem:[#allocation2 + $0xe0] sm:$0xf]
        %v6141 = vld [vmem:[#allocation2 + $0xe4] sm:$0xf]
        %v6142 = vld [vmem:[#allocation2 + $0xe8] sm:$0xf]
        %v6143 = vld [vmem:[#allocation2 + $0xec] sm:$0xf]
        %v6144 = vld [vmem:[#allocation2 + $0xf0] sm:$0xf]
        %v6145 = vld [vmem:[#allocation2 + $0xf4] sm:$0xf]
        %v6146 = vperm.slane %v5646, 1
        %v6147 = vunpack.c.l.bf16 %v6146
        %v6148 = vmul.f32 %v4846, %v6147
        %v6149 = vmul.f32 %v4847, %v6147
        %v6150 = vmul.f32 %v4848, %v6147
        %v6151 = vmul.f32 %v4849, %v6147
        %v6152 = vmul.f32 %v4850, %v6147
        %v6153 = vmul.f32 %v4851, %v6147
        %v6154 = vmul.f32 %v4852, %v6147
        %v6155 = vmul.f32 %v4853, %v6147
        %v6156 = vmul.f32 %v4854, %v6147
        %v6157 = vmul.f32 %v4855, %v6147
        %v6158 = vmul.f32 %v4856, %v6147
        %v6159 = vmul.f32 %v4857, %v6147
        %v6160 = vmul.f32 %v4858, %v6147
        %v6161 = vmul.f32 %v4859, %v6147
        %v6162 = vmul.f32 %v4860, %v6147
        %v6163 = vmul.f32 %v4861, %v6147
        %v6164 = vmul.f32 %v4862, %v6147
        %v6165 = vmul.f32 %v4863, %v6147
        %v6166 = vmul.f32 %v4864, %v6147
        %v6167 = vmul.f32 %v4865, %v6147
        %v6168 = vmul.f32 %v4866, %v6147
        %v6169 = vmul.f32 %v4867, %v6147
        %v6170 = vmul.f32 %v4868, %v6147
        %v6171 = vmul.f32 %v4869, %v6147
        %v6172 = vmul.f32 %v4870, %v6147
        %v6173 = vmul.f32 %v4871, %v6147
        %v6174 = vmul.f32 %v4872, %v6147
        %v6175 = vmul.f32 %v4873, %v6147
        %v6176 = vmul.f32 %v4874, %v6147
        %v6177 = vmul.f32 %v4875, %v6147
        %v6178 = vmul.f32 %v4876, %v6147
        %v6179 = vmul.f32 %v4877, %v6147
        %v6180 = vmul.f32 %v4878, %v6147
        %v6181 = vmul.f32 %v4879, %v6147
        %v6182 = vmul.f32 %v4880, %v6147
        %v6183 = vmul.f32 %v4881, %v6147
        %v6184 = vmul.f32 %v4882, %v6147
        %v6185 = vmul.f32 %v4883, %v6147
        %v6186 = vmul.f32 %v4884, %v6147
        %v6187 = vmul.f32 %v4885, %v6147
        %v6188 = vmul.f32 %v4886, %v6147
        %v6189 = vmul.f32 %v4887, %v6147
        %v6190 = vmul.f32 %v4888, %v6147
        %v6191 = vmul.f32 %v4889, %v6147
        %v6192 = vmul.f32 %v4890, %v6147
        %v6193 = vmul.f32 %v4891, %v6147
        %v6194 = vmul.f32 %v4892, %v6147
        %v6195 = vmul.f32 %v4893, %v6147
        %v6196 = vmul.f32 %v4894, %v6147
        %v6197 = vmul.f32 %v4895, %v6147
        %v6198 = vmul.f32 %v4896, %v6147
        %v6199 = vmul.f32 %v4897, %v6147
        %v6200 = vmul.f32 %v4898, %v6147
        %v6201 = vmul.f32 %v4899, %v6147
        %v6202 = vmul.f32 %v4900, %v6147
        %v6203 = vmul.f32 %v4901, %v6147
        %v6204 = vmul.f32 %v4902, %v6147
        %v6205 = vmul.f32 %v4903, %v6147
        %v6206 = vmul.f32 %v4904, %v6147
        %v6207 = vmul.f32 %v4905, %v6147
        %v6208 = vmul.f32 %v4906, %v6147
        %v6209 = vmul.f32 %v4907, %v6147
        %v6210 = vpack.c.bf16 %v6148, %v6148
        %v6211 = vpack.c.bf16 %v6149, %v6149
        %v6212 = vpack.c.bf16 %v6150, %v6150
        %v6213 = vpack.c.bf16 %v6151, %v6151
        %v6214 = vpack.c.bf16 %v6152, %v6152
        %v6215 = vpack.c.bf16 %v6153, %v6153
        %v6216 = vpack.c.bf16 %v6154, %v6154
        %v6217 = vpack.c.bf16 %v6155, %v6155
        %v6218 = vpack.c.bf16 %v6156, %v6156
        %v6219 = vpack.c.bf16 %v6157, %v6157
        %v6220 = vpack.c.bf16 %v6158, %v6158
        %v6221 = vpack.c.bf16 %v6159, %v6159
        %v6222 = vpack.c.bf16 %v6160, %v6160
        %v6223 = vpack.c.bf16 %v6161, %v6161
        %v6224 = vpack.c.bf16 %v6162, %v6162
        %v6225 = vpack.c.bf16 %v6163, %v6163
        %v6226 = vpack.c.bf16 %v6164, %v6164
        %v6227 = vpack.c.bf16 %v6165, %v6165
        %v6228 = vpack.c.bf16 %v6166, %v6166
        %v6229 = vpack.c.bf16 %v6167, %v6167
        %v6230 = vpack.c.bf16 %v6168, %v6168
        %v6231 = vpack.c.bf16 %v6169, %v6169
        %v6232 = vpack.c.bf16 %v6170, %v6170
        %v6233 = vpack.c.bf16 %v6171, %v6171
        %v6234 = vpack.c.bf16 %v6172, %v6172
        %v6235 = vpack.c.bf16 %v6173, %v6173
        %v6236 = vpack.c.bf16 %v6174, %v6174
        %v6237 = vpack.c.bf16 %v6175, %v6175
        %v6238 = vpack.c.bf16 %v6176, %v6176
        %v6239 = vpack.c.bf16 %v6177, %v6177
        %v6240 = vpack.c.bf16 %v6178, %v6178
        %v6241 = vpack.c.bf16 %v6179, %v6179
        %v6242 = vpack.c.bf16 %v6180, %v6180
        %v6243 = vpack.c.bf16 %v6181, %v6181
        %v6244 = vpack.c.bf16 %v6182, %v6182
        %v6245 = vpack.c.bf16 %v6183, %v6183
        %v6246 = vpack.c.bf16 %v6184, %v6184
        %v6247 = vpack.c.bf16 %v6185, %v6185
        %v6248 = vpack.c.bf16 %v6186, %v6186
        %v6249 = vpack.c.bf16 %v6187, %v6187
        %v6250 = vpack.c.bf16 %v6188, %v6188
        %v6251 = vpack.c.bf16 %v6189, %v6189
        %v6252 = vpack.c.bf16 %v6190, %v6190
        %v6253 = vpack.c.bf16 %v6191, %v6191
        %v6254 = vpack.c.bf16 %v6192, %v6192
        %v6255 = vpack.c.bf16 %v6193, %v6193
        %v6256 = vpack.c.bf16 %v6194, %v6194
        %v6257 = vpack.c.bf16 %v6195, %v6195
        %v6258 = vpack.c.bf16 %v6196, %v6196
        %v6259 = vpack.c.bf16 %v6197, %v6197
        %v6260 = vpack.c.bf16 %v6198, %v6198
        %v6261 = vpack.c.bf16 %v6199, %v6199
        %v6262 = vpack.c.bf16 %v6200, %v6200
        %v6263 = vpack.c.bf16 %v6201, %v6201
        %v6264 = vpack.c.bf16 %v6202, %v6202
        %v6265 = vpack.c.bf16 %v6203, %v6203
        %v6266 = vpack.c.bf16 %v6204, %v6204
        %v6267 = vpack.c.bf16 %v6205, %v6205
        %v6268 = vpack.c.bf16 %v6206, %v6206
        %v6269 = vpack.c.bf16 %v6207, %v6207
        %v6270 = vpack.c.bf16 %v6208, %v6208
        %v6271 = vpack.c.bf16 %v6209, %v6209
        %v6272 = vunpack.c.l.bf16 %v6084
        %v6273 = vunpack.c.l.bf16 %v6085
        %v6274 = vunpack.c.l.bf16 %v6086
        %v6275 = vunpack.c.l.bf16 %v6087
        %v6276 = vunpack.c.l.bf16 %v6088
        %v6277 = vunpack.c.l.bf16 %v6089
        %v6278 = vunpack.c.l.bf16 %v6090
        %v6279 = vunpack.c.l.bf16 %v6091
        %v6280 = vunpack.c.l.bf16 %v6092
        %v6281 = vunpack.c.l.bf16 %v6093
        %v6282 = vunpack.c.l.bf16 %v6094
        %v6283 = vunpack.c.l.bf16 %v6095
        %v6284 = vunpack.c.l.bf16 %v6096
        %v6285 = vunpack.c.l.bf16 %v6097
        %v6286 = vunpack.c.l.bf16 %v6098
        %v6287 = vunpack.c.l.bf16 %v6099
        %v6288 = vunpack.c.l.bf16 %v6100
        %v6289 = vunpack.c.l.bf16 %v6101
        %v6290 = vunpack.c.l.bf16 %v6102
        %v6291 = vunpack.c.l.bf16 %v6103
        %v6292 = vunpack.c.l.bf16 %v6104
        %v6293 = vunpack.c.l.bf16 %v6105
        %v6294 = vunpack.c.l.bf16 %v6106
        %v6295 = vunpack.c.l.bf16 %v6107
        %v6296 = vunpack.c.l.bf16 %v6108
        %v6297 = vunpack.c.l.bf16 %v6109
        %v6298 = vunpack.c.l.bf16 %v6110
        %v6299 = vunpack.c.l.bf16 %v6111
        %v6300 = vunpack.c.l.bf16 %v6112
        %v6301 = vunpack.c.l.bf16 %v6113
        %v6302 = vunpack.c.l.bf16 %v6114
        %v6303 = vunpack.c.l.bf16 %v6115
        %v6304 = vunpack.c.l.bf16 %v6116
        %v6305 = vunpack.c.l.bf16 %v6117
        %v6306 = vunpack.c.l.bf16 %v6118
        %v6307 = vunpack.c.l.bf16 %v6119
        %v6308 = vunpack.c.l.bf16 %v6120
        %v6309 = vunpack.c.l.bf16 %v6121
        %v6310 = vunpack.c.l.bf16 %v6122
        %v6311 = vunpack.c.l.bf16 %v6123
        %v6312 = vunpack.c.l.bf16 %v6124
        %v6313 = vunpack.c.l.bf16 %v6125
        %v6314 = vunpack.c.l.bf16 %v6126
        %v6315 = vunpack.c.l.bf16 %v6127
        %v6316 = vunpack.c.l.bf16 %v6128
        %v6317 = vunpack.c.l.bf16 %v6129
        %v6318 = vunpack.c.l.bf16 %v6130
        %v6319 = vunpack.c.l.bf16 %v6131
        %v6320 = vunpack.c.l.bf16 %v6132
        %v6321 = vunpack.c.l.bf16 %v6133
        %v6322 = vunpack.c.l.bf16 %v6134
        %v6323 = vunpack.c.l.bf16 %v6135
        %v6324 = vunpack.c.l.bf16 %v6136
        %v6325 = vunpack.c.l.bf16 %v6137
        %v6326 = vunpack.c.l.bf16 %v6138
        %v6327 = vunpack.c.l.bf16 %v6139
        %v6328 = vunpack.c.l.bf16 %v6140
        %v6329 = vunpack.c.l.bf16 %v6141
        %v6330 = vunpack.c.l.bf16 %v6142
        %v6331 = vunpack.c.l.bf16 %v6143
        %v6332 = vunpack.c.l.bf16 %v6144
        %v6333 = vunpack.c.l.bf16 %v6145
        %v6334 = vunpack.c.l.bf16 %v6210
        %v6335 = vunpack.c.l.bf16 %v6211
        %v6336 = vunpack.c.l.bf16 %v6212
        %v6337 = vunpack.c.l.bf16 %v6213
        %v6338 = vunpack.c.l.bf16 %v6214
        %v6339 = vunpack.c.l.bf16 %v6215
        %v6340 = vunpack.c.l.bf16 %v6216
        %v6341 = vunpack.c.l.bf16 %v6217
        %v6342 = vunpack.c.l.bf16 %v6218
        %v6343 = vunpack.c.l.bf16 %v6219
        %v6344 = vunpack.c.l.bf16 %v6220
        %v6345 = vunpack.c.l.bf16 %v6221
        %v6346 = vunpack.c.l.bf16 %v6222
        %v6347 = vunpack.c.l.bf16 %v6223
        %v6348 = vunpack.c.l.bf16 %v6224
        %v6349 = vunpack.c.l.bf16 %v6225
        %v6350 = vunpack.c.l.bf16 %v6226
        %v6351 = vunpack.c.l.bf16 %v6227
        %v6352 = vunpack.c.l.bf16 %v6228
        %v6353 = vunpack.c.l.bf16 %v6229
        %v6354 = vunpack.c.l.bf16 %v6230
        %v6355 = vunpack.c.l.bf16 %v6231
        %v6356 = vunpack.c.l.bf16 %v6232
        %v6357 = vunpack.c.l.bf16 %v6233
        %v6358 = vunpack.c.l.bf16 %v6234
        %v6359 = vunpack.c.l.bf16 %v6235
        %v6360 = vunpack.c.l.bf16 %v6236
        %v6361 = vunpack.c.l.bf16 %v6237
        %v6362 = vunpack.c.l.bf16 %v6238
        %v6363 = vunpack.c.l.bf16 %v6239
        %v6364 = vunpack.c.l.bf16 %v6240
        %v6365 = vunpack.c.l.bf16 %v6241
        %v6366 = vunpack.c.l.bf16 %v6242
        %v6367 = vunpack.c.l.bf16 %v6243
        %v6368 = vunpack.c.l.bf16 %v6244
        %v6369 = vunpack.c.l.bf16 %v6245
        %v6370 = vunpack.c.l.bf16 %v6246
        %v6371 = vunpack.c.l.bf16 %v6247
        %v6372 = vunpack.c.l.bf16 %v6248
        %v6373 = vunpack.c.l.bf16 %v6249
        %v6374 = vunpack.c.l.bf16 %v6250
        %v6375 = vunpack.c.l.bf16 %v6251
        %v6376 = vunpack.c.l.bf16 %v6252
        %v6377 = vunpack.c.l.bf16 %v6253
        %v6378 = vunpack.c.l.bf16 %v6254
        %v6379 = vunpack.c.l.bf16 %v6255
        %v6380 = vunpack.c.l.bf16 %v6256
        %v6381 = vunpack.c.l.bf16 %v6257
        %v6382 = vunpack.c.l.bf16 %v6258
        %v6383 = vunpack.c.l.bf16 %v6259
        %v6384 = vunpack.c.l.bf16 %v6260
        %v6385 = vunpack.c.l.bf16 %v6261
        %v6386 = vunpack.c.l.bf16 %v6262
        %v6387 = vunpack.c.l.bf16 %v6263
        %v6388 = vunpack.c.l.bf16 %v6264
        %v6389 = vunpack.c.l.bf16 %v6265
        %v6390 = vunpack.c.l.bf16 %v6266
        %v6391 = vunpack.c.l.bf16 %v6267
        %v6392 = vunpack.c.l.bf16 %v6268
        %v6393 = vunpack.c.l.bf16 %v6269
        %v6394 = vunpack.c.l.bf16 %v6270
        %v6395 = vunpack.c.l.bf16 %v6271
        %v6396 = vadd.f32 %v6272, %v6334
        %v6397 = vadd.f32 %v6273, %v6335
        %v6398 = vadd.f32 %v6274, %v6336
        %v6399 = vadd.f32 %v6275, %v6337
        %v6400 = vadd.f32 %v6276, %v6338
        %v6401 = vadd.f32 %v6277, %v6339
        %v6402 = vadd.f32 %v6278, %v6340
        %v6403 = vadd.f32 %v6279, %v6341
        %v6404 = vadd.f32 %v6280, %v6342
        %v6405 = vadd.f32 %v6281, %v6343
        %v6406 = vadd.f32 %v6282, %v6344
        %v6407 = vadd.f32 %v6283, %v6345
        %v6408 = vadd.f32 %v6284, %v6346
        %v6409 = vadd.f32 %v6285, %v6347
        %v6410 = vadd.f32 %v6286, %v6348
        %v6411 = vadd.f32 %v6287, %v6349
        %v6412 = vadd.f32 %v6288, %v6350
        %v6413 = vadd.f32 %v6289, %v6351
        %v6414 = vadd.f32 %v6290, %v6352
        %v6415 = vadd.f32 %v6291, %v6353
        %v6416 = vadd.f32 %v6292, %v6354
        %v6417 = vadd.f32 %v6293, %v6355
        %v6418 = vadd.f32 %v6294, %v6356
        %v6419 = vadd.f32 %v6295, %v6357
        %v6420 = vadd.f32 %v6296, %v6358
        %v6421 = vadd.f32 %v6297, %v6359
        %v6422 = vadd.f32 %v6298, %v6360
        %v6423 = vadd.f32 %v6299, %v6361
        %v6424 = vadd.f32 %v6300, %v6362
        %v6425 = vadd.f32 %v6301, %v6363
        %v6426 = vadd.f32 %v6302, %v6364
        %v6427 = vadd.f32 %v6303, %v6365
        %v6428 = vadd.f32 %v6304, %v6366
        %v6429 = vadd.f32 %v6305, %v6367
        %v6430 = vadd.f32 %v6306, %v6368
        %v6431 = vadd.f32 %v6307, %v6369
        %v6432 = vadd.f32 %v6308, %v6370
        %v6433 = vadd.f32 %v6309, %v6371
        %v6434 = vadd.f32 %v6310, %v6372
        %v6435 = vadd.f32 %v6311, %v6373
        %v6436 = vadd.f32 %v6312, %v6374
        %v6437 = vadd.f32 %v6313, %v6375
        %v6438 = vadd.f32 %v6314, %v6376
        %v6439 = vadd.f32 %v6315, %v6377
        %v6440 = vadd.f32 %v6316, %v6378
        %v6441 = vadd.f32 %v6317, %v6379
        %v6442 = vadd.f32 %v6318, %v6380
        %v6443 = vadd.f32 %v6319, %v6381
        %v6444 = vadd.f32 %v6320, %v6382
        %v6445 = vadd.f32 %v6321, %v6383
        %v6446 = vadd.f32 %v6322, %v6384
        %v6447 = vadd.f32 %v6323, %v6385
        %v6448 = vadd.f32 %v6324, %v6386
        %v6449 = vadd.f32 %v6325, %v6387
        %v6450 = vadd.f32 %v6326, %v6388
        %v6451 = vadd.f32 %v6327, %v6389
        %v6452 = vadd.f32 %v6328, %v6390
        %v6453 = vadd.f32 %v6329, %v6391
        %v6454 = vadd.f32 %v6330, %v6392
        %v6455 = vadd.f32 %v6331, %v6393
        %v6456 = vadd.f32 %v6332, %v6394
        %v6457 = vadd.f32 %v6333, %v6395
        %v6458 = vpack.c.bf16 %v6396, %v6396
        %v6459 = vpack.c.bf16 %v6397, %v6397
        %v6460 = vpack.c.bf16 %v6398, %v6398
        %v6461 = vpack.c.bf16 %v6399, %v6399
        %v6462 = vpack.c.bf16 %v6400, %v6400
        %v6463 = vpack.c.bf16 %v6401, %v6401
        %v6464 = vpack.c.bf16 %v6402, %v6402
        %v6465 = vpack.c.bf16 %v6403, %v6403
        %v6466 = vpack.c.bf16 %v6404, %v6404
        %v6467 = vpack.c.bf16 %v6405, %v6405
        %v6468 = vpack.c.bf16 %v6406, %v6406
        %v6469 = vpack.c.bf16 %v6407, %v6407
        %v6470 = vpack.c.bf16 %v6408, %v6408
        %v6471 = vpack.c.bf16 %v6409, %v6409
        %v6472 = vpack.c.bf16 %v6410, %v6410
        %v6473 = vpack.c.bf16 %v6411, %v6411
        %v6474 = vpack.c.bf16 %v6412, %v6412
        %v6475 = vpack.c.bf16 %v6413, %v6413
        %v6476 = vpack.c.bf16 %v6414, %v6414
        %v6477 = vpack.c.bf16 %v6415, %v6415
        %v6478 = vpack.c.bf16 %v6416, %v6416
        %v6479 = vpack.c.bf16 %v6417, %v6417
        %v6480 = vpack.c.bf16 %v6418, %v6418
        %v6481 = vpack.c.bf16 %v6419, %v6419
        %v6482 = vpack.c.bf16 %v6420, %v6420
        %v6483 = vpack.c.bf16 %v6421, %v6421
        %v6484 = vpack.c.bf16 %v6422, %v6422
        %v6485 = vpack.c.bf16 %v6423, %v6423
        %v6486 = vpack.c.bf16 %v6424, %v6424
        %v6487 = vpack.c.bf16 %v6425, %v6425
        %v6488 = vpack.c.bf16 %v6426, %v6426
        %v6489 = vpack.c.bf16 %v6427, %v6427
        %v6490 = vpack.c.bf16 %v6428, %v6428
        %v6491 = vpack.c.bf16 %v6429, %v6429
        %v6492 = vpack.c.bf16 %v6430, %v6430
        %v6493 = vpack.c.bf16 %v6431, %v6431
        %v6494 = vpack.c.bf16 %v6432, %v6432
        %v6495 = vpack.c.bf16 %v6433, %v6433
        %v6496 = vpack.c.bf16 %v6434, %v6434
        %v6497 = vpack.c.bf16 %v6435, %v6435
        %v6498 = vpack.c.bf16 %v6436, %v6436
        %v6499 = vpack.c.bf16 %v6437, %v6437
        %v6500 = vpack.c.bf16 %v6438, %v6438
        %v6501 = vpack.c.bf16 %v6439, %v6439
        %v6502 = vpack.c.bf16 %v6440, %v6440
        %v6503 = vpack.c.bf16 %v6441, %v6441
        %v6504 = vpack.c.bf16 %v6442, %v6442
        %v6505 = vpack.c.bf16 %v6443, %v6443
        %v6506 = vpack.c.bf16 %v6444, %v6444
        %v6507 = vpack.c.bf16 %v6445, %v6445
        %v6508 = vpack.c.bf16 %v6446, %v6446
        %v6509 = vpack.c.bf16 %v6447, %v6447
        %v6510 = vpack.c.bf16 %v6448, %v6448
        %v6511 = vpack.c.bf16 %v6449, %v6449
        %v6512 = vpack.c.bf16 %v6450, %v6450
        %v6513 = vpack.c.bf16 %v6451, %v6451
        %v6514 = vpack.c.bf16 %v6452, %v6452
        %v6515 = vpack.c.bf16 %v6453, %v6453
        %v6516 = vpack.c.bf16 %v6454, %v6454
        %v6517 = vpack.c.bf16 %v6455, %v6455
        %v6518 = vpack.c.bf16 %v6456, %v6456
        %v6519 = vpack.c.bf16 %v6457, %v6457
        %6520 = vst [vmem:[#allocation2] sm:$0xf] %v6458
        %6521 = vst [vmem:[#allocation2 + $0x4] sm:$0xf] %v6459
        %6522 = vst [vmem:[#allocation2 + $0x8] sm:$0xf] %v6460
        %6523 = vst [vmem:[#allocation2 + $0xc] sm:$0xf] %v6461
        %6524 = vst [vmem:[#allocation2 + $0x10] sm:$0xf] %v6462
        %6525 = vst [vmem:[#allocation2 + $0x14] sm:$0xf] %v6463
        %6526 = vst [vmem:[#allocation2 + $0x18] sm:$0xf] %v6464
        %6527 = vst [vmem:[#allocation2 + $0x1c] sm:$0xf] %v6465
        %6528 = vst [vmem:[#allocation2 + $0x20] sm:$0xf] %v6466
        %6529 = vst [vmem:[#allocation2 + $0x24] sm:$0xf] %v6467
        %6530 = vst [vmem:[#allocation2 + $0x28] sm:$0xf] %v6468
        %6531 = vst [vmem:[#allocation2 + $0x2c] sm:$0xf] %v6469
        %6532 = vst [vmem:[#allocation2 + $0x30] sm:$0xf] %v6470
        %6533 = vst [vmem:[#allocation2 + $0x34] sm:$0xf] %v6471
        %6534 = vst [vmem:[#allocation2 + $0x38] sm:$0xf] %v6472
        %6535 = vst [vmem:[#allocation2 + $0x3c] sm:$0xf] %v6473
        %6536 = vst [vmem:[#allocation2 + $0x40] sm:$0xf] %v6474
        %6537 = vst [vmem:[#allocation2 + $0x44] sm:$0xf] %v6475
        %6538 = vst [vmem:[#allocation2 + $0x48] sm:$0xf] %v6476
        %6539 = vst [vmem:[#allocation2 + $0x4c] sm:$0xf] %v6477
        %6540 = vst [vmem:[#allocation2 + $0x50] sm:$0xf] %v6478
        %6541 = vst [vmem:[#allocation2 + $0x54] sm:$0xf] %v6479
        %6542 = vst [vmem:[#allocation2 + $0x58] sm:$0xf] %v6480
        %6543 = vst [vmem:[#allocation2 + $0x5c] sm:$0xf] %v6481
        %6544 = vst [vmem:[#allocation2 + $0x60] sm:$0xf] %v6482
        %6545 = vst [vmem:[#allocation2 + $0x64] sm:$0xf] %v6483
        %6546 = vst [vmem:[#allocation2 + $0x68] sm:$0xf] %v6484
        %6547 = vst [vmem:[#allocation2 + $0x6c] sm:$0xf] %v6485
        %6548 = vst [vmem:[#allocation2 + $0x70] sm:$0xf] %v6486
        %6549 = vst [vmem:[#allocation2 + $0x74] sm:$0xf] %v6487
        %6550 = vst [vmem:[#allocation2 + $0x78] sm:$0xf] %v6488
        %6551 = vst [vmem:[#allocation2 + $0x7c] sm:$0xf] %v6489
        %6552 = vst [vmem:[#allocation2 + $0x80] sm:$0xf] %v6490
        %6553 = vst [vmem:[#allocation2 + $0x84] sm:$0xf] %v6491
        %6554 = vst [vmem:[#allocation2 + $0x88] sm:$0xf] %v6492
        %6555 = vst [vmem:[#allocation2 + $0x8c] sm:$0xf] %v6493
        %6556 = vst [vmem:[#allocation2 + $0x90] sm:$0xf] %v6494
        %6557 = vst [vmem:[#allocation2 + $0x94] sm:$0xf] %v6495
        %6558 = vst [vmem:[#allocation2 + $0x98] sm:$0xf] %v6496
        %6559 = vst [vmem:[#allocation2 + $0x9c] sm:$0xf] %v6497
        %6560 = vst [vmem:[#allocation2 + $0xa0] sm:$0xf] %v6498
        %6561 = vst [vmem:[#allocation2 + $0xa4] sm:$0xf] %v6499
        %6562 = vst [vmem:[#allocation2 + $0xa8] sm:$0xf] %v6500
        %6563 = vst [vmem:[#allocation2 + $0xac] sm:$0xf] %v6501
        %6564 = vst [vmem:[#allocation2 + $0xb0] sm:$0xf] %v6502
        %6565 = vst [vmem:[#allocation2 + $0xb4] sm:$0xf] %v6503
        %6566 = vst [vmem:[#allocation2 + $0xb8] sm:$0xf] %v6504
        %6567 = vst [vmem:[#allocation2 + $0xbc] sm:$0xf] %v6505
        %6568 = vst [vmem:[#allocation2 + $0xc0] sm:$0xf] %v6506
        %6569 = vst [vmem:[#allocation2 + $0xc4] sm:$0xf] %v6507
        %6570 = vst [vmem:[#allocation2 + $0xc8] sm:$0xf] %v6508
        %6571 = vst [vmem:[#allocation2 + $0xcc] sm:$0xf] %v6509
        %6572 = vst [vmem:[#allocation2 + $0xd0] sm:$0xf] %v6510
        %6573 = vst [vmem:[#allocation2 + $0xd4] sm:$0xf] %v6511
        %6574 = vst [vmem:[#allocation2 + $0xd8] sm:$0xf] %v6512
        %6575 = vst [vmem:[#allocation2 + $0xdc] sm:$0xf] %v6513
        %6576 = vst [vmem:[#allocation2 + $0xe0] sm:$0xf] %v6514
        %6577 = vst [vmem:[#allocation2 + $0xe4] sm:$0xf] %v6515
        %6578 = vst [vmem:[#allocation2 + $0xe8] sm:$0xf] %v6516
        %6579 = vst [vmem:[#allocation2 + $0xec] sm:$0xf] %v6517
        %6580 = vst [vmem:[#allocation2 + $0xf0] sm:$0xf] %v6518
        %6581 = vst [vmem:[#allocation2 + $0xf4] sm:$0xf] %v6519
        %v6582 = vld [vmem:[#allocation2] sm:$0xf]
        %v6583 = vld [vmem:[#allocation2 + $0x4] sm:$0xf]
        %v6584 = vld [vmem:[#allocation2 + $0x8] sm:$0xf]
        %v6585 = vld [vmem:[#allocation2 + $0xc] sm:$0xf]
        %v6586 = vld [vmem:[#allocation2 + $0x10] sm:$0xf]
        %v6587 = vld [vmem:[#allocation2 + $0x14] sm:$0xf]
        %v6588 = vld [vmem:[#allocation2 + $0x18] sm:$0xf]
        %v6589 = vld [vmem:[#allocation2 + $0x1c] sm:$0xf]
        %v6590 = vld [vmem:[#allocation2 + $0x20] sm:$0xf]
        %v6591 = vld [vmem:[#allocation2 + $0x24] sm:$0xf]
        %v6592 = vld [vmem:[#allocation2 + $0x28] sm:$0xf]
        %v6593 = vld [vmem:[#allocation2 + $0x2c] sm:$0xf]
        %v6594 = vld [vmem:[#allocation2 + $0x30] sm:$0xf]
        %v6595 = vld [vmem:[#allocation2 + $0x34] sm:$0xf]
        %v6596 = vld [vmem:[#allocation2 + $0x38] sm:$0xf]
        %v6597 = vld [vmem:[#allocation2 + $0x3c] sm:$0xf]
        %v6598 = vld [vmem:[#allocation2 + $0x40] sm:$0xf]
        %v6599 = vld [vmem:[#allocation2 + $0x44] sm:$0xf]
        %v6600 = vld [vmem:[#allocation2 + $0x48] sm:$0xf]
        %v6601 = vld [vmem:[#allocation2 + $0x4c] sm:$0xf]
        %v6602 = vld [vmem:[#allocation2 + $0x50] sm:$0xf]
        %v6603 = vld [vmem:[#allocation2 + $0x54] sm:$0xf]
        %v6604 = vld [vmem:[#allocation2 + $0x58] sm:$0xf]
        %v6605 = vld [vmem:[#allocation2 + $0x5c] sm:$0xf]
        %v6606 = vld [vmem:[#allocation2 + $0x60] sm:$0xf]
        %v6607 = vld [vmem:[#allocation2 + $0x64] sm:$0xf]
        %v6608 = vld [vmem:[#allocation2 + $0x68] sm:$0xf]
        %v6609 = vld [vmem:[#allocation2 + $0x6c] sm:$0xf]
        %v6610 = vld [vmem:[#allocation2 + $0x70] sm:$0xf]
        %v6611 = vld [vmem:[#allocation2 + $0x74] sm:$0xf]
        %v6612 = vld [vmem:[#allocation2 + $0x78] sm:$0xf]
        %v6613 = vld [vmem:[#allocation2 + $0x7c] sm:$0xf]
        %v6614 = vld [vmem:[#allocation2 + $0x80] sm:$0xf]
        %v6615 = vld [vmem:[#allocation2 + $0x84] sm:$0xf]
        %v6616 = vld [vmem:[#allocation2 + $0x88] sm:$0xf]
        %v6617 = vld [vmem:[#allocation2 + $0x8c] sm:$0xf]
        %v6618 = vld [vmem:[#allocation2 + $0x90] sm:$0xf]
        %v6619 = vld [vmem:[#allocation2 + $0x94] sm:$0xf]
        %v6620 = vld [vmem:[#allocation2 + $0x98] sm:$0xf]
        %v6621 = vld [vmem:[#allocation2 + $0x9c] sm:$0xf]
        %v6622 = vld [vmem:[#allocation2 + $0xa0] sm:$0xf]
        %v6623 = vld [vmem:[#allocation2 + $0xa4] sm:$0xf]
        %v6624 = vld [vmem:[#allocation2 + $0xa8] sm:$0xf]
        %v6625 = vld [vmem:[#allocation2 + $0xac] sm:$0xf]
        %v6626 = vld [vmem:[#allocation2 + $0xb0] sm:$0xf]
        %v6627 = vld [vmem:[#allocation2 + $0xb4] sm:$0xf]
        %v6628 = vld [vmem:[#allocation2 + $0xb8] sm:$0xf]
        %v6629 = vld [vmem:[#allocation2 + $0xbc] sm:$0xf]
        %v6630 = vld [vmem:[#allocation2 + $0xc0] sm:$0xf]
        %v6631 = vld [vmem:[#allocation2 + $0xc4] sm:$0xf]
        %v6632 = vld [vmem:[#allocation2 + $0xc8] sm:$0xf]
        %v6633 = vld [vmem:[#allocation2 + $0xcc] sm:$0xf]
        %v6634 = vld [vmem:[#allocation2 + $0xd0] sm:$0xf]
        %v6635 = vld [vmem:[#allocation2 + $0xd4] sm:$0xf]
        %v6636 = vld [vmem:[#allocation2 + $0xd8] sm:$0xf]
        %v6637 = vld [vmem:[#allocation2 + $0xdc] sm:$0xf]
        %v6638 = vld [vmem:[#allocation2 + $0xe0] sm:$0xf]
        %v6639 = vld [vmem:[#allocation2 + $0xe4] sm:$0xf]
        %v6640 = vld [vmem:[#allocation2 + $0xe8] sm:$0xf]
        %v6641 = vld [vmem:[#allocation2 + $0xec] sm:$0xf]
        %v6642 = vperm.slane %v4841, 2
        %v6643 = vunpack.c.l.bf16 %v6642
        %v6644 = vmul.f32 %v4848, %v6643
        %v6645 = vmul.f32 %v4849, %v6643
        %v6646 = vmul.f32 %v4850, %v6643
        %v6647 = vmul.f32 %v4851, %v6643
        %v6648 = vmul.f32 %v4852, %v6643
        %v6649 = vmul.f32 %v4853, %v6643
        %v6650 = vmul.f32 %v4854, %v6643
        %v6651 = vmul.f32 %v4855, %v6643
        %v6652 = vmul.f32 %v4856, %v6643
        %v6653 = vmul.f32 %v4857, %v6643
        %v6654 = vmul.f32 %v4858, %v6643
        %v6655 = vmul.f32 %v4859, %v6643
        %v6656 = vmul.f32 %v4860, %v6643
        %v6657 = vmul.f32 %v4861, %v6643
        %v6658 = vmul.f32 %v4862, %v6643
        %v6659 = vmul.f32 %v4863, %v6643
        %v6660 = vmul.f32 %v4864, %v6643
        %v6661 = vmul.f32 %v4865, %v6643
        %v6662 = vmul.f32 %v4866, %v6643
        %v6663 = vmul.f32 %v4867, %v6643
        %v6664 = vmul.f32 %v4868, %v6643
        %v6665 = vmul.f32 %v4869, %v6643
        %v6666 = vmul.f32 %v4870, %v6643
        %v6667 = vmul.f32 %v4871, %v6643
        %v6668 = vmul.f32 %v4872, %v6643
        %v6669 = vmul.f32 %v4873, %v6643
        %v6670 = vmul.f32 %v4874, %v6643
        %v6671 = vmul.f32 %v4875, %v6643
        %v6672 = vmul.f32 %v4876, %v6643
        %v6673 = vmul.f32 %v4877, %v6643
        %v6674 = vmul.f32 %v4878, %v6643
        %v6675 = vmul.f32 %v4879, %v6643
        %v6676 = vmul.f32 %v4880, %v6643
        %v6677 = vmul.f32 %v4881, %v6643
        %v6678 = vmul.f32 %v4882, %v6643
        %v6679 = vmul.f32 %v4883, %v6643
        %v6680 = vmul.f32 %v4884, %v6643
        %v6681 = vmul.f32 %v4885, %v6643
        %v6682 = vmul.f32 %v4886, %v6643
        %v6683 = vmul.f32 %v4887, %v6643
        %v6684 = vmul.f32 %v4888, %v6643
        %v6685 = vmul.f32 %v4889, %v6643
        %v6686 = vmul.f32 %v4890, %v6643
        %v6687 = vmul.f32 %v4891, %v6643
        %v6688 = vmul.f32 %v4892, %v6643
        %v6689 = vmul.f32 %v4893, %v6643
        %v6690 = vmul.f32 %v4894, %v6643
        %v6691 = vmul.f32 %v4895, %v6643
        %v6692 = vmul.f32 %v4896, %v6643
        %v6693 = vmul.f32 %v4897, %v6643
        %v6694 = vmul.f32 %v4898, %v6643
        %v6695 = vmul.f32 %v4899, %v6643
        %v6696 = vmul.f32 %v4900, %v6643
        %v6697 = vmul.f32 %v4901, %v6643
        %v6698 = vmul.f32 %v4902, %v6643
        %v6699 = vmul.f32 %v4903, %v6643
        %v6700 = vmul.f32 %v4904, %v6643
        %v6701 = vmul.f32 %v4905, %v6643
        %v6702 = vmul.f32 %v4906, %v6643
        %v6703 = vmul.f32 %v4907, %v6643
        %v6704 = vpack.c.bf16 %v6644, %v6644
        %v6705 = vpack.c.bf16 %v6645, %v6645
        %v6706 = vpack.c.bf16 %v6646, %v6646
        %v6707 = vpack.c.bf16 %v6647, %v6647
        %v6708 = vpack.c.bf16 %v6648, %v6648
        %v6709 = vpack.c.bf16 %v6649, %v6649
        %v6710 = vpack.c.bf16 %v6650, %v6650
        %v6711 = vpack.c.bf16 %v6651, %v6651
        %v6712 = vpack.c.bf16 %v6652, %v6652
        %v6713 = vpack.c.bf16 %v6653, %v6653
        %v6714 = vpack.c.bf16 %v6654, %v6654
        %v6715 = vpack.c.bf16 %v6655, %v6655
        %v6716 = vpack.c.bf16 %v6656, %v6656
        %v6717 = vpack.c.bf16 %v6657, %v6657
        %v6718 = vpack.c.bf16 %v6658, %v6658
        %v6719 = vpack.c.bf16 %v6659, %v6659
        %v6720 = vpack.c.bf16 %v6660, %v6660
        %v6721 = vpack.c.bf16 %v6661, %v6661
        %v6722 = vpack.c.bf16 %v6662, %v6662
        %v6723 = vpack.c.bf16 %v6663, %v6663
        %v6724 = vpack.c.bf16 %v6664, %v6664
        %v6725 = vpack.c.bf16 %v6665, %v6665
        %v6726 = vpack.c.bf16 %v6666, %v6666
        %v6727 = vpack.c.bf16 %v6667, %v6667
        %v6728 = vpack.c.bf16 %v6668, %v6668
        %v6729 = vpack.c.bf16 %v6669, %v6669
        %v6730 = vpack.c.bf16 %v6670, %v6670
        %v6731 = vpack.c.bf16 %v6671, %v6671
        %v6732 = vpack.c.bf16 %v6672, %v6672
        %v6733 = vpack.c.bf16 %v6673, %v6673
        %v6734 = vpack.c.bf16 %v6674, %v6674
        %v6735 = vpack.c.bf16 %v6675, %v6675
        %v6736 = vpack.c.bf16 %v6676, %v6676
        %v6737 = vpack.c.bf16 %v6677, %v6677
        %v6738 = vpack.c.bf16 %v6678, %v6678
        %v6739 = vpack.c.bf16 %v6679, %v6679
        %v6740 = vpack.c.bf16 %v6680, %v6680
        %v6741 = vpack.c.bf16 %v6681, %v6681
        %v6742 = vpack.c.bf16 %v6682, %v6682
        %v6743 = vpack.c.bf16 %v6683, %v6683
        %v6744 = vpack.c.bf16 %v6684, %v6684
        %v6745 = vpack.c.bf16 %v6685, %v6685
        %v6746 = vpack.c.bf16 %v6686, %v6686
        %v6747 = vpack.c.bf16 %v6687, %v6687
        %v6748 = vpack.c.bf16 %v6688, %v6688
        %v6749 = vpack.c.bf16 %v6689, %v6689
        %v6750 = vpack.c.bf16 %v6690, %v6690
        %v6751 = vpack.c.bf16 %v6691, %v6691
        %v6752 = vpack.c.bf16 %v6692, %v6692
        %v6753 = vpack.c.bf16 %v6693, %v6693
        %v6754 = vpack.c.bf16 %v6694, %v6694
        %v6755 = vpack.c.bf16 %v6695, %v6695
        %v6756 = vpack.c.bf16 %v6696, %v6696
        %v6757 = vpack.c.bf16 %v6697, %v6697
        %v6758 = vpack.c.bf16 %v6698, %v6698
        %v6759 = vpack.c.bf16 %v6699, %v6699
        %v6760 = vpack.c.bf16 %v6700, %v6700
        %v6761 = vpack.c.bf16 %v6701, %v6701
        %v6762 = vpack.c.bf16 %v6702, %v6702
        %v6763 = vpack.c.bf16 %v6703, %v6703
        %v6764 = vunpack.c.l.bf16 %v6582
        %v6765 = vunpack.c.l.bf16 %v6583
        %v6766 = vunpack.c.l.bf16 %v6584
        %v6767 = vunpack.c.l.bf16 %v6585
        %v6768 = vunpack.c.l.bf16 %v6586
        %v6769 = vunpack.c.l.bf16 %v6587
        %v6770 = vunpack.c.l.bf16 %v6588
        %v6771 = vunpack.c.l.bf16 %v6589
        %v6772 = vunpack.c.l.bf16 %v6590
        %v6773 = vunpack.c.l.bf16 %v6591
        %v6774 = vunpack.c.l.bf16 %v6592
        %v6775 = vunpack.c.l.bf16 %v6593
        %v6776 = vunpack.c.l.bf16 %v6594
        %v6777 = vunpack.c.l.bf16 %v6595
        %v6778 = vunpack.c.l.bf16 %v6596
        %v6779 = vunpack.c.l.bf16 %v6597
        %v6780 = vunpack.c.l.bf16 %v6598
        %v6781 = vunpack.c.l.bf16 %v6599
        %v6782 = vunpack.c.l.bf16 %v6600
        %v6783 = vunpack.c.l.bf16 %v6601
        %v6784 = vunpack.c.l.bf16 %v6602
        %v6785 = vunpack.c.l.bf16 %v6603
        %v6786 = vunpack.c.l.bf16 %v6604
        %v6787 = vunpack.c.l.bf16 %v6605
        %v6788 = vunpack.c.l.bf16 %v6606
        %v6789 = vunpack.c.l.bf16 %v6607
        %v6790 = vunpack.c.l.bf16 %v6608
        %v6791 = vunpack.c.l.bf16 %v6609
        %v6792 = vunpack.c.l.bf16 %v6610
        %v6793 = vunpack.c.l.bf16 %v6611
        %v6794 = vunpack.c.l.bf16 %v6612
        %v6795 = vunpack.c.l.bf16 %v6613
        %v6796 = vunpack.c.l.bf16 %v6614
        %v6797 = vunpack.c.l.bf16 %v6615
        %v6798 = vunpack.c.l.bf16 %v6616
        %v6799 = vunpack.c.l.bf16 %v6617
        %v6800 = vunpack.c.l.bf16 %v6618
        %v6801 = vunpack.c.l.bf16 %v6619
        %v6802 = vunpack.c.l.bf16 %v6620
        %v6803 = vunpack.c.l.bf16 %v6621
        %v6804 = vunpack.c.l.bf16 %v6622
        %v6805 = vunpack.c.l.bf16 %v6623
        %v6806 = vunpack.c.l.bf16 %v6624
        %v6807 = vunpack.c.l.bf16 %v6625
        %v6808 = vunpack.c.l.bf16 %v6626
        %v6809 = vunpack.c.l.bf16 %v6627
        %v6810 = vunpack.c.l.bf16 %v6628
        %v6811 = vunpack.c.l.bf16 %v6629
        %v6812 = vunpack.c.l.bf16 %v6630
        %v6813 = vunpack.c.l.bf16 %v6631
        %v6814 = vunpack.c.l.bf16 %v6632
        %v6815 = vunpack.c.l.bf16 %v6633
        %v6816 = vunpack.c.l.bf16 %v6634
        %v6817 = vunpack.c.l.bf16 %v6635
        %v6818 = vunpack.c.l.bf16 %v6636
        %v6819 = vunpack.c.l.bf16 %v6637
        %v6820 = vunpack.c.l.bf16 %v6638
        %v6821 = vunpack.c.l.bf16 %v6639
        %v6822 = vunpack.c.l.bf16 %v6640
        %v6823 = vunpack.c.l.bf16 %v6641
        %v6824 = vunpack.c.l.bf16 %v6704
        %v6825 = vunpack.c.l.bf16 %v6705
        %v6826 = vunpack.c.l.bf16 %v6706
        %v6827 = vunpack.c.l.bf16 %v6707
        %v6828 = vunpack.c.l.bf16 %v6708
        %v6829 = vunpack.c.l.bf16 %v6709
        %v6830 = vunpack.c.l.bf16 %v6710
        %v6831 = vunpack.c.l.bf16 %v6711
        %v6832 = vunpack.c.l.bf16 %v6712
        %v6833 = vunpack.c.l.bf16 %v6713
        %v6834 = vunpack.c.l.bf16 %v6714
        %v6835 = vunpack.c.l.bf16 %v6715
        %v6836 = vunpack.c.l.bf16 %v6716
        %v6837 = vunpack.c.l.bf16 %v6717
        %v6838 = vunpack.c.l.bf16 %v6718
        %v6839 = vunpack.c.l.bf16 %v6719
        %v6840 = vunpack.c.l.bf16 %v6720
        %v6841 = vunpack.c.l.bf16 %v6721
        %v6842 = vunpack.c.l.bf16 %v6722
        %v6843 = vunpack.c.l.bf16 %v6723
        %v6844 = vunpack.c.l.bf16 %v6724
        %v6845 = vunpack.c.l.bf16 %v6725
        %v6846 = vunpack.c.l.bf16 %v6726
        %v6847 = vunpack.c.l.bf16 %v6727
        %v6848 = vunpack.c.l.bf16 %v6728
        %v6849 = vunpack.c.l.bf16 %v6729
        %v6850 = vunpack.c.l.bf16 %v6730
        %v6851 = vunpack.c.l.bf16 %v6731
        %v6852 = vunpack.c.l.bf16 %v6732
        %v6853 = vunpack.c.l.bf16 %v6733
        %v6854 = vunpack.c.l.bf16 %v6734
        %v6855 = vunpack.c.l.bf16 %v6735
        %v6856 = vunpack.c.l.bf16 %v6736
        %v6857 = vunpack.c.l.bf16 %v6737
        %v6858 = vunpack.c.l.bf16 %v6738
        %v6859 = vunpack.c.l.bf16 %v6739
        %v6860 = vunpack.c.l.bf16 %v6740
        %v6861 = vunpack.c.l.bf16 %v6741
        %v6862 = vunpack.c.l.bf16 %v6742
        %v6863 = vunpack.c.l.bf16 %v6743
        %v6864 = vunpack.c.l.bf16 %v6744
        %v6865 = vunpack.c.l.bf16 %v6745
        %v6866 = vunpack.c.l.bf16 %v6746
        %v6867 = vunpack.c.l.bf16 %v6747
        %v6868 = vunpack.c.l.bf16 %v6748
        %v6869 = vunpack.c.l.bf16 %v6749
        %v6870 = vunpack.c.l.bf16 %v6750
        %v6871 = vunpack.c.l.bf16 %v6751
        %v6872 = vunpack.c.l.bf16 %v6752
        %v6873 = vunpack.c.l.bf16 %v6753
        %v6874 = vunpack.c.l.bf16 %v6754
        %v6875 = vunpack.c.l.bf16 %v6755
        %v6876 = vunpack.c.l.bf16 %v6756
        %v6877 = vunpack.c.l.bf16 %v6757
        %v6878 = vunpack.c.l.bf16 %v6758
        %v6879 = vunpack.c.l.bf16 %v6759
        %v6880 = vunpack.c.l.bf16 %v6760
        %v6881 = vunpack.c.l.bf16 %v6761
        %v6882 = vunpack.c.l.bf16 %v6762
        %v6883 = vunpack.c.l.bf16 %v6763
        %v6884 = vadd.f32 %v6764, %v6824
        %v6885 = vadd.f32 %v6765, %v6825
        %v6886 = vadd.f32 %v6766, %v6826
        %v6887 = vadd.f32 %v6767, %v6827
        %v6888 = vadd.f32 %v6768, %v6828
        %v6889 = vadd.f32 %v6769, %v6829
        %v6890 = vadd.f32 %v6770, %v6830
        %v6891 = vadd.f32 %v6771, %v6831
        %v6892 = vadd.f32 %v6772, %v6832
        %v6893 = vadd.f32 %v6773, %v6833
        %v6894 = vadd.f32 %v6774, %v6834
        %v6895 = vadd.f32 %v6775, %v6835
        %v6896 = vadd.f32 %v6776, %v6836
        %v6897 = vadd.f32 %v6777, %v6837
        %v6898 = vadd.f32 %v6778, %v6838
        %v6899 = vadd.f32 %v6779, %v6839
        %v6900 = vadd.f32 %v6780, %v6840
        %v6901 = vadd.f32 %v6781, %v6841
        %v6902 = vadd.f32 %v6782, %v6842
        %v6903 = vadd.f32 %v6783, %v6843
        %v6904 = vadd.f32 %v6784, %v6844
        %v6905 = vadd.f32 %v6785, %v6845
        %v6906 = vadd.f32 %v6786, %v6846
        %v6907 = vadd.f32 %v6787, %v6847
        %v6908 = vadd.f32 %v6788, %v6848
        %v6909 = vadd.f32 %v6789, %v6849
        %v6910 = vadd.f32 %v6790, %v6850
        %v6911 = vadd.f32 %v6791, %v6851
        %v6912 = vadd.f32 %v6792, %v6852
        %v6913 = vadd.f32 %v6793, %v6853
        %v6914 = vadd.f32 %v6794, %v6854
        %v6915 = vadd.f32 %v6795, %v6855
        %v6916 = vadd.f32 %v6796, %v6856
        %v6917 = vadd.f32 %v6797, %v6857
        %v6918 = vadd.f32 %v6798, %v6858
        %v6919 = vadd.f32 %v6799, %v6859
        %v6920 = vadd.f32 %v6800, %v6860
        %v6921 = vadd.f32 %v6801, %v6861
        %v6922 = vadd.f32 %v6802, %v6862
        %v6923 = vadd.f32 %v6803, %v6863
        %v6924 = vadd.f32 %v6804, %v6864
        %v6925 = vadd.f32 %v6805, %v6865
        %v6926 = vadd.f32 %v6806, %v6866
        %v6927 = vadd.f32 %v6807, %v6867
        %v6928 = vadd.f32 %v6808, %v6868
        %v6929 = vadd.f32 %v6809, %v6869
        %v6930 = vadd.f32 %v6810, %v6870
        %v6931 = vadd.f32 %v6811, %v6871
        %v6932 = vadd.f32 %v6812, %v6872
        %v6933 = vadd.f32 %v6813, %v6873
        %v6934 = vadd.f32 %v6814, %v6874
        %v6935 = vadd.f32 %v6815, %v6875
        %v6936 = vadd.f32 %v6816, %v6876
        %v6937 = vadd.f32 %v6817, %v6877
        %v6938 = vadd.f32 %v6818, %v6878
        %v6939 = vadd.f32 %v6819, %v6879
        %v6940 = vadd.f32 %v6820, %v6880
        %v6941 = vadd.f32 %v6821, %v6881
        %v6942 = vadd.f32 %v6822, %v6882
        %v6943 = vadd.f32 %v6823, %v6883
        %v6944 = vpack.c.bf16 %v6884, %v6884
        %v6945 = vpack.c.bf16 %v6885, %v6885
        %v6946 = vpack.c.bf16 %v6886, %v6886
        %v6947 = vpack.c.bf16 %v6887, %v6887
        %v6948 = vpack.c.bf16 %v6888, %v6888
        %v6949 = vpack.c.bf16 %v6889, %v6889
        %v6950 = vpack.c.bf16 %v6890, %v6890
        %v6951 = vpack.c.bf16 %v6891, %v6891
        %v6952 = vpack.c.bf16 %v6892, %v6892
        %v6953 = vpack.c.bf16 %v6893, %v6893
        %v6954 = vpack.c.bf16 %v6894, %v6894
        %v6955 = vpack.c.bf16 %v6895, %v6895
        %v6956 = vpack.c.bf16 %v6896, %v6896
        %v6957 = vpack.c.bf16 %v6897, %v6897
        %v6958 = vpack.c.bf16 %v6898, %v6898
        %v6959 = vpack.c.bf16 %v6899, %v6899
        %v6960 = vpack.c.bf16 %v6900, %v6900
        %v6961 = vpack.c.bf16 %v6901, %v6901
        %v6962 = vpack.c.bf16 %v6902, %v6902
        %v6963 = vpack.c.bf16 %v6903, %v6903
        %v6964 = vpack.c.bf16 %v6904, %v6904
        %v6965 = vpack.c.bf16 %v6905, %v6905
        %v6966 = vpack.c.bf16 %v6906, %v6906
        %v6967 = vpack.c.bf16 %v6907, %v6907
        %v6968 = vpack.c.bf16 %v6908, %v6908
        %v6969 = vpack.c.bf16 %v6909, %v6909
        %v6970 = vpack.c.bf16 %v6910, %v6910
        %v6971 = vpack.c.bf16 %v6911, %v6911
        %v6972 = vpack.c.bf16 %v6912, %v6912
        %v6973 = vpack.c.bf16 %v6913, %v6913
        %v6974 = vpack.c.bf16 %v6914, %v6914
        %v6975 = vpack.c.bf16 %v6915, %v6915
        %v6976 = vpack.c.bf16 %v6916, %v6916
        %v6977 = vpack.c.bf16 %v6917, %v6917
        %v6978 = vpack.c.bf16 %v6918, %v6918
        %v6979 = vpack.c.bf16 %v6919, %v6919
        %v6980 = vpack.c.bf16 %v6920, %v6920
        %v6981 = vpack.c.bf16 %v6921, %v6921
        %v6982 = vpack.c.bf16 %v6922, %v6922
        %v6983 = vpack.c.bf16 %v6923, %v6923
        %v6984 = vpack.c.bf16 %v6924, %v6924
        %v6985 = vpack.c.bf16 %v6925, %v6925
        %v6986 = vpack.c.bf16 %v6926, %v6926
        %v6987 = vpack.c.bf16 %v6927, %v6927
        %v6988 = vpack.c.bf16 %v6928, %v6928
        %v6989 = vpack.c.bf16 %v6929, %v6929
        %v6990 = vpack.c.bf16 %v6930, %v6930
        %v6991 = vpack.c.bf16 %v6931, %v6931
        %v6992 = vpack.c.bf16 %v6932, %v6932
        %v6993 = vpack.c.bf16 %v6933, %v6933
        %v6994 = vpack.c.bf16 %v6934, %v6934
        %v6995 = vpack.c.bf16 %v6935, %v6935
        %v6996 = vpack.c.bf16 %v6936, %v6936
        %v6997 = vpack.c.bf16 %v6937, %v6937
        %v6998 = vpack.c.bf16 %v6938, %v6938
        %v6999 = vpack.c.bf16 %v6939, %v6939
        %v7000 = vpack.c.bf16 %v6940, %v6940
        %v7001 = vpack.c.bf16 %v6941, %v6941
        %v7002 = vpack.c.bf16 %v6942, %v6942
        %v7003 = vpack.c.bf16 %v6943, %v6943
        %7004 = vst [vmem:[#allocation2] sm:$0xf] %v6944
        %7005 = vst [vmem:[#allocation2 + $0x4] sm:$0xf] %v6945
        %7006 = vst [vmem:[#allocation2 + $0x8] sm:$0xf] %v6946
        %7007 = vst [vmem:[#allocation2 + $0xc] sm:$0xf] %v6947
        %7008 = vst [vmem:[#allocation2 + $0x10] sm:$0xf] %v6948
        %7009 = vst [vmem:[#allocation2 + $0x14] sm:$0xf] %v6949
        %7010 = vst [vmem:[#allocation2 + $0x18] sm:$0xf] %v6950
        %7011 = vst [vmem:[#allocation2 + $0x1c] sm:$0xf] %v6951
        %7012 = vst [vmem:[#allocation2 + $0x20] sm:$0xf] %v6952
        %7013 = vst [vmem:[#allocation2 + $0x24] sm:$0xf] %v6953
        %7014 = vst [vmem:[#allocation2 + $0x28] sm:$0xf] %v6954
        %7015 = vst [vmem:[#allocation2 + $0x2c] sm:$0xf] %v6955
        %7016 = vst [vmem:[#allocation2 + $0x30] sm:$0xf] %v6956
        %7017 = vst [vmem:[#allocation2 + $0x34] sm:$0xf] %v6957
        %7018 = vst [vmem:[#allocation2 + $0x38] sm:$0xf] %v6958
        %7019 = vst [vmem:[#allocation2 + $0x3c] sm:$0xf] %v6959
        %7020 = vst [vmem:[#allocation2 + $0x40] sm:$0xf] %v6960
        %7021 = vst [vmem:[#allocation2 + $0x44] sm:$0xf] %v6961
        %7022 = vst [vmem:[#allocation2 + $0x48] sm:$0xf] %v6962
        %7023 = vst [vmem:[#allocation2 + $0x4c] sm:$0xf] %v6963
        %7024 = vst [vmem:[#allocation2 + $0x50] sm:$0xf] %v6964
        %7025 = vst [vmem:[#allocation2 + $0x54] sm:$0xf] %v6965
        %7026 = vst [vmem:[#allocation2 + $0x58] sm:$0xf] %v6966
        %7027 = vst [vmem:[#allocation2 + $0x5c] sm:$0xf] %v6967
        %7028 = vst [vmem:[#allocation2 + $0x60] sm:$0xf] %v6968
        %7029 = vst [vmem:[#allocation2 + $0x64] sm:$0xf] %v6969
        %7030 = vst [vmem:[#allocation2 + $0x68] sm:$0xf] %v6970
        %7031 = vst [vmem:[#allocation2 + $0x6c] sm:$0xf] %v6971
        %7032 = vst [vmem:[#allocation2 + $0x70] sm:$0xf] %v6972
        %7033 = vst [vmem:[#allocation2 + $0x74] sm:$0xf] %v6973
        %7034 = vst [vmem:[#allocation2 + $0x78] sm:$0xf] %v6974
        %7035 = vst [vmem:[#allocation2 + $0x7c] sm:$0xf] %v6975
        %7036 = vst [vmem:[#allocation2 + $0x80] sm:$0xf] %v6976
        %7037 = vst [vmem:[#allocation2 + $0x84] sm:$0xf] %v6977
        %7038 = vst [vmem:[#allocation2 + $0x88] sm:$0xf] %v6978
        %7039 = vst [vmem:[#allocation2 + $0x8c] sm:$0xf] %v6979
        %7040 = vst [vmem:[#allocation2 + $0x90] sm:$0xf] %v6980
        %7041 = vst [vmem:[#allocation2 + $0x94] sm:$0xf] %v6981
        %7042 = vst [vmem:[#allocation2 + $0x98] sm:$0xf] %v6982
        %7043 = vst [vmem:[#allocation2 + $0x9c] sm:$0xf] %v6983
        %7044 = vst [vmem:[#allocation2 + $0xa0] sm:$0xf] %v6984
        %7045 = vst [vmem:[#allocation2 + $0xa4] sm:$0xf] %v6985
        %7046 = vst [vmem:[#allocation2 + $0xa8] sm:$0xf] %v6986
        %7047 = vst [vmem:[#allocation2 + $0xac] sm:$0xf] %v6987
        %7048 = vst [vmem:[#allocation2 + $0xb0] sm:$0xf] %v6988
        %7049 = vst [vmem:[#allocation2 + $0xb4] sm:$0xf] %v6989
        %7050 = vst [vmem:[#allocation2 + $0xb8] sm:$0xf] %v6990
        %7051 = vst [vmem:[#allocation2 + $0xbc] sm:$0xf] %v6991
        %7052 = vst [vmem:[#allocation2 + $0xc0] sm:$0xf] %v6992
        %7053 = vst [vmem:[#allocation2 + $0xc4] sm:$0xf] %v6993
        %7054 = vst [vmem:[#allocation2 + $0xc8] sm:$0xf] %v6994
        %7055 = vst [vmem:[#allocation2 + $0xcc] sm:$0xf] %v6995
        %7056 = vst [vmem:[#allocation2 + $0xd0] sm:$0xf] %v6996
        %7057 = vst [vmem:[#allocation2 + $0xd4] sm:$0xf] %v6997
        %7058 = vst [vmem:[#allocation2 + $0xd8] sm:$0xf] %v6998
        %7059 = vst [vmem:[#allocation2 + $0xdc] sm:$0xf] %v6999
        %7060 = vst [vmem:[#allocation2 + $0xe0] sm:$0xf] %v7000
        %7061 = vst [vmem:[#allocation2 + $0xe4] sm:$0xf] %v7001
        %7062 = vst [vmem:[#allocation2 + $0xe8] sm:$0xf] %v7002
        %7063 = vst [vmem:[#allocation2 + $0xec] sm:$0xf] %v7003
        %v7064 = vld [vmem:[#allocation2] sm:$0xf]
        %v7065 = vld [vmem:[#allocation2 + $0x4] sm:$0xf]
        %v7066 = vld [vmem:[#allocation2 + $0x8] sm:$0xf]
        %v7067 = vld [vmem:[#allocation2 + $0xc] sm:$0xf]
        %v7068 = vld [vmem:[#allocation2 + $0x10] sm:$0xf]
        %v7069 = vld [vmem:[#allocation2 + $0x14] sm:$0xf]
        %v7070 = vld [vmem:[#allocation2 + $0x18] sm:$0xf]
        %v7071 = vld [vmem:[#allocation2 + $0x1c] sm:$0xf]
        %v7072 = vld [vmem:[#allocation2 + $0x20] sm:$0xf]
        %v7073 = vld [vmem:[#allocation2 + $0x24] sm:$0xf]
        %v7074 = vld [vmem:[#allocation2 + $0x28] sm:$0xf]
        %v7075 = vld [vmem:[#allocation2 + $0x2c] sm:$0xf]
        %v7076 = vld [vmem:[#allocation2 + $0x30] sm:$0xf]
        %v7077 = vld [vmem:[#allocation2 + $0x34] sm:$0xf]
        %v7078 = vld [vmem:[#allocation2 + $0x38] sm:$0xf]
        %v7079 = vld [vmem:[#allocation2 + $0x3c] sm:$0xf]
        %v7080 = vld [vmem:[#allocation2 + $0x40] sm:$0xf]
        %v7081 = vld [vmem:[#allocation2 + $0x44] sm:$0xf]
        %v7082 = vld [vmem:[#allocation2 + $0x48] sm:$0xf]
        %v7083 = vld [vmem:[#allocation2 + $0x4c] sm:$0xf]
        %v7084 = vld [vmem:[#allocation2 + $0x50] sm:$0xf]
        %v7085 = vld [vmem:[#allocation2 + $0x54] sm:$0xf]
        %v7086 = vld [vmem:[#allocation2 + $0x58] sm:$0xf]
        %v7087 = vld [vmem:[#allocation2 + $0x5c] sm:$0xf]
        %v7088 = vld [vmem:[#allocation2 + $0x60] sm:$0xf]
        %v7089 = vld [vmem:[#allocation2 + $0x64] sm:$0xf]
        %v7090 = vld [vmem:[#allocation2 + $0x68] sm:$0xf]
        %v7091 = vld [vmem:[#allocation2 + $0x6c] sm:$0xf]
        %v7092 = vld [vmem:[#allocation2 + $0x70] sm:$0xf]
        %v7093 = vld [vmem:[#allocation2 + $0x74] sm:$0xf]
        %v7094 = vld [vmem:[#allocation2 + $0x78] sm:$0xf]
        %v7095 = vld [vmem:[#allocation2 + $0x7c] sm:$0xf]
        %v7096 = vld [vmem:[#allocation2 + $0x80] sm:$0xf]
        %v7097 = vld [vmem:[#allocation2 + $0x84] sm:$0xf]
        %v7098 = vld [vmem:[#allocation2 + $0x88] sm:$0xf]
        %v7099 = vld [vmem:[#allocation2 + $0x8c] sm:$0xf]
        %v7100 = vld [vmem:[#allocation2 + $0x90] sm:$0xf]
        %v7101 = vld [vmem:[#allocation2 + $0x94] sm:$0xf]
        %v7102 = vld [vmem:[#allocation2 + $0x98] sm:$0xf]
        %v7103 = vld [vmem:[#allocation2 + $0x9c] sm:$0xf]
        %v7104 = vld [vmem:[#allocation2 + $0xa0] sm:$0xf]
        %v7105 = vld [vmem:[#allocation2 + $0xa4] sm:$0xf]
        %v7106 = vld [vmem:[#allocation2 + $0xa8] sm:$0xf]
        %v7107 = vld [vmem:[#allocation2 + $0xac] sm:$0xf]
        %v7108 = vld [vmem:[#allocation2 + $0xb0] sm:$0xf]
        %v7109 = vld [vmem:[#allocation2 + $0xb4] sm:$0xf]
        %v7110 = vld [vmem:[#allocation2 + $0xb8] sm:$0xf]
        %v7111 = vld [vmem:[#allocation2 + $0xbc] sm:$0xf]
        %v7112 = vld [vmem:[#allocation2 + $0xc0] sm:$0xf]
        %v7113 = vld [vmem:[#allocation2 + $0xc4] sm:$0xf]
        %v7114 = vld [vmem:[#allocation2 + $0xc8] sm:$0xf]
        %v7115 = vld [vmem:[#allocation2 + $0xcc] sm:$0xf]
        %v7116 = vld [vmem:[#allocation2 + $0xd0] sm:$0xf]
        %v7117 = vld [vmem:[#allocation2 + $0xd4] sm:$0xf]
        %v7118 = vld [vmem:[#allocation2 + $0xd8] sm:$0xf]
        %v7119 = vld [vmem:[#allocation2 + $0xdc] sm:$0xf]
        %v7120 = vld [vmem:[#allocation2 + $0xe0] sm:$0xf]
        %v7121 = vld [vmem:[#allocation2 + $0xe4] sm:$0xf]
        %v7122 = vld [vmem:[#allocation2 + $0xe8] sm:$0xf]
        %v7123 = vld [vmem:[#allocation2 + $0xec] sm:$0xf]
        %v7124 = vld [vmem:[#allocation2 + $0xf0] sm:$0xf]
        %v7125 = vld [vmem:[#allocation2 + $0xf4] sm:$0xf]
        %v7126 = vld [vmem:[#allocation2 + $0xf8] sm:$0xf]
        %v7127 = vld [vmem:[#allocation2 + $0xfc] sm:$0xf]
        %v7128 = vld [vmem:[#allocation11] sm:$0xf]
        %v7129 = vld [vmem:[#allocation11 + $0x4] sm:$0xf]
        %v7130 = vld [vmem:[#allocation11 + $0x8] sm:$0xf]
        %v7131 = vld [vmem:[#allocation11 + $0xc] sm:$0xf]
        %v7132 = vld [vmem:[#allocation11 + $0x10] sm:$0xf]
        %v7133 = vld [vmem:[#allocation11 + $0x14] sm:$0xf]
        %v7134 = vld [vmem:[#allocation11 + $0x18] sm:$0xf]
        %v7135 = vld [vmem:[#allocation11 + $0x1c] sm:$0xf]
        %v7136 = vld [vmem:[#allocation11 + $0x20] sm:$0xf]
        %v7137 = vld [vmem:[#allocation11 + $0x24] sm:$0xf]
        %v7138 = vld [vmem:[#allocation11 + $0x28] sm:$0xf]
        %v7139 = vld [vmem:[#allocation11 + $0x2c] sm:$0xf]
        %v7140 = vld [vmem:[#allocation11 + $0x30] sm:$0xf]
        %v7141 = vld [vmem:[#allocation11 + $0x34] sm:$0xf]
        %v7142 = vld [vmem:[#allocation11 + $0x38] sm:$0xf]
        %v7143 = vld [vmem:[#allocation11 + $0x3c] sm:$0xf]
        %v7144 = vld [vmem:[%s8] sm:$0x1]
        %v7146 = vperm.slane %v7144, 0
        %v7212 = vunpack.c.l.b16 %v7064
        %v7213 = vunpack.c.l.b16 %v7065
        %v7214 = vunpack.c.l.b16 %v7066
        %v7215 = vunpack.c.l.b16 %v7067
        %v7216 = vunpack.c.l.b16 %v7068
        %v7217 = vunpack.c.l.b16 %v7069
        %v7218 = vunpack.c.l.b16 %v7070
        %v7219 = vunpack.c.l.b16 %v7071
        %v7220 = vunpack.c.l.b16 %v7072
        %v7221 = vunpack.c.l.b16 %v7073
        %v7222 = vunpack.c.l.b16 %v7074
        %v7223 = vunpack.c.l.b16 %v7075
        %v7224 = vunpack.c.l.b16 %v7076
        %v7225 = vunpack.c.l.b16 %v7077
        %v7226 = vunpack.c.l.b16 %v7078
        %v7227 = vunpack.c.l.b16 %v7079
        %v7228 = vunpack.c.l.b16 %v7080
        %v7229 = vunpack.c.l.b16 %v7081
        %v7230 = vunpack.c.l.b16 %v7082
        %v7231 = vunpack.c.l.b16 %v7083
        %v7232 = vunpack.c.l.b16 %v7084
        %v7233 = vunpack.c.l.b16 %v7085
        %v7234 = vunpack.c.l.b16 %v7086
        %v7235 = vunpack.c.l.b16 %v7087
        %v7236 = vunpack.c.l.b16 %v7088
        %v7237 = vunpack.c.l.b16 %v7089
        %v7238 = vunpack.c.l.b16 %v7090
        %v7239 = vunpack.c.l.b16 %v7091
        %v7240 = vunpack.c.l.b16 %v7092
        %v7241 = vunpack.c.l.b16 %v7093
        %v7242 = vunpack.c.l.b16 %v7094
        %v7243 = vunpack.c.l.b16 %v7095
        %v7244 = vunpack.c.l.b16 %v7096
        %v7245 = vunpack.c.l.b16 %v7097
        %v7246 = vunpack.c.l.b16 %v7098
        %v7247 = vunpack.c.l.b16 %v7099
        %v7248 = vunpack.c.l.b16 %v7100
        %v7249 = vunpack.c.l.b16 %v7101
        %v7250 = vunpack.c.l.b16 %v7102
        %v7251 = vunpack.c.l.b16 %v7103
        %v7252 = vunpack.c.l.b16 %v7104
        %v7253 = vunpack.c.l.b16 %v7105
        %v7254 = vunpack.c.l.b16 %v7106
        %v7255 = vunpack.c.l.b16 %v7107
        %v7256 = vunpack.c.l.b16 %v7108
        %v7257 = vunpack.c.l.b16 %v7109
        %v7258 = vunpack.c.l.b16 %v7110
        %v7259 = vunpack.c.l.b16 %v7111
        %v7260 = vunpack.c.l.b16 %v7112
        %v7261 = vunpack.c.l.b16 %v7113
        %v7262 = vunpack.c.l.b16 %v7114
        %v7263 = vunpack.c.l.b16 %v7115
        %v7264 = vunpack.c.l.b16 %v7116
        %v7265 = vunpack.c.l.b16 %v7117
        %v7266 = vunpack.c.l.b16 %v7118
        %v7267 = vunpack.c.l.b16 %v7119
        %v7268 = vunpack.c.l.b16 %v7120
        %v7269 = vunpack.c.l.b16 %v7121
        %v7270 = vunpack.c.l.b16 %v7122
        %v7271 = vunpack.c.l.b16 %v7123
        %v7272 = vunpack.c.l.b16 %v7124
        %v7273 = vunpack.c.l.b16 %v7125
        %v7274 = vunpack.c.l.b16 %v7126
        %v7275 = vunpack.c.l.b16 %v7127
        %v7276 = vpack.c.b16 %v7213, %v7212
        %v7277 = vpack.c.b16 %v7215, %v7214
        %v7278 = vpack.c.b16 %v7217, %v7216
        %v7279 = vpack.c.b16 %v7219, %v7218
        %v7280 = vpack.c.b16 %v7221, %v7220
        %v7281 = vpack.c.b16 %v7223, %v7222
        %v7282 = vpack.c.b16 %v7225, %v7224
        %v7283 = vpack.c.b16 %v7227, %v7226
        %v7284 = vpack.c.b16 %v7229, %v7228
        %v7285 = vpack.c.b16 %v7231, %v7230
        %v7286 = vpack.c.b16 %v7233, %v7232
        %v7287 = vpack.c.b16 %v7235, %v7234
        %v7288 = vpack.c.b16 %v7237, %v7236
        %v7289 = vpack.c.b16 %v7239, %v7238
        %v7290 = vpack.c.b16 %v7241, %v7240
        %v7291 = vpack.c.b16 %v7243, %v7242
        %v7292 = vpack.c.b16 %v7245, %v7244
        %v7293 = vpack.c.b16 %v7247, %v7246
        %v7294 = vpack.c.b16 %v7249, %v7248
        %v7295 = vpack.c.b16 %v7251, %v7250
        %v7296 = vpack.c.b16 %v7253, %v7252
        %v7297 = vpack.c.b16 %v7255, %v7254
        %v7298 = vpack.c.b16 %v7257, %v7256
        %v7299 = vpack.c.b16 %v7259, %v7258
        %v7300 = vpack.c.b16 %v7261, %v7260
        %v7301 = vpack.c.b16 %v7263, %v7262
        %v7302 = vpack.c.b16 %v7265, %v7264
        %v7303 = vpack.c.b16 %v7267, %v7266
        %v7304 = vpack.c.b16 %v7269, %v7268
        %v7305 = vpack.c.b16 %v7271, %v7270
        %v7306 = vpack.c.b16 %v7273, %v7272
        %v7307 = vpack.c.b16 %v7275, %v7274
        %v7356 = vunpack.c.l.b16 %v7128
        %v7357 = vunpack.c.l.b16 %v7129
        %v7358 = vunpack.c.l.b16 %v7130
        %v7359 = vunpack.c.l.b16 %v7131
        %v7360 = vunpack.c.l.b16 %v7132
        %v7361 = vunpack.c.l.b16 %v7133
        %v7362 = vunpack.c.l.b16 %v7134
        %v7363 = vunpack.c.l.b16 %v7135
        %v7364 = vunpack.c.l.b16 %v7136
        %v7365 = vunpack.c.l.b16 %v7137
        %v7366 = vunpack.c.l.b16 %v7138
        %v7367 = vunpack.c.l.b16 %v7139
        %v7368 = vunpack.c.l.b16 %v7140
        %v7369 = vunpack.c.l.b16 %v7141
        %v7370 = vunpack.c.l.b16 %v7142
        %v7371 = vunpack.c.l.b16 %v7143
        %v7372 = vpack.c.b16 %v7357, %v7356
        %v7373 = vpack.c.b16 %v7359, %v7358
        %v7374 = vpack.c.b16 %v7361, %v7360
        %v7375 = vpack.c.b16 %v7363, %v7362
        %v7376 = vpack.c.b16 %v7365, %v7364
        %v7377 = vpack.c.b16 %v7367, %v7366
        %v7378 = vpack.c.b16 %v7369, %v7368
        %v7379 = vpack.c.b16 %v7371, %v7370
        %7388 = vmatpush.bf16.msra.mxu0 %v7379
        %7389 = vmatpush.bf16.msra.mxu0 %v7378
        %7390 = vmatpush.bf16.msra.mxu0 %v7377
        %7391 = vmatpush.bf16.msra.mxu0 %v7376
        %7392 = vmatpush.bf16.msra.mxu0 %v7375
        %7393 = vmatpush.bf16.msra.mxu0 %v7374
        %7394 = vmatpush.bf16.msra.mxu0 %v7373
        %7395 = vmatpush.bf16.msra.mxu0 %v7372
        %7396 = vmatmul.bf16.gmra.mxu0 %v7276
        %v7397 = vpop.f32.mrf.mxu0
        %v7398 = vadd.f32 %v7146, %v7397
        %v7399 = vpop.f32.mrf.mxu0
        %v7400 = vadd.f32 %v7146, %v7399
        %7401 = vmatmul.bf16.gmra.mxu0 %v7277
        %v7402 = vpop.f32.mrf.mxu0
        %v7403 = vadd.f32 %v7146, %v7402
        %v7404 = vpop.f32.mrf.mxu0
        %v7405 = vadd.f32 %v7146, %v7404
        %7406 = vmatmul.bf16.gmra.mxu0 %v7278
        %v7407 = vpop.f32.mrf.mxu0
        %v7408 = vadd.f32 %v7146, %v7407
        %v7409 = vpop.f32.mrf.mxu0
        %v7410 = vadd.f32 %v7146, %v7409
        %7411 = vmatmul.bf16.gmra.mxu0 %v7279
        %v7412 = vpop.f32.mrf.mxu0
        %v7413 = vadd.f32 %v7146, %v7412
        %v7414 = vpop.f32.mrf.mxu0
        %v7415 = vadd.f32 %v7146, %v7414
        %7416 = vmatmul.bf16.gmra.mxu0 %v7280
        %v7417 = vpop.f32.mrf.mxu0
        %v7418 = vadd.f32 %v7146, %v7417
        %v7419 = vpop.f32.mrf.mxu0
        %v7420 = vadd.f32 %v7146, %v7419
        %7421 = vmatmul.bf16.gmra.mxu0 %v7281
        %v7422 = vpop.f32.mrf.mxu0
        %v7423 = vadd.f32 %v7146, %v7422
        %v7424 = vpop.f32.mrf.mxu0
        %v7425 = vadd.f32 %v7146, %v7424
        %7426 = vmatmul.bf16.gmra.mxu0 %v7282
        %v7427 = vpop.f32.mrf.mxu0
        %v7428 = vadd.f32 %v7146, %v7427
        %v7429 = vpop.f32.mrf.mxu0
        %v7430 = vadd.f32 %v7146, %v7429
        %7431 = vmatmul.bf16.gmra.mxu0 %v7283
        %v7432 = vpop.f32.mrf.mxu0
        %v7433 = vadd.f32 %v7146, %v7432
        %v7434 = vpop.f32.mrf.mxu0
        %v7435 = vadd.f32 %v7146, %v7434
        %7436 = vmatmul.bf16.gmra.mxu0 %v7284
        %v7437 = vpop.f32.mrf.mxu0
        %v7438 = vadd.f32 %v7146, %v7437
        %v7439 = vpop.f32.mrf.mxu0
        %v7440 = vadd.f32 %v7146, %v7439
        %7441 = vmatmul.bf16.gmra.mxu0 %v7285
        %v7442 = vpop.f32.mrf.mxu0
        %v7443 = vadd.f32 %v7146, %v7442
        %v7444 = vpop.f32.mrf.mxu0
        %v7445 = vadd.f32 %v7146, %v7444
        %7446 = vmatmul.bf16.gmra.mxu0 %v7286
        %v7447 = vpop.f32.mrf.mxu0
        %v7448 = vadd.f32 %v7146, %v7447
        %v7449 = vpop.f32.mrf.mxu0
        %v7450 = vadd.f32 %v7146, %v7449
        %7451 = vmatmul.bf16.gmra.mxu0 %v7287
        %v7452 = vpop.f32.mrf.mxu0
        %v7453 = vadd.f32 %v7146, %v7452
        %v7454 = vpop.f32.mrf.mxu0
        %v7455 = vadd.f32 %v7146, %v7454
        %7456 = vmatmul.bf16.gmra.mxu0 %v7288
        %v7457 = vpop.f32.mrf.mxu0
        %v7458 = vadd.f32 %v7146, %v7457
        %v7459 = vpop.f32.mrf.mxu0
        %v7460 = vadd.f32 %v7146, %v7459
        %7461 = vmatmul.bf16.gmra.mxu0 %v7289
        %v7462 = vpop.f32.mrf.mxu0
        %v7463 = vadd.f32 %v7146, %v7462
        %v7464 = vpop.f32.mrf.mxu0
        %v7465 = vadd.f32 %v7146, %v7464
        %7466 = vmatmul.bf16.gmra.mxu0 %v7290
        %v7467 = vpop.f32.mrf.mxu0
        %v7468 = vadd.f32 %v7146, %v7467
        %v7469 = vpop.f32.mrf.mxu0
        %v7470 = vadd.f32 %v7146, %v7469
        %7471 = vmatmul.bf16.gmra.mxu0 %v7291
        %v7472 = vpop.f32.mrf.mxu0
        %v7473 = vadd.f32 %v7146, %v7472
        %v7474 = vpop.f32.mrf.mxu0
        %v7475 = vadd.f32 %v7146, %v7474
        %7476 = vmatmul.bf16.gmra.mxu0 %v7292
        %v7477 = vpop.f32.mrf.mxu0
        %v7478 = vadd.f32 %v7146, %v7477
        %v7479 = vpop.f32.mrf.mxu0
        %v7480 = vadd.f32 %v7146, %v7479
        %7481 = vmatmul.bf16.gmra.mxu0 %v7293
        %v7482 = vpop.f32.mrf.mxu0
        %v7483 = vadd.f32 %v7146, %v7482
        %v7484 = vpop.f32.mrf.mxu0
        %v7485 = vadd.f32 %v7146, %v7484
        %7486 = vmatmul.bf16.gmra.mxu0 %v7294
        %v7487 = vpop.f32.mrf.mxu0
        %v7488 = vadd.f32 %v7146, %v7487
        %v7489 = vpop.f32.mrf.mxu0
        %v7490 = vadd.f32 %v7146, %v7489
        %7491 = vmatmul.bf16.gmra.mxu0 %v7295
        %v7492 = vpop.f32.mrf.mxu0
        %v7493 = vadd.f32 %v7146, %v7492
        %v7494 = vpop.f32.mrf.mxu0
        %v7495 = vadd.f32 %v7146, %v7494
        %7496 = vmatmul.bf16.gmra.mxu0 %v7296
        %v7497 = vpop.f32.mrf.mxu0
        %v7498 = vadd.f32 %v7146, %v7497
        %v7499 = vpop.f32.mrf.mxu0
        %v7500 = vadd.f32 %v7146, %v7499
        %7501 = vmatmul.bf16.gmra.mxu0 %v7297
        %v7502 = vpop.f32.mrf.mxu0
        %v7503 = vadd.f32 %v7146, %v7502
        %v7504 = vpop.f32.mrf.mxu0
        %v7505 = vadd.f32 %v7146, %v7504
        %7506 = vmatmul.bf16.gmra.mxu0 %v7298
        %v7507 = vpop.f32.mrf.mxu0
        %v7508 = vadd.f32 %v7146, %v7507
        %v7509 = vpop.f32.mrf.mxu0
        %v7510 = vadd.f32 %v7146, %v7509
        %7511 = vmatmul.bf16.gmra.mxu0 %v7299
        %v7512 = vpop.f32.mrf.mxu0
        %v7513 = vadd.f32 %v7146, %v7512
        %v7514 = vpop.f32.mrf.mxu0
        %v7515 = vadd.f32 %v7146, %v7514
        %7516 = vmatmul.bf16.gmra.mxu0 %v7300
        %v7517 = vpop.f32.mrf.mxu0
        %v7518 = vadd.f32 %v7146, %v7517
        %v7519 = vpop.f32.mrf.mxu0
        %v7520 = vadd.f32 %v7146, %v7519
        %7521 = vmatmul.bf16.gmra.mxu0 %v7301
        %v7522 = vpop.f32.mrf.mxu0
        %v7523 = vadd.f32 %v7146, %v7522
        %v7524 = vpop.f32.mrf.mxu0
        %v7525 = vadd.f32 %v7146, %v7524
        %7526 = vmatmul.bf16.gmra.mxu0 %v7302
        %v7527 = vpop.f32.mrf.mxu0
        %v7528 = vadd.f32 %v7146, %v7527
        %v7529 = vpop.f32.mrf.mxu0
        %v7530 = vadd.f32 %v7146, %v7529
        %7531 = vmatmul.bf16.gmra.mxu0 %v7303
        %v7532 = vpop.f32.mrf.mxu0
        %v7533 = vadd.f32 %v7146, %v7532
        %v7534 = vpop.f32.mrf.mxu0
        %v7535 = vadd.f32 %v7146, %v7534
        %7536 = vmatmul.bf16.gmra.mxu0 %v7304
        %v7537 = vpop.f32.mrf.mxu0
        %v7538 = vadd.f32 %v7146, %v7537
        %v7539 = vpop.f32.mrf.mxu0
        %v7540 = vadd.f32 %v7146, %v7539
        %7541 = vmatmul.bf16.gmra.mxu0 %v7305
        %v7542 = vpop.f32.mrf.mxu0
        %v7543 = vadd.f32 %v7146, %v7542
        %v7544 = vpop.f32.mrf.mxu0
        %v7545 = vadd.f32 %v7146, %v7544
        %7546 = vmatmul.bf16.gmra.mxu0 %v7306
        %v7547 = vpop.f32.mrf.mxu0
        %v7548 = vadd.f32 %v7146, %v7547
        %v7549 = vpop.f32.mrf.mxu0
        %v7550 = vadd.f32 %v7146, %v7549
        %7551 = vmatmul.bf16.gmra.mxu0 %v7307
        %v7552 = vpop.f32.mrf.mxu0
        %v7553 = vadd.f32 %v7146, %v7552
        %v7554 = vpop.f32.mrf.mxu0
        %v7555 = vadd.f32 %v7146, %v7554
        %7556 = vdwg.mxu0
        %v7557 = vmax.f32 %v7398, 0.0
        %v7558 = vmax.f32 %v7400, 0.0
        %v7559 = vmax.f32 %v7403, 0.0
        %v7560 = vmax.f32 %v7405, 0.0
        %v7561 = vmax.f32 %v7408, 0.0
        %v7562 = vmax.f32 %v7410, 0.0
        %v7563 = vmax.f32 %v7413, 0.0
        %v7564 = vmax.f32 %v7415, 0.0
        %v7565 = vmax.f32 %v7418, 0.0
        %v7566 = vmax.f32 %v7420, 0.0
        %v7567 = vmax.f32 %v7423, 0.0
        %v7568 = vmax.f32 %v7425, 0.0
        %v7569 = vmax.f32 %v7428, 0.0
        %v7570 = vmax.f32 %v7430, 0.0
        %v7571 = vmax.f32 %v7433, 0.0
        %v7572 = vmax.f32 %v7435, 0.0
        %v7573 = vmax.f32 %v7438, 0.0
        %v7574 = vmax.f32 %v7440, 0.0
        %v7575 = vmax.f32 %v7443, 0.0
        %v7576 = vmax.f32 %v7445, 0.0
        %v7577 = vmax.f32 %v7448, 0.0
        %v7578 = vmax.f32 %v7450, 0.0
        %v7579 = vmax.f32 %v7453, 0.0
        %v7580 = vmax.f32 %v7455, 0.0
        %v7581 = vmax.f32 %v7458, 0.0
        %v7582 = vmax.f32 %v7460, 0.0
        %v7583 = vmax.f32 %v7463, 0.0
        %v7584 = vmax.f32 %v7465, 0.0
        %v7585 = vmax.f32 %v7468, 0.0
        %v7586 = vmax.f32 %v7470, 0.0
        %v7587 = vmax.f32 %v7473, 0.0
        %v7588 = vmax.f32 %v7475, 0.0
        %v7589 = vmax.f32 %v7478, 0.0
        %v7590 = vmax.f32 %v7480, 0.0
        %v7591 = vmax.f32 %v7483, 0.0
        %v7592 = vmax.f32 %v7485, 0.0
        %v7593 = vmax.f32 %v7488, 0.0
        %v7594 = vmax.f32 %v7490, 0.0
        %v7595 = vmax.f32 %v7493, 0.0
        %v7596 = vmax.f32 %v7495, 0.0
        %v7597 = vmax.f32 %v7498, 0.0
        %v7598 = vmax.f32 %v7500, 0.0
        %v7599 = vmax.f32 %v7503, 0.0
        %v7600 = vmax.f32 %v7505, 0.0
        %v7601 = vmax.f32 %v7508, 0.0
        %v7602 = vmax.f32 %v7510, 0.0
        %v7603 = vmax.f32 %v7513, 0.0
        %v7604 = vmax.f32 %v7515, 0.0
        %v7605 = vmax.f32 %v7518, 0.0
        %v7606 = vmax.f32 %v7520, 0.0
        %v7607 = vmax.f32 %v7523, 0.0
        %v7608 = vmax.f32 %v7525, 0.0
        %v7609 = vmax.f32 %v7528, 0.0
        %v7610 = vmax.f32 %v7530, 0.0
        %v7611 = vmax.f32 %v7533, 0.0
        %v7612 = vmax.f32 %v7535, 0.0
        %v7613 = vmax.f32 %v7538, 0.0
        %v7614 = vmax.f32 %v7540, 0.0
        %v7615 = vmax.f32 %v7543, 0.0
        %v7616 = vmax.f32 %v7545, 0.0
        %v7617 = vmax.f32 %v7548, 0.0
        %v7618 = vmax.f32 %v7550, 0.0
        %v7619 = vmax.f32 %v7553, 0.0
        %v7620 = vmax.f32 %v7555, 0.0
        %v7621 = vld [vmem:[%s384] sm:$0xff]
        %v7622 = vld [vmem:[%s384 + $0x8] sm:$0xff]
        %v7623 = vld [vmem:[%s384 + $0x10] sm:$0xff]
        %v7624 = vld [vmem:[%s384 + $0x18] sm:$0xff]
        %v7625 = vld [vmem:[%s384 + $0x20] sm:$0xff]
        %v7626 = vld [vmem:[%s384 + $0x28] sm:$0xff]
        %v7627 = vld [vmem:[%s384 + $0x30] sm:$0xff]
        %v7628 = vld [vmem:[%s384 + $0x38] sm:$0xff]
        %v7629 = vld [vmem:[%s384 + $0x40] sm:$0xff]
        %v7630 = vld [vmem:[%s384 + $0x48] sm:$0xff]
        %v7631 = vld [vmem:[%s384 + $0x50] sm:$0xff]
        %v7632 = vld [vmem:[%s384 + $0x58] sm:$0xff]
        %v7633 = vld [vmem:[%s384 + $0x60] sm:$0xff]
        %v7634 = vld [vmem:[%s384 + $0x68] sm:$0xff]
        %v7635 = vld [vmem:[%s384 + $0x70] sm:$0xff]
        %v7636 = vld [vmem:[%s384 + $0x78] sm:$0xff]
        %v7637 = vld [vmem:[%s384 + $0x80] sm:$0xff]
        %v7638 = vld [vmem:[%s384 + $0x88] sm:$0xff]
        %v7639 = vld [vmem:[%s384 + $0x90] sm:$0xff]
        %v7640 = vld [vmem:[%s384 + $0x98] sm:$0xff]
        %v7641 = vld [vmem:[%s384 + $0xa0] sm:$0xff]
        %v7642 = vld [vmem:[%s384 + $0xa8] sm:$0xff]
        %v7643 = vld [vmem:[%s384 + $0xb0] sm:$0xff]
        %v7644 = vld [vmem:[%s384 + $0xb8] sm:$0xff]
        %v7645 = vld [vmem:[%s384 + $0xc0] sm:$0xff]
        %v7646 = vld [vmem:[%s384 + $0xc8] sm:$0xff]
        %v7647 = vld [vmem:[%s384 + $0xd0] sm:$0xff]
        %v7648 = vld [vmem:[%s384 + $0xd8] sm:$0xff]
        %v7649 = vld [vmem:[%s384 + $0xe0] sm:$0xff]
        %v7650 = vld [vmem:[%s384 + $0xe8] sm:$0xff]
        %v7651 = vld [vmem:[%s384 + $0xf0] sm:$0xff]
        %v7652 = vld [vmem:[%s384 + $0xf8] sm:$0xff]
        %v7653 = vld [vmem:[%s384 + $0x100] sm:$0xff]
        %v7654 = vld [vmem:[%s384 + $0x108] sm:$0xff]
        %v7655 = vld [vmem:[%s384 + $0x110] sm:$0xff]
        %v7656 = vld [vmem:[%s384 + $0x118] sm:$0xff]
        %v7657 = vld [vmem:[%s384 + $0x120] sm:$0xff]
        %v7658 = vld [vmem:[%s384 + $0x128] sm:$0xff]
        %v7659 = vld [vmem:[%s384 + $0x130] sm:$0xff]
        %v7660 = vld [vmem:[%s384 + $0x138] sm:$0xff]
        %v7661 = vld [vmem:[%s384 + $0x140] sm:$0xff]
        %v7662 = vld [vmem:[%s384 + $0x148] sm:$0xff]
        %v7663 = vld [vmem:[%s384 + $0x150] sm:$0xff]
        %v7664 = vld [vmem:[%s384 + $0x158] sm:$0xff]
        %v7665 = vld [vmem:[%s384 + $0x160] sm:$0xff]
        %v7666 = vld [vmem:[%s384 + $0x168] sm:$0xff]
        %v7667 = vld [vmem:[%s384 + $0x170] sm:$0xff]
        %v7668 = vld [vmem:[%s384 + $0x178] sm:$0xff]
        %v7669 = vld [vmem:[%s384 + $0x180] sm:$0xff]
        %v7670 = vld [vmem:[%s384 + $0x188] sm:$0xff]
        %v7671 = vld [vmem:[%s384 + $0x190] sm:$0xff]
        %v7672 = vld [vmem:[%s384 + $0x198] sm:$0xff]
        %v7673 = vld [vmem:[%s384 + $0x1a0] sm:$0xff]
        %v7674 = vld [vmem:[%s384 + $0x1a8] sm:$0xff]
        %v7675 = vld [vmem:[%s384 + $0x1b0] sm:$0xff]
        %v7676 = vld [vmem:[%s384 + $0x1b8] sm:$0xff]
        %v7677 = vld [vmem:[%s384 + $0x1c0] sm:$0xff]
        %v7678 = vld [vmem:[%s384 + $0x1c8] sm:$0xff]
        %v7679 = vld [vmem:[%s384 + $0x1d0] sm:$0xff]
        %v7680 = vld [vmem:[%s384 + $0x1d8] sm:$0xff]
        %v7681 = vld [vmem:[%s384 + $0x1e0] sm:$0xff]
        %v7682 = vld [vmem:[%s384 + $0x1e8] sm:$0xff]
        %v7683 = vld [vmem:[%s384 + $0x1f0] sm:$0xff]
        %v7684 = vld [vmem:[%s384 + $0x1f8] sm:$0xff]
        %v7685 = vadd.f32 %v7621, %v7557
        %v7686 = vadd.f32 %v7622, %v7558
        %v7687 = vadd.f32 %v7623, %v7559
        %v7688 = vadd.f32 %v7624, %v7560
        %v7689 = vadd.f32 %v7625, %v7561
        %v7690 = vadd.f32 %v7626, %v7562
        %v7691 = vadd.f32 %v7627, %v7563
        %v7692 = vadd.f32 %v7628, %v7564
        %v7693 = vadd.f32 %v7629, %v7565
        %v7694 = vadd.f32 %v7630, %v7566
        %v7695 = vadd.f32 %v7631, %v7567
        %v7696 = vadd.f32 %v7632, %v7568
        %v7697 = vadd.f32 %v7633, %v7569
        %v7698 = vadd.f32 %v7634, %v7570
        %v7699 = vadd.f32 %v7635, %v7571
        %v7700 = vadd.f32 %v7636, %v7572
        %v7701 = vadd.f32 %v7637, %v7573
        %v7702 = vadd.f32 %v7638, %v7574
        %v7703 = vadd.f32 %v7639, %v7575
        %v7704 = vadd.f32 %v7640, %v7576
        %v7705 = vadd.f32 %v7641, %v7577
        %v7706 = vadd.f32 %v7642, %v7578
        %v7707 = vadd.f32 %v7643, %v7579
        %v7708 = vadd.f32 %v7644, %v7580
        %v7709 = vadd.f32 %v7645, %v7581
        %v7710 = vadd.f32 %v7646, %v7582
        %v7711 = vadd.f32 %v7647, %v7583
        %v7712 = vadd.f32 %v7648, %v7584
        %v7713 = vadd.f32 %v7649, %v7585
        %v7714 = vadd.f32 %v7650, %v7586
        %v7715 = vadd.f32 %v7651, %v7587
        %v7716 = vadd.f32 %v7652, %v7588
        %v7717 = vadd.f32 %v7653, %v7589
        %v7718 = vadd.f32 %v7654, %v7590
        %v7719 = vadd.f32 %v7655, %v7591
        %v7720 = vadd.f32 %v7656, %v7592
        %v7721 = vadd.f32 %v7657, %v7593
        %v7722 = vadd.f32 %v7658, %v7594
        %v7723 = vadd.f32 %v7659, %v7595
        %v7724 = vadd.f32 %v7660, %v7596
        %v7725 = vadd.f32 %v7661, %v7597
        %v7726 = vadd.f32 %v7662, %v7598
        %v7727 = vadd.f32 %v7663, %v7599
        %v7728 = vadd.f32 %v7664, %v7600
        %v7729 = vadd.f32 %v7665, %v7601
        %v7730 = vadd.f32 %v7666, %v7602
        %v7731 = vadd.f32 %v7667, %v7603
        %v7732 = vadd.f32 %v7668, %v7604
        %v7733 = vadd.f32 %v7669, %v7605
        %v7734 = vadd.f32 %v7670, %v7606
        %v7735 = vadd.f32 %v7671, %v7607
        %v7736 = vadd.f32 %v7672, %v7608
        %v7737 = vadd.f32 %v7673, %v7609
        %v7738 = vadd.f32 %v7674, %v7610
        %v7739 = vadd.f32 %v7675, %v7611
        %v7740 = vadd.f32 %v7676, %v7612
        %v7741 = vadd.f32 %v7677, %v7613
        %v7742 = vadd.f32 %v7678, %v7614
        %v7743 = vadd.f32 %v7679, %v7615
        %v7744 = vadd.f32 %v7680, %v7616
        %v7745 = vadd.f32 %v7681, %v7617
        %v7746 = vadd.f32 %v7682, %v7618
        %v7747 = vadd.f32 %v7683, %v7619
        %v7748 = vadd.f32 %v7684, %v7620
        %7749 = vst [vmem:[%s439] sm:$0xff] %v7685
        %7750 = vst [vmem:[%s439 + $0x8] sm:$0xff] %v7686
        %7751 = vst [vmem:[%s439 + $0x10] sm:$0xff] %v7687
        %7752 = vst [vmem:[%s439 + $0x18] sm:$0xff] %v7688
        %7753 = vst [vmem:[%s439 + $0x20] sm:$0xff] %v7689
        %7754 = vst [vmem:[%s439 + $0x28] sm:$0xff] %v7690
        %7755 = vst [vmem:[%s439 + $0x30] sm:$0xff] %v7691
        %7756 = vst [vmem:[%s439 + $0x38] sm:$0xff] %v7692
        %7757 = vst [vmem:[%s439 + $0x40] sm:$0xff] %v7693
        %7758 = vst [vmem:[%s439 + $0x48] sm:$0xff] %v7694
        %7759 = vst [vmem:[%s439 + $0x50] sm:$0xff] %v7695
        %7760 = vst [vmem:[%s439 + $0x58] sm:$0xff] %v7696
        %7761 = vst [vmem:[%s439 + $0x60] sm:$0xff] %v7697
        %7762 = vst [vmem:[%s439 + $0x68] sm:$0xff] %v7698
        %7763 = vst [vmem:[%s439 + $0x70] sm:$0xff] %v7699
        %7764 = vst [vmem:[%s439 + $0x78] sm:$0xff] %v7700
        %7765 = vst [vmem:[%s439 + $0x80] sm:$0xff] %v7701
        %7766 = vst [vmem:[%s439 + $0x88] sm:$0xff] %v7702
        %7767 = vst [vmem:[%s439 + $0x90] sm:$0xff] %v7703
        %7768 = vst [vmem:[%s439 + $0x98] sm:$0xff] %v7704
        %7769 = vst [vmem:[%s439 + $0xa0] sm:$0xff] %v7705
        %7770 = vst [vmem:[%s439 + $0xa8] sm:$0xff] %v7706
        %7771 = vst [vmem:[%s439 + $0xb0] sm:$0xff] %v7707
        %7772 = vst [vmem:[%s439 + $0xb8] sm:$0xff] %v7708
        %7773 = vst [vmem:[%s439 + $0xc0] sm:$0xff] %v7709
        %7774 = vst [vmem:[%s439 + $0xc8] sm:$0xff] %v7710
        %7775 = vst [vmem:[%s439 + $0xd0] sm:$0xff] %v7711
        %7776 = vst [vmem:[%s439 + $0xd8] sm:$0xff] %v7712
        %7777 = vst [vmem:[%s439 + $0xe0] sm:$0xff] %v7713
        %7778 = vst [vmem:[%s439 + $0xe8] sm:$0xff] %v7714
        %7779 = vst [vmem:[%s439 + $0xf0] sm:$0xff] %v7715
        %7780 = vst [vmem:[%s439 + $0xf8] sm:$0xff] %v7716
        %7781 = vst [vmem:[%s439 + $0x100] sm:$0xff] %v7717
        %7782 = vst [vmem:[%s439 + $0x108] sm:$0xff] %v7718
        %7783 = vst [vmem:[%s439 + $0x110] sm:$0xff] %v7719
        %7784 = vst [vmem:[%s439 + $0x118] sm:$0xff] %v7720
        %7785 = vst [vmem:[%s439 + $0x120] sm:$0xff] %v7721
        %7786 = vst [vmem:[%s439 + $0x128] sm:$0xff] %v7722
        %7787 = vst [vmem:[%s439 + $0x130] sm:$0xff] %v7723
        %7788 = vst [vmem:[%s439 + $0x138] sm:$0xff] %v7724
        %7789 = vst [vmem:[%s439 + $0x140] sm:$0xff] %v7725
        %7790 = vst [vmem:[%s439 + $0x148] sm:$0xff] %v7726
        %7791 = vst [vmem:[%s439 + $0x150] sm:$0xff] %v7727
        %7792 = vst [vmem:[%s439 + $0x158] sm:$0xff] %v7728
        %7793 = vst [vmem:[%s439 + $0x160] sm:$0xff] %v7729
        %7794 = vst [vmem:[%s439 + $0x168] sm:$0xff] %v7730
        %7795 = vst [vmem:[%s439 + $0x170] sm:$0xff] %v7731
        %7796 = vst [vmem:[%s439 + $0x178] sm:$0xff] %v7732
        %7797 = vst [vmem:[%s439 + $0x180] sm:$0xff] %v7733
        %7798 = vst [vmem:[%s439 + $0x188] sm:$0xff] %v7734
        %7799 = vst [vmem:[%s439 + $0x190] sm:$0xff] %v7735
        %7800 = vst [vmem:[%s439 + $0x198] sm:$0xff] %v7736
        %7801 = vst [vmem:[%s439 + $0x1a0] sm:$0xff] %v7737
        %7802 = vst [vmem:[%s439 + $0x1a8] sm:$0xff] %v7738
        %7803 = vst [vmem:[%s439 + $0x1b0] sm:$0xff] %v7739
        %7804 = vst [vmem:[%s439 + $0x1b8] sm:$0xff] %v7740
        %7805 = vst [vmem:[%s439 + $0x1c0] sm:$0xff] %v7741
        %7806 = vst [vmem:[%s439 + $0x1c8] sm:$0xff] %v7742
        %7807 = vst [vmem:[%s439 + $0x1d0] sm:$0xff] %v7743
        %7808 = vst [vmem:[%s439 + $0x1d8] sm:$0xff] %v7744
        %7809 = vst [vmem:[%s439 + $0x1e0] sm:$0xff] %v7745
        %7810 = vst [vmem:[%s439 + $0x1e8] sm:$0xff] %v7746
        %7811 = vst [vmem:[%s439 + $0x1f0] sm:$0xff] %v7747
        %7812 = vst [vmem:[%s439 + $0x1f8] sm:$0xff] %v7748
        %s7813 = sand.u32 %s230, 1
        %s7814 = scalar_lea.sflag [#allocation5], %s7813
        %s7815 = sand.u32 %s230, 1
        %s7816 = smul.addr %s7815, 512
        %s7817 = scalar_lea.vmem [#allocation12], %s7816
        // Predicated region
        $region77: #{enc_sep_conv_layer.1} parent=55 // pred_check
          %p7818 = pneg %p240
        $region78: #{enc_sep_conv_layer.1} parent=55 // pred_check_branch
          %7820 = sbr.rel (%p7818) target = $region80
        $region79: #{enc_sep_conv_layer.1} parent=55 // pred_region
          #allocation16 [shape = 'u32[6]{0}', space=smem, size = 0x18, scoped, tag = 'DMA stride descriptor']
          %s7821 = smul.u32 2, %s28
          %7823 = vsyncadd %s7814, 0
          %s7824 = smul.addr %s7821, 8
          %s7825 = scalar_lea.hbm %s9, %s7824
          %s7827 = sshll.u32 1, 14
          %s7828 = sxor.u32 4294967295, %s7827
          %s7831 = sshll.u32 7, 18
          %s7832 = sxor.u32 4294967295, %s7831
          %s7833 = sand.u32 0, %s7832
          %s7835 = sor.u32 %s7833, 0
          %s7836 = sshll.u32 %s7817, 4
          %s7837 = int_to_ptr.vmem [resolvable:$true] %s7836
          %s7838 = sshll.u32 %s7825, 4
          %s7839 = int_to_ptr.hbm [resolvable:$true] %s7838
          %7845 = sst [smem:[#allocation16]] 256
          %s7846 = scalar_lea.smem [#allocation16], 1
          %7847 = sst [smem:[%s7846]] 512
          %s7848 = scalar_lea.smem [#allocation16], 2
          %7849 = sst [smem:[%s7848]] 2
          %s7850 = scalar_lea.smem [#allocation16], 3
          %7851 = sst [smem:[%s7850]] 128
          %s7852 = scalar_lea.smem [#allocation16], 4
          %7853 = sst [smem:[%s7852]] 128
          %s7854 = scalar_lea.smem [#allocation16], 5
          %7855 = sst [smem:[%s7854]] 8
          %7857 = dma.general %s7837, 8192, %s7839, %s7814, [#allocation15], [#allocation16], %s7835, 0
        $region80: #{enc_sep_conv_layer.1} parent=55 // pred_fallthru
          _
      $region56: #{enc_sep_conv_layer.1} parent=5 // pred_fallthru
        _
      %p7858 = scmp.le.s32.totalorder 2, %s23
      // Predicated region
      $region81: #{enc_sep_conv_layer.1} parent=5 // pred_check
        %p7859 = pneg %p7858
      $region82: #{enc_sep_conv_layer.1} parent=5 // pred_check_branch
        %7861 = sbr.rel (%p7859) target = $region84
      $region83: #{enc_sep_conv_layer.1} parent=5 // pred_region
        %s7862 = ssub.s32 %s23, 2
        // Predicated region
        $region85: #{enc_sep_conv_layer.1} parent=83 // pred_check
          %p7863 = pneg %p246
        $region86: #{enc_sep_conv_layer.1} parent=83 // pred_check_branch
          %7865 = sbr.rel (%p7863) target = $region88
        $region87: #{enc_sep_conv_layer.1} parent=83 // pred_region
          %s7866 = sand.u32 %s231, 1
          %s7867 = scalar_lea.sflag [#allocation5], %s7866
          %s7868 = sand.u32 %s231, 1
          %s7869 = smul.addr %s7868, 512
          %s7870 = scalar_lea.vmem [#allocation12], %s7869
          %7872 = dma.done %s7867, 8192
        $region88: #{enc_sep_conv_layer.1} parent=83 // pred_fallthru
          _
      $region84: #{enc_sep_conv_layer.1} parent=5 // pred_fallthru
        _
    $region6: #{enc_sep_conv_layer.1} parent=1 // loop_footer
      %s27 = sadd.s32 1, %s23
    $region7: #{enc_sep_conv_layer.1} parent=1 // loop_footer_branch
      %22 = sbr.rel target = $region3
    $region8: #{enc_sep_conv_layer.1} parent=1 // loop_exit
      _
    %7873 = vsyncpa [#allocation4], 1
    %s7874 = scalar_lea.sflag [#allocation4], 1
    %7875 = vsyncpa %s7874, 1
    %7876 = vsyncpa [#allocation7], 1
    %7877 = vsyncpa [#allocation10], 1
    %7878 = vsyncpa [#allocation5], 1
    %s7879 = scalar_lea.sflag [#allocation5], 1
    %7880 = vsyncpa %s7879, 1

</llo_original>
